<compile_context>
chip_gen: v7x
topology: tpu7x:2x2x1
jax: 0.10.0
libtpu: 0.0.40
codegen_flags: <defaults>
</compile_context>

<pallas_src>
import functools

import jax
import jax.numpy as jnp
from jax.experimental import pallas as pl
from jax.experimental.pallas import tpu as pltpu

_BN_EPS = 1e-5
_LANE = 128                      # channel dims padded up to a multiple of this
_VMEM_LIMIT = 32 * 1024 * 1024   # explicit scoped-VMEM limit (safe on v5e/v6e/v7x)


def _round_up(x, m):
    return ((x + m - 1) // m) * m


def _row_tile(m, cap=1024):
    """Largest multiple-of-8 divisor of m that is <= cap and leaves >= 2 tiles when possible."""
    limit = min(cap, m)
    if m >= 16:
        limit = min(limit, m // 2)     # keep both v7x TensorCores fed
    cand = (limit // 8) * 8
    while cand >= 8:
        if m % cand == 0:
            return cand
        cand -= 8
    return m


def _bn_scale_shift(stats, gamma, beta, m_total):
    # Training-mode BatchNorm: biased batch stats from (sum, sum_sq) over M rows.
    mean = stats[0:1] * (1.0 / m_total)
    var = stats[1:2] * (1.0 / m_total) - mean * mean
    var = jnp.maximum(var, 0.0)                     # guard tiny negative from cancellation
    scale = gamma * jax.lax.rsqrt(var + _BN_EPS)
    shift = beta - mean * scale
    return scale, shift


# --------------------------------------------------------------------------------------
# Pass 1: 7x7 stem (tap-packed K matmul, +bias), downsample 1x1 (+bias), conv1 1x1,
#         bn1 partial stats.  Grid: (M // TM,) over pixel rows; input is lane-dense im2col.
# --------------------------------------------------------------------------------------
def _stem_kernel(xc_ref, w7_ref, b7_ref, wd_ref, bd_ref, w1_ref,
                 id_ref, t1_ref, s1_ref):
    y0 = jnp.dot(xc_ref[...], w7_ref[...],
                 preferred_element_type=jnp.float32) + b7_ref[...]
    y0b = y0.astype(jnp.bfloat16)

    # Bottleneck downsample branch: Conv2d 1x1 with bias (as in the spec), no BN.
    ident = jnp.dot(y0b, wd_ref[...],
                    preferred_element_type=jnp.float32) + bd_ref[...]
    id_ref[...] = ident.astype(id_ref.dtype)

    # Bottleneck conv1 (1x1, no bias) -> pre-BN activation + (sum, sum_sq) partials.
    t1p = jnp.dot(y0b, w1_ref[...], preferred_element_type=jnp.float32)
    t1b = t1p.astype(jnp.bfloat16)
    t1_ref[...] = t1b
    t1f = t1b.astype(jnp.float32)       # stats match the bf16 value the next pass normalizes
    s1_ref[0] = jnp.concatenate(
        [jnp.sum(t1f, axis=0, keepdims=True),
         jnp.sum(t1f * t1f, axis=0, keepdims=True)], axis=0)


# --------------------------------------------------------------------------------------
# Pass 2: bn1 + relu (global batch stats), 3x3 conv2 via a bf16 VMEM halo scratch,
#         bn2 partial stats.  Grid: (N,) (one image per step; spatial conv needs the halo).
# --------------------------------------------------------------------------------------
def _mid_kernel(t1p_ref, s1_ref, g1_ref, be1_ref, w3_ref,
                t2_ref, s2_ref, halo_ref, *, H, W, m_total):
    scale, shift = _bn_scale_shift(s1_ref[...], g1_ref[...], be1_ref[...], m_total)
    t1 = jnp.maximum(t1p_ref[0].astype(jnp.float32) * scale + shift, 0.0)   # (H, W, Cw_p)
    cw_p = t1.shape[-1]

    # bf16 halo built in a VMEM scratch: zero border + interior store (no f32 concatenates).
    halo_ref[...] = jnp.zeros_like(halo_ref)
    halo_ref[1:H + 1, 1:W + 1, :] = t1.astype(jnp.bfloat16)

    acc = jnp.zeros((H * W, cw_p), jnp.float32)
    for t in range(9):
        ky, kx = t // 3, t % 3
        xt = halo_ref[ky:ky + H, kx:kx + W, :].reshape(H * W, cw_p)
        acc = acc + jnp.dot(xt, w3_ref[t], preferred_element_type=jnp.float32)

    t2b = acc.astype(jnp.bfloat16)
    t2_ref[0] = t2b
    t2f = t2b.astype(jnp.float32)
    s2_ref[0] = jnp.concatenate(
        [jnp.sum(t2f, axis=0, keepdims=True),
         jnp.sum(t2f * t2f, axis=0, keepdims=True)], axis=0)


# --------------------------------------------------------------------------------------
# Pass 3: bn2 + relu, conv3 1x1 (kept in-register), bn3 partial stats ONLY.
# Grid: (M // TM,).  No t3_pre HBM round trip.
# --------------------------------------------------------------------------------------
def _conv3_stats_kernel(t2p_ref, s2_ref, g2_ref, be2_ref, w4_ref, s3_ref, *, m_total):
    scale, shift = _bn_scale_shift(s2_ref[...], g2_ref[...], be2_ref[...], m_total)
    t2 = jnp.maximum(t2p_ref[...].astype(jnp.float32) * scale + shift, 0.0)
    t3p = jnp.dot(t2.astype(jnp.bfloat16), w4_ref[...],
                  preferred_element_type=jnp.float32)
    s3_ref[0] = jnp.concatenate(
        [jnp.sum(t3p, axis=0, keepdims=True),
         jnp.sum(t3p * t3p, axis=0, keepdims=True)], axis=0)


# --------------------------------------------------------------------------------------
# Pass 4: recompute bn2+relu+conv3, apply bn3, residual add (downsample identity), relu.
# Grid: (M // TM,).
# --------------------------------------------------------------------------------------
def _final_kernel(t2p_ref, s2_ref, g2_ref, be2_ref, w4_ref,
                  s3_ref, g3_ref, be3_ref, id_ref, o_ref, *, m_total):
    scale2, shift2 = _bn_scale_shift(s2_ref[...], g2_ref[...], be2_ref[...], m_total)
    t2 = jnp.maximum(t2p_ref[...].astype(jnp.float32) * scale2 + shift2, 0.0)
    t3p = jnp.dot(t2.astype(jnp.bfloat16), w4_ref[...],
                  preferred_element_type=jnp.float32)
    scale3, shift3 = _bn_scale_shift(s3_ref[...], g3_ref[...], be3_ref[...], m_total)
    o_ref[...] = jnp.maximum(t3p * scale3 + shift3 + id_ref[...].astype(jnp.float32), 0.0)


# --------------------------------------------------------------------------------------
# Parameter init (PyTorch layouts) and packing (lane-padded, bf16 matmul weights).
# --------------------------------------------------------------------------------------
def init_params(key, cin, cmid, cout):
    assert cout % 4 == 0
    cw = cout // 4
    ks = jax.random.split(key, 13)

    def u(k, shape, scale=0.1):
        return jax.random.uniform(k, shape, jnp.float32, -scale, scale)

    return dict(
        # input_layer: Conv2d(cin, cmid, 7, stride=1, padding=3, bias=True)
        w7=u(ks[0], (cmid, cin, 7, 7)), b7=u(ks[1], (cmid,)),
        # Bottleneck conv1 (1x1, bias=False) + bn1
        w1=u(ks[2], (cw, cmid, 1, 1)), g1=1.0 + u(ks[3], (cw,)), be1=u(ks[4], (cw,)),
        # Bottleneck conv2 (3x3, bias=False) + bn2
        w3=u(ks[5], (cw, cw, 3, 3)), g2=1.0 + u(ks[6], (cw,)), be2=u(ks[7], (cw,)),
        # Bottleneck conv3 (1x1, bias=False) + bn3
        w4=u(ks[8], (cout, cw, 1, 1)), g3=1.0 + u(ks[9], (cout,)), be3=u(ks[10], (cout,)),
        # downsample: Conv2d(cmid, cout, 1, bias=True default), no BN (matches the spec)
        wd=u(ks[11], (cout, cmid, 1, 1)), bd=u(ks[12], (cout,)),
    )


def _pack_params(params, cin, cmid, cw, cout, k7p, cmid_p, cw_p, cout_p):
    bf16, f32 = jnp.bfloat16, jnp.float32

    def pad2(m2, rows, cols):
        return jnp.pad(m2, ((0, rows - m2.shape[0]), (0, cols - m2.shape[1])))

    def pad_vec(v, cp):
        return jnp.pad(v.reshape(1, -1), ((0, 0), (0, cp - v.shape[-1]))).astype(f32)

    k7 = 49 * cin
    # stem 7x7: [cmid, cin, 7, 7] -> tap-major/cin-minor K rows, padded to k7p (mult of 256).
    w7 = jnp.transpose(params["w7"], (2, 3, 1, 0)).reshape(k7, cmid)
    w7 = pad2(w7, k7p, cmid_p).astype(bf16)
    # 1x1 convs: [out, in, 1, 1] -> [in_p, out_p]
    wd = pad2(params["wd"].reshape(cout, cmid).T, cmid_p, cout_p).astype(bf16)
    w1 = pad2(params["w1"].reshape(cw, cmid).T, cmid_p, cw_p).astype(bf16)
    w4 = pad2(params["w4"].reshape(cout, cw).T, cw_p, cout_p).astype(bf16)
    # conv2 3x3: [cw, cw, 3, 3] -> per-tap [9, cw_p, cw_p]
    w3 = jnp.transpose(params["w3"], (2, 3, 1, 0)).reshape(9, cw, cw)
    w3 = jnp.pad(w3, ((0, 0), (0, cw_p - cw), (0, cw_p - cw))).astype(bf16)

    # NOTE: gamma/beta/bias are ZERO-padded so the padded channels stay exactly 0.
    return dict(
        w7=w7, b7=pad_vec(params["b7"], cmid_p),
        wd=wd, bd=pad_vec(params["bd"], cout_p),
        w1=w1, w3=w3, w4=w4,
        g1=pad_vec(params["g1"], cw_p), be1=pad_vec(params["be1"], cw_p),
        g2=pad_vec(params["g2"], cw_p), be2=pad_vec(params["be2"], cw_p),
        g3=pad_vec(params["g3"], cout_p), be3=pad_vec(params["be3"], cout_p),
    )


# --------------------------------------------------------------------------------------
# Public wrapper: NCHW in, NCHW out (matches the PyTorch module).
# --------------------------------------------------------------------------------------
def coarse_feature_extractor(x_nchw, params, *, row_tile=1024):
    n, cin, h, w = x_nchw.shape
    cmid = params["w7"].shape[0]
    cw = params["w1"].shape[0]
    cout = params["w4"].shape[0]
    assert params["w7"].shape[1] == cin and params["w4"].shape[1] == cw
    assert cout % 4 == 0

    k7 = 49 * cin
    k7p = _round_up(k7, 256)          # fill the 256-deep MXU on v6e/v7x (also /128 for v5e)
    cmid_p = _round_up(cmid, _LANE)
    cw_p = _round_up(cw, _LANE)
    cout_p = _round_up(cout, _LANE)
    hw = h * w
    m = n * hw
    tm = _row_tile(m, cap=row_tile)
    n_tiles = m // tm

    p = _pack_params(params, cin, cmid, cw, cout, k7p, cmid_p, cw_p, cout_p)
    cparams = pltpu.CompilerParams(dimension_semantics=("parallel",),
                                   vmem_limit_bytes=_VMEM_LIMIT)

    # Wrapper-side im2col of the raw input (cin is tiny): lane-dense K for the stem matmul.
    x_nhwc = jnp.transpose(x_nchw, (0, 2, 3, 1)).astype(jnp.float32)
    x_pad = jnp.pad(x_nhwc, ((0, 0), (3, 3), (3, 3), (0, 0)))
    taps = [x_pad[:, ky:ky + h, kx:kx + w, :] for ky in range(7) for kx in range(7)]
    x_col = jnp.concatenate(taps, axis=-1).reshape(m, k7)
    x_col = jnp.pad(x_col, ((0, 0), (0, k7p - k7))).astype(jnp.bfloat16)

    # ---------------- pass 1: stem + downsample + conv1 + bn1 partials ----------------
    identity, t1_pre, s1_part = pl.pallas_call(
        _stem_kernel,
        grid=(n_tiles,),
        in_specs=[
            pl.BlockSpec((tm, k7p), lambda i: (i, 0)),
            pl.BlockSpec((k7p, cmid_p), lambda i: (0, 0)),
            pl.BlockSpec((1, cmid_p), lambda i: (0, 0)),
            pl.BlockSpec((cmid_p, cout_p), lambda i: (0, 0)),
            pl.BlockSpec((1, cout_p), lambda i: (0, 0)),
            pl.BlockSpec((cmid_p, cw_p), lambda i: (0, 0)),
        ],
        out_specs=(
            pl.BlockSpec((tm, cout_p), lambda i: (i, 0)),
            pl.BlockSpec((tm, cw_p), lambda i: (i, 0)),
            pl.BlockSpec((1, 2, cw_p), lambda i: (i, 0, 0)),
        ),
        out_shape=(
            jax.ShapeDtypeStruct((m, cout_p), jnp.bfloat16),
            jax.ShapeDtypeStruct((m, cw_p), jnp.bfloat16),
            jax.ShapeDtypeStruct((n_tiles, 2, cw_p), jnp.float32),
        ),
        compiler_params=cparams,
    )(x_col, p["w7"], p["b7"], p["wd"], p["bd"], p["w1"])
    s1 = jnp.sum(s1_part, axis=0)             # tiny XLA reduce of per-tile BN partials

    # ---------------- pass 2: bn1+relu -> 3x3 conv2 + bn2 partials ----------------
    t1_nhwc = t1_pre.reshape(n, h, w, cw_p)   # metadata-only reshape
    t2_pre, s2_part = pl.pallas_call(
        functools.partial(_mid_kernel, H=h, W=w, m_total=m),
        grid=(n,),
        in_specs=[
            pl.BlockSpec((1, h, w, cw_p), lambda i: (i, 0, 0, 0)),
            pl.BlockSpec((2, cw_p), lambda i: (0, 0)),
            pl.BlockSpec((1, cw_p), lambda i: (0, 0)),
            pl.BlockSpec((1, cw_p), lambda i: (0, 0)),
            pl.BlockSpec((9, cw_p, cw_p), lambda i: (0, 0, 0)),
        ],
        out_specs=(
            pl.BlockSpec((1, hw, cw_p), lambda i: (i, 0, 0)),
            pl.BlockSpec((1, 2, cw_p), lambda i: (i, 0, 0)),
        ),
        out_shape=(
            jax.ShapeDtypeStruct((n, hw, cw_p), jnp.bfloat16),
            jax.ShapeDtypeStruct((n, 2, cw_p), jnp.float32),
        ),
        scratch_shapes=[pltpu.VMEM((h + 2, w + 2, cw_p), jnp.bfloat16)],
        compiler_params=cparams,
    )(t1_nhwc, s1, p["g1"], p["be1"], p["w3"])
    s2 = jnp.sum(s2_part, axis=0)

    # ---------------- pass 3: bn3 partial stats only (conv3 stays in-register) ----------------
    t2_flat = t2_pre.reshape(m, cw_p)
    s3_part = pl.pallas_call(
        functools.partial(_conv3_stats_kernel, m_total=m),
        grid=(n_tiles,),
        in_specs=[
            pl.BlockSpec((tm, cw_p), lambda i: (i, 0)),
            pl.BlockSpec((2, cw_p), lambda i: (0, 0)),
            pl.BlockSpec((1, cw_p), lambda i: (0, 0)),
            pl.BlockSpec((1, cw_p), lambda i: (0, 0)),
            pl.BlockSpec((cw_p, cout_p), lambda i: (0, 0)),
        ],
        out_specs=pl.BlockSpec((1, 2, cout_p), lambda i: (i, 0, 0)),
        out_shape=jax.ShapeDtypeStruct((n_tiles, 2, cout_p), jnp.float32),
        compiler_params=cparams,
    )(t2_flat, s2, p["g2"], p["be2"], p["w4"])
    s3 = jnp.sum(s3_part, axis=0)

    # ---------------- pass 4: recompute conv3, bn3 + residual + relu ----------------
    out = pl.pallas_call(
        functools.partial(_final_kernel, m_total=m),
        grid=(n_tiles,),
        in_specs=[
            pl.BlockSpec((tm, cw_p), lambda i: (i, 0)),
            pl.BlockSpec((2, cw_p), lambda i: (0, 0)),
            pl.BlockSpec((1, cw_p), lambda i: (0, 0)),
            pl.BlockSpec((1, cw_p), lambda i: (0, 0)),
            pl.BlockSpec((cw_p, cout_p), lambda i: (0, 0)),
            pl.BlockSpec((2, cout_p), lambda i: (0, 0)),
            pl.BlockSpec((1, cout_p), lambda i: (0, 0)),
            pl.BlockSpec((1, cout_p), lambda i: (0, 0)),
            pl.BlockSpec((tm, cout_p), lambda i: (i, 0)),
        ],
        out_specs=pl.BlockSpec((tm, cout_p), lambda i: (i, 0)),
        out_shape=jax.ShapeDtypeStruct((m, cout_p), jnp.float32),
        compiler_params=cparams,
    )(t2_flat, s2, p["g2"], p["be2"], p["w4"], s3, p["g3"], p["be3"], identity)

    # Slice off the lane padding and return NCHW like the PyTorch module.
    out = out[:, :cout].reshape(n, h, w, cout)
    return jnp.transpose(out, (0, 3, 1, 2))


if __name__ == "__main__":
    key = jax.random.PRNGKey(0)
    k_x, k_p = jax.random.split(key)

    N, CIN, H, W = 2, 4, 16, 16
    CMID, COUT = 8, 16

    x = jax.random.normal(k_x, (N, CIN, H, W), dtype=jnp.float32)
    params = init_params(k_p, CIN, CMID, COUT)

    fwd = jax.jit(coarse_feature_extractor)
    out = jax.block_until_ready(fwd(x, params))

    assert out.shape == (N, COUT, H, W), out.shape
    assert bool(jnp.all(jnp.isfinite(out)))
    assert bool(jnp.all(out >= 0.0))   # final ReLU
    print("KERNEL_OK")
</pallas_src>

<mosaic_0001>
module attributes {stable_mosaic.version = 11 : i64} {
  func.func @_stem_kernel(%arg0: i32, %arg1: memref<256x256xbf16, #tpu.memory_space<vmem>>, %arg2: memref<256x128xbf16, #tpu.memory_space<vmem>>, %arg3: memref<1x128xf32, #tpu.memory_space<vmem>>, %arg4: memref<128x128xbf16, #tpu.memory_space<vmem>>, %arg5: memref<1x128xf32, #tpu.memory_space<vmem>>, %arg6: memref<128x128xbf16, #tpu.memory_space<vmem>>, %arg7: memref<256x128xbf16, #tpu.memory_space<vmem>>, %arg8: memref<256x128xbf16, #tpu.memory_space<vmem>>, %arg9: memref<1x2x128xf32, #tpu.memory_space<vmem>>) attributes {dimension_semantics = [#tpu.dimension_semantics<parallel>], iteration_bounds = array<i64: 2>, scalar_prefetch = 0 : i64, scratch_operands = 0 : i64, tpu.core_type = #tpu.core_type<tc>, window_params = [{transform_indices = @transform_0, window_bounds = array<i64: 256, 256>}, {pipeline_mode = #tpu.pipeline_mode<synchronous>, transform_indices = @transform_1, window_bounds = array<i64: 256, 128>}, {pipeline_mode = #tpu.pipeline_mode<synchronous>, transform_indices = @transform_2, window_bounds = array<i64: 1, 128>}, {pipeline_mode = #tpu.pipeline_mode<synchronous>, transform_indices = @transform_3, window_bounds = array<i64: 128, 128>}, {pipeline_mode = #tpu.pipeline_mode<synchronous>, transform_indices = @transform_4, window_bounds = array<i64: 1, 128>}, {pipeline_mode = #tpu.pipeline_mode<synchronous>, transform_indices = @transform_5, window_bounds = array<i64: 128, 128>}, {transform_indices = @transform_6, window_bounds = array<i64: 256, 128>}, {transform_indices = @transform_7, window_bounds = array<i64: 256, 128>}, {transform_indices = @transform_8, window_bounds = array<i64: 1, 2, 128>}]} {
    %c0 = arith.constant 0 : index
    %c0_0 = arith.constant 0 : index
    %0 = vector.load %arg1[%c0, %c0_0] : memref<256x256xbf16, #tpu.memory_space<vmem>>, vector<256x256xbf16>
    %c0_1 = arith.constant 0 : index
    %c0_2 = arith.constant 0 : index
    %1 = vector.load %arg2[%c0_1, %c0_2] : memref<256x128xbf16, #tpu.memory_space<vmem>>, vector<256x128xbf16>
    %cst = arith.constant dense<0.000000e+00> : vector<256x128xf32>
    %2 = tpu.matmul %0, %1, %cst {dimension_numbers = #tpu.dot_dimension_numbers<[1], [0], [0], [1], [0, 0, 1, 1], [], []>} : vector<256x256xbf16>, vector<256x128xbf16>, vector<256x128xf32> -> vector<256x128xf32>
    %c0_3 = arith.constant 0 : index
    %c0_4 = arith.constant 0 : index
    %3 = vector.load %arg3[%c0_3, %c0_4] : memref<1x128xf32, #tpu.memory_space<vmem>>, vector<1x128xf32>
    %4 = vector.broadcast %3 : vector<1x128xf32> to vector<256x128xf32>
    %5 = arith.addf %2, %4 : vector<256x128xf32>
    %6 = arith.truncf %5 : vector<256x128xf32> to vector<256x128xbf16>
    %c0_5 = arith.constant 0 : index
    %c0_6 = arith.constant 0 : index
    %7 = vector.load %arg4[%c0_5, %c0_6] : memref<128x128xbf16, #tpu.memory_space<vmem>>, vector<128x128xbf16>
    %cst_7 = arith.constant dense<0.000000e+00> : vector<256x128xf32>
    %8 = tpu.matmul %6, %7, %cst_7 {dimension_numbers = #tpu.dot_dimension_numbers<[1], [0], [0], [1], [0, 0, 1, 1], [], []>} : vector<256x128xbf16>, vector<128x128xbf16>, vector<256x128xf32> -> vector<256x128xf32>
    %c0_8 = arith.constant 0 : index
    %c0_9 = arith.constant 0 : index
    %9 = vector.load %arg5[%c0_8, %c0_9] : memref<1x128xf32, #tpu.memory_space<vmem>>, vector<1x128xf32>
    %10 = vector.broadcast %9 : vector<1x128xf32> to vector<256x128xf32>
    %11 = arith.addf %8, %10 : vector<256x128xf32>
    %12 = arith.truncf %11 : vector<256x128xf32> to vector<256x128xbf16>
    %c0_10 = arith.constant 0 : index
    %c0_11 = arith.constant 0 : index
    %13 = vector.load %arg7[%c0_10, %c0_11] : memref<256x128xbf16, #tpu.memory_space<vmem>>, vector<256x128xbf16>
    tpu.vector_store %arg7[%c0_10, %c0_11], %12 {strides = array<i32>} : memref<256x128xbf16, #tpu.memory_space<vmem>>, vector<256x128xbf16>,
    %c0_12 = arith.constant 0 : index
    %c0_13 = arith.constant 0 : index
    %14 = vector.load %arg6[%c0_12, %c0_13] : memref<128x128xbf16, #tpu.memory_space<vmem>>, vector<128x128xbf16>
    %cst_14 = arith.constant dense<0.000000e+00> : vector<256x128xf32>
    %15 = tpu.matmul %6, %14, %cst_14 {dimension_numbers = #tpu.dot_dimension_numbers<[1], [0], [0], [1], [0, 0, 1, 1], [], []>} : vector<256x128xbf16>, vector<128x128xbf16>, vector<256x128xf32> -> vector<256x128xf32>
    %16 = arith.truncf %15 : vector<256x128xf32> to vector<256x128xbf16>
    %c0_15 = arith.constant 0 : index
    %c0_16 = arith.constant 0 : index
    %17 = vector.load %arg8[%c0_15, %c0_16] : memref<256x128xbf16, #tpu.memory_space<vmem>>, vector<256x128xbf16>
    tpu.vector_store %arg8[%c0_15, %c0_16], %16 {strides = array<i32>} : memref<256x128xbf16, #tpu.memory_space<vmem>>, vector<256x128xbf16>,
    %18 = arith.extf %16 : vector<256x128xbf16> to vector<256x128xf32>
    %cst_17 = arith.constant dense<0.000000e+00> : vector<128xf32>
    %19 = vector.multi_reduction <add>, %18, %cst_17 [0] : vector<256x128xf32> to vector<128xf32>
    %20 = vector.shape_cast %19 : vector<128xf32> to vector<1x128xf32>
    %21 = arith.mulf %18, %18 : vector<256x128xf32>
    %cst_18 = arith.constant dense<0.000000e+00> : vector<128xf32>
    %22 = vector.multi_reduction <add>, %21, %cst_18 [0] : vector<256x128xf32> to vector<128xf32>
    %23 = vector.shape_cast %22 : vector<128xf32> to vector<1x128xf32>
    %24 = tpu.concatenate %20, %23 in 0 : vector<1x128xf32>, vector<1x128xf32> -> vector<2x128xf32>
    %c0_19 = arith.constant 0 : index
    %c0_20 = arith.constant 0 : index
    %c0_21 = arith.constant 0 : index
    %25 = vector.load %arg9[%c0_19, %c0_20, %c0_21] : memref<1x2x128xf32, #tpu.memory_space<vmem>>, vector<1x2x128xf32>
    %26 = vector.shape_cast %25 : vector<1x2x128xf32> to vector<2x128xf32>
    %27 = vector.shape_cast %24 : vector<2x128xf32> to vector<1x2x128xf32>
    tpu.vector_store %arg9[%c0_19, %c0_20, %c0_21], %27 {strides = array<i32>} : memref<1x2x128xf32, #tpu.memory_space<vmem>>, vector<1x2x128xf32>,
    return
  }
  func.func @transform_0(%arg0: i32) -> (i32, i32) {
    %c0_i32 = arith.constant 0 : i32
    %c0_i32_0 = arith.constant 0 : i32
    return %arg0, %c0_i32 : i32, i32
  }
  func.func @transform_1(%arg0: i32) -> (i32, i32) {
    %c0_i32 = arith.constant 0 : i32
    %c0_i32_0 = arith.constant 0 : i32
    %c0_i32_1 = arith.constant 0 : i32
    return %c0_i32, %c0_i32_0 : i32, i32
  }
  func.func @transform_2(%arg0: i32) -> (i32, i32) {
    %c0_i32 = arith.constant 0 : i32
    %c0_i32_0 = arith.constant 0 : i32
    %c0_i32_1 = arith.constant 0 : i32
    return %c0_i32, %c0_i32_0 : i32, i32
  }
  func.func @transform_3(%arg0: i32) -> (i32, i32) {
    %c0_i32 = arith.constant 0 : i32
    %c0_i32_0 = arith.constant 0 : i32
    %c0_i32_1 = arith.constant 0 : i32
    return %c0_i32, %c0_i32_0 : i32, i32
  }
  func.func @transform_4(%arg0: i32) -> (i32, i32) {
    %c0_i32 = arith.constant 0 : i32
    %c0_i32_0 = arith.constant 0 : i32
    %c0_i32_1 = arith.constant 0 : i32
    return %c0_i32, %c0_i32_0 : i32, i32
  }
  func.func @transform_5(%arg0: i32) -> (i32, i32) {
    %c0_i32 = arith.constant 0 : i32
    %c0_i32_0 = arith.constant 0 : i32
    %c0_i32_1 = arith.constant 0 : i32
    return %c0_i32, %c0_i32_0 : i32, i32
  }
  func.func @transform_6(%arg0: i32) -> (i32, i32) {
    %c0_i32 = arith.constant 0 : i32
    %c0_i32_0 = arith.constant 0 : i32
    return %arg0, %c0_i32 : i32, i32
  }
  func.func @transform_7(%arg0: i32) -> (i32, i32) {
    %c0_i32 = arith.constant 0 : i32
    %c0_i32_0 = arith.constant 0 : i32
    return %arg0, %c0_i32 : i32, i32
  }
  func.func @transform_8(%arg0: i32) -> (i32, i32, i32) {
    %c0_i32 = arith.constant 0 : i32
    %c0_i32_0 = arith.constant 0 : i32
    %c0_i32_1 = arith.constant 0 : i32
    return %arg0, %c0_i32, %c0_i32_0 : i32, i32, i32
  }
}

module attributes {stable_mosaic.version = 11 : i64} {
  func.func @_mid_kernel(%arg0: i32, %arg1: memref<1x16x16x128xbf16, #tpu.memory_space<vmem>>, %arg2: memref<2x128xf32, #tpu.memory_space<vmem>>, %arg3: memref<1x128xf32, #tpu.memory_space<vmem>>, %arg4: memref<1x128xf32, #tpu.memory_space<vmem>>, %arg5: memref<9x128x128xbf16, #tpu.memory_space<vmem>>, %arg6: memref<1x256x128xbf16, #tpu.memory_space<vmem>>, %arg7: memref<1x2x128xf32, #tpu.memory_space<vmem>>, %arg8: memref<18x18x128xbf16, #tpu.memory_space<vmem>>) attributes {dimension_semantics = [#tpu.dimension_semantics<parallel>], iteration_bounds = array<i64: 2>, scalar_prefetch = 0 : i64, scratch_operands = 1 : i64, tpu.core_type = #tpu.core_type<tc>, window_params = [{transform_indices = @transform_0, window_bounds = array<i64: 1, 16, 16, 128>}, {pipeline_mode = #tpu.pipeline_mode<synchronous>, transform_indices = @transform_1, window_bounds = array<i64: 2, 128>}, {pipeline_mode = #tpu.pipeline_mode<synchronous>, transform_indices = @transform_2, window_bounds = array<i64: 1, 128>}, {pipeline_mode = #tpu.pipeline_mode<synchronous>, transform_indices = @transform_3, window_bounds = array<i64: 1, 128>}, {pipeline_mode = #tpu.pipeline_mode<synchronous>, transform_indices = @transform_4, window_bounds = array<i64: 9, 128, 128>}, {transform_indices = @transform_5, window_bounds = array<i64: 1, 256, 128>}, {transform_indices = @transform_6, window_bounds = array<i64: 1, 2, 128>}]} {
    %c0 = arith.constant 0 : index
    %c0_0 = arith.constant 0 : index
    %0 = vector.load %arg2[%c0, %c0_0] : memref<2x128xf32, #tpu.memory_space<vmem>>, vector<2x128xf32>
    %c0_1 = arith.constant 0 : index
    %c0_2 = arith.constant 0 : index
    %1 = vector.load %arg3[%c0_1, %c0_2] : memref<1x128xf32, #tpu.memory_space<vmem>>, vector<1x128xf32>
    %c0_3 = arith.constant 0 : index
    %c0_4 = arith.constant 0 : index
    %2 = vector.load %arg4[%c0_3, %c0_4] : memref<1x128xf32, #tpu.memory_space<vmem>>, vector<1x128xf32>
    %3 = vector.extract_strided_slice %0 {offsets = [0, 0], sizes = [1, 128], strides = [1, 1]} : vector<2x128xf32> to vector<1x128xf32>
    %cst = arith.constant 0.001953125 : f32
    %4 = vector.broadcast %cst : f32 to vector<1x128xf32>
    %5 = arith.mulf %3, %4 : vector<1x128xf32>
    %6 = vector.extract_strided_slice %0 {offsets = [1, 0], sizes = [1, 128], strides = [1, 1]} : vector<2x128xf32> to vector<1x128xf32>
    %cst_5 = arith.constant 0.001953125 : f32
    %7 = vector.broadcast %cst_5 : f32 to vector<1x128xf32>
    %8 = arith.mulf %6, %7 : vector<1x128xf32>
    %9 = arith.mulf %5, %5 : vector<1x128xf32>
    %10 = arith.subf %8, %9 : vector<1x128xf32>
    %cst_6 = arith.constant 0.000000e+00 : f32
    %11 = vector.broadcast %cst_6 : f32 to vector<1x128xf32>
    %12 = arith.maximumf %10, %11 : vector<1x128xf32>
    %cst_7 = arith.constant 9.99999974E-6 : f32
    %13 = vector.broadcast %cst_7 : f32 to vector<1x128xf32>
    %14 = arith.addf %12, %13 : vector<1x128xf32>
    %15 = math.rsqrt %14 : vector<1x128xf32>
    %16 = arith.mulf %1, %15 : vector<1x128xf32>
    %17 = arith.mulf %5, %16 : vector<1x128xf32>
    %18 = arith.subf %2, %17 : vector<1x128xf32>
    %c0_8 = arith.constant 0 : index
    %c0_9 = arith.constant 0 : index
    %c0_10 = arith.constant 0 : index
    %c0_11 = arith.constant 0 : index
    %19 = vector.load %arg1[%c0_8, %c0_9, %c0_10, %c0_11] : memref<1x16x16x128xbf16, #tpu.memory_space<vmem>>, vector<1x16x16x128xbf16>
    %20 = vector.shape_cast %19 : vector<1x16x16x128xbf16> to vector<16x16x128xbf16>
    %21 = arith.extf %20 : vector<16x16x128xbf16> to vector<16x16x128xf32>
    %22 = vector.shape_cast %16 : vector<1x128xf32> to vector<1x1x128xf32>
    %23 = vector.broadcast %22 : vector<1x1x128xf32> to vector<16x16x128xf32>
    %24 = arith.mulf %21, %23 : vector<16x16x128xf32>
    %25 = vector.shape_cast %18 : vector<1x128xf32> to vector<1x1x128xf32>
    %26 = vector.broadcast %25 : vector<1x1x128xf32> to vector<16x16x128xf32>
    %27 = arith.addf %24, %26 : vector<16x16x128xf32>
    %cst_12 = arith.constant 0.000000e+00 : f32
    %28 = vector.broadcast %cst_12 : f32 to vector<16x16x128xf32>
    %29 = arith.maximumf %27, %28 : vector<16x16x128xf32>
    %cst_13 = arith.constant 0.000000e+00 : bf16
    %30 = vector.broadcast %cst_13 : bf16 to vector<18x18x128xbf16>
    %c0_14 = arith.constant 0 : index
    %c0_15 = arith.constant 0 : index
    %c0_16 = arith.constant 0 : index
    %31 = vector.load %arg8[%c0_14, %c0_15, %c0_16] : memref<18x18x128xbf16, #tpu.memory_space<vmem>>, vector<18x18x128xbf16>
    tpu.vector_store %arg8[%c0_14, %c0_15, %c0_16], %30 {strides = array<i32>} : memref<18x18x128xbf16, #tpu.memory_space<vmem>>, vector<18x18x128xbf16>,
    %32 = arith.truncf %29 : vector<16x16x128xf32> to vector<16x16x128xbf16>
    %c1 = arith.constant 1 : index
    %c1_17 = arith.constant 1 : index
    %c0_18 = arith.constant 0 : index
    %33 = vector.load %arg8[%c1, %c1_17, %c0_18] : memref<18x18x128xbf16, #tpu.memory_space<vmem>>, vector<16x16x128xbf16>
    tpu.vector_store %arg8[%c1, %c1_17, %c0_18], %32 {strides = array<i32>} : memref<18x18x128xbf16, #tpu.memory_space<vmem>>, vector<16x16x128xbf16>,
    %cst_19 = arith.constant 0.000000e+00 : f32
    %34 = vector.broadcast %cst_19 : f32 to vector<256x128xf32>
    %c0_20 = arith.constant 0 : index
    %c0_21 = arith.constant 0 : index
    %c0_22 = arith.constant 0 : index
    %35 = vector.load %arg8[%c0_20, %c0_21, %c0_22] : memref<18x18x128xbf16, #tpu.memory_space<vmem>>, vector<16x16x128xbf16>
    %36 = vector.shape_cast %35 : vector<16x16x128xbf16> to vector<256x128xbf16>
    %c0_23 = arith.constant 0 : index
    %c0_24 = arith.constant 0 : index
    %c0_25 = arith.constant 0 : index
    %37 = vector.load %arg5[%c0_23, %c0_24, %c0_25] : memref<9x128x128xbf16, #tpu.memory_space<vmem>>, vector<1x128x128xbf16>
    %38 = vector.shape_cast %37 : vector<1x128x128xbf16> to vector<128x128xbf16>
    %cst_26 = arith.constant dense<0.000000e+00> : vector<256x128xf32>
    %39 = tpu.matmul %36, %38, %cst_26 {dimension_numbers = #tpu.dot_dimension_numbers<[1], [0], [0], [1], [0, 0, 1, 1], [], []>} : vector<256x128xbf16>, vector<128x128xbf16>, vector<256x128xf32> -> vector<256x128xf32>
    %40 = arith.addf %34, %39 : vector<256x128xf32>
    %c0_27 = arith.constant 0 : index
    %c1_28 = arith.constant 1 : index
    %c0_29 = arith.constant 0 : index
    %41 = vector.load %arg8[%c0_27, %c1_28, %c0_29] : memref<18x18x128xbf16, #tpu.memory_space<vmem>>, vector<16x16x128xbf16>
    %42 = vector.shape_cast %41 : vector<16x16x128xbf16> to vector<256x128xbf16>
    %c1_30 = arith.constant 1 : index
    %c0_31 = arith.constant 0 : index
    %c0_32 = arith.constant 0 : index
    %43 = vector.load %arg5[%c1_30, %c0_31, %c0_32] : memref<9x128x128xbf16, #tpu.memory_space<vmem>>, vector<1x128x128xbf16>
    %44 = vector.shape_cast %43 : vector<1x128x128xbf16> to vector<128x128xbf16>
    %cst_33 = arith.constant dense<0.000000e+00> : vector<256x128xf32>
    %45 = tpu.matmul %42, %44, %cst_33 {dimension_numbers = #tpu.dot_dimension_numbers<[1], [0], [0], [1], [0, 0, 1, 1], [], []>} : vector<256x128xbf16>, vector<128x128xbf16>, vector<256x128xf32> -> vector<256x128xf32>
    %46 = arith.addf %40, %45 : vector<256x128xf32>
    %c0_34 = arith.constant 0 : index
    %c2 = arith.constant 2 : index
    %c0_35 = arith.constant 0 : index
    %47 = vector.load %arg8[%c0_34, %c2, %c0_35] : memref<18x18x128xbf16, #tpu.memory_space<vmem>>, vector<16x16x128xbf16>
    %48 = vector.shape_cast %47 : vector<16x16x128xbf16> to vector<256x128xbf16>
    %c2_36 = arith.constant 2 : index
    %c0_37 = arith.constant 0 : index
    %c0_38 = arith.constant 0 : index
    %49 = vector.load %arg5[%c2_36, %c0_37, %c0_38] : memref<9x128x128xbf16, #tpu.memory_space<vmem>>, vector<1x128x128xbf16>
    %50 = vector.shape_cast %49 : vector<1x128x128xbf16> to vector<128x128xbf16>
    %cst_39 = arith.constant dense<0.000000e+00> : vector<256x128xf32>
    %51 = tpu.matmul %48, %50, %cst_39 {dimension_numbers = #tpu.dot_dimension_numbers<[1], [0], [0], [1], [0, 0, 1, 1], [], []>} : vector<256x128xbf16>, vector<128x128xbf16>, vector<256x128xf32> -> vector<256x128xf32>
    %52 = arith.addf %46, %51 : vector<256x128xf32>
    %c1_40 = arith.constant 1 : index
    %c0_41 = arith.constant 0 : index
    %c0_42 = arith.constant 0 : index
    %53 = vector.load %arg8[%c1_40, %c0_41, %c0_42] : memref<18x18x128xbf16, #tpu.memory_space<vmem>>, vector<16x16x128xbf16>
    %54 = vector.shape_cast %53 : vector<16x16x128xbf16> to vector<256x128xbf16>
    %c3 = arith.constant 3 : index
    %c0_43 = arith.constant 0 : index
    %c0_44 = arith.constant 0 : index
    %55 = vector.load %arg5[%c3, %c0_43, %c0_44] : memref<9x128x128xbf16, #tpu.memory_space<vmem>>, vector<1x128x128xbf16>
    %56 = vector.shape_cast %55 : vector<1x128x128xbf16> to vector<128x128xbf16>
    %cst_45 = arith.constant dense<0.000000e+00> : vector<256x128xf32>
    %57 = tpu.matmul %54, %56, %cst_45 {dimension_numbers = #tpu.dot_dimension_numbers<[1], [0], [0], [1], [0, 0, 1, 1], [], []>} : vector<256x128xbf16>, vector<128x128xbf16>, vector<256x128xf32> -> vector<256x128xf32>
    %58 = arith.addf %52, %57 : vector<256x128xf32>
    %c1_46 = arith.constant 1 : index
    %c1_47 = arith.constant 1 : index
    %c0_48 = arith.constant 0 : index
    %59 = vector.load %arg8[%c1_46, %c1_47, %c0_48] : memref<18x18x128xbf16, #tpu.memory_space<vmem>>, vector<16x16x128xbf16>
    %60 = vector.shape_cast %59 : vector<16x16x128xbf16> to vector<256x128xbf16>
    %c4 = arith.constant 4 : index
    %c0_49 = arith.constant 0 : index
    %c0_50 = arith.constant 0 : index
    %61 = vector.load %arg5[%c4, %c0_49, %c0_50] : memref<9x128x128xbf16, #tpu.memory_space<vmem>>, vector<1x128x128xbf16>
    %62 = vector.shape_cast %61 : vector<1x128x128xbf16> to vector<128x128xbf16>
    %cst_51 = arith.constant dense<0.000000e+00> : vector<256x128xf32>
    %63 = tpu.matmul %60, %62, %cst_51 {dimension_numbers = #tpu.dot_dimension_numbers<[1], [0], [0], [1], [0, 0, 1, 1], [], []>} : vector<256x128xbf16>, vector<128x128xbf16>, vector<256x128xf32> -> vector<256x128xf32>
    %64 = arith.addf %58, %63 : vector<256x128xf32>
    %c1_52 = arith.constant 1 : index
    %c2_53 = arith.constant 2 : index
    %c0_54 = arith.constant 0 : index
    %65 = vector.load %arg8[%c1_52, %c2_53, %c0_54] : memref<18x18x128xbf16, #tpu.memory_space<vmem>>, vector<16x16x128xbf16>
    %66 = vector.shape_cast %65 : vector<16x16x128xbf16> to vector<256x128xbf16>
    %c5 = arith.constant 5 : index
    %c0_55 = arith.constant 0 : index
    %c0_56 = arith.constant 0 : index
    %67 = vector.load %arg5[%c5, %c0_55, %c0_56] : memref<9x128x128xbf16, #tpu.memory_space<vmem>>, vector<1x128x128xbf16>
    %68 = vector.shape_cast %67 : vector<1x128x128xbf16> to vector<128x128xbf16>
    %cst_57 = arith.constant dense<0.000000e+00> : vector<256x128xf32>
    %69 = tpu.matmul %66, %68, %cst_57 {dimension_numbers = #tpu.dot_dimension_numbers<[1], [0], [0], [1], [0, 0, 1, 1], [], []>} : vector<256x128xbf16>, vector<128x128xbf16>, vector<256x128xf32> -> vector<256x128xf32>
    %70 = arith.addf %64, %69 : vector<256x128xf32>
    %c2_58 = arith.constant 2 : index
    %c0_59 = arith.constant 0 : index
    %c0_60 = arith.constant 0 : index
    %71 = vector.load %arg8[%c2_58, %c0_59, %c0_60] : memref<18x18x128xbf16, #tpu.memory_space<vmem>>, vector<16x16x128xbf16>
    %72 = vector.shape_cast %71 : vector<16x16x128xbf16> to vector<256x128xbf16>
    %c6 = arith.constant 6 : index
    %c0_61 = arith.constant 0 : index
    %c0_62 = arith.constant 0 : index
    %73 = vector.load %arg5[%c6, %c0_61, %c0_62] : memref<9x128x128xbf16, #tpu.memory_space<vmem>>, vector<1x128x128xbf16>
    %74 = vector.shape_cast %73 : vector<1x128x128xbf16> to vector<128x128xbf16>
    %cst_63 = arith.constant dense<0.000000e+00> : vector<256x128xf32>
    %75 = tpu.matmul %72, %74, %cst_63 {dimension_numbers = #tpu.dot_dimension_numbers<[1], [0], [0], [1], [0, 0, 1, 1], [], []>} : vector<256x128xbf16>, vector<128x128xbf16>, vector<256x128xf32> -> vector<256x128xf32>
    %76 = arith.addf %70, %75 : vector<256x128xf32>
    %c2_64 = arith.constant 2 : index
    %c1_65 = arith.constant 1 : index
    %c0_66 = arith.constant 0 : index
    %77 = vector.load %arg8[%c2_64, %c1_65, %c0_66] : memref<18x18x128xbf16, #tpu.memory_space<vmem>>, vector<16x16x128xbf16>
    %78 = vector.shape_cast %77 : vector<16x16x128xbf16> to vector<256x128xbf16>
    %c7 = arith.constant 7 : index
    %c0_67 = arith.constant 0 : index
    %c0_68 = arith.constant 0 : index
    %79 = vector.load %arg5[%c7, %c0_67, %c0_68] : memref<9x128x128xbf16, #tpu.memory_space<vmem>>, vector<1x128x128xbf16>
    %80 = vector.shape_cast %79 : vector<1x128x128xbf16> to vector<128x128xbf16>
    %cst_69 = arith.constant dense<0.000000e+00> : vector<256x128xf32>
    %81 = tpu.matmul %78, %80, %cst_69 {dimension_numbers = #tpu.dot_dimension_numbers<[1], [0], [0], [1], [0, 0, 1, 1], [], []>} : vector<256x128xbf16>, vector<128x128xbf16>, vector<256x128xf32> -> vector<256x128xf32>
    %82 = arith.addf %76, %81 : vector<256x128xf32>
    %c2_70 = arith.constant 2 : index
    %c2_71 = arith.constant 2 : index
    %c0_72 = arith.constant 0 : index
    %83 = vector.load %arg8[%c2_70, %c2_71, %c0_72] : memref<18x18x128xbf16, #tpu.memory_space<vmem>>, vector<16x16x128xbf16>
    %84 = vector.shape_cast %83 : vector<16x16x128xbf16> to vector<256x128xbf16>
    %c8 = arith.constant 8 : index
    %c0_73 = arith.constant 0 : index
    %c0_74 = arith.constant 0 : index
    %85 = vector.load %arg5[%c8, %c0_73, %c0_74] : memref<9x128x128xbf16, #tpu.memory_space<vmem>>, vector<1x128x128xbf16>
    %86 = vector.shape_cast %85 : vector<1x128x128xbf16> to vector<128x128xbf16>
    %cst_75 = arith.constant dense<0.000000e+00> : vector<256x128xf32>
    %87 = tpu.matmul %84, %86, %cst_75 {dimension_numbers = #tpu.dot_dimension_numbers<[1], [0], [0], [1], [0, 0, 1, 1], [], []>} : vector<256x128xbf16>, vector<128x128xbf16>, vector<256x128xf32> -> vector<256x128xf32>
    %88 = arith.addf %82, %87 : vector<256x128xf32>
    %89 = arith.truncf %88 : vector<256x128xf32> to vector<256x128xbf16>
    %c0_76 = arith.constant 0 : index
    %c0_77 = arith.constant 0 : index
    %c0_78 = arith.constant 0 : index
    %90 = vector.load %arg6[%c0_76, %c0_77, %c0_78] : memref<1x256x128xbf16, #tpu.memory_space<vmem>>, vector<1x256x128xbf16>
    %91 = vector.shape_cast %90 : vector<1x256x128xbf16> to vector<256x128xbf16>
    %92 = vector.shape_cast %89 : vector<256x128xbf16> to vector<1x256x128xbf16>
    tpu.vector_store %arg6[%c0_76, %c0_77, %c0_78], %92 {strides = array<i32>} : memref<1x256x128xbf16, #tpu.memory_space<vmem>>, vector<1x256x128xbf16>,
    %93 = arith.extf %89 : vector<256x128xbf16> to vector<256x128xf32>
    %cst_79 = arith.constant dense<0.000000e+00> : vector<128xf32>
    %94 = vector.multi_reduction <add>, %93, %cst_79 [0] : vector<256x128xf32> to vector<128xf32>
    %95 = vector.shape_cast %94 : vector<128xf32> to vector<1x128xf32>
    %96 = arith.mulf %93, %93 : vector<256x128xf32>
    %cst_80 = arith.constant dense<0.000000e+00> : vector<128xf32>
    %97 = vector.multi_reduction <add>, %96, %cst_80 [0] : vector<256x128xf32> to vector<128xf32>
    %98 = vector.shape_cast %97 : vector<128xf32> to vector<1x128xf32>
    %99 = tpu.concatenate %95, %98 in 0 : vector<1x128xf32>, vector<1x128xf32> -> vector<2x128xf32>
    %c0_81 = arith.constant 0 : index
    %c0_82 = arith.constant 0 : index
    %c0_83 = arith.constant 0 : index
    %100 = vector.load %arg7[%c0_81, %c0_82, %c0_83] : memref<1x2x128xf32, #tpu.memory_space<vmem>>, vector<1x2x128xf32>
    %101 = vector.shape_cast %100 : vector<1x2x128xf32> to vector<2x128xf32>
    %102 = vector.shape_cast %99 : vector<2x128xf32> to vector<1x2x128xf32>
    tpu.vector_store %arg7[%c0_81, %c0_82, %c0_83], %102 {strides = array<i32>} : memref<1x2x128xf32, #tpu.memory_space<vmem>>, vector<1x2x128xf32>,
    return
  }
  func.func @transform_0(%arg0: i32) -> (i32, i32, i32, i32) {
    %c0_i32 = arith.constant 0 : i32
    %c0_i32_0 = arith.constant 0 : i32
    %c0_i32_1 = arith.constant 0 : i32
    %c0_i32_2 = arith.constant 0 : i32
    return %arg0, %c0_i32, %c0_i32_0, %c0_i32_1 : i32, i32, i32, i32
  }
  func.func @transform_1(%arg0: i32) -> (i32, i32) {
    %c0_i32 = arith.constant 0 : i32
    %c0_i32_0 = arith.constant 0 : i32
    %c0_i32_1 = arith.constant 0 : i32
    return %c0_i32, %c0_i32_0 : i32, i32
  }
  func.func @transform_2(%arg0: i32) -> (i32, i32) {
    %c0_i32 = arith.constant 0 : i32
    %c0_i32_0 = arith.constant 0 : i32
    %c0_i32_1 = arith.constant 0 : i32
    return %c0_i32, %c0_i32_0 : i32, i32
  }
  func.func @transform_3(%arg0: i32) -> (i32, i32) {
    %c0_i32 = arith.constant 0 : i32
    %c0_i32_0 = arith.constant 0 : i32
    %c0_i32_1 = arith.constant 0 : i32
    return %c0_i32, %c0_i32_0 : i32, i32
  }
  func.func @transform_4(%arg0: i32) -> (i32, i32, i32) {
    %c0_i32 = arith.constant 0 : i32
    %c0_i32_0 = arith.constant 0 : i32
    %c0_i32_1 = arith.constant 0 : i32
    %c0_i32_2 = arith.constant 0 : i32
    return %c0_i32, %c0_i32_0, %c0_i32_1 : i32, i32, i32
  }
  func.func @transform_5(%arg0: i32) -> (i32, i32, i32) {
    %c0_i32 = arith.constant 0 : i32
    %c0_i32_0 = arith.constant 0 : i32
    %c0_i32_1 = arith.constant 0 : i32
    return %arg0, %c0_i32, %c0_i32_0 : i32, i32, i32
  }
  func.func @transform_6(%arg0: i32) -> (i32, i32, i32) {
    %c0_i32 = arith.constant 0 : i32
    %c0_i32_0 = arith.constant 0 : i32
    %c0_i32_1 = arith.constant 0 : i32
    return %arg0, %c0_i32, %c0_i32_0 : i32, i32, i32
  }
}

module attributes {stable_mosaic.version = 11 : i64} {
  func.func @_conv3_stats_kernel(%arg0: i32, %arg1: memref<256x128xbf16, #tpu.memory_space<vmem>>, %arg2: memref<2x128xf32, #tpu.memory_space<vmem>>, %arg3: memref<1x128xf32, #tpu.memory_space<vmem>>, %arg4: memref<1x128xf32, #tpu.memory_space<vmem>>, %arg5: memref<128x128xbf16, #tpu.memory_space<vmem>>, %arg6: memref<1x2x128xf32, #tpu.memory_space<vmem>>) attributes {dimension_semantics = [#tpu.dimension_semantics<parallel>], iteration_bounds = array<i64: 2>, scalar_prefetch = 0 : i64, scratch_operands = 0 : i64, tpu.core_type = #tpu.core_type<tc>, window_params = [{transform_indices = @transform_0, window_bounds = array<i64: 256, 128>}, {pipeline_mode = #tpu.pipeline_mode<synchronous>, transform_indices = @transform_1, window_bounds = array<i64: 2, 128>}, {pipeline_mode = #tpu.pipeline_mode<synchronous>, transform_indices = @transform_2, window_bounds = array<i64: 1, 128>}, {pipeline_mode = #tpu.pipeline_mode<synchronous>, transform_indices = @transform_3, window_bounds = array<i64: 1, 128>}, {pipeline_mode = #tpu.pipeline_mode<synchronous>, transform_indices = @transform_4, window_bounds = array<i64: 128, 128>}, {transform_indices = @transform_5, window_bounds = array<i64: 1, 2, 128>}]} {
    %c0 = arith.constant 0 : index
    %c0_0 = arith.constant 0 : index
    %0 = vector.load %arg2[%c0, %c0_0] : memref<2x128xf32, #tpu.memory_space<vmem>>, vector<2x128xf32>
    %c0_1 = arith.constant 0 : index
    %c0_2 = arith.constant 0 : index
    %1 = vector.load %arg3[%c0_1, %c0_2] : memref<1x128xf32, #tpu.memory_space<vmem>>, vector<1x128xf32>
    %c0_3 = arith.constant 0 : index
    %c0_4 = arith.constant 0 : index
    %2 = vector.load %arg4[%c0_3, %c0_4] : memref<1x128xf32, #tpu.memory_space<vmem>>, vector<1x128xf32>
    %3 = vector.extract_strided_slice %0 {offsets = [0, 0], sizes = [1, 128], strides = [1, 1]} : vector<2x128xf32> to vector<1x128xf32>
    %cst = arith.constant 0.001953125 : f32
    %4 = vector.broadcast %cst : f32 to vector<1x128xf32>
    %5 = arith.mulf %3, %4 : vector<1x128xf32>
    %6 = vector.extract_strided_slice %0 {offsets = [1, 0], sizes = [1, 128], strides = [1, 1]} : vector<2x128xf32> to vector<1x128xf32>
    %cst_5 = arith.constant 0.001953125 : f32
    %7 = vector.broadcast %cst_5 : f32 to vector<1x128xf32>
    %8 = arith.mulf %6, %7 : vector<1x128xf32>
    %9 = arith.mulf %5, %5 : vector<1x128xf32>
    %10 = arith.subf %8, %9 : vector<1x128xf32>
    %cst_6 = arith.constant 0.000000e+00 : f32
    %11 = vector.broadcast %cst_6 : f32 to vector<1x128xf32>
    %12 = arith.maximumf %10, %11 : vector<1x128xf32>
    %cst_7 = arith.constant 9.99999974E-6 : f32
    %13 = vector.broadcast %cst_7 : f32 to vector<1x128xf32>
    %14 = arith.addf %12, %13 : vector<1x128xf32>
    %15 = math.rsqrt %14 : vector<1x128xf32>
    %16 = arith.mulf %1, %15 : vector<1x128xf32>
    %17 = arith.mulf %5, %16 : vector<1x128xf32>
    %18 = arith.subf %2, %17 : vector<1x128xf32>
    %c0_8 = arith.constant 0 : index
    %c0_9 = arith.constant 0 : index
    %19 = vector.load %arg1[%c0_8, %c0_9] : memref<256x128xbf16, #tpu.memory_space<vmem>>, vector<256x128xbf16>
    %20 = arith.extf %19 : vector<256x128xbf16> to vector<256x128xf32>
    %21 = vector.broadcast %16 : vector<1x128xf32> to vector<256x128xf32>
    %22 = arith.mulf %20, %21 : vector<256x128xf32>
    %23 = vector.broadcast %18 : vector<1x128xf32> to vector<256x128xf32>
    %24 = arith.addf %22, %23 : vector<256x128xf32>
    %cst_10 = arith.constant 0.000000e+00 : f32
    %25 = vector.broadcast %cst_10 : f32 to vector<256x128xf32>
    %26 = arith.maximumf %24, %25 : vector<256x128xf32>
    %27 = arith.truncf %26 : vector<256x128xf32> to vector<256x128xbf16>
    %c0_11 = arith.constant 0 : index
    %c0_12 = arith.constant 0 : index
    %28 = vector.load %arg5[%c0_11, %c0_12] : memref<128x128xbf16, #tpu.memory_space<vmem>>, vector<128x128xbf16>
    %cst_13 = arith.constant dense<0.000000e+00> : vector<256x128xf32>
    %29 = tpu.matmul %27, %28, %cst_13 {dimension_numbers = #tpu.dot_dimension_numbers<[1], [0], [0], [1], [0, 0, 1, 1], [], []>} : vector<256x128xbf16>, vector<128x128xbf16>, vector<256x128xf32> -> vector<256x128xf32>
    %cst_14 = arith.constant dense<0.000000e+00> : vector<128xf32>
    %30 = vector.multi_reduction <add>, %29, %cst_14 [0] : vector<256x128xf32> to vector<128xf32>
    %31 = vector.shape_cast %30 : vector<128xf32> to vector<1x128xf32>
    %32 = arith.mulf %29, %29 : vector<256x128xf32>
    %cst_15 = arith.constant dense<0.000000e+00> : vector<128xf32>
    %33 = vector.multi_reduction <add>, %32, %cst_15 [0] : vector<256x128xf32> to vector<128xf32>
    %34 = vector.shape_cast %33 : vector<128xf32> to vector<1x128xf32>
    %35 = tpu.concatenate %31, %34 in 0 : vector<1x128xf32>, vector<1x128xf32> -> vector<2x128xf32>
    %c0_16 = arith.constant 0 : index
    %c0_17 = arith.constant 0 : index
    %c0_18 = arith.constant 0 : index
    %36 = vector.load %arg6[%c0_16, %c0_17, %c0_18] : memref<1x2x128xf32, #tpu.memory_space<vmem>>, vector<1x2x128xf32>
    %37 = vector.shape_cast %36 : vector<1x2x128xf32> to vector<2x128xf32>
    %38 = vector.shape_cast %35 : vector<2x128xf32> to vector<1x2x128xf32>
    tpu.vector_store %arg6[%c0_16, %c0_17, %c0_18], %38 {strides = array<i32>} : memref<1x2x128xf32, #tpu.memory_space<vmem>>, vector<1x2x128xf32>,
    return
  }
  func.func @transform_0(%arg0: i32) -> (i32, i32) {
    %c0_i32 = arith.constant 0 : i32
    %c0_i32_0 = arith.constant 0 : i32
    return %arg0, %c0_i32 : i32, i32
  }
  func.func @transform_1(%arg0: i32) -> (i32, i32) {
    %c0_i32 = arith.constant 0 : i32
    %c0_i32_0 = arith.constant 0 : i32
    %c0_i32_1 = arith.constant 0 : i32
    return %c0_i32, %c0_i32_0 : i32, i32
  }
  func.func @transform_2(%arg0: i32) -> (i32, i32) {
    %c0_i32 = arith.constant 0 : i32
    %c0_i32_0 = arith.constant 0 : i32
    %c0_i32_1 = arith.constant 0 : i32
    return %c0_i32, %c0_i32_0 : i32, i32
  }
  func.func @transform_3(%arg0: i32) -> (i32, i32) {
    %c0_i32 = arith.constant 0 : i32
    %c0_i32_0 = arith.constant 0 : i32
    %c0_i32_1 = arith.constant 0 : i32
    return %c0_i32, %c0_i32_0 : i32, i32
  }
  func.func @transform_4(%arg0: i32) -> (i32, i32) {
    %c0_i32 = arith.constant 0 : i32
    %c0_i32_0 = arith.constant 0 : i32
    %c0_i32_1 = arith.constant 0 : i32
    return %c0_i32, %c0_i32_0 : i32, i32
  }
  func.func @transform_5(%arg0: i32) -> (i32, i32, i32) {
    %c0_i32 = arith.constant 0 : i32
    %c0_i32_0 = arith.constant 0 : i32
    %c0_i32_1 = arith.constant 0 : i32
    return %arg0, %c0_i32, %c0_i32_0 : i32, i32, i32
  }
}

module attributes {stable_mosaic.version = 11 : i64} {
  func.func @_final_kernel(%arg0: i32, %arg1: memref<256x128xbf16, #tpu.memory_space<vmem>>, %arg2: memref<2x128xf32, #tpu.memory_space<vmem>>, %arg3: memref<1x128xf32, #tpu.memory_space<vmem>>, %arg4: memref<1x128xf32, #tpu.memory_space<vmem>>, %arg5: memref<128x128xbf16, #tpu.memory_space<vmem>>, %arg6: memref<2x128xf32, #tpu.memory_space<vmem>>, %arg7: memref<1x128xf32, #tpu.memory_space<vmem>>, %arg8: memref<1x128xf32, #tpu.memory_space<vmem>>, %arg9: memref<256x128xbf16, #tpu.memory_space<vmem>>, %arg10: memref<256x128xf32, #tpu.memory_space<vmem>>) attributes {dimension_semantics = [#tpu.dimension_semantics<parallel>], iteration_bounds = array<i64: 2>, scalar_prefetch = 0 : i64, scratch_operands = 0 : i64, tpu.core_type = #tpu.core_type<tc>, window_params = [{transform_indices = @transform_0, window_bounds = array<i64: 256, 128>}, {pipeline_mode = #tpu.pipeline_mode<synchronous>, transform_indices = @transform_1, window_bounds = array<i64: 2, 128>}, {pipeline_mode = #tpu.pipeline_mode<synchronous>, transform_indices = @transform_2, window_bounds = array<i64: 1, 128>}, {pipeline_mode = #tpu.pipeline_mode<synchronous>, transform_indices = @transform_3, window_bounds = array<i64: 1, 128>}, {pipeline_mode = #tpu.pipeline_mode<synchronous>, transform_indices = @transform_4, window_bounds = array<i64: 128, 128>}, {pipeline_mode = #tpu.pipeline_mode<synchronous>, transform_indices = @transform_5, window_bounds = array<i64: 2, 128>}, {pipeline_mode = #tpu.pipeline_mode<synchronous>, transform_indices = @transform_6, window_bounds = array<i64: 1, 128>}, {pipeline_mode = #tpu.pipeline_mode<synchronous>, transform_indices = @transform_7, window_bounds = array<i64: 1, 128>}, {transform_indices = @transform_8, window_bounds = array<i64: 256, 128>}, {transform_indices = @transform_9, window_bounds = array<i64: 256, 128>}]} {
    %c0 = arith.constant 0 : index
    %c0_0 = arith.constant 0 : index
    %0 = vector.load %arg2[%c0, %c0_0] : memref<2x128xf32, #tpu.memory_space<vmem>>, vector<2x128xf32>
    %c0_1 = arith.constant 0 : index
    %c0_2 = arith.constant 0 : index
    %1 = vector.load %arg3[%c0_1, %c0_2] : memref<1x128xf32, #tpu.memory_space<vmem>>, vector<1x128xf32>
    %c0_3 = arith.constant 0 : index
    %c0_4 = arith.constant 0 : index
    %2 = vector.load %arg4[%c0_3, %c0_4] : memref<1x128xf32, #tpu.memory_space<vmem>>, vector<1x128xf32>
    %3 = vector.extract_strided_slice %0 {offsets = [0, 0], sizes = [1, 128], strides = [1, 1]} : vector<2x128xf32> to vector<1x128xf32>
    %cst = arith.constant 0.001953125 : f32
    %4 = vector.broadcast %cst : f32 to vector<1x128xf32>
    %5 = arith.mulf %3, %4 : vector<1x128xf32>
    %6 = vector.extract_strided_slice %0 {offsets = [1, 0], sizes = [1, 128], strides = [1, 1]} : vector<2x128xf32> to vector<1x128xf32>
    %cst_5 = arith.constant 0.001953125 : f32
    %7 = vector.broadcast %cst_5 : f32 to vector<1x128xf32>
    %8 = arith.mulf %6, %7 : vector<1x128xf32>
    %9 = arith.mulf %5, %5 : vector<1x128xf32>
    %10 = arith.subf %8, %9 : vector<1x128xf32>
    %cst_6 = arith.constant 0.000000e+00 : f32
    %11 = vector.broadcast %cst_6 : f32 to vector<1x128xf32>
    %12 = arith.maximumf %10, %11 : vector<1x128xf32>
    %cst_7 = arith.constant 9.99999974E-6 : f32
    %13 = vector.broadcast %cst_7 : f32 to vector<1x128xf32>
    %14 = arith.addf %12, %13 : vector<1x128xf32>
    %15 = math.rsqrt %14 : vector<1x128xf32>
    %16 = arith.mulf %1, %15 : vector<1x128xf32>
    %17 = arith.mulf %5, %16 : vector<1x128xf32>
    %18 = arith.subf %2, %17 : vector<1x128xf32>
    %c0_8 = arith.constant 0 : index
    %c0_9 = arith.constant 0 : index
    %19 = vector.load %arg1[%c0_8, %c0_9] : memref<256x128xbf16, #tpu.memory_space<vmem>>, vector<256x128xbf16>
    %20 = arith.extf %19 : vector<256x128xbf16> to vector<256x128xf32>
    %21 = vector.broadcast %16 : vector<1x128xf32> to vector<256x128xf32>
    %22 = arith.mulf %20, %21 : vector<256x128xf32>
    %23 = vector.broadcast %18 : vector<1x128xf32> to vector<256x128xf32>
    %24 = arith.addf %22, %23 : vector<256x128xf32>
    %cst_10 = arith.constant 0.000000e+00 : f32
    %25 = vector.broadcast %cst_10 : f32 to vector<256x128xf32>
    %26 = arith.maximumf %24, %25 : vector<256x128xf32>
    %27 = arith.truncf %26 : vector<256x128xf32> to vector<256x128xbf16>
    %c0_11 = arith.constant 0 : index
    %c0_12 = arith.constant 0 : index
    %28 = vector.load %arg5[%c0_11, %c0_12] : memref<128x128xbf16, #tpu.memory_space<vmem>>, vector<128x128xbf16>
    %cst_13 = arith.constant dense<0.000000e+00> : vector<256x128xf32>
    %29 = tpu.matmul %27, %28, %cst_13 {dimension_numbers = #tpu.dot_dimension_numbers<[1], [0], [0], [1], [0, 0, 1, 1], [], []>} : vector<256x128xbf16>, vector<128x128xbf16>, vector<256x128xf32> -> vector<256x128xf32>
    %c0_14 = arith.constant 0 : index
    %c0_15 = arith.constant 0 : index
    %30 = vector.load %arg6[%c0_14, %c0_15] : memref<2x128xf32, #tpu.memory_space<vmem>>, vector<2x128xf32>
    %c0_16 = arith.constant 0 : index
    %c0_17 = arith.constant 0 : index
    %31 = vector.load %arg7[%c0_16, %c0_17] : memref<1x128xf32, #tpu.memory_space<vmem>>, vector<1x128xf32>
    %c0_18 = arith.constant 0 : index
    %c0_19 = arith.constant 0 : index
    %32 = vector.load %arg8[%c0_18, %c0_19] : memref<1x128xf32, #tpu.memory_space<vmem>>, vector<1x128xf32>
    %33 = vector.extract_strided_slice %30 {offsets = [0, 0], sizes = [1, 128], strides = [1, 1]} : vector<2x128xf32> to vector<1x128xf32>
    %cst_20 = arith.constant 0.001953125 : f32
    %34 = vector.broadcast %cst_20 : f32 to vector<1x128xf32>
    %35 = arith.mulf %33, %34 : vector<1x128xf32>
    %36 = vector.extract_strided_slice %30 {offsets = [1, 0], sizes = [1, 128], strides = [1, 1]} : vector<2x128xf32> to vector<1x128xf32>
    %cst_21 = arith.constant 0.001953125 : f32
    %37 = vector.broadcast %cst_21 : f32 to vector<1x128xf32>
    %38 = arith.mulf %36, %37 : vector<1x128xf32>
    %39 = arith.mulf %35, %35 : vector<1x128xf32>
    %40 = arith.subf %38, %39 : vector<1x128xf32>
    %cst_22 = arith.constant 0.000000e+00 : f32
    %41 = vector.broadcast %cst_22 : f32 to vector<1x128xf32>
    %42 = arith.maximumf %40, %41 : vector<1x128xf32>
    %cst_23 = arith.constant 9.99999974E-6 : f32
    %43 = vector.broadcast %cst_23 : f32 to vector<1x128xf32>
    %44 = arith.addf %42, %43 : vector<1x128xf32>
    %45 = math.rsqrt %44 : vector<1x128xf32>
    %46 = arith.mulf %31, %45 : vector<1x128xf32>
    %47 = arith.mulf %35, %46 : vector<1x128xf32>
    %48 = arith.subf %32, %47 : vector<1x128xf32>
    %49 = vector.broadcast %46 : vector<1x128xf32> to vector<256x128xf32>
    %50 = arith.mulf %29, %49 : vector<256x128xf32>
    %51 = vector.broadcast %48 : vector<1x128xf32> to vector<256x128xf32>
    %52 = arith.addf %50, %51 : vector<256x128xf32>
    %c0_24 = arith.constant 0 : index
    %c0_25 = arith.constant 0 : index
    %53 = vector.load %arg9[%c0_24, %c0_25] : memref<256x128xbf16, #tpu.memory_space<vmem>>, vector<256x128xbf16>
    %54 = arith.extf %53 : vector<256x128xbf16> to vector<256x128xf32>
    %55 = arith.addf %52, %54 : vector<256x128xf32>
    %cst_26 = arith.constant 0.000000e+00 : f32
    %56 = vector.broadcast %cst_26 : f32 to vector<256x128xf32>
    %57 = arith.maximumf %55, %56 : vector<256x128xf32>
    %c0_27 = arith.constant 0 : index
    %c0_28 = arith.constant 0 : index
    %58 = vector.load %arg10[%c0_27, %c0_28] : memref<256x128xf32, #tpu.memory_space<vmem>>, vector<256x128xf32>
    tpu.vector_store %arg10[%c0_27, %c0_28], %57 {strides = array<i32>} : memref<256x128xf32, #tpu.memory_space<vmem>>, vector<256x128xf32>,
    return
  }
  func.func @transform_0(%arg0: i32) -> (i32, i32) {
    %c0_i32 = arith.constant 0 : i32
    %c0_i32_0 = arith.constant 0 : i32
    return %arg0, %c0_i32 : i32, i32
  }
  func.func @transform_1(%arg0: i32) -> (i32, i32) {
    %c0_i32 = arith.constant 0 : i32
    %c0_i32_0 = arith.constant 0 : i32
    %c0_i32_1 = arith.constant 0 : i32
    return %c0_i32, %c0_i32_0 : i32, i32
  }
  func.func @transform_2(%arg0: i32) -> (i32, i32) {
    %c0_i32 = arith.constant 0 : i32
    %c0_i32_0 = arith.constant 0 : i32
    %c0_i32_1 = arith.constant 0 : i32
    return %c0_i32, %c0_i32_0 : i32, i32
  }
  func.func @transform_3(%arg0: i32) -> (i32, i32) {
    %c0_i32 = arith.constant 0 : i32
    %c0_i32_0 = arith.constant 0 : i32
    %c0_i32_1 = arith.constant 0 : i32
    return %c0_i32, %c0_i32_0 : i32, i32
  }
  func.func @transform_4(%arg0: i32) -> (i32, i32) {
    %c0_i32 = arith.constant 0 : i32
    %c0_i32_0 = arith.constant 0 : i32
    %c0_i32_1 = arith.constant 0 : i32
    return %c0_i32, %c0_i32_0 : i32, i32
  }
  func.func @transform_5(%arg0: i32) -> (i32, i32) {
    %c0_i32 = arith.constant 0 : i32
    %c0_i32_0 = arith.constant 0 : i32
    %c0_i32_1 = arith.constant 0 : i32
    return %c0_i32, %c0_i32_0 : i32, i32
  }
  func.func @transform_6(%arg0: i32) -> (i32, i32) {
    %c0_i32 = arith.constant 0 : i32
    %c0_i32_0 = arith.constant 0 : i32
    %c0_i32_1 = arith.constant 0 : i32
    return %c0_i32, %c0_i32_0 : i32, i32
  }
  func.func @transform_7(%arg0: i32) -> (i32, i32) {
    %c0_i32 = arith.constant 0 : i32
    %c0_i32_0 = arith.constant 0 : i32
    %c0_i32_1 = arith.constant 0 : i32
    return %c0_i32, %c0_i32_0 : i32, i32
  }
  func.func @transform_8(%arg0: i32) -> (i32, i32) {
    %c0_i32 = arith.constant 0 : i32
    %c0_i32_0 = arith.constant 0 : i32
    return %arg0, %c0_i32 : i32, i32
  }
  func.func @transform_9(%arg0: i32) -> (i32, i32) {
    %c0_i32 = arith.constant 0 : i32
    %c0_i32_0 = arith.constant 0 : i32
    return %arg0, %c0_i32 : i32, i32
  }
}

</mosaic_0001>

<llo_original>
// kernel: coarse_feature_extractor.4
$region0: #{coarse_feature_extractor.4}
  #allocation0 [shape = 'u32[]', space=smem, size = 0x4, offset = 0x4, fixed_abs, tag = 'smem constant byte address 0x4 - core index']
  #allocation1 [shape = 'u32[144,128]{1,0:T(1,128)}', space=vmem, size = 0x12000, scoped, tag = 'internal scratch']
  %s0 = inlined_call_operand.vmem [shape: bf16[512,256], index: 0, kind: input, shape index: {}]
  %s1 = inlined_call_operand.vmem [shape: bf16[256,128], index: 1, kind: input, shape index: {}]
  %s2 = inlined_call_operand.vmem [shape: f32[1,128], index: 2, kind: input, shape index: {}]
  %s3 = inlined_call_operand.vmem [shape: bf16[128,128], index: 3, kind: input, shape index: {}]
  %s4 = inlined_call_operand.vmem [shape: f32[1,128], index: 4, kind: input, shape index: {}]
  %s5 = inlined_call_operand.vmem [shape: bf16[128,128], index: 5, kind: input, shape index: {}]
  %s6 = inlined_call_operand.vmem [shape: bf16[512,128], index: 6, kind: output, shape index: {0}]
  %s7 = inlined_call_operand.vmem [shape: bf16[512,128], index: 7, kind: output, shape index: {1}]
  %s8 = inlined_call_operand.vmem [shape: f32[2,2,128], index: 8, kind: output, shape index: {2}]
  %9 = xla_tuple %s6, %s7, %s8
  %s10 = sld [smem:[#allocation0]]
  $region73: #{coarse_feature_extractor.4} parent=0
    _
  %s12 = ssub.s32 1, %s10
  %s13 = scalar_select 0, %s12, %s10
  loop: start=0, step=1, limit=4
  $region2: #{coarse_feature_extractor.4} parent=0 // loop_pre_header
    _
  $region3: #{coarse_feature_extractor.4} parent=0 // loop_header
    %s15 = sphi 0, %s19
    %p16 = scmp.ge.s32.totalorder %s15, 4
    %s25 = sphi 0, %s27
    %s28 = sphi 0, %s25
    %s29 = sphi 0, %s28
    %s45 = sphi 0, %s29
    %s49 = sphi 0, %s49
    %s51 = sphi 0, %s49
    %s52 = sphi 0, %s51
    %s66 = sphi 0, %s52
    %s70 = sphi 0, %s70
    %s72 = sphi 0, %s70
    %s73 = sphi 0, %s72
    %s87 = sphi 0, %s73
    %s91 = sphi 0, %s91
    %s93 = sphi 0, %s91
    %s94 = sphi 0, %s93
    %s108 = sphi 0, %s94
    %s112 = sphi 0, %s112
    %s114 = sphi 0, %s112
    %s115 = sphi 0, %s114
    %s129 = sphi 0, %s115
    %s133 = sphi 0, %s133
    %s135 = sphi 0, %s133
    %s136 = sphi 0, %s135
    %s150 = sphi 0, %s136
    %s156 = sphi 0, %s158
    %s159 = sphi 0, %s156
    %s160 = sphi 0, %s159
    %s176 = sphi 0, %s160
    %s182 = sphi 0, %s184
    %s185 = sphi 0, %s182
    %s186 = sphi 0, %s185
    %s202 = sphi 0, %s186
    %s208 = sphi 0, %s210
    %s211 = sphi 0, %s208
    %s212 = sphi 0, %s211
    %s228 = sphi 0, %s212
  $region4: #{coarse_feature_extractor.4} parent=0 // loop_header_branch
    %18 = sbr.rel (%p16) target = $region8
  $region5: #{coarse_feature_extractor.4} parent=0 // loop_body
    %s20 = ssub.s32 %s15, 1
    %s21 = ssub.s32 %s15, 2
    %s22 = sadd.s32 %s15, 1
    %s23 = ssub.s32 %s15, %s22
    %p24 = scmp.eq.s32.totalorder %s23, 0
    %s26 = sadd.s32 %s25, 1
    %s27 = scalar_select %p24, %s25, %s26
    %p30 = pneg %p24
    %p31 = scmp.eq.s32.totalorder %s15, 1
    %p32 = por %p30, %p31
    %p33 = scmp.ne.s32.totalorder %s25, %s28
    %p34 = scmp.eq.s32.totalorder %s15, 0
    %p35 = por %p33, %p34
    %p36 = scmp.ne.s32.totalorder %s25, %s28
    %p37 = scmp.eq.s32.totalorder %s20, 1
    %p38 = por %p36, %p37
    %p39 = scmp.ne.s32.totalorder %s28, %s29
    %p40 = scmp.eq.s32.totalorder %s20, 0
    %p41 = por %p39, %p40
    %p42 = scmp.ne.s32.totalorder %s28, %s29
    %p43 = scmp.eq.s32.totalorder %s21, 1
    %p44 = por %p42, %p43
    %p46 = scmp.ne.s32.totalorder %s29, %s45
    %p47 = scmp.eq.s32.totalorder %s21, 0
    %p48 = por %p46, %p47
    %s50 = sadd.s32 %s49, 1
    %p53 = scmp.eq.s32.totalorder %s15, 1
    %p54 = scmp.ne.s32.totalorder %s49, %s51
    %p55 = scmp.eq.s32.totalorder %s15, 0
    %p56 = por %p54, %p55
    %p57 = scmp.ne.s32.totalorder %s49, %s51
    %p58 = scmp.eq.s32.totalorder %s20, 1
    %p59 = por %p57, %p58
    %p60 = scmp.ne.s32.totalorder %s51, %s52
    %p61 = scmp.eq.s32.totalorder %s20, 0
    %p62 = por %p60, %p61
    %p63 = scmp.ne.s32.totalorder %s51, %s52
    %p64 = scmp.eq.s32.totalorder %s21, 1
    %p65 = por %p63, %p64
    %p67 = scmp.ne.s32.totalorder %s52, %s66
    %p68 = scmp.eq.s32.totalorder %s21, 0
    %p69 = por %p67, %p68
    %s71 = sadd.s32 %s70, 1
    %p74 = scmp.eq.s32.totalorder %s15, 1
    %p75 = scmp.ne.s32.totalorder %s70, %s72
    %p76 = scmp.eq.s32.totalorder %s15, 0
    %p77 = por %p75, %p76
    %p78 = scmp.ne.s32.totalorder %s70, %s72
    %p79 = scmp.eq.s32.totalorder %s20, 1
    %p80 = por %p78, %p79
    %p81 = scmp.ne.s32.totalorder %s72, %s73
    %p82 = scmp.eq.s32.totalorder %s20, 0
    %p83 = por %p81, %p82
    %p84 = scmp.ne.s32.totalorder %s72, %s73
    %p85 = scmp.eq.s32.totalorder %s21, 1
    %p86 = por %p84, %p85
    %p88 = scmp.ne.s32.totalorder %s73, %s87
    %p89 = scmp.eq.s32.totalorder %s21, 0
    %p90 = por %p88, %p89
    %s92 = sadd.s32 %s91, 1
    %p95 = scmp.eq.s32.totalorder %s15, 1
    %p96 = scmp.ne.s32.totalorder %s91, %s93
    %p97 = scmp.eq.s32.totalorder %s15, 0
    %p98 = por %p96, %p97
    %p99 = scmp.ne.s32.totalorder %s91, %s93
    %p100 = scmp.eq.s32.totalorder %s20, 1
    %p101 = por %p99, %p100
    %p102 = scmp.ne.s32.totalorder %s93, %s94
    %p103 = scmp.eq.s32.totalorder %s20, 0
    %p104 = por %p102, %p103
    %p105 = scmp.ne.s32.totalorder %s93, %s94
    %p106 = scmp.eq.s32.totalorder %s21, 1
    %p107 = por %p105, %p106
    %p109 = scmp.ne.s32.totalorder %s94, %s108
    %p110 = scmp.eq.s32.totalorder %s21, 0
    %p111 = por %p109, %p110
    %s113 = sadd.s32 %s112, 1
    %p116 = scmp.eq.s32.totalorder %s15, 1
    %p117 = scmp.ne.s32.totalorder %s112, %s114
    %p118 = scmp.eq.s32.totalorder %s15, 0
    %p119 = por %p117, %p118
    %p120 = scmp.ne.s32.totalorder %s112, %s114
    %p121 = scmp.eq.s32.totalorder %s20, 1
    %p122 = por %p120, %p121
    %p123 = scmp.ne.s32.totalorder %s114, %s115
    %p124 = scmp.eq.s32.totalorder %s20, 0
    %p125 = por %p123, %p124
    %p126 = scmp.ne.s32.totalorder %s114, %s115
    %p127 = scmp.eq.s32.totalorder %s21, 1
    %p128 = por %p126, %p127
    %p130 = scmp.ne.s32.totalorder %s115, %s129
    %p131 = scmp.eq.s32.totalorder %s21, 0
    %p132 = por %p130, %p131
    %s134 = sadd.s32 %s133, 1
    %p137 = scmp.eq.s32.totalorder %s15, 1
    %p138 = scmp.ne.s32.totalorder %s133, %s135
    %p139 = scmp.eq.s32.totalorder %s15, 0
    %p140 = por %p138, %p139
    %p141 = scmp.ne.s32.totalorder %s133, %s135
    %p142 = scmp.eq.s32.totalorder %s20, 1
    %p143 = por %p141, %p142
    %p144 = scmp.ne.s32.totalorder %s135, %s136
    %p145 = scmp.eq.s32.totalorder %s20, 0
    %p146 = por %p144, %p145
    %p147 = scmp.ne.s32.totalorder %s135, %s136
    %p148 = scmp.eq.s32.totalorder %s21, 1
    %p149 = por %p147, %p148
    %p151 = scmp.ne.s32.totalorder %s136, %s150
    %p152 = scmp.eq.s32.totalorder %s21, 0
    %p153 = por %p151, %p152
    %s154 = ssub.s32 %s15, %s22
    %p155 = scmp.eq.s32.totalorder %s154, 0
    %s157 = sadd.s32 %s156, 1
    %s158 = scalar_select %p155, %s156, %s157
    %p161 = pneg %p155
    %p162 = scmp.eq.s32.totalorder %s15, 1
    %p163 = por %p161, %p162
    %p164 = scmp.ne.s32.totalorder %s156, %s159
    %p165 = scmp.eq.s32.totalorder %s15, 0
    %p166 = por %p164, %p165
    %p167 = scmp.ne.s32.totalorder %s156, %s159
    %p168 = scmp.eq.s32.totalorder %s20, 1
    %p169 = por %p167, %p168
    %p170 = scmp.ne.s32.totalorder %s159, %s160
    %p171 = scmp.eq.s32.totalorder %s20, 0
    %p172 = por %p170, %p171
    %p173 = scmp.ne.s32.totalorder %s159, %s160
    %p174 = scmp.eq.s32.totalorder %s21, 1
    %p175 = por %p173, %p174
    %p177 = scmp.ne.s32.totalorder %s160, %s176
    %p178 = scmp.eq.s32.totalorder %s21, 0
    %p179 = por %p177, %p178
    %s180 = ssub.s32 %s15, %s22
    %p181 = scmp.eq.s32.totalorder %s180, 0
    %s183 = sadd.s32 %s182, 1
    %s184 = scalar_select %p181, %s182, %s183
    %p187 = pneg %p181
    %p188 = scmp.eq.s32.totalorder %s15, 1
    %p189 = por %p187, %p188
    %p190 = scmp.ne.s32.totalorder %s182, %s185
    %p191 = scmp.eq.s32.totalorder %s15, 0
    %p192 = por %p190, %p191
    %p193 = scmp.ne.s32.totalorder %s182, %s185
    %p194 = scmp.eq.s32.totalorder %s20, 1
    %p195 = por %p193, %p194
    %p196 = scmp.ne.s32.totalorder %s185, %s186
    %p197 = scmp.eq.s32.totalorder %s20, 0
    %p198 = por %p196, %p197
    %p199 = scmp.ne.s32.totalorder %s185, %s186
    %p200 = scmp.eq.s32.totalorder %s21, 1
    %p201 = por %p199, %p200
    %p203 = scmp.ne.s32.totalorder %s186, %s202
    %p204 = scmp.eq.s32.totalorder %s21, 0
    %p205 = por %p203, %p204
    %s206 = ssub.s32 %s15, %s22
    %p207 = scmp.eq.s32.totalorder %s206, 0
    %s209 = sadd.s32 %s208, 1
    %s210 = scalar_select %p207, %s208, %s209
    %p213 = pneg %p207
    %p214 = scmp.eq.s32.totalorder %s15, 1
    %p215 = por %p213, %p214
    %p216 = scmp.ne.s32.totalorder %s208, %s211
    %p217 = scmp.eq.s32.totalorder %s15, 0
    %p218 = por %p216, %p217
    %p219 = scmp.ne.s32.totalorder %s208, %s211
    %p220 = scmp.eq.s32.totalorder %s20, 1
    %p221 = por %p219, %p220
    %p222 = scmp.ne.s32.totalorder %s211, %s212
    %p223 = scmp.eq.s32.totalorder %s20, 0
    %p224 = por %p222, %p223
    %p225 = scmp.ne.s32.totalorder %s211, %s212
    %p226 = scmp.eq.s32.totalorder %s21, 1
    %p227 = por %p225, %p226
    %p229 = scmp.ne.s32.totalorder %s212, %s228
    %p230 = scmp.eq.s32.totalorder %s21, 0
    %p231 = por %p229, %p230
    %p232 = scmp.le.s32.totalorder 1, %s15
    %p233 = scmp.lt.s32.totalorder %s15, 3
    %p234 = pnand %p232, %p233
    %p235 = pneg %p234
    // Predicated region
    $region9: #{coarse_feature_extractor.4} parent=5 // pred_check
      _
    $region10: #{coarse_feature_extractor.4} parent=5 // pred_check_branch
      %237 = sbr.rel (%p234) target = $region12
    $region11: #{coarse_feature_extractor.4} parent=5 // pred_region
      %s238 = ssub.s32 %s15, 1
      // Predicated region
      $region13: #{coarse_feature_extractor.4} parent=11 // pred_check
        %p239 = pneg %p62
      $region14: #{coarse_feature_extractor.4} parent=11 // pred_check_branch
        %241 = sbr.rel (%p239) target = $region16
      $region15: #{coarse_feature_extractor.4} parent=11 // pred_region
        _
      $region16: #{coarse_feature_extractor.4} parent=11 // pred_fallthru
        _
      // Predicated region
      $region17: #{coarse_feature_extractor.4} parent=11 // pred_check
        %p242 = pneg %p83
      $region18: #{coarse_feature_extractor.4} parent=11 // pred_check_branch
        %244 = sbr.rel (%p242) target = $region20
      $region19: #{coarse_feature_extractor.4} parent=11 // pred_region
        _
      $region20: #{coarse_feature_extractor.4} parent=11 // pred_fallthru
        _
      // Predicated region
      $region21: #{coarse_feature_extractor.4} parent=11 // pred_check
        %p245 = pneg %p104
      $region22: #{coarse_feature_extractor.4} parent=11 // pred_check_branch
        %247 = sbr.rel (%p245) target = $region24
      $region23: #{coarse_feature_extractor.4} parent=11 // pred_region
        _
      $region24: #{coarse_feature_extractor.4} parent=11 // pred_fallthru
        _
      // Predicated region
      $region25: #{coarse_feature_extractor.4} parent=11 // pred_check
        %p248 = pneg %p125
      $region26: #{coarse_feature_extractor.4} parent=11 // pred_check_branch
        %250 = sbr.rel (%p248) target = $region28
      $region27: #{coarse_feature_extractor.4} parent=11 // pred_region
        _
      $region28: #{coarse_feature_extractor.4} parent=11 // pred_fallthru
        _
      // Predicated region
      $region29: #{coarse_feature_extractor.4} parent=11 // pred_check
        %p251 = pneg %p146
      $region30: #{coarse_feature_extractor.4} parent=11 // pred_check_branch
        %253 = sbr.rel (%p251) target = $region32
      $region31: #{coarse_feature_extractor.4} parent=11 // pred_region
        _
      $region32: #{coarse_feature_extractor.4} parent=11 // pred_fallthru
        _
    $region12: #{coarse_feature_extractor.4} parent=5 // pred_fallthru
      _
    %p254 = scmp.lt.s32.totalorder %s15, 2
    // Predicated region
    $region33: #{coarse_feature_extractor.4} parent=5 // pred_check
      %p255 = pneg %p254
    $region34: #{coarse_feature_extractor.4} parent=5 // pred_check_branch
      %257 = sbr.rel (%p255) target = $region36
    $region35: #{coarse_feature_extractor.4} parent=5 // pred_region
      // Predicated region
      $region37: #{coarse_feature_extractor.4} parent=35 // pred_check
        %p258 = pneg %p35
      $region38: #{coarse_feature_extractor.4} parent=35 // pred_check_branch
        %260 = sbr.rel (%p258) target = $region40
      $region39: #{coarse_feature_extractor.4} parent=35 // pred_region
        %s261 = smul.u32 32, %s15
        %p262 = scmp.lt.s32.totalorder %s261, 63
        %s263 = scalar_select %p262, %s261, 63
        %s264 = smul.addr %s263, 2
        %s265 = smul.addr %s264, 4
        %s266 = scalar_lea.vmem %s0, %s265
        %s267 = smul.u32 32, %s15
      $region40: #{coarse_feature_extractor.4} parent=35 // pred_fallthru
        _
    $region36: #{coarse_feature_extractor.4} parent=5 // pred_fallthru
      _
    %p268 = scmp.le.s32.totalorder 1, %s15
    %p269 = scmp.lt.s32.totalorder %s15, 3
    %p270 = pnand %p268, %p269
    %p271 = pneg %p270
    // Predicated region
    $region41: #{coarse_feature_extractor.4} parent=5 // pred_check
      _
    $region42: #{coarse_feature_extractor.4} parent=5 // pred_check_branch
      %273 = sbr.rel (%p270) target = $region44
    $region43: #{coarse_feature_extractor.4} parent=5 // pred_region
      %s274 = ssub.s32 %s15, 1
      %s275 = smul.u32 32, %s20
      %p276 = scmp.lt.s32.totalorder %s275, 63
      %s277 = scalar_select %p276, %s275, 63
      %s278 = smul.addr %s277, 2
      %s279 = smul.addr %s278, 4
      %s280 = scalar_lea.vmem %s0, %s279
      %p281 = pneg %p41
      %p282 = pneg %p38
      %p283 = pneg %p62
      %p284 = pneg %p59
      %p285 = pneg %p83
      %p286 = pneg %p80
      %p287 = pneg %p104
      %p288 = pneg %p101
      %p289 = pneg %p125
      %p290 = pneg %p122
      %p291 = pneg %p146
      %p292 = pneg %p143
      %p293 = pneg %p172
      %p294 = pneg %p169
      %s295 = smul.u32 32, %s20
      %p296 = scmp.lt.s32.totalorder %s295, 63
      %s297 = scalar_select %p296, %s295, 63
      %s298 = smul.addr %s297, 4
      %s299 = scalar_lea.vmem %s6, %s298
      %p300 = pneg %p198
      %p301 = pneg %p195
      %s302 = smul.u32 32, %s20
      %p303 = scmp.lt.s32.totalorder %s302, 63
      %s304 = scalar_select %p303, %s302, 63
      %s305 = smul.addr %s304, 4
      %s306 = scalar_lea.vmem %s7, %s305
      %p307 = pneg %p224
      %p308 = pneg %p221
      %p309 = scmp.lt.s32.totalorder %s20, 1
      %s310 = scalar_select %p309, %s20, 1
      %s311 = smul.addr %s310, 2
      %s312 = scalar_lea.vmem %s8, %s311
      %s313 = smul.u32 32, %s20
      %p314 = scmp.lt.s32.totalorder %s313, 63
      %s315 = scalar_select %p314, %s313, 63
      %s316 = smul.addr %s315, 2
      %s317 = smul.addr %s316, 4
      %s318 = scalar_lea.vmem %s0, %s317
      %s319 = smul.u32 32, %s20
      %s320 = smul.u32 32, %s20
      %p321 = scmp.lt.s32.totalorder %s320, 63
      %s322 = scalar_select %p321, %s320, 63
      %s323 = smul.addr %s322, 4
      %s324 = scalar_lea.vmem %s6, %s323
      %s325 = smul.u32 32, %s20
      %s326 = smul.u32 32, %s20
      %p327 = scmp.lt.s32.totalorder %s326, 63
      %s328 = scalar_select %p327, %s326, 63
      %s329 = smul.addr %s328, 4
      %s330 = scalar_lea.vmem %s7, %s329
      %s331 = smul.u32 32, %s20
      %p332 = scmp.lt.s32.totalorder %s20, 1
      %s333 = scalar_select %p332, %s20, 1
      %s334 = smul.addr %s333, 2
      %s335 = scalar_lea.vmem %s8, %s334
      %v337 = vld [vmem:[%s318] sm:$0xff]
      %v338 = vld [vmem:[%s318 + $0x8] sm:$0xff]
      %v339 = vld [vmem:[%s318 + $0x10] sm:$0xff]
      %v340 = vld [vmem:[%s318 + $0x18] sm:$0xff]
      %v341 = vld [vmem:[%s318 + $0x20] sm:$0xff]
      %v342 = vld [vmem:[%s318 + $0x28] sm:$0xff]
      %v343 = vld [vmem:[%s318 + $0x30] sm:$0xff]
      %v344 = vld [vmem:[%s318 + $0x38] sm:$0xff]
      %v345 = vld [vmem:[%s318 + $0x40] sm:$0xff]
      %v346 = vld [vmem:[%s318 + $0x48] sm:$0xff]
      %v347 = vld [vmem:[%s318 + $0x50] sm:$0xff]
      %v348 = vld [vmem:[%s318 + $0x58] sm:$0xff]
      %v349 = vld [vmem:[%s318 + $0x60] sm:$0xff]
      %v350 = vld [vmem:[%s318 + $0x68] sm:$0xff]
      %v351 = vld [vmem:[%s318 + $0x70] sm:$0xff]
      %v352 = vld [vmem:[%s318 + $0x78] sm:$0xff]
      %v353 = vld [vmem:[%s318 + $0x80] sm:$0xff]
      %v354 = vld [vmem:[%s318 + $0x88] sm:$0xff]
      %v355 = vld [vmem:[%s318 + $0x90] sm:$0xff]
      %v356 = vld [vmem:[%s318 + $0x98] sm:$0xff]
      %v357 = vld [vmem:[%s318 + $0xa0] sm:$0xff]
      %v358 = vld [vmem:[%s318 + $0xa8] sm:$0xff]
      %v359 = vld [vmem:[%s318 + $0xb0] sm:$0xff]
      %v360 = vld [vmem:[%s318 + $0xb8] sm:$0xff]
      %v361 = vld [vmem:[%s318 + $0xc0] sm:$0xff]
      %v362 = vld [vmem:[%s318 + $0xc8] sm:$0xff]
      %v363 = vld [vmem:[%s318 + $0xd0] sm:$0xff]
      %v364 = vld [vmem:[%s318 + $0xd8] sm:$0xff]
      %v365 = vld [vmem:[%s318 + $0xe0] sm:$0xff]
      %v366 = vld [vmem:[%s318 + $0xe8] sm:$0xff]
      %v367 = vld [vmem:[%s318 + $0xf0] sm:$0xff]
      %v368 = vld [vmem:[%s318 + $0xf8] sm:$0xff]
      %v369 = vld [vmem:[%s1] sm:$0xf]
      %v370 = vld [vmem:[%s1 + $0x4] sm:$0xf]
      %v371 = vld [vmem:[%s1 + $0x8] sm:$0xf]
      %v372 = vld [vmem:[%s1 + $0xc] sm:$0xf]
      %v373 = vld [vmem:[%s1 + $0x10] sm:$0xf]
      %v374 = vld [vmem:[%s1 + $0x14] sm:$0xf]
      %v375 = vld [vmem:[%s1 + $0x18] sm:$0xf]
      %v376 = vld [vmem:[%s1 + $0x1c] sm:$0xf]
      %v377 = vld [vmem:[%s1 + $0x20] sm:$0xf]
      %v378 = vld [vmem:[%s1 + $0x24] sm:$0xf]
      %v379 = vld [vmem:[%s1 + $0x28] sm:$0xf]
      %v380 = vld [vmem:[%s1 + $0x2c] sm:$0xf]
      %v381 = vld [vmem:[%s1 + $0x30] sm:$0xf]
      %v382 = vld [vmem:[%s1 + $0x34] sm:$0xf]
      %v383 = vld [vmem:[%s1 + $0x38] sm:$0xf]
      %v384 = vld [vmem:[%s1 + $0x3c] sm:$0xf]
      %v385 = vld [vmem:[%s1 + $0x40] sm:$0xf]
      %v386 = vld [vmem:[%s1 + $0x44] sm:$0xf]
      %v387 = vld [vmem:[%s1 + $0x48] sm:$0xf]
      %v388 = vld [vmem:[%s1 + $0x4c] sm:$0xf]
      %v389 = vld [vmem:[%s1 + $0x50] sm:$0xf]
      %v390 = vld [vmem:[%s1 + $0x54] sm:$0xf]
      %v391 = vld [vmem:[%s1 + $0x58] sm:$0xf]
      %v392 = vld [vmem:[%s1 + $0x5c] sm:$0xf]
      %v393 = vld [vmem:[%s1 + $0x60] sm:$0xf]
      %v394 = vld [vmem:[%s1 + $0x64] sm:$0xf]
      %v395 = vld [vmem:[%s1 + $0x68] sm:$0xf]
      %v396 = vld [vmem:[%s1 + $0x6c] sm:$0xf]
      %v397 = vld [vmem:[%s1 + $0x70] sm:$0xf]
      %v398 = vld [vmem:[%s1 + $0x74] sm:$0xf]
      %v399 = vld [vmem:[%s1 + $0x78] sm:$0xf]
      %v400 = vld [vmem:[%s1 + $0x7c] sm:$0xf]
      %v401 = vld [vmem:[%s2] sm:$0x1]
      %v403 = vlaneseq
      %v404 = vshrl.u32 %v403, 7
      %v405 = vsub.s32 0, %v404
      %v406 = vrot.slane %v401, %v405
      %v440 = vunpack.c.l.b16 %v337
      %v441 = vunpack.c.h.b16 %v337
      %v442 = vunpack.c.l.b16 %v338
      %v443 = vunpack.c.h.b16 %v338
      %v444 = vunpack.c.l.b16 %v339
      %v445 = vunpack.c.h.b16 %v339
      %v446 = vunpack.c.l.b16 %v340
      %v447 = vunpack.c.h.b16 %v340
      %v448 = vunpack.c.l.b16 %v341
      %v449 = vunpack.c.h.b16 %v341
      %v450 = vunpack.c.l.b16 %v342
      %v451 = vunpack.c.h.b16 %v342
      %v452 = vunpack.c.l.b16 %v343
      %v453 = vunpack.c.h.b16 %v343
      %v454 = vunpack.c.l.b16 %v344
      %v455 = vunpack.c.h.b16 %v344
      %v456 = vunpack.c.l.b16 %v345
      %v457 = vunpack.c.h.b16 %v345
      %v458 = vunpack.c.l.b16 %v346
      %v459 = vunpack.c.h.b16 %v346
      %v460 = vunpack.c.l.b16 %v347
      %v461 = vunpack.c.h.b16 %v347
      %v462 = vunpack.c.l.b16 %v348
      %v463 = vunpack.c.h.b16 %v348
      %v464 = vunpack.c.l.b16 %v349
      %v465 = vunpack.c.h.b16 %v349
      %v466 = vunpack.c.l.b16 %v350
      %v467 = vunpack.c.h.b16 %v350
      %v468 = vunpack.c.l.b16 %v351
      %v469 = vunpack.c.h.b16 %v351
      %v470 = vunpack.c.l.b16 %v352
      %v471 = vunpack.c.h.b16 %v352
      %v472 = vunpack.c.l.b16 %v353
      %v473 = vunpack.c.h.b16 %v353
      %v474 = vunpack.c.l.b16 %v354
      %v475 = vunpack.c.h.b16 %v354
      %v476 = vunpack.c.l.b16 %v355
      %v477 = vunpack.c.h.b16 %v355
      %v478 = vunpack.c.l.b16 %v356
      %v479 = vunpack.c.h.b16 %v356
      %v480 = vunpack.c.l.b16 %v357
      %v481 = vunpack.c.h.b16 %v357
      %v482 = vunpack.c.l.b16 %v358
      %v483 = vunpack.c.h.b16 %v358
      %v484 = vunpack.c.l.b16 %v359
      %v485 = vunpack.c.h.b16 %v359
      %v486 = vunpack.c.l.b16 %v360
      %v487 = vunpack.c.h.b16 %v360
      %v488 = vunpack.c.l.b16 %v361
      %v489 = vunpack.c.h.b16 %v361
      %v490 = vunpack.c.l.b16 %v362
      %v491 = vunpack.c.h.b16 %v362
      %v492 = vunpack.c.l.b16 %v363
      %v493 = vunpack.c.h.b16 %v363
      %v494 = vunpack.c.l.b16 %v364
      %v495 = vunpack.c.h.b16 %v364
      %v496 = vunpack.c.l.b16 %v365
      %v497 = vunpack.c.h.b16 %v365
      %v498 = vunpack.c.l.b16 %v366
      %v499 = vunpack.c.h.b16 %v366
      %v500 = vunpack.c.l.b16 %v367
      %v501 = vunpack.c.h.b16 %v367
      %v502 = vunpack.c.l.b16 %v368
      %v503 = vunpack.c.h.b16 %v368
      %v504 = vpack.c.b16 %v442, %v440
      %v505 = vpack.c.b16 %v443, %v441
      %v506 = vpack.c.b16 %v446, %v444
      %v507 = vpack.c.b16 %v447, %v445
      %v508 = vpack.c.b16 %v450, %v448
      %v509 = vpack.c.b16 %v451, %v449
      %v510 = vpack.c.b16 %v454, %v452
      %v511 = vpack.c.b16 %v455, %v453
      %v512 = vpack.c.b16 %v458, %v456
      %v513 = vpack.c.b16 %v459, %v457
      %v514 = vpack.c.b16 %v462, %v460
      %v515 = vpack.c.b16 %v463, %v461
      %v516 = vpack.c.b16 %v466, %v464
      %v517 = vpack.c.b16 %v467, %v465
      %v518 = vpack.c.b16 %v470, %v468
      %v519 = vpack.c.b16 %v471, %v469
      %v520 = vpack.c.b16 %v474, %v472
      %v521 = vpack.c.b16 %v475, %v473
      %v522 = vpack.c.b16 %v478, %v476
      %v523 = vpack.c.b16 %v479, %v477
      %v524 = vpack.c.b16 %v482, %v480
      %v525 = vpack.c.b16 %v483, %v481
      %v526 = vpack.c.b16 %v486, %v484
      %v527 = vpack.c.b16 %v487, %v485
      %v528 = vpack.c.b16 %v490, %v488
      %v529 = vpack.c.b16 %v491, %v489
      %v530 = vpack.c.b16 %v494, %v492
      %v531 = vpack.c.b16 %v495, %v493
      %v532 = vpack.c.b16 %v498, %v496
      %v533 = vpack.c.b16 %v499, %v497
      %v534 = vpack.c.b16 %v502, %v500
      %v535 = vpack.c.b16 %v503, %v501
      %v600 = vunpack.c.l.b16 %v369
      %v601 = vunpack.c.l.b16 %v370
      %v602 = vunpack.c.l.b16 %v371
      %v603 = vunpack.c.l.b16 %v372
      %v604 = vunpack.c.l.b16 %v373
      %v605 = vunpack.c.l.b16 %v374
      %v606 = vunpack.c.l.b16 %v375
      %v607 = vunpack.c.l.b16 %v376
      %v608 = vunpack.c.l.b16 %v377
      %v609 = vunpack.c.l.b16 %v378
      %v610 = vunpack.c.l.b16 %v379
      %v611 = vunpack.c.l.b16 %v380
      %v612 = vunpack.c.l.b16 %v381
      %v613 = vunpack.c.l.b16 %v382
      %v614 = vunpack.c.l.b16 %v383
      %v615 = vunpack.c.l.b16 %v384
      %v616 = vunpack.c.l.b16 %v385
      %v617 = vunpack.c.l.b16 %v386
      %v618 = vunpack.c.l.b16 %v387
      %v619 = vunpack.c.l.b16 %v388
      %v620 = vunpack.c.l.b16 %v389
      %v621 = vunpack.c.l.b16 %v390
      %v622 = vunpack.c.l.b16 %v391
      %v623 = vunpack.c.l.b16 %v392
      %v624 = vunpack.c.l.b16 %v393
      %v625 = vunpack.c.l.b16 %v394
      %v626 = vunpack.c.l.b16 %v395
      %v627 = vunpack.c.l.b16 %v396
      %v628 = vunpack.c.l.b16 %v397
      %v629 = vunpack.c.l.b16 %v398
      %v630 = vunpack.c.l.b16 %v399
      %v631 = vunpack.c.l.b16 %v400
      %v632 = vpack.c.b16 %v601, %v600
      %v633 = vpack.c.b16 %v603, %v602
      %v634 = vpack.c.b16 %v605, %v604
      %v635 = vpack.c.b16 %v607, %v606
      %v636 = vpack.c.b16 %v609, %v608
      %v637 = vpack.c.b16 %v611, %v610
      %v638 = vpack.c.b16 %v613, %v612
      %v639 = vpack.c.b16 %v615, %v614
      %v640 = vpack.c.b16 %v617, %v616
      %v641 = vpack.c.b16 %v619, %v618
      %v642 = vpack.c.b16 %v621, %v620
      %v643 = vpack.c.b16 %v623, %v622
      %v644 = vpack.c.b16 %v625, %v624
      %v645 = vpack.c.b16 %v627, %v626
      %v646 = vpack.c.b16 %v629, %v628
      %v647 = vpack.c.b16 %v631, %v630
      %664 = vmatprep.subr.bf16.mxu0 0
      %665 = vmatpush1.bf16.msra.mxu0 %v632
      %666 = vmatprep.subr.bf16.mxu0 0
      %667 = vmatpush1.bf16.msra.mxu0 %v633
      %668 = vmatprep.subr.bf16.mxu0 0
      %669 = vmatpush1.bf16.msra.mxu0 %v634
      %670 = vmatprep.subr.bf16.mxu0 0
      %671 = vmatpush1.bf16.msra.mxu0 %v635
      %672 = vmatprep.subr.bf16.mxu0 0
      %673 = vmatpush1.bf16.msra.mxu0 %v636
      %674 = vmatprep.subr.bf16.mxu0 0
      %675 = vmatpush1.bf16.msra.mxu0 %v637
      %676 = vmatprep.subr.bf16.mxu0 0
      %677 = vmatpush1.bf16.msra.mxu0 %v638
      %678 = vmatprep.subr.bf16.mxu0 0
      %679 = vmatpush1.bf16.msra.mxu0 %v639
      %680 = vmatprep.subr.bf16.mxu0 0
      %681 = vmatpush1.bf16.msra.mxu0 %v640
      %682 = vmatprep.subr.bf16.mxu0 0
      %683 = vmatpush1.bf16.msra.mxu0 %v641
      %684 = vmatprep.subr.bf16.mxu0 0
      %685 = vmatpush1.bf16.msra.mxu0 %v642
      %686 = vmatprep.subr.bf16.mxu0 0
      %687 = vmatpush1.bf16.msra.mxu0 %v643
      %688 = vmatprep.subr.bf16.mxu0 0
      %689 = vmatpush1.bf16.msra.mxu0 %v644
      %690 = vmatprep.subr.bf16.mxu0 0
      %691 = vmatpush1.bf16.msra.mxu0 %v645
      %692 = vmatprep.subr.bf16.mxu0 0
      %693 = vmatpush1.bf16.msra.mxu0 %v646
      %694 = vmatprep.subr.bf16.mxu0 0
      %695 = vmatpush1.bf16.msra.mxu0 %v647
      %696 = vmatprep.mubr.bf16.mxu0 %v505
      %697 = vmatmul.mubr.bf16.gmra.mrb[0].mxu0 %v504
      %v698 = vpop.f32.mrb[0].mxu0
      %v699 = vadd.f32 %v406, %v698
      %v700 = vpop.f32.mrb[0].mxu0
      %v701 = vpop.f32.mrb[0].mxu0
      %v702 = vadd.f32 %v406, %v701
      %v703 = vpop.f32.mrb[0].mxu0
      %704 = vmatprep.mubr.bf16.mxu0 %v507
      %705 = vmatmul.mubr.bf16.gmra.mrb[0].mxu0 %v506
      %v706 = vpop.f32.mrb[0].mxu0
      %v707 = vadd.f32 %v406, %v706
      %v708 = vpop.f32.mrb[0].mxu0
      %v709 = vpop.f32.mrb[0].mxu0
      %v710 = vadd.f32 %v406, %v709
      %v711 = vpop.f32.mrb[0].mxu0
      %712 = vmatprep.mubr.bf16.mxu0 %v509
      %713 = vmatmul.mubr.bf16.gmra.mrb[0].mxu0 %v508
      %v714 = vpop.f32.mrb[0].mxu0
      %v715 = vadd.f32 %v406, %v714
      %v716 = vpop.f32.mrb[0].mxu0
      %v717 = vpop.f32.mrb[0].mxu0
      %v718 = vadd.f32 %v406, %v717
      %v719 = vpop.f32.mrb[0].mxu0
      %720 = vmatprep.mubr.bf16.mxu0 %v511
      %721 = vmatmul.mubr.bf16.gmra.mrb[0].mxu0 %v510
      %v722 = vpop.f32.mrb[0].mxu0
      %v723 = vadd.f32 %v406, %v722
      %v724 = vpop.f32.mrb[0].mxu0
      %v725 = vpop.f32.mrb[0].mxu0
      %v726 = vadd.f32 %v406, %v725
      %v727 = vpop.f32.mrb[0].mxu0
      %728 = vmatprep.mubr.bf16.mxu0 %v513
      %729 = vmatmul.mubr.bf16.gmra.mrb[0].mxu0 %v512
      %v730 = vpop.f32.mrb[0].mxu0
      %v731 = vadd.f32 %v406, %v730
      %v732 = vpop.f32.mrb[0].mxu0
      %v733 = vpop.f32.mrb[0].mxu0
      %v734 = vadd.f32 %v406, %v733
      %v735 = vpop.f32.mrb[0].mxu0
      %736 = vmatprep.mubr.bf16.mxu0 %v515
      %737 = vmatmul.mubr.bf16.gmra.mrb[0].mxu0 %v514
      %v738 = vpop.f32.mrb[0].mxu0
      %v739 = vadd.f32 %v406, %v738
      %v740 = vpop.f32.mrb[0].mxu0
      %v741 = vpop.f32.mrb[0].mxu0
      %v742 = vadd.f32 %v406, %v741
      %v743 = vpop.f32.mrb[0].mxu0
      %744 = vmatprep.mubr.bf16.mxu0 %v517
      %745 = vmatmul.mubr.bf16.gmra.mrb[0].mxu0 %v516
      %v746 = vpop.f32.mrb[0].mxu0
      %v747 = vadd.f32 %v406, %v746
      %v748 = vpop.f32.mrb[0].mxu0
      %v749 = vpop.f32.mrb[0].mxu0
      %v750 = vadd.f32 %v406, %v749
      %v751 = vpop.f32.mrb[0].mxu0
      %752 = vmatprep.mubr.bf16.mxu0 %v519
      %753 = vmatmul.mubr.bf16.gmra.mrb[0].mxu0 %v518
      %v754 = vpop.f32.mrb[0].mxu0
      %v755 = vadd.f32 %v406, %v754
      %v756 = vpop.f32.mrb[0].mxu0
      %v757 = vpop.f32.mrb[0].mxu0
      %v758 = vadd.f32 %v406, %v757
      %v759 = vpop.f32.mrb[0].mxu0
      %760 = vmatprep.mubr.bf16.mxu0 %v521
      %761 = vmatmul.mubr.bf16.gmra.mrb[0].mxu0 %v520
      %v762 = vpop.f32.mrb[0].mxu0
      %v763 = vadd.f32 %v406, %v762
      %v764 = vpop.f32.mrb[0].mxu0
      %v765 = vpop.f32.mrb[0].mxu0
      %v766 = vadd.f32 %v406, %v765
      %v767 = vpop.f32.mrb[0].mxu0
      %768 = vmatprep.mubr.bf16.mxu0 %v523
      %769 = vmatmul.mubr.bf16.gmra.mrb[0].mxu0 %v522
      %v770 = vpop.f32.mrb[0].mxu0
      %v771 = vadd.f32 %v406, %v770
      %v772 = vpop.f32.mrb[0].mxu0
      %v773 = vpop.f32.mrb[0].mxu0
      %v774 = vadd.f32 %v406, %v773
      %v775 = vpop.f32.mrb[0].mxu0
      %776 = vmatprep.mubr.bf16.mxu0 %v525
      %777 = vmatmul.mubr.bf16.gmra.mrb[0].mxu0 %v524
      %v778 = vpop.f32.mrb[0].mxu0
      %v779 = vadd.f32 %v406, %v778
      %v780 = vpop.f32.mrb[0].mxu0
      %v781 = vpop.f32.mrb[0].mxu0
      %v782 = vadd.f32 %v406, %v781
      %v783 = vpop.f32.mrb[0].mxu0
      %784 = vmatprep.mubr.bf16.mxu0 %v527
      %785 = vmatmul.mubr.bf16.gmra.mrb[0].mxu0 %v526
      %v786 = vpop.f32.mrb[0].mxu0
      %v787 = vadd.f32 %v406, %v786
      %v788 = vpop.f32.mrb[0].mxu0
      %v789 = vpop.f32.mrb[0].mxu0
      %v790 = vadd.f32 %v406, %v789
      %v791 = vpop.f32.mrb[0].mxu0
      %792 = vmatprep.mubr.bf16.mxu0 %v529
      %793 = vmatmul.mubr.bf16.gmra.mrb[0].mxu0 %v528
      %v794 = vpop.f32.mrb[0].mxu0
      %v795 = vadd.f32 %v406, %v794
      %v796 = vpop.f32.mrb[0].mxu0
      %v797 = vpop.f32.mrb[0].mxu0
      %v798 = vadd.f32 %v406, %v797
      %v799 = vpop.f32.mrb[0].mxu0
      %800 = vmatprep.mubr.bf16.mxu0 %v531
      %801 = vmatmul.mubr.bf16.gmra.mrb[0].mxu0 %v530
      %v802 = vpop.f32.mrb[0].mxu0
      %v803 = vadd.f32 %v406, %v802
      %v804 = vpop.f32.mrb[0].mxu0
      %v805 = vpop.f32.mrb[0].mxu0
      %v806 = vadd.f32 %v406, %v805
      %v807 = vpop.f32.mrb[0].mxu0
      %808 = vmatprep.mubr.bf16.mxu0 %v533
      %809 = vmatmul.mubr.bf16.gmra.mrb[0].mxu0 %v532
      %v810 = vpop.f32.mrb[0].mxu0
      %v811 = vadd.f32 %v406, %v810
      %v812 = vpop.f32.mrb[0].mxu0
      %v813 = vpop.f32.mrb[0].mxu0
      %v814 = vadd.f32 %v406, %v813
      %v815 = vpop.f32.mrb[0].mxu0
      %816 = vmatprep.mubr.bf16.mxu0 %v535
      %817 = vmatmul.mubr.bf16.gmra.mrb[0].mxu0 %v534
      %v818 = vpop.f32.mrb[0].mxu0
      %v819 = vadd.f32 %v406, %v818
      %v820 = vpop.f32.mrb[0].mxu0
      %v821 = vpop.f32.mrb[0].mxu0
      %v822 = vadd.f32 %v406, %v821
      %v823 = vpop.f32.mrb[0].mxu0
      %824 = vdwg.mxu0
      %v825 = vpack.c.bf16 %v702, %v699
      %v826 = vpack.c.bf16 %v710, %v707
      %v827 = vpack.c.bf16 %v718, %v715
      %v828 = vpack.c.bf16 %v726, %v723
      %v829 = vpack.c.bf16 %v734, %v731
      %v830 = vpack.c.bf16 %v742, %v739
      %v831 = vpack.c.bf16 %v750, %v747
      %v832 = vpack.c.bf16 %v758, %v755
      %v833 = vpack.c.bf16 %v766, %v763
      %v834 = vpack.c.bf16 %v774, %v771
      %v835 = vpack.c.bf16 %v782, %v779
      %v836 = vpack.c.bf16 %v790, %v787
      %v837 = vpack.c.bf16 %v798, %v795
      %v838 = vpack.c.bf16 %v806, %v803
      %v839 = vpack.c.bf16 %v814, %v811
      %v840 = vpack.c.bf16 %v822, %v819
      %v841 = vld [vmem:[%s3] sm:$0xf]
      %v842 = vld [vmem:[%s3 + $0x4] sm:$0xf]
      %v843 = vld [vmem:[%s3 + $0x8] sm:$0xf]
      %v844 = vld [vmem:[%s3 + $0xc] sm:$0xf]
      %v845 = vld [vmem:[%s3 + $0x10] sm:$0xf]
      %v846 = vld [vmem:[%s3 + $0x14] sm:$0xf]
      %v847 = vld [vmem:[%s3 + $0x18] sm:$0xf]
      %v848 = vld [vmem:[%s3 + $0x1c] sm:$0xf]
      %v849 = vld [vmem:[%s3 + $0x20] sm:$0xf]
      %v850 = vld [vmem:[%s3 + $0x24] sm:$0xf]
      %v851 = vld [vmem:[%s3 + $0x28] sm:$0xf]
      %v852 = vld [vmem:[%s3 + $0x2c] sm:$0xf]
      %v853 = vld [vmem:[%s3 + $0x30] sm:$0xf]
      %v854 = vld [vmem:[%s3 + $0x34] sm:$0xf]
      %v855 = vld [vmem:[%s3 + $0x38] sm:$0xf]
      %v856 = vld [vmem:[%s3 + $0x3c] sm:$0xf]
      %v857 = vld [vmem:[%s4] sm:$0x1]
      %v859 = vlaneseq
      %v860 = vshrl.u32 %v859, 7
      %v861 = vsub.s32 0, %v860
      %v862 = vrot.slane %v857, %v861
      %v880 = vunpack.c.l.b16 %v841
      %v881 = vunpack.c.l.b16 %v842
      %v882 = vunpack.c.l.b16 %v843
      %v883 = vunpack.c.l.b16 %v844
      %v884 = vunpack.c.l.b16 %v845
      %v885 = vunpack.c.l.b16 %v846
      %v886 = vunpack.c.l.b16 %v847
      %v887 = vunpack.c.l.b16 %v848
      %v888 = vunpack.c.l.b16 %v849
      %v889 = vunpack.c.l.b16 %v850
      %v890 = vunpack.c.l.b16 %v851
      %v891 = vunpack.c.l.b16 %v852
      %v892 = vunpack.c.l.b16 %v853
      %v893 = vunpack.c.l.b16 %v854
      %v894 = vunpack.c.l.b16 %v855
      %v895 = vunpack.c.l.b16 %v856
      %v896 = vpack.c.b16 %v881, %v880
      %v897 = vpack.c.b16 %v883, %v882
      %v898 = vpack.c.b16 %v885, %v884
      %v899 = vpack.c.b16 %v887, %v886
      %v900 = vpack.c.b16 %v889, %v888
      %v901 = vpack.c.b16 %v891, %v890
      %v902 = vpack.c.b16 %v893, %v892
      %v903 = vpack.c.b16 %v895, %v894
      %912 = vmatprep.subr.bf16.mxu0 0
      %913 = vmatpush1.bf16.msra.mxu0 %v896
      %914 = vmatprep.subr.bf16.mxu0 0
      %915 = vmatpush1.bf16.msra.mxu0 %v897
      %916 = vmatprep.subr.bf16.mxu0 0
      %917 = vmatpush1.bf16.msra.mxu0 %v898
      %918 = vmatprep.subr.bf16.mxu0 0
      %919 = vmatpush1.bf16.msra.mxu0 %v899
      %920 = vmatprep.subr.bf16.mxu0 0
      %921 = vmatpush1.bf16.msra.mxu0 %v900
      %922 = vmatprep.subr.bf16.mxu0 0
      %923 = vmatpush1.bf16.msra.mxu0 %v901
      %924 = vmatprep.subr.bf16.mxu0 0
      %925 = vmatpush1.bf16.msra.mxu0 %v902
      %926 = vmatprep.subr.bf16.mxu0 0
      %927 = vmatpush1.bf16.msra.mxu0 %v903
      %928 = vmatprep.subr.bf16.mxu0 0
      %929 = vmatpush1.bf16.msra.mxu0 0
      %930 = vmatprep.subr.bf16.mxu0 0
      %931 = vmatpush1.bf16.msra.mxu0 0
      %932 = vmatprep.subr.bf16.mxu0 0
      %933 = vmatpush1.bf16.msra.mxu0 0
      %934 = vmatprep.subr.bf16.mxu0 0
      %935 = vmatpush1.bf16.msra.mxu0 0
      %936 = vmatprep.subr.bf16.mxu0 0
      %937 = vmatpush1.bf16.msra.mxu0 0
      %938 = vmatprep.subr.bf16.mxu0 0
      %939 = vmatpush1.bf16.msra.mxu0 0
      %940 = vmatprep.subr.bf16.mxu0 0
      %941 = vmatpush1.bf16.msra.mxu0 0
      %942 = vmatprep.subr.bf16.mxu0 0
      %943 = vmatpush1.bf16.msra.mxu0 0
      %944 = vmatprep.mubr.bf16.mxu0 0
      %945 = vmatmul.mubr.bf16.gmra.mrb[0].mxu0 %v825
      %v946 = vpop.f32.mrb[0].mxu0
      %v947 = vadd.f32 %v862, %v946
      %v948 = vpop.f32.mrb[0].mxu0
      %v949 = vpop.f32.mrb[0].mxu0
      %v950 = vadd.f32 %v862, %v949
      %v951 = vpop.f32.mrb[0].mxu0
      %952 = vmatprep.mubr.bf16.mxu0 0
      %953 = vmatmul.mubr.bf16.gmra.mrb[0].mxu0 %v826
      %v954 = vpop.f32.mrb[0].mxu0
      %v955 = vadd.f32 %v862, %v954
      %v956 = vpop.f32.mrb[0].mxu0
      %v957 = vpop.f32.mrb[0].mxu0
      %v958 = vadd.f32 %v862, %v957
      %v959 = vpop.f32.mrb[0].mxu0
      %960 = vmatprep.mubr.bf16.mxu0 0
      %961 = vmatmul.mubr.bf16.gmra.mrb[0].mxu0 %v827
      %v962 = vpop.f32.mrb[0].mxu0
      %v963 = vadd.f32 %v862, %v962
      %v964 = vpop.f32.mrb[0].mxu0
      %v965 = vpop.f32.mrb[0].mxu0
      %v966 = vadd.f32 %v862, %v965
      %v967 = vpop.f32.mrb[0].mxu0
      %968 = vmatprep.mubr.bf16.mxu0 0
      %969 = vmatmul.mubr.bf16.gmra.mrb[0].mxu0 %v828
      %v970 = vpop.f32.mrb[0].mxu0
      %v971 = vadd.f32 %v862, %v970
      %v972 = vpop.f32.mrb[0].mxu0
      %v973 = vpop.f32.mrb[0].mxu0
      %v974 = vadd.f32 %v862, %v973
      %v975 = vpop.f32.mrb[0].mxu0
      %976 = vmatprep.mubr.bf16.mxu0 0
      %977 = vmatmul.mubr.bf16.gmra.mrb[0].mxu0 %v829
      %v978 = vpop.f32.mrb[0].mxu0
      %v979 = vadd.f32 %v862, %v978
      %v980 = vpop.f32.mrb[0].mxu0
      %v981 = vpop.f32.mrb[0].mxu0
      %v982 = vadd.f32 %v862, %v981
      %v983 = vpop.f32.mrb[0].mxu0
      %984 = vmatprep.mubr.bf16.mxu0 0
      %985 = vmatmul.mubr.bf16.gmra.mrb[0].mxu0 %v830
      %v986 = vpop.f32.mrb[0].mxu0
      %v987 = vadd.f32 %v862, %v986
      %v988 = vpop.f32.mrb[0].mxu0
      %v989 = vpop.f32.mrb[0].mxu0
      %v990 = vadd.f32 %v862, %v989
      %v991 = vpop.f32.mrb[0].mxu0
      %992 = vmatprep.mubr.bf16.mxu0 0
      %993 = vmatmul.mubr.bf16.gmra.mrb[0].mxu0 %v831
      %v994 = vpop.f32.mrb[0].mxu0
      %v995 = vadd.f32 %v862, %v994
      %v996 = vpop.f32.mrb[0].mxu0
      %v997 = vpop.f32.mrb[0].mxu0
      %v998 = vadd.f32 %v862, %v997
      %v999 = vpop.f32.mrb[0].mxu0
      %1000 = vmatprep.mubr.bf16.mxu0 0
      %1001 = vmatmul.mubr.bf16.gmra.mrb[0].mxu0 %v832
      %v1002 = vpop.f32.mrb[0].mxu0
      %v1003 = vadd.f32 %v862, %v1002
      %v1004 = vpop.f32.mrb[0].mxu0
      %v1005 = vpop.f32.mrb[0].mxu0
      %v1006 = vadd.f32 %v862, %v1005
      %v1007 = vpop.f32.mrb[0].mxu0
      %1008 = vmatprep.mubr.bf16.mxu0 0
      %1009 = vmatmul.mubr.bf16.gmra.mrb[0].mxu0 %v833
      %v1010 = vpop.f32.mrb[0].mxu0
      %v1011 = vadd.f32 %v862, %v1010
      %v1012 = vpop.f32.mrb[0].mxu0
      %v1013 = vpop.f32.mrb[0].mxu0
      %v1014 = vadd.f32 %v862, %v1013
      %v1015 = vpop.f32.mrb[0].mxu0
      %1016 = vmatprep.mubr.bf16.mxu0 0
      %1017 = vmatmul.mubr.bf16.gmra.mrb[0].mxu0 %v834
      %v1018 = vpop.f32.mrb[0].mxu0
      %v1019 = vadd.f32 %v862, %v1018
      %v1020 = vpop.f32.mrb[0].mxu0
      %v1021 = vpop.f32.mrb[0].mxu0
      %v1022 = vadd.f32 %v862, %v1021
      %v1023 = vpop.f32.mrb[0].mxu0
      %1024 = vmatprep.mubr.bf16.mxu0 0
      %1025 = vmatmul.mubr.bf16.gmra.mrb[0].mxu0 %v835
      %v1026 = vpop.f32.mrb[0].mxu0
      %v1027 = vadd.f32 %v862, %v1026
      %v1028 = vpop.f32.mrb[0].mxu0
      %v1029 = vpop.f32.mrb[0].mxu0
      %v1030 = vadd.f32 %v862, %v1029
      %v1031 = vpop.f32.mrb[0].mxu0
      %1032 = vmatprep.mubr.bf16.mxu0 0
      %1033 = vmatmul.mubr.bf16.gmra.mrb[0].mxu0 %v836
      %v1034 = vpop.f32.mrb[0].mxu0
      %v1035 = vadd.f32 %v862, %v1034
      %v1036 = vpop.f32.mrb[0].mxu0
      %v1037 = vpop.f32.mrb[0].mxu0
      %v1038 = vadd.f32 %v862, %v1037
      %v1039 = vpop.f32.mrb[0].mxu0
      %1040 = vmatprep.mubr.bf16.mxu0 0
      %1041 = vmatmul.mubr.bf16.gmra.mrb[0].mxu0 %v837
      %v1042 = vpop.f32.mrb[0].mxu0
      %v1043 = vadd.f32 %v862, %v1042
      %v1044 = vpop.f32.mrb[0].mxu0
      %v1045 = vpop.f32.mrb[0].mxu0
      %v1046 = vadd.f32 %v862, %v1045
      %v1047 = vpop.f32.mrb[0].mxu0
      %1048 = vmatprep.mubr.bf16.mxu0 0
      %1049 = vmatmul.mubr.bf16.gmra.mrb[0].mxu0 %v838
      %v1050 = vpop.f32.mrb[0].mxu0
      %v1051 = vadd.f32 %v862, %v1050
      %v1052 = vpop.f32.mrb[0].mxu0
      %v1053 = vpop.f32.mrb[0].mxu0
      %v1054 = vadd.f32 %v862, %v1053
      %v1055 = vpop.f32.mrb[0].mxu0
      %1056 = vmatprep.mubr.bf16.mxu0 0
      %1057 = vmatmul.mubr.bf16.gmra.mrb[0].mxu0 %v839
      %v1058 = vpop.f32.mrb[0].mxu0
      %v1059 = vadd.f32 %v862, %v1058
      %v1060 = vpop.f32.mrb[0].mxu0
      %v1061 = vpop.f32.mrb[0].mxu0
      %v1062 = vadd.f32 %v862, %v1061
      %v1063 = vpop.f32.mrb[0].mxu0
      %1064 = vmatprep.mubr.bf16.mxu0 0
      %1065 = vmatmul.mubr.bf16.gmra.mrb[0].mxu0 %v840
      %v1066 = vpop.f32.mrb[0].mxu0
      %v1067 = vadd.f32 %v862, %v1066
      %v1068 = vpop.f32.mrb[0].mxu0
      %v1069 = vpop.f32.mrb[0].mxu0
      %v1070 = vadd.f32 %v862, %v1069
      %v1071 = vpop.f32.mrb[0].mxu0
      %1072 = vdwg.mxu0
      %v1073 = vpack.c.bf16 %v950, %v947
      %v1074 = vpack.c.bf16 %v958, %v955
      %v1075 = vpack.c.bf16 %v966, %v963
      %v1076 = vpack.c.bf16 %v974, %v971
      %v1077 = vpack.c.bf16 %v982, %v979
      %v1078 = vpack.c.bf16 %v990, %v987
      %v1079 = vpack.c.bf16 %v998, %v995
      %v1080 = vpack.c.bf16 %v1006, %v1003
      %v1081 = vpack.c.bf16 %v1014, %v1011
      %v1082 = vpack.c.bf16 %v1022, %v1019
      %v1083 = vpack.c.bf16 %v1030, %v1027
      %v1084 = vpack.c.bf16 %v1038, %v1035
      %v1085 = vpack.c.bf16 %v1046, %v1043
      %v1086 = vpack.c.bf16 %v1054, %v1051
      %v1087 = vpack.c.bf16 %v1062, %v1059
      %v1088 = vpack.c.bf16 %v1070, %v1067
      %v1105 = vunpack.c.l.b16 %v1073
      %v1106 = vunpack.c.h.b16 %v1073
      %v1107 = vunpack.c.l.b16 %v1074
      %v1108 = vunpack.c.h.b16 %v1074
      %v1109 = vunpack.c.l.b16 %v1075
      %v1110 = vunpack.c.h.b16 %v1075
      %v1111 = vunpack.c.l.b16 %v1076
      %v1112 = vunpack.c.h.b16 %v1076
      %v1113 = vunpack.c.l.b16 %v1077
      %v1114 = vunpack.c.h.b16 %v1077
      %v1115 = vunpack.c.l.b16 %v1078
      %v1116 = vunpack.c.h.b16 %v1078
      %v1117 = vunpack.c.l.b16 %v1079
      %v1118 = vunpack.c.h.b16 %v1079
      %v1119 = vunpack.c.l.b16 %v1080
      %v1120 = vunpack.c.h.b16 %v1080
      %v1121 = vunpack.c.l.b16 %v1081
      %v1122 = vunpack.c.h.b16 %v1081
      %v1123 = vunpack.c.l.b16 %v1082
      %v1124 = vunpack.c.h.b16 %v1082
      %v1125 = vunpack.c.l.b16 %v1083
      %v1126 = vunpack.c.h.b16 %v1083
      %v1127 = vunpack.c.l.b16 %v1084
      %v1128 = vunpack.c.h.b16 %v1084
      %v1129 = vunpack.c.l.b16 %v1085
      %v1130 = vunpack.c.h.b16 %v1085
      %v1131 = vunpack.c.l.b16 %v1086
      %v1132 = vunpack.c.h.b16 %v1086
      %v1133 = vunpack.c.l.b16 %v1087
      %v1134 = vunpack.c.h.b16 %v1087
      %v1135 = vunpack.c.l.b16 %v1088
      %v1136 = vunpack.c.h.b16 %v1088
      %v1137 = vpack.c.b16 %v1105, %v1105
      %v1138 = vpack.c.b16 %v1106, %v1106
      %v1139 = vpack.c.b16 %v1107, %v1107
      %v1140 = vpack.c.b16 %v1108, %v1108
      %v1141 = vpack.c.b16 %v1109, %v1109
      %v1142 = vpack.c.b16 %v1110, %v1110
      %v1143 = vpack.c.b16 %v1111, %v1111
      %v1144 = vpack.c.b16 %v1112, %v1112
      %v1145 = vpack.c.b16 %v1113, %v1113
      %v1146 = vpack.c.b16 %v1114, %v1114
      %v1147 = vpack.c.b16 %v1115, %v1115
      %v1148 = vpack.c.b16 %v1116, %v1116
      %v1149 = vpack.c.b16 %v1117, %v1117
      %v1150 = vpack.c.b16 %v1118, %v1118
      %v1151 = vpack.c.b16 %v1119, %v1119
      %v1152 = vpack.c.b16 %v1120, %v1120
      %v1153 = vpack.c.b16 %v1121, %v1121
      %v1154 = vpack.c.b16 %v1122, %v1122
      %v1155 = vpack.c.b16 %v1123, %v1123
      %v1156 = vpack.c.b16 %v1124, %v1124
      %v1157 = vpack.c.b16 %v1125, %v1125
      %v1158 = vpack.c.b16 %v1126, %v1126
      %v1159 = vpack.c.b16 %v1127, %v1127
      %v1160 = vpack.c.b16 %v1128, %v1128
      %v1161 = vpack.c.b16 %v1129, %v1129
      %v1162 = vpack.c.b16 %v1130, %v1130
      %v1163 = vpack.c.b16 %v1131, %v1131
      %v1164 = vpack.c.b16 %v1132, %v1132
      %v1165 = vpack.c.b16 %v1133, %v1133
      %v1166 = vpack.c.b16 %v1134, %v1134
      %v1167 = vpack.c.b16 %v1135, %v1135
      %v1168 = vpack.c.b16 %v1136, %v1136
      %1201 = vst [vmem:[%s324] sm:$0xf] %v1137
      %1202 = vst [vmem:[%s324 + $0x4] sm:$0xf] %v1138
      %1203 = vst [vmem:[%s324 + $0x8] sm:$0xf] %v1139
      %1204 = vst [vmem:[%s324 + $0xc] sm:$0xf] %v1140
      %1205 = vst [vmem:[%s324 + $0x10] sm:$0xf] %v1141
      %1206 = vst [vmem:[%s324 + $0x14] sm:$0xf] %v1142
      %1207 = vst [vmem:[%s324 + $0x18] sm:$0xf] %v1143
      %1208 = vst [vmem:[%s324 + $0x1c] sm:$0xf] %v1144
      %1209 = vst [vmem:[%s324 + $0x20] sm:$0xf] %v1145
      %1210 = vst [vmem:[%s324 + $0x24] sm:$0xf] %v1146
      %1211 = vst [vmem:[%s324 + $0x28] sm:$0xf] %v1147
      %1212 = vst [vmem:[%s324 + $0x2c] sm:$0xf] %v1148
      %1213 = vst [vmem:[%s324 + $0x30] sm:$0xf] %v1149
      %1214 = vst [vmem:[%s324 + $0x34] sm:$0xf] %v1150
      %1215 = vst [vmem:[%s324 + $0x38] sm:$0xf] %v1151
      %1216 = vst [vmem:[%s324 + $0x3c] sm:$0xf] %v1152
      %1217 = vst [vmem:[%s324 + $0x40] sm:$0xf] %v1153
      %1218 = vst [vmem:[%s324 + $0x44] sm:$0xf] %v1154
      %1219 = vst [vmem:[%s324 + $0x48] sm:$0xf] %v1155
      %1220 = vst [vmem:[%s324 + $0x4c] sm:$0xf] %v1156
      %1221 = vst [vmem:[%s324 + $0x50] sm:$0xf] %v1157
      %1222 = vst [vmem:[%s324 + $0x54] sm:$0xf] %v1158
      %1223 = vst [vmem:[%s324 + $0x58] sm:$0xf] %v1159
      %1224 = vst [vmem:[%s324 + $0x5c] sm:$0xf] %v1160
      %1225 = vst [vmem:[%s324 + $0x60] sm:$0xf] %v1161
      %1226 = vst [vmem:[%s324 + $0x64] sm:$0xf] %v1162
      %1227 = vst [vmem:[%s324 + $0x68] sm:$0xf] %v1163
      %1228 = vst [vmem:[%s324 + $0x6c] sm:$0xf] %v1164
      %1229 = vst [vmem:[%s324 + $0x70] sm:$0xf] %v1165
      %1230 = vst [vmem:[%s324 + $0x74] sm:$0xf] %v1166
      %1231 = vst [vmem:[%s324 + $0x78] sm:$0xf] %v1167
      %1232 = vst [vmem:[%s324 + $0x7c] sm:$0xf] %v1168
      %v1233 = vld [vmem:[%s5] sm:$0xf]
      %v1234 = vld [vmem:[%s5 + $0x4] sm:$0xf]
      %v1235 = vld [vmem:[%s5 + $0x8] sm:$0xf]
      %v1236 = vld [vmem:[%s5 + $0xc] sm:$0xf]
      %v1237 = vld [vmem:[%s5 + $0x10] sm:$0xf]
      %v1238 = vld [vmem:[%s5 + $0x14] sm:$0xf]
      %v1239 = vld [vmem:[%s5 + $0x18] sm:$0xf]
      %v1240 = vld [vmem:[%s5 + $0x1c] sm:$0xf]
      %v1241 = vld [vmem:[%s5 + $0x20] sm:$0xf]
      %v1242 = vld [vmem:[%s5 + $0x24] sm:$0xf]
      %v1243 = vld [vmem:[%s5 + $0x28] sm:$0xf]
      %v1244 = vld [vmem:[%s5 + $0x2c] sm:$0xf]
      %v1245 = vld [vmem:[%s5 + $0x30] sm:$0xf]
      %v1246 = vld [vmem:[%s5 + $0x34] sm:$0xf]
      %v1247 = vld [vmem:[%s5 + $0x38] sm:$0xf]
      %v1248 = vld [vmem:[%s5 + $0x3c] sm:$0xf]
      %v1265 = vunpack.c.l.b16 %v1233
      %v1266 = vunpack.c.l.b16 %v1234
      %v1267 = vunpack.c.l.b16 %v1235
      %v1268 = vunpack.c.l.b16 %v1236
      %v1269 = vunpack.c.l.b16 %v1237
      %v1270 = vunpack.c.l.b16 %v1238
      %v1271 = vunpack.c.l.b16 %v1239
      %v1272 = vunpack.c.l.b16 %v1240
      %v1273 = vunpack.c.l.b16 %v1241
      %v1274 = vunpack.c.l.b16 %v1242
      %v1275 = vunpack.c.l.b16 %v1243
      %v1276 = vunpack.c.l.b16 %v1244
      %v1277 = vunpack.c.l.b16 %v1245
      %v1278 = vunpack.c.l.b16 %v1246
      %v1279 = vunpack.c.l.b16 %v1247
      %v1280 = vunpack.c.l.b16 %v1248
      %v1281 = vpack.c.b16 %v1266, %v1265
      %v1282 = vpack.c.b16 %v1268, %v1267
      %v1283 = vpack.c.b16 %v1270, %v1269
      %v1284 = vpack.c.b16 %v1272, %v1271
      %v1285 = vpack.c.b16 %v1274, %v1273
      %v1286 = vpack.c.b16 %v1276, %v1275
      %v1287 = vpack.c.b16 %v1278, %v1277
      %v1288 = vpack.c.b16 %v1280, %v1279
      %1297 = vmatprep.subr.bf16.mxu0 0
      %1298 = vmatpush1.bf16.msra.mxu0 %v1281
      %1299 = vmatprep.subr.bf16.mxu0 0
      %1300 = vmatpush1.bf16.msra.mxu0 %v1282
      %1301 = vmatprep.subr.bf16.mxu0 0
      %1302 = vmatpush1.bf16.msra.mxu0 %v1283
      %1303 = vmatprep.subr.bf16.mxu0 0
      %1304 = vmatpush1.bf16.msra.mxu0 %v1284
      %1305 = vmatprep.subr.bf16.mxu0 0
      %1306 = vmatpush1.bf16.msra.mxu0 %v1285
      %1307 = vmatprep.subr.bf16.mxu0 0
      %1308 = vmatpush1.bf16.msra.mxu0 %v1286
      %1309 = vmatprep.subr.bf16.mxu0 0
      %1310 = vmatpush1.bf16.msra.mxu0 %v1287
      %1311 = vmatprep.subr.bf16.mxu0 0
      %1312 = vmatpush1.bf16.msra.mxu0 %v1288
      %1313 = vmatprep.subr.bf16.mxu0 0
      %1314 = vmatpush1.bf16.msra.mxu0 0
      %1315 = vmatprep.subr.bf16.mxu0 0
      %1316 = vmatpush1.bf16.msra.mxu0 0
      %1317 = vmatprep.subr.bf16.mxu0 0
      %1318 = vmatpush1.bf16.msra.mxu0 0
      %1319 = vmatprep.subr.bf16.mxu0 0
      %1320 = vmatpush1.bf16.msra.mxu0 0
      %1321 = vmatprep.subr.bf16.mxu0 0
      %1322 = vmatpush1.bf16.msra.mxu0 0
      %1323 = vmatprep.subr.bf16.mxu0 0
      %1324 = vmatpush1.bf16.msra.mxu0 0
      %1325 = vmatprep.subr.bf16.mxu0 0
      %1326 = vmatpush1.bf16.msra.mxu0 0
      %1327 = vmatprep.subr.bf16.mxu0 0
      %1328 = vmatpush1.bf16.msra.mxu0 0
      %1329 = vmatprep.mubr.bf16.mxu0 0
      %1330 = vmatmul.mubr.bf16.gmra.mrb[0].mxu0 %v825
      %v1331 = vpop.f32.mrb[0].mxu0
      %v1332 = vadd.f32 0.0, %v1331
      %v1333 = vpop.f32.mrb[0].mxu0
      %v1334 = vpop.f32.mrb[0].mxu0
      %v1335 = vadd.f32 0.0, %v1334
      %v1336 = vpop.f32.mrb[0].mxu0
      %1337 = vmatprep.mubr.bf16.mxu0 0
      %1338 = vmatmul.mubr.bf16.gmra.mrb[0].mxu0 %v826
      %v1339 = vpop.f32.mrb[0].mxu0
      %v1340 = vadd.f32 0.0, %v1339
      %v1341 = vpop.f32.mrb[0].mxu0
      %v1342 = vpop.f32.mrb[0].mxu0
      %v1343 = vadd.f32 0.0, %v1342
      %v1344 = vpop.f32.mrb[0].mxu0
      %1345 = vmatprep.mubr.bf16.mxu0 0
      %1346 = vmatmul.mubr.bf16.gmra.mrb[0].mxu0 %v827
      %v1347 = vpop.f32.mrb[0].mxu0
      %v1348 = vadd.f32 0.0, %v1347
      %v1349 = vpop.f32.mrb[0].mxu0
      %v1350 = vpop.f32.mrb[0].mxu0
      %v1351 = vadd.f32 0.0, %v1350
      %v1352 = vpop.f32.mrb[0].mxu0
      %1353 = vmatprep.mubr.bf16.mxu0 0
      %1354 = vmatmul.mubr.bf16.gmra.mrb[0].mxu0 %v828
      %v1355 = vpop.f32.mrb[0].mxu0
      %v1356 = vadd.f32 0.0, %v1355
      %v1357 = vpop.f32.mrb[0].mxu0
      %v1358 = vpop.f32.mrb[0].mxu0
      %v1359 = vadd.f32 0.0, %v1358
      %v1360 = vpop.f32.mrb[0].mxu0
      %1361 = vmatprep.mubr.bf16.mxu0 0
      %1362 = vmatmul.mubr.bf16.gmra.mrb[0].mxu0 %v829
      %v1363 = vpop.f32.mrb[0].mxu0
      %v1364 = vadd.f32 0.0, %v1363
      %v1365 = vpop.f32.mrb[0].mxu0
      %v1366 = vpop.f32.mrb[0].mxu0
      %v1367 = vadd.f32 0.0, %v1366
      %v1368 = vpop.f32.mrb[0].mxu0
      %1369 = vmatprep.mubr.bf16.mxu0 0
      %1370 = vmatmul.mubr.bf16.gmra.mrb[0].mxu0 %v830
      %v1371 = vpop.f32.mrb[0].mxu0
      %v1372 = vadd.f32 0.0, %v1371
      %v1373 = vpop.f32.mrb[0].mxu0
      %v1374 = vpop.f32.mrb[0].mxu0
      %v1375 = vadd.f32 0.0, %v1374
      %v1376 = vpop.f32.mrb[0].mxu0
      %1377 = vmatprep.mubr.bf16.mxu0 0
      %1378 = vmatmul.mubr.bf16.gmra.mrb[0].mxu0 %v831
      %v1379 = vpop.f32.mrb[0].mxu0
      %v1380 = vadd.f32 0.0, %v1379
      %v1381 = vpop.f32.mrb[0].mxu0
      %v1382 = vpop.f32.mrb[0].mxu0
      %v1383 = vadd.f32 0.0, %v1382
      %v1384 = vpop.f32.mrb[0].mxu0
      %1385 = vmatprep.mubr.bf16.mxu0 0
      %1386 = vmatmul.mubr.bf16.gmra.mrb[0].mxu0 %v832
      %v1387 = vpop.f32.mrb[0].mxu0
      %v1388 = vadd.f32 0.0, %v1387
      %v1389 = vpop.f32.mrb[0].mxu0
      %v1390 = vpop.f32.mrb[0].mxu0
      %v1391 = vadd.f32 0.0, %v1390
      %v1392 = vpop.f32.mrb[0].mxu0
      %1393 = vmatprep.mubr.bf16.mxu0 0
      %1394 = vmatmul.mubr.bf16.gmra.mrb[0].mxu0 %v833
      %v1395 = vpop.f32.mrb[0].mxu0
      %v1396 = vadd.f32 0.0, %v1395
      %v1397 = vpop.f32.mrb[0].mxu0
      %v1398 = vpop.f32.mrb[0].mxu0
      %v1399 = vadd.f32 0.0, %v1398
      %v1400 = vpop.f32.mrb[0].mxu0
      %1401 = vmatprep.mubr.bf16.mxu0 0
      %1402 = vmatmul.mubr.bf16.gmra.mrb[0].mxu0 %v834
      %v1403 = vpop.f32.mrb[0].mxu0
      %v1404 = vadd.f32 0.0, %v1403
      %v1405 = vpop.f32.mrb[0].mxu0
      %v1406 = vpop.f32.mrb[0].mxu0
      %v1407 = vadd.f32 0.0, %v1406
      %v1408 = vpop.f32.mrb[0].mxu0
      %1409 = vmatprep.mubr.bf16.mxu0 0
      %1410 = vmatmul.mubr.bf16.gmra.mrb[0].mxu0 %v835
      %v1411 = vpop.f32.mrb[0].mxu0
      %v1412 = vadd.f32 0.0, %v1411
      %v1413 = vpop.f32.mrb[0].mxu0
      %v1414 = vpop.f32.mrb[0].mxu0
      %v1415 = vadd.f32 0.0, %v1414
      %v1416 = vpop.f32.mrb[0].mxu0
      %1417 = vmatprep.mubr.bf16.mxu0 0
      %1418 = vmatmul.mubr.bf16.gmra.mrb[0].mxu0 %v836
      %v1419 = vpop.f32.mrb[0].mxu0
      %v1420 = vadd.f32 0.0, %v1419
      %v1421 = vpop.f32.mrb[0].mxu0
      %v1422 = vpop.f32.mrb[0].mxu0
      %v1423 = vadd.f32 0.0, %v1422
      %v1424 = vpop.f32.mrb[0].mxu0
      %1425 = vmatprep.mubr.bf16.mxu0 0
      %1426 = vmatmul.mubr.bf16.gmra.mrb[0].mxu0 %v837
      %v1427 = vpop.f32.mrb[0].mxu0
      %v1428 = vadd.f32 0.0, %v1427
      %v1429 = vpop.f32.mrb[0].mxu0
      %v1430 = vpop.f32.mrb[0].mxu0
      %v1431 = vadd.f32 0.0, %v1430
      %v1432 = vpop.f32.mrb[0].mxu0
      %1433 = vmatprep.mubr.bf16.mxu0 0
      %1434 = vmatmul.mubr.bf16.gmra.mrb[0].mxu0 %v838
      %v1435 = vpop.f32.mrb[0].mxu0
      %v1436 = vadd.f32 0.0, %v1435
      %v1437 = vpop.f32.mrb[0].mxu0
      %v1438 = vpop.f32.mrb[0].mxu0
      %v1439 = vadd.f32 0.0, %v1438
      %v1440 = vpop.f32.mrb[0].mxu0
      %1441 = vmatprep.mubr.bf16.mxu0 0
      %1442 = vmatmul.mubr.bf16.gmra.mrb[0].mxu0 %v839
      %v1443 = vpop.f32.mrb[0].mxu0
      %v1444 = vadd.f32 0.0, %v1443
      %v1445 = vpop.f32.mrb[0].mxu0
      %v1446 = vpop.f32.mrb[0].mxu0
      %v1447 = vadd.f32 0.0, %v1446
      %v1448 = vpop.f32.mrb[0].mxu0
      %1449 = vmatprep.mubr.bf16.mxu0 0
      %1450 = vmatmul.mubr.bf16.gmra.mrb[0].mxu0 %v840
      %v1451 = vpop.f32.mrb[0].mxu0
      %v1452 = vadd.f32 0.0, %v1451
      %v1453 = vpop.f32.mrb[0].mxu0
      %v1454 = vpop.f32.mrb[0].mxu0
      %v1455 = vadd.f32 0.0, %v1454
      %v1456 = vpop.f32.mrb[0].mxu0
      %1457 = vdwg.mxu0
      %v1458 = vpack.c.bf16 %v1335, %v1332
      %v1459 = vpack.c.bf16 %v1343, %v1340
      %v1460 = vpack.c.bf16 %v1351, %v1348
      %v1461 = vpack.c.bf16 %v1359, %v1356
      %v1462 = vpack.c.bf16 %v1367, %v1364
      %v1463 = vpack.c.bf16 %v1375, %v1372
      %v1464 = vpack.c.bf16 %v1383, %v1380
      %v1465 = vpack.c.bf16 %v1391, %v1388
      %v1466 = vpack.c.bf16 %v1399, %v1396
      %v1467 = vpack.c.bf16 %v1407, %v1404
      %v1468 = vpack.c.bf16 %v1415, %v1412
      %v1469 = vpack.c.bf16 %v1423, %v1420
      %v1470 = vpack.c.bf16 %v1431, %v1428
      %v1471 = vpack.c.bf16 %v1439, %v1436
      %v1472 = vpack.c.bf16 %v1447, %v1444
      %v1473 = vpack.c.bf16 %v1455, %v1452
      %v1490 = vunpack.c.l.b16 %v1458
      %v1491 = vunpack.c.h.b16 %v1458
      %v1492 = vunpack.c.l.b16 %v1459
      %v1493 = vunpack.c.h.b16 %v1459
      %v1494 = vunpack.c.l.b16 %v1460
      %v1495 = vunpack.c.h.b16 %v1460
      %v1496 = vunpack.c.l.b16 %v1461
      %v1497 = vunpack.c.h.b16 %v1461
      %v1498 = vunpack.c.l.b16 %v1462
      %v1499 = vunpack.c.h.b16 %v1462
      %v1500 = vunpack.c.l.b16 %v1463
      %v1501 = vunpack.c.h.b16 %v1463
      %v1502 = vunpack.c.l.b16 %v1464
      %v1503 = vunpack.c.h.b16 %v1464
      %v1504 = vunpack.c.l.b16 %v1465
      %v1505 = vunpack.c.h.b16 %v1465
      %v1506 = vunpack.c.l.b16 %v1466
      %v1507 = vunpack.c.h.b16 %v1466
      %v1508 = vunpack.c.l.b16 %v1467
      %v1509 = vunpack.c.h.b16 %v1467
      %v1510 = vunpack.c.l.b16 %v1468
      %v1511 = vunpack.c.h.b16 %v1468
      %v1512 = vunpack.c.l.b16 %v1469
      %v1513 = vunpack.c.h.b16 %v1469
      %v1514 = vunpack.c.l.b16 %v1470
      %v1515 = vunpack.c.h.b16 %v1470
      %v1516 = vunpack.c.l.b16 %v1471
      %v1517 = vunpack.c.h.b16 %v1471
      %v1518 = vunpack.c.l.b16 %v1472
      %v1519 = vunpack.c.h.b16 %v1472
      %v1520 = vunpack.c.l.b16 %v1473
      %v1521 = vunpack.c.h.b16 %v1473
      %v1522 = vpack.c.b16 %v1490, %v1490
      %v1523 = vpack.c.b16 %v1491, %v1491
      %v1524 = vpack.c.b16 %v1492, %v1492
      %v1525 = vpack.c.b16 %v1493, %v1493
      %v1526 = vpack.c.b16 %v1494, %v1494
      %v1527 = vpack.c.b16 %v1495, %v1495
      %v1528 = vpack.c.b16 %v1496, %v1496
      %v1529 = vpack.c.b16 %v1497, %v1497
      %v1530 = vpack.c.b16 %v1498, %v1498
      %v1531 = vpack.c.b16 %v1499, %v1499
      %v1532 = vpack.c.b16 %v1500, %v1500
      %v1533 = vpack.c.b16 %v1501, %v1501
      %v1534 = vpack.c.b16 %v1502, %v1502
      %v1535 = vpack.c.b16 %v1503, %v1503
      %v1536 = vpack.c.b16 %v1504, %v1504
      %v1537 = vpack.c.b16 %v1505, %v1505
      %v1538 = vpack.c.b16 %v1506, %v1506
      %v1539 = vpack.c.b16 %v1507, %v1507
      %v1540 = vpack.c.b16 %v1508, %v1508
      %v1541 = vpack.c.b16 %v1509, %v1509
      %v1542 = vpack.c.b16 %v1510, %v1510
      %v1543 = vpack.c.b16 %v1511, %v1511
      %v1544 = vpack.c.b16 %v1512, %v1512
      %v1545 = vpack.c.b16 %v1513, %v1513
      %v1546 = vpack.c.b16 %v1514, %v1514
      %v1547 = vpack.c.b16 %v1515, %v1515
      %v1548 = vpack.c.b16 %v1516, %v1516
      %v1549 = vpack.c.b16 %v1517, %v1517
      %v1550 = vpack.c.b16 %v1518, %v1518
      %v1551 = vpack.c.b16 %v1519, %v1519
      %v1552 = vpack.c.b16 %v1520, %v1520
      %v1553 = vpack.c.b16 %v1521, %v1521
      %1586 = vst [vmem:[%s330] sm:$0xf] %v1522
      %1587 = vst [vmem:[%s330 + $0x4] sm:$0xf] %v1523
      %1588 = vst [vmem:[%s330 + $0x8] sm:$0xf] %v1524
      %1589 = vst [vmem:[%s330 + $0xc] sm:$0xf] %v1525
      %1590 = vst [vmem:[%s330 + $0x10] sm:$0xf] %v1526
      %1591 = vst [vmem:[%s330 + $0x14] sm:$0xf] %v1527
      %1592 = vst [vmem:[%s330 + $0x18] sm:$0xf] %v1528
      %1593 = vst [vmem:[%s330 + $0x1c] sm:$0xf] %v1529
      %1594 = vst [vmem:[%s330 + $0x20] sm:$0xf] %v1530
      %1595 = vst [vmem:[%s330 + $0x24] sm:$0xf] %v1531
      %1596 = vst [vmem:[%s330 + $0x28] sm:$0xf] %v1532
      %1597 = vst [vmem:[%s330 + $0x2c] sm:$0xf] %v1533
      %1598 = vst [vmem:[%s330 + $0x30] sm:$0xf] %v1534
      %1599 = vst [vmem:[%s330 + $0x34] sm:$0xf] %v1535
      %1600 = vst [vmem:[%s330 + $0x38] sm:$0xf] %v1536
      %1601 = vst [vmem:[%s330 + $0x3c] sm:$0xf] %v1537
      %1602 = vst [vmem:[%s330 + $0x40] sm:$0xf] %v1538
      %1603 = vst [vmem:[%s330 + $0x44] sm:$0xf] %v1539
      %1604 = vst [vmem:[%s330 + $0x48] sm:$0xf] %v1540
      %1605 = vst [vmem:[%s330 + $0x4c] sm:$0xf] %v1541
      %1606 = vst [vmem:[%s330 + $0x50] sm:$0xf] %v1542
      %1607 = vst [vmem:[%s330 + $0x54] sm:$0xf] %v1543
      %1608 = vst [vmem:[%s330 + $0x58] sm:$0xf] %v1544
      %1609 = vst [vmem:[%s330 + $0x5c] sm:$0xf] %v1545
      %1610 = vst [vmem:[%s330 + $0x60] sm:$0xf] %v1546
      %1611 = vst [vmem:[%s330 + $0x64] sm:$0xf] %v1547
      %1612 = vst [vmem:[%s330 + $0x68] sm:$0xf] %v1548
      %1613 = vst [vmem:[%s330 + $0x6c] sm:$0xf] %v1549
      %1614 = vst [vmem:[%s330 + $0x70] sm:$0xf] %v1550
      %1615 = vst [vmem:[%s330 + $0x74] sm:$0xf] %v1551
      %1616 = vst [vmem:[%s330 + $0x78] sm:$0xf] %v1552
      %1617 = vst [vmem:[%s330 + $0x7c] sm:$0xf] %v1553
      %v1618 = vunpack.c.l.bf16 %v1458
      %v1619 = vunpack.c.h.bf16 %v1458
      %v1620 = vunpack.c.l.bf16 %v1459
      %v1621 = vunpack.c.h.bf16 %v1459
      %v1622 = vunpack.c.l.bf16 %v1460
      %v1623 = vunpack.c.h.bf16 %v1460
      %v1624 = vunpack.c.l.bf16 %v1461
      %v1625 = vunpack.c.h.bf16 %v1461
      %v1626 = vunpack.c.l.bf16 %v1462
      %v1627 = vunpack.c.h.bf16 %v1462
      %v1628 = vunpack.c.l.bf16 %v1463
      %v1629 = vunpack.c.h.bf16 %v1463
      %v1630 = vunpack.c.l.bf16 %v1464
      %v1631 = vunpack.c.h.bf16 %v1464
      %v1632 = vunpack.c.l.bf16 %v1465
      %v1633 = vunpack.c.h.bf16 %v1465
      %v1634 = vunpack.c.l.bf16 %v1466
      %v1635 = vunpack.c.h.bf16 %v1466
      %v1636 = vunpack.c.l.bf16 %v1467
      %v1637 = vunpack.c.h.bf16 %v1467
      %v1638 = vunpack.c.l.bf16 %v1468
      %v1639 = vunpack.c.h.bf16 %v1468
      %v1640 = vunpack.c.l.bf16 %v1469
      %v1641 = vunpack.c.h.bf16 %v1469
      %v1642 = vunpack.c.l.bf16 %v1470
      %v1643 = vunpack.c.h.bf16 %v1470
      %v1644 = vunpack.c.l.bf16 %v1471
      %v1645 = vunpack.c.h.bf16 %v1471
      %v1646 = vunpack.c.l.bf16 %v1472
      %v1647 = vunpack.c.h.bf16 %v1472
      %v1648 = vunpack.c.l.bf16 %v1473
      %v1649 = vunpack.c.h.bf16 %v1473
      %v1650 = vadd.f32 %v1618, %v1619
      %v1651 = vadd.f32 %v1650, %v1620
      %v1652 = vadd.f32 %v1651, %v1621
      %v1653 = vadd.f32 %v1652, %v1622
      %v1654 = vadd.f32 %v1653, %v1623
      %v1655 = vadd.f32 %v1654, %v1624
      %v1656 = vadd.f32 %v1655, %v1625
      %v1657 = vadd.f32 %v1656, %v1626
      %v1658 = vadd.f32 %v1657, %v1627
      %v1659 = vadd.f32 %v1658, %v1628
      %v1660 = vadd.f32 %v1659, %v1629
      %v1661 = vadd.f32 %v1660, %v1630
      %v1662 = vadd.f32 %v1661, %v1631
      %v1663 = vadd.f32 %v1662, %v1632
      %v1664 = vadd.f32 %v1663, %v1633
      %v1665 = vadd.f32 %v1664, %v1634
      %v1666 = vadd.f32 %v1665, %v1635
      %v1667 = vadd.f32 %v1666, %v1636
      %v1668 = vadd.f32 %v1667, %v1637
      %v1669 = vadd.f32 %v1668, %v1638
      %v1670 = vadd.f32 %v1669, %v1639
      %v1671 = vadd.f32 %v1670, %v1640
      %v1672 = vadd.f32 %v1671, %v1641
      %v1673 = vadd.f32 %v1672, %v1642
      %v1674 = vadd.f32 %v1673, %v1643
      %v1675 = vadd.f32 %v1674, %v1644
      %v1676 = vadd.f32 %v1675, %v1645
      %v1677 = vadd.f32 %v1676, %v1646
      %v1678 = vadd.f32 %v1677, %v1647
      %v1679 = vadd.f32 %v1678, %v1648
      %v1680 = vadd.f32 %v1679, %v1649
      %v1681 = vrot.slane %v1680, 4
      %v1682 = vadd.f32 %v1680, %v1681
      %v1683 = vrot.slane %v1682, 2
      %v1684 = vadd.f32 %v1682, %v1683
      %v1685 = vrot.slane %v1684, 1
      %v1686 = vadd.f32 %v1684, %v1685
      %v1687 = vmul.f32 %v1618, %v1618
      %v1688 = vmul.f32 %v1619, %v1619
      %v1689 = vmul.f32 %v1620, %v1620
      %v1690 = vmul.f32 %v1621, %v1621
      %v1691 = vmul.f32 %v1622, %v1622
      %v1692 = vmul.f32 %v1623, %v1623
      %v1693 = vmul.f32 %v1624, %v1624
      %v1694 = vmul.f32 %v1625, %v1625
      %v1695 = vmul.f32 %v1626, %v1626
      %v1696 = vmul.f32 %v1627, %v1627
      %v1697 = vmul.f32 %v1628, %v1628
      %v1698 = vmul.f32 %v1629, %v1629
      %v1699 = vmul.f32 %v1630, %v1630
      %v1700 = vmul.f32 %v1631, %v1631
      %v1701 = vmul.f32 %v1632, %v1632
      %v1702 = vmul.f32 %v1633, %v1633
      %v1703 = vmul.f32 %v1634, %v1634
      %v1704 = vmul.f32 %v1635, %v1635
      %v1705 = vmul.f32 %v1636, %v1636
      %v1706 = vmul.f32 %v1637, %v1637
      %v1707 = vmul.f32 %v1638, %v1638
      %v1708 = vmul.f32 %v1639, %v1639
      %v1709 = vmul.f32 %v1640, %v1640
      %v1710 = vmul.f32 %v1641, %v1641
      %v1711 = vmul.f32 %v1642, %v1642
      %v1712 = vmul.f32 %v1643, %v1643
      %v1713 = vmul.f32 %v1644, %v1644
      %v1714 = vmul.f32 %v1645, %v1645
      %v1715 = vmul.f32 %v1646, %v1646
      %v1716 = vmul.f32 %v1647, %v1647
      %v1717 = vmul.f32 %v1648, %v1648
      %v1718 = vmul.f32 %v1649, %v1649
      %v1719 = vadd.f32 %v1687, %v1688
      %v1720 = vadd.f32 %v1719, %v1689
      %v1721 = vadd.f32 %v1720, %v1690
      %v1722 = vadd.f32 %v1721, %v1691
      %v1723 = vadd.f32 %v1722, %v1692
      %v1724 = vadd.f32 %v1723, %v1693
      %v1725 = vadd.f32 %v1724, %v1694
      %v1726 = vadd.f32 %v1725, %v1695
      %v1727 = vadd.f32 %v1726, %v1696
      %v1728 = vadd.f32 %v1727, %v1697
      %v1729 = vadd.f32 %v1728, %v1698
      %v1730 = vadd.f32 %v1729, %v1699
      %v1731 = vadd.f32 %v1730, %v1700
      %v1732 = vadd.f32 %v1731, %v1701
      %v1733 = vadd.f32 %v1732, %v1702
      %v1734 = vadd.f32 %v1733, %v1703
      %v1735 = vadd.f32 %v1734, %v1704
      %v1736 = vadd.f32 %v1735, %v1705
      %v1737 = vadd.f32 %v1736, %v1706
      %v1738 = vadd.f32 %v1737, %v1707
      %v1739 = vadd.f32 %v1738, %v1708
      %v1740 = vadd.f32 %v1739, %v1709
      %v1741 = vadd.f32 %v1740, %v1710
      %v1742 = vadd.f32 %v1741, %v1711
      %v1743 = vadd.f32 %v1742, %v1712
      %v1744 = vadd.f32 %v1743, %v1713
      %v1745 = vadd.f32 %v1744, %v1714
      %v1746 = vadd.f32 %v1745, %v1715
      %v1747 = vadd.f32 %v1746, %v1716
      %v1748 = vadd.f32 %v1747, %v1717
      %v1749 = vadd.f32 %v1748, %v1718
      %v1750 = vrot.slane %v1749, 4
      %v1751 = vadd.f32 %v1749, %v1750
      %v1752 = vrot.slane %v1751, 2
      %v1753 = vadd.f32 %v1751, %v1752
      %v1754 = vrot.slane %v1753, 1
      %v1755 = vadd.f32 %v1753, %v1754
      %vm1756 = vcmask 1040384
      %v1757 = vsel %vm1756, %v1686, %v1755
      %1758 = vst [vmem:[%s335] sm:$0x3] %v1757
      %s1759 = smul.u32 32, %s20
      %p1760 = scmp.lt.s32.totalorder %s1759, 63
      %s1761 = scalar_select %p1760, %s1759, 63
      %s1762 = smul.addr %s1761, 4
      %s1763 = scalar_lea.vmem %s6, %s1762
      %s1764 = smul.u32 32, %s20
      %p1765 = scmp.lt.s32.totalorder %s1764, 63
      %s1766 = scalar_select %p1765, %s1764, 63
      %s1767 = smul.addr %s1766, 4
      %s1768 = scalar_lea.vmem %s7, %s1767
      %p1769 = scmp.lt.s32.totalorder %s20, 1
      %s1770 = scalar_select %p1769, %s20, 1
      %s1771 = smul.addr %s1770, 2
      %s1772 = scalar_lea.vmem %s8, %s1771
      // Predicated region
      $region45: #{coarse_feature_extractor.4} parent=43 // pred_check
        %p1773 = pneg %p169
      $region46: #{coarse_feature_extractor.4} parent=43 // pred_check_branch
        %1775 = sbr.rel (%p1773) target = $region48
      $region47: #{coarse_feature_extractor.4} parent=43 // pred_region
        %s1776 = smul.u32 32, %s20
      $region48: #{coarse_feature_extractor.4} parent=43 // pred_fallthru
        _
      // Predicated region
      $region49: #{coarse_feature_extractor.4} parent=43 // pred_check
        %p1777 = pneg %p195
      $region50: #{coarse_feature_extractor.4} parent=43 // pred_check_branch
        %1779 = sbr.rel (%p1777) target = $region52
      $region51: #{coarse_feature_extractor.4} parent=43 // pred_region
        %s1780 = smul.u32 32, %s20
      $region52: #{coarse_feature_extractor.4} parent=43 // pred_fallthru
        _
      // Predicated region
      $region53: #{coarse_feature_extractor.4} parent=43 // pred_check
        %p1781 = pneg %p221
      $region54: #{coarse_feature_extractor.4} parent=43 // pred_check_branch
        %1783 = sbr.rel (%p1781) target = $region56
      $region55: #{coarse_feature_extractor.4} parent=43 // pred_region
        _
      $region56: #{coarse_feature_extractor.4} parent=43 // pred_fallthru
        _
    $region44: #{coarse_feature_extractor.4} parent=5 // pred_fallthru
      _
    %p1784 = scmp.le.s32.totalorder 2, %s15
    // Predicated region
    $region57: #{coarse_feature_extractor.4} parent=5 // pred_check
      %p1785 = pneg %p1784
    $region58: #{coarse_feature_extractor.4} parent=5 // pred_check_branch
      %1787 = sbr.rel (%p1785) target = $region60
    $region59: #{coarse_feature_extractor.4} parent=5 // pred_region
      %s1788 = ssub.s32 %s15, 2
      // Predicated region
      $region61: #{coarse_feature_extractor.4} parent=59 // pred_check
        %p1789 = pneg %p175
      $region62: #{coarse_feature_extractor.4} parent=59 // pred_check_branch
        %1791 = sbr.rel (%p1789) target = $region64
      $region63: #{coarse_feature_extractor.4} parent=59 // pred_region
        %s1792 = smul.u32 32, %s21
        %p1793 = scmp.lt.s32.totalorder %s1792, 63
        %s1794 = scalar_select %p1793, %s1792, 63
        %s1795 = smul.addr %s1794, 4
        %s1796 = scalar_lea.vmem %s6, %s1795
      $region64: #{coarse_feature_extractor.4} parent=59 // pred_fallthru
        _
      // Predicated region
      $region65: #{coarse_feature_extractor.4} parent=59 // pred_check
        %p1797 = pneg %p201
      $region66: #{coarse_feature_extractor.4} parent=59 // pred_check_branch
        %1799 = sbr.rel (%p1797) target = $region68
      $region67: #{coarse_feature_extractor.4} parent=59 // pred_region
        %s1800 = smul.u32 32, %s21
        %p1801 = scmp.lt.s32.totalorder %s1800, 63
        %s1802 = scalar_select %p1801, %s1800, 63
        %s1803 = smul.addr %s1802, 4
        %s1804 = scalar_lea.vmem %s7, %s1803
      $region68: #{coarse_feature_extractor.4} parent=59 // pred_fallthru
        _
      // Predicated region
      $region69: #{coarse_feature_extractor.4} parent=59 // pred_check
        %p1805 = pneg %p227
      $region70: #{coarse_feature_extractor.4} parent=59 // pred_check_branch
        %1807 = sbr.rel (%p1805) target = $region72
      $region71: #{coarse_feature_extractor.4} parent=59 // pred_region
        %p1808 = scmp.lt.s32.totalorder %s21, 1
        %s1809 = scalar_select %p1808, %s21, 1
        %s1810 = smul.addr %s1809, 2
        %s1811 = scalar_lea.vmem %s8, %s1810
      $region72: #{coarse_feature_extractor.4} parent=59 // pred_fallthru
        _
    $region60: #{coarse_feature_extractor.4} parent=5 // pred_fallthru
      _
  $region6: #{coarse_feature_extractor.4} parent=0 // loop_footer
    %s19 = sadd.s32 1, %s15
  $region7: #{coarse_feature_extractor.4} parent=0 // loop_footer_branch
    %14 = sbr.rel target = $region3
  $region8: #{coarse_feature_extractor.4} parent=0 // loop_exit
    _

// kernel: coarse_feature_extractor.6
$region0: #{coarse_feature_extractor.6}
  #allocation0 [shape = 'u32[]', space=smem, size = 0x4, offset = 0x4, fixed_abs, tag = 'smem constant byte address 0x4 - core index']
  #allocation1 [shape = 'u32[144,128]{1,0:T(1,128)}', space=vmem, size = 0x12000, scoped, tag = 'internal scratch']
  %s0 = inlined_call_operand.vmem [shape: bf16[512,128], index: 0, kind: input, shape index: {}]
  %s1 = inlined_call_operand.vmem [shape: f32[2,128], index: 1, kind: input, shape index: {}]
  %s2 = inlined_call_operand.vmem [shape: f32[1,128], index: 2, kind: input, shape index: {}]
  %s3 = inlined_call_operand.vmem [shape: f32[1,128], index: 3, kind: input, shape index: {}]
  %s4 = inlined_call_operand.vmem [shape: bf16[128,128], index: 4, kind: input, shape index: {}]
  %s5 = inlined_call_operand.vmem [shape: f32[2,2,128], index: 5, kind: output, shape index: {}]
  %s6 = sld [smem:[#allocation0]]
  $region53: #{coarse_feature_extractor.6} parent=0
    _
  %s8 = ssub.s32 1, %s6
  %s9 = scalar_select 0, %s8, %s6
  loop: start=0, step=1, limit=4
  $region2: #{coarse_feature_extractor.6} parent=0 // loop_pre_header
    _
  $region3: #{coarse_feature_extractor.6} parent=0 // loop_header
    %s11 = sphi 0, %s15
    %p12 = scmp.ge.s32.totalorder %s11, 4
    %s21 = sphi 0, %s23
    %s24 = sphi 0, %s21
    %s25 = sphi 0, %s24
    %s41 = sphi 0, %s25
    %s45 = sphi 0, %s45
    %s47 = sphi 0, %s45
    %s48 = sphi 0, %s47
    %s62 = sphi 0, %s48
    %s66 = sphi 0, %s66
    %s68 = sphi 0, %s66
    %s69 = sphi 0, %s68
    %s83 = sphi 0, %s69
    %s87 = sphi 0, %s87
    %s89 = sphi 0, %s87
    %s90 = sphi 0, %s89
    %s104 = sphi 0, %s90
    %s108 = sphi 0, %s108
    %s110 = sphi 0, %s108
    %s111 = sphi 0, %s110
    %s125 = sphi 0, %s111
    %s131 = sphi 0, %s133
    %s134 = sphi 0, %s131
    %s135 = sphi 0, %s134
    %s151 = sphi 0, %s135
  $region4: #{coarse_feature_extractor.6} parent=0 // loop_header_branch
    %14 = sbr.rel (%p12) target = $region8
  $region5: #{coarse_feature_extractor.6} parent=0 // loop_body
    %s16 = ssub.s32 %s11, 1
    %s17 = ssub.s32 %s11, 2
    %s18 = sadd.s32 %s11, 1
    %s19 = ssub.s32 %s11, %s18
    %p20 = scmp.eq.s32.totalorder %s19, 0
    %s22 = sadd.s32 %s21, 1
    %s23 = scalar_select %p20, %s21, %s22
    %p26 = pneg %p20
    %p27 = scmp.eq.s32.totalorder %s11, 1
    %p28 = por %p26, %p27
    %p29 = scmp.ne.s32.totalorder %s21, %s24
    %p30 = scmp.eq.s32.totalorder %s11, 0
    %p31 = por %p29, %p30
    %p32 = scmp.ne.s32.totalorder %s21, %s24
    %p33 = scmp.eq.s32.totalorder %s16, 1
    %p34 = por %p32, %p33
    %p35 = scmp.ne.s32.totalorder %s24, %s25
    %p36 = scmp.eq.s32.totalorder %s16, 0
    %p37 = por %p35, %p36
    %p38 = scmp.ne.s32.totalorder %s24, %s25
    %p39 = scmp.eq.s32.totalorder %s17, 1
    %p40 = por %p38, %p39
    %p42 = scmp.ne.s32.totalorder %s25, %s41
    %p43 = scmp.eq.s32.totalorder %s17, 0
    %p44 = por %p42, %p43
    %s46 = sadd.s32 %s45, 1
    %p49 = scmp.eq.s32.totalorder %s11, 1
    %p50 = scmp.ne.s32.totalorder %s45, %s47
    %p51 = scmp.eq.s32.totalorder %s11, 0
    %p52 = por %p50, %p51
    %p53 = scmp.ne.s32.totalorder %s45, %s47
    %p54 = scmp.eq.s32.totalorder %s16, 1
    %p55 = por %p53, %p54
    %p56 = scmp.ne.s32.totalorder %s47, %s48
    %p57 = scmp.eq.s32.totalorder %s16, 0
    %p58 = por %p56, %p57
    %p59 = scmp.ne.s32.totalorder %s47, %s48
    %p60 = scmp.eq.s32.totalorder %s17, 1
    %p61 = por %p59, %p60
    %p63 = scmp.ne.s32.totalorder %s48, %s62
    %p64 = scmp.eq.s32.totalorder %s17, 0
    %p65 = por %p63, %p64
    %s67 = sadd.s32 %s66, 1
    %p70 = scmp.eq.s32.totalorder %s11, 1
    %p71 = scmp.ne.s32.totalorder %s66, %s68
    %p72 = scmp.eq.s32.totalorder %s11, 0
    %p73 = por %p71, %p72
    %p74 = scmp.ne.s32.totalorder %s66, %s68
    %p75 = scmp.eq.s32.totalorder %s16, 1
    %p76 = por %p74, %p75
    %p77 = scmp.ne.s32.totalorder %s68, %s69
    %p78 = scmp.eq.s32.totalorder %s16, 0
    %p79 = por %p77, %p78
    %p80 = scmp.ne.s32.totalorder %s68, %s69
    %p81 = scmp.eq.s32.totalorder %s17, 1
    %p82 = por %p80, %p81
    %p84 = scmp.ne.s32.totalorder %s69, %s83
    %p85 = scmp.eq.s32.totalorder %s17, 0
    %p86 = por %p84, %p85
    %s88 = sadd.s32 %s87, 1
    %p91 = scmp.eq.s32.totalorder %s11, 1
    %p92 = scmp.ne.s32.totalorder %s87, %s89
    %p93 = scmp.eq.s32.totalorder %s11, 0
    %p94 = por %p92, %p93
    %p95 = scmp.ne.s32.totalorder %s87, %s89
    %p96 = scmp.eq.s32.totalorder %s16, 1
    %p97 = por %p95, %p96
    %p98 = scmp.ne.s32.totalorder %s89, %s90
    %p99 = scmp.eq.s32.totalorder %s16, 0
    %p100 = por %p98, %p99
    %p101 = scmp.ne.s32.totalorder %s89, %s90
    %p102 = scmp.eq.s32.totalorder %s17, 1
    %p103 = por %p101, %p102
    %p105 = scmp.ne.s32.totalorder %s90, %s104
    %p106 = scmp.eq.s32.totalorder %s17, 0
    %p107 = por %p105, %p106
    %s109 = sadd.s32 %s108, 1
    %p112 = scmp.eq.s32.totalorder %s11, 1
    %p113 = scmp.ne.s32.totalorder %s108, %s110
    %p114 = scmp.eq.s32.totalorder %s11, 0
    %p115 = por %p113, %p114
    %p116 = scmp.ne.s32.totalorder %s108, %s110
    %p117 = scmp.eq.s32.totalorder %s16, 1
    %p118 = por %p116, %p117
    %p119 = scmp.ne.s32.totalorder %s110, %s111
    %p120 = scmp.eq.s32.totalorder %s16, 0
    %p121 = por %p119, %p120
    %p122 = scmp.ne.s32.totalorder %s110, %s111
    %p123 = scmp.eq.s32.totalorder %s17, 1
    %p124 = por %p122, %p123
    %p126 = scmp.ne.s32.totalorder %s111, %s125
    %p127 = scmp.eq.s32.totalorder %s17, 0
    %p128 = por %p126, %p127
    %s129 = ssub.s32 %s11, %s18
    %p130 = scmp.eq.s32.totalorder %s129, 0
    %s132 = sadd.s32 %s131, 1
    %s133 = scalar_select %p130, %s131, %s132
    %p136 = pneg %p130
    %p137 = scmp.eq.s32.totalorder %s11, 1
    %p138 = por %p136, %p137
    %p139 = scmp.ne.s32.totalorder %s131, %s134
    %p140 = scmp.eq.s32.totalorder %s11, 0
    %p141 = por %p139, %p140
    %p142 = scmp.ne.s32.totalorder %s131, %s134
    %p143 = scmp.eq.s32.totalorder %s16, 1
    %p144 = por %p142, %p143
    %p145 = scmp.ne.s32.totalorder %s134, %s135
    %p146 = scmp.eq.s32.totalorder %s16, 0
    %p147 = por %p145, %p146
    %p148 = scmp.ne.s32.totalorder %s134, %s135
    %p149 = scmp.eq.s32.totalorder %s17, 1
    %p150 = por %p148, %p149
    %p152 = scmp.ne.s32.totalorder %s135, %s151
    %p153 = scmp.eq.s32.totalorder %s17, 0
    %p154 = por %p152, %p153
    %p155 = scmp.le.s32.totalorder 1, %s11
    %p156 = scmp.lt.s32.totalorder %s11, 3
    %p157 = pnand %p155, %p156
    %p158 = pneg %p157
    // Predicated region
    $region9: #{coarse_feature_extractor.6} parent=5 // pred_check
      _
    $region10: #{coarse_feature_extractor.6} parent=5 // pred_check_branch
      %160 = sbr.rel (%p157) target = $region12
    $region11: #{coarse_feature_extractor.6} parent=5 // pred_region
      %s161 = ssub.s32 %s11, 1
      // Predicated region
      $region13: #{coarse_feature_extractor.6} parent=11 // pred_check
        %p162 = pneg %p58
      $region14: #{coarse_feature_extractor.6} parent=11 // pred_check_branch
        %164 = sbr.rel (%p162) target = $region16
      $region15: #{coarse_feature_extractor.6} parent=11 // pred_region
        _
      $region16: #{coarse_feature_extractor.6} parent=11 // pred_fallthru
        _
      // Predicated region
      $region17: #{coarse_feature_extractor.6} parent=11 // pred_check
        %p165 = pneg %p79
      $region18: #{coarse_feature_extractor.6} parent=11 // pred_check_branch
        %167 = sbr.rel (%p165) target = $region20
      $region19: #{coarse_feature_extractor.6} parent=11 // pred_region
        _
      $region20: #{coarse_feature_extractor.6} parent=11 // pred_fallthru
        _
      // Predicated region
      $region21: #{coarse_feature_extractor.6} parent=11 // pred_check
        %p168 = pneg %p100
      $region22: #{coarse_feature_extractor.6} parent=11 // pred_check_branch
        %170 = sbr.rel (%p168) target = $region24
      $region23: #{coarse_feature_extractor.6} parent=11 // pred_region
        _
      $region24: #{coarse_feature_extractor.6} parent=11 // pred_fallthru
        _
      // Predicated region
      $region25: #{coarse_feature_extractor.6} parent=11 // pred_check
        %p171 = pneg %p121
      $region26: #{coarse_feature_extractor.6} parent=11 // pred_check_branch
        %173 = sbr.rel (%p171) target = $region28
      $region27: #{coarse_feature_extractor.6} parent=11 // pred_region
        _
      $region28: #{coarse_feature_extractor.6} parent=11 // pred_fallthru
        _
    $region12: #{coarse_feature_extractor.6} parent=5 // pred_fallthru
      _
    %p174 = scmp.lt.s32.totalorder %s11, 2
    // Predicated region
    $region29: #{coarse_feature_extractor.6} parent=5 // pred_check
      %p175 = pneg %p174
    $region30: #{coarse_feature_extractor.6} parent=5 // pred_check_branch
      %177 = sbr.rel (%p175) target = $region32
    $region31: #{coarse_feature_extractor.6} parent=5 // pred_region
      // Predicated region
      $region33: #{coarse_feature_extractor.6} parent=31 // pred_check
        %p178 = pneg %p31
      $region34: #{coarse_feature_extractor.6} parent=31 // pred_check_branch
        %180 = sbr.rel (%p178) target = $region36
      $region35: #{coarse_feature_extractor.6} parent=31 // pred_region
        %s181 = smul.u32 32, %s11
        %p182 = scmp.lt.s32.totalorder %s181, 63
        %s183 = scalar_select %p182, %s181, 63
        %s184 = smul.addr %s183, 4
        %s185 = scalar_lea.vmem %s0, %s184
        %s186 = smul.u32 32, %s11
      $region36: #{coarse_feature_extractor.6} parent=31 // pred_fallthru
        _
    $region32: #{coarse_feature_extractor.6} parent=5 // pred_fallthru
      _
    %p187 = scmp.le.s32.totalorder 1, %s11
    %p188 = scmp.lt.s32.totalorder %s11, 3
    %p189 = pnand %p187, %p188
    %p190 = pneg %p189
    // Predicated region
    $region37: #{coarse_feature_extractor.6} parent=5 // pred_check
      _
    $region38: #{coarse_feature_extractor.6} parent=5 // pred_check_branch
      %192 = sbr.rel (%p189) target = $region40
    $region39: #{coarse_feature_extractor.6} parent=5 // pred_region
      %s193 = ssub.s32 %s11, 1
      %s194 = smul.u32 32, %s16
      %p195 = scmp.lt.s32.totalorder %s194, 63
      %s196 = scalar_select %p195, %s194, 63
      %s197 = smul.addr %s196, 4
      %s198 = scalar_lea.vmem %s0, %s197
      %p199 = pneg %p37
      %p200 = pneg %p34
      %p201 = pneg %p58
      %p202 = pneg %p55
      %p203 = pneg %p79
      %p204 = pneg %p76
      %p205 = pneg %p100
      %p206 = pneg %p97
      %p207 = pneg %p121
      %p208 = pneg %p118
      %p209 = pneg %p147
      %p210 = pneg %p144
      %p211 = scmp.lt.s32.totalorder %s16, 1
      %s212 = scalar_select %p211, %s16, 1
      %s213 = smul.addr %s212, 2
      %s214 = scalar_lea.vmem %s5, %s213
      %s215 = smul.u32 32, %s16
      %p216 = scmp.lt.s32.totalorder %s215, 63
      %s217 = scalar_select %p216, %s215, 63
      %s218 = smul.addr %s217, 4
      %s219 = scalar_lea.vmem %s0, %s218
      %s220 = smul.u32 32, %s16
      %p221 = scmp.lt.s32.totalorder %s16, 1
      %s222 = scalar_select %p221, %s16, 1
      %s223 = smul.addr %s222, 2
      %s224 = scalar_lea.vmem %s5, %s223
      %v226 = vld [vmem:[%s1] sm:$0x3]
      %v227 = vld [vmem:[%s2] sm:$0x1]
      %v228 = vld [vmem:[%s3] sm:$0x1]
      %v229 = vmul.f32 %v226, 0.001953125
      %v230 = vmul.f32 %v229, %v229
      %v232 = vrot.slane %v230, 7
      %v234 = vsub.f32 %v229, %v232
      %v235 = vmax.f32 %v234, 0.0
      %v236 = vadd.f32 %v235, 1e-05
      %v237 = vrsqrt.pop %v236
      %v240 = vunpack.c.l.s4 1966171168
      %v241 = vunpack.c.0.s8 %v240
      %v242 = vlaneseq
      %v243 = vshrl.u32 %v242, 7
      %v244 = vsub.s32 %v241, %v243
      %v245 = vrot.slane %v237, %v244
      %v246 = vcombine.high %v245, %v245
      %v248 = vunpack.c.l.s4 1966171168
      %v249 = vunpack.c.0.s8 %v248
      %v250 = vlaneseq
      %v251 = vshrl.u32 %v250, 7
      %v252 = vsub.s32 %v249, %v251
      %v253 = vrot.slane %v246, %v252
      %v255 = vmul.f32 %v227, %v253
      %v256 = vmul.f32 %v229, %v255
      %v257 = vsub.f32 %v228, %v256
      %v258 = vld [vmem:[%s219] sm:$0xf]
      %v259 = vld [vmem:[%s219 + $0x4] sm:$0xf]
      %v260 = vld [vmem:[%s219 + $0x8] sm:$0xf]
      %v261 = vld [vmem:[%s219 + $0xc] sm:$0xf]
      %v262 = vld [vmem:[%s219 + $0x10] sm:$0xf]
      %v263 = vld [vmem:[%s219 + $0x14] sm:$0xf]
      %v264 = vld [vmem:[%s219 + $0x18] sm:$0xf]
      %v265 = vld [vmem:[%s219 + $0x1c] sm:$0xf]
      %v266 = vld [vmem:[%s219 + $0x20] sm:$0xf]
      %v267 = vld [vmem:[%s219 + $0x24] sm:$0xf]
      %v268 = vld [vmem:[%s219 + $0x28] sm:$0xf]
      %v269 = vld [vmem:[%s219 + $0x2c] sm:$0xf]
      %v270 = vld [vmem:[%s219 + $0x30] sm:$0xf]
      %v271 = vld [vmem:[%s219 + $0x34] sm:$0xf]
      %v272 = vld [vmem:[%s219 + $0x38] sm:$0xf]
      %v273 = vld [vmem:[%s219 + $0x3c] sm:$0xf]
      %v274 = vld [vmem:[%s219 + $0x40] sm:$0xf]
      %v275 = vld [vmem:[%s219 + $0x44] sm:$0xf]
      %v276 = vld [vmem:[%s219 + $0x48] sm:$0xf]
      %v277 = vld [vmem:[%s219 + $0x4c] sm:$0xf]
      %v278 = vld [vmem:[%s219 + $0x50] sm:$0xf]
      %v279 = vld [vmem:[%s219 + $0x54] sm:$0xf]
      %v280 = vld [vmem:[%s219 + $0x58] sm:$0xf]
      %v281 = vld [vmem:[%s219 + $0x5c] sm:$0xf]
      %v282 = vld [vmem:[%s219 + $0x60] sm:$0xf]
      %v283 = vld [vmem:[%s219 + $0x64] sm:$0xf]
      %v284 = vld [vmem:[%s219 + $0x68] sm:$0xf]
      %v285 = vld [vmem:[%s219 + $0x6c] sm:$0xf]
      %v286 = vld [vmem:[%s219 + $0x70] sm:$0xf]
      %v287 = vld [vmem:[%s219 + $0x74] sm:$0xf]
      %v288 = vld [vmem:[%s219 + $0x78] sm:$0xf]
      %v289 = vld [vmem:[%s219 + $0x7c] sm:$0xf]
      %v290 = vunpack.c.l.bf16 %v258
      %v291 = vunpack.c.l.bf16 %v259
      %v292 = vunpack.c.l.bf16 %v260
      %v293 = vunpack.c.l.bf16 %v261
      %v294 = vunpack.c.l.bf16 %v262
      %v295 = vunpack.c.l.bf16 %v263
      %v296 = vunpack.c.l.bf16 %v264
      %v297 = vunpack.c.l.bf16 %v265
      %v298 = vunpack.c.l.bf16 %v266
      %v299 = vunpack.c.l.bf16 %v267
      %v300 = vunpack.c.l.bf16 %v268
      %v301 = vunpack.c.l.bf16 %v269
      %v302 = vunpack.c.l.bf16 %v270
      %v303 = vunpack.c.l.bf16 %v271
      %v304 = vunpack.c.l.bf16 %v272
      %v305 = vunpack.c.l.bf16 %v273
      %v306 = vunpack.c.l.bf16 %v274
      %v307 = vunpack.c.l.bf16 %v275
      %v308 = vunpack.c.l.bf16 %v276
      %v309 = vunpack.c.l.bf16 %v277
      %v310 = vunpack.c.l.bf16 %v278
      %v311 = vunpack.c.l.bf16 %v279
      %v312 = vunpack.c.l.bf16 %v280
      %v313 = vunpack.c.l.bf16 %v281
      %v314 = vunpack.c.l.bf16 %v282
      %v315 = vunpack.c.l.bf16 %v283
      %v316 = vunpack.c.l.bf16 %v284
      %v317 = vunpack.c.l.bf16 %v285
      %v318 = vunpack.c.l.bf16 %v286
      %v319 = vunpack.c.l.bf16 %v287
      %v320 = vunpack.c.l.bf16 %v288
      %v321 = vunpack.c.l.bf16 %v289
      %v323 = vlaneseq
      %v324 = vshrl.u32 %v323, 7
      %v325 = vsub.s32 0, %v324
      %v326 = vrot.slane %v255, %v325
      %v328 = vmul.f32 %v290, %v326
      %v329 = vmul.f32 %v291, %v326
      %v330 = vmul.f32 %v292, %v326
      %v331 = vmul.f32 %v293, %v326
      %v332 = vmul.f32 %v294, %v326
      %v333 = vmul.f32 %v295, %v326
      %v334 = vmul.f32 %v296, %v326
      %v335 = vmul.f32 %v297, %v326
      %v336 = vmul.f32 %v298, %v326
      %v337 = vmul.f32 %v299, %v326
      %v338 = vmul.f32 %v300, %v326
      %v339 = vmul.f32 %v301, %v326
      %v340 = vmul.f32 %v302, %v326
      %v341 = vmul.f32 %v303, %v326
      %v342 = vmul.f32 %v304, %v326
      %v343 = vmul.f32 %v305, %v326
      %v344 = vmul.f32 %v306, %v326
      %v345 = vmul.f32 %v307, %v326
      %v346 = vmul.f32 %v308, %v326
      %v347 = vmul.f32 %v309, %v326
      %v348 = vmul.f32 %v310, %v326
      %v349 = vmul.f32 %v311, %v326
      %v350 = vmul.f32 %v312, %v326
      %v351 = vmul.f32 %v313, %v326
      %v352 = vmul.f32 %v314, %v326
      %v353 = vmul.f32 %v315, %v326
      %v354 = vmul.f32 %v316, %v326
      %v355 = vmul.f32 %v317, %v326
      %v356 = vmul.f32 %v318, %v326
      %v357 = vmul.f32 %v319, %v326
      %v358 = vmul.f32 %v320, %v326
      %v359 = vmul.f32 %v321, %v326
      %v361 = vlaneseq
      %v362 = vshrl.u32 %v361, 7
      %v363 = vsub.s32 0, %v362
      %v364 = vrot.slane %v257, %v363
      %v366 = vadd.f32 %v328, %v364
      %v367 = vadd.f32 %v329, %v364
      %v368 = vadd.f32 %v330, %v364
      %v369 = vadd.f32 %v331, %v364
      %v370 = vadd.f32 %v332, %v364
      %v371 = vadd.f32 %v333, %v364
      %v372 = vadd.f32 %v334, %v364
      %v373 = vadd.f32 %v335, %v364
      %v374 = vadd.f32 %v336, %v364
      %v375 = vadd.f32 %v337, %v364
      %v376 = vadd.f32 %v338, %v364
      %v377 = vadd.f32 %v339, %v364
      %v378 = vadd.f32 %v340, %v364
      %v379 = vadd.f32 %v341, %v364
      %v380 = vadd.f32 %v342, %v364
      %v381 = vadd.f32 %v343, %v364
      %v382 = vadd.f32 %v344, %v364
      %v383 = vadd.f32 %v345, %v364
      %v384 = vadd.f32 %v346, %v364
      %v385 = vadd.f32 %v347, %v364
      %v386 = vadd.f32 %v348, %v364
      %v387 = vadd.f32 %v349, %v364
      %v388 = vadd.f32 %v350, %v364
      %v389 = vadd.f32 %v351, %v364
      %v390 = vadd.f32 %v352, %v364
      %v391 = vadd.f32 %v353, %v364
      %v392 = vadd.f32 %v354, %v364
      %v393 = vadd.f32 %v355, %v364
      %v394 = vadd.f32 %v356, %v364
      %v395 = vadd.f32 %v357, %v364
      %v396 = vadd.f32 %v358, %v364
      %v397 = vadd.f32 %v359, %v364
      %v398 = vmax.f32 %v366, 0.0
      %v399 = vmax.f32 %v367, 0.0
      %v400 = vmax.f32 %v368, 0.0
      %v401 = vmax.f32 %v369, 0.0
      %v402 = vmax.f32 %v370, 0.0
      %v403 = vmax.f32 %v371, 0.0
      %v404 = vmax.f32 %v372, 0.0
      %v405 = vmax.f32 %v373, 0.0
      %v406 = vmax.f32 %v374, 0.0
      %v407 = vmax.f32 %v375, 0.0
      %v408 = vmax.f32 %v376, 0.0
      %v409 = vmax.f32 %v377, 0.0
      %v410 = vmax.f32 %v378, 0.0
      %v411 = vmax.f32 %v379, 0.0
      %v412 = vmax.f32 %v380, 0.0
      %v413 = vmax.f32 %v381, 0.0
      %v414 = vmax.f32 %v382, 0.0
      %v415 = vmax.f32 %v383, 0.0
      %v416 = vmax.f32 %v384, 0.0
      %v417 = vmax.f32 %v385, 0.0
      %v418 = vmax.f32 %v386, 0.0
      %v419 = vmax.f32 %v387, 0.0
      %v420 = vmax.f32 %v388, 0.0
      %v421 = vmax.f32 %v389, 0.0
      %v422 = vmax.f32 %v390, 0.0
      %v423 = vmax.f32 %v391, 0.0
      %v424 = vmax.f32 %v392, 0.0
      %v425 = vmax.f32 %v393, 0.0
      %v426 = vmax.f32 %v394, 0.0
      %v427 = vmax.f32 %v395, 0.0
      %v428 = vmax.f32 %v396, 0.0
      %v429 = vmax.f32 %v397, 0.0
      %v430 = vpack.c.bf16 %v399, %v398
      %v431 = vpack.c.bf16 %v401, %v400
      %v432 = vpack.c.bf16 %v403, %v402
      %v433 = vpack.c.bf16 %v405, %v404
      %v434 = vpack.c.bf16 %v407, %v406
      %v435 = vpack.c.bf16 %v409, %v408
      %v436 = vpack.c.bf16 %v411, %v410
      %v437 = vpack.c.bf16 %v413, %v412
      %v438 = vpack.c.bf16 %v415, %v414
      %v439 = vpack.c.bf16 %v417, %v416
      %v440 = vpack.c.bf16 %v419, %v418
      %v441 = vpack.c.bf16 %v421, %v420
      %v442 = vpack.c.bf16 %v423, %v422
      %v443 = vpack.c.bf16 %v425, %v424
      %v444 = vpack.c.bf16 %v427, %v426
      %v445 = vpack.c.bf16 %v429, %v428
      %v446 = vld [vmem:[%s4] sm:$0xf]
      %v447 = vld [vmem:[%s4 + $0x4] sm:$0xf]
      %v448 = vld [vmem:[%s4 + $0x8] sm:$0xf]
      %v449 = vld [vmem:[%s4 + $0xc] sm:$0xf]
      %v450 = vld [vmem:[%s4 + $0x10] sm:$0xf]
      %v451 = vld [vmem:[%s4 + $0x14] sm:$0xf]
      %v452 = vld [vmem:[%s4 + $0x18] sm:$0xf]
      %v453 = vld [vmem:[%s4 + $0x1c] sm:$0xf]
      %v454 = vld [vmem:[%s4 + $0x20] sm:$0xf]
      %v455 = vld [vmem:[%s4 + $0x24] sm:$0xf]
      %v456 = vld [vmem:[%s4 + $0x28] sm:$0xf]
      %v457 = vld [vmem:[%s4 + $0x2c] sm:$0xf]
      %v458 = vld [vmem:[%s4 + $0x30] sm:$0xf]
      %v459 = vld [vmem:[%s4 + $0x34] sm:$0xf]
      %v460 = vld [vmem:[%s4 + $0x38] sm:$0xf]
      %v461 = vld [vmem:[%s4 + $0x3c] sm:$0xf]
      %v478 = vunpack.c.l.b16 %v446
      %v479 = vunpack.c.l.b16 %v447
      %v480 = vunpack.c.l.b16 %v448
      %v481 = vunpack.c.l.b16 %v449
      %v482 = vunpack.c.l.b16 %v450
      %v483 = vunpack.c.l.b16 %v451
      %v484 = vunpack.c.l.b16 %v452
      %v485 = vunpack.c.l.b16 %v453
      %v486 = vunpack.c.l.b16 %v454
      %v487 = vunpack.c.l.b16 %v455
      %v488 = vunpack.c.l.b16 %v456
      %v489 = vunpack.c.l.b16 %v457
      %v490 = vunpack.c.l.b16 %v458
      %v491 = vunpack.c.l.b16 %v459
      %v492 = vunpack.c.l.b16 %v460
      %v493 = vunpack.c.l.b16 %v461
      %v494 = vpack.c.b16 %v479, %v478
      %v495 = vpack.c.b16 %v481, %v480
      %v496 = vpack.c.b16 %v483, %v482
      %v497 = vpack.c.b16 %v485, %v484
      %v498 = vpack.c.b16 %v487, %v486
      %v499 = vpack.c.b16 %v489, %v488
      %v500 = vpack.c.b16 %v491, %v490
      %v501 = vpack.c.b16 %v493, %v492
      %510 = vmatprep.subr.bf16.mxu0 0
      %511 = vmatpush1.bf16.msra.mxu0 %v494
      %512 = vmatprep.subr.bf16.mxu0 0
      %513 = vmatpush1.bf16.msra.mxu0 %v495
      %514 = vmatprep.subr.bf16.mxu0 0
      %515 = vmatpush1.bf16.msra.mxu0 %v496
      %516 = vmatprep.subr.bf16.mxu0 0
      %517 = vmatpush1.bf16.msra.mxu0 %v497
      %518 = vmatprep.subr.bf16.mxu0 0
      %519 = vmatpush1.bf16.msra.mxu0 %v498
      %520 = vmatprep.subr.bf16.mxu0 0
      %521 = vmatpush1.bf16.msra.mxu0 %v499
      %522 = vmatprep.subr.bf16.mxu0 0
      %523 = vmatpush1.bf16.msra.mxu0 %v500
      %524 = vmatprep.subr.bf16.mxu0 0
      %525 = vmatpush1.bf16.msra.mxu0 %v501
      %526 = vmatprep.subr.bf16.mxu0 0
      %527 = vmatpush1.bf16.msra.mxu0 0
      %528 = vmatprep.subr.bf16.mxu0 0
      %529 = vmatpush1.bf16.msra.mxu0 0
      %530 = vmatprep.subr.bf16.mxu0 0
      %531 = vmatpush1.bf16.msra.mxu0 0
      %532 = vmatprep.subr.bf16.mxu0 0
      %533 = vmatpush1.bf16.msra.mxu0 0
      %534 = vmatprep.subr.bf16.mxu0 0
      %535 = vmatpush1.bf16.msra.mxu0 0
      %536 = vmatprep.subr.bf16.mxu0 0
      %537 = vmatpush1.bf16.msra.mxu0 0
      %538 = vmatprep.subr.bf16.mxu0 0
      %539 = vmatpush1.bf16.msra.mxu0 0
      %540 = vmatprep.subr.bf16.mxu0 0
      %541 = vmatpush1.bf16.msra.mxu0 0
      %542 = vmatprep.mubr.bf16.mxu0 0
      %543 = vmatmul.mubr.bf16.gmra.mrb[0].mxu0 %v430
      %v544 = vpop.f32.mrb[0].mxu0
      %v545 = vadd.f32 0.0, %v544
      %v546 = vpop.f32.mrb[0].mxu0
      %v547 = vpop.f32.mrb[0].mxu0
      %v548 = vadd.f32 0.0, %v547
      %v549 = vpop.f32.mrb[0].mxu0
      %550 = vmatprep.mubr.bf16.mxu0 0
      %551 = vmatmul.mubr.bf16.gmra.mrb[0].mxu0 %v431
      %v552 = vpop.f32.mrb[0].mxu0
      %v553 = vadd.f32 0.0, %v552
      %v554 = vpop.f32.mrb[0].mxu0
      %v555 = vpop.f32.mrb[0].mxu0
      %v556 = vadd.f32 0.0, %v555
      %v557 = vpop.f32.mrb[0].mxu0
      %558 = vmatprep.mubr.bf16.mxu0 0
      %559 = vmatmul.mubr.bf16.gmra.mrb[0].mxu0 %v432
      %v560 = vpop.f32.mrb[0].mxu0
      %v561 = vadd.f32 0.0, %v560
      %v562 = vpop.f32.mrb[0].mxu0
      %v563 = vpop.f32.mrb[0].mxu0
      %v564 = vadd.f32 0.0, %v563
      %v565 = vpop.f32.mrb[0].mxu0
      %566 = vmatprep.mubr.bf16.mxu0 0
      %567 = vmatmul.mubr.bf16.gmra.mrb[0].mxu0 %v433
      %v568 = vpop.f32.mrb[0].mxu0
      %v569 = vadd.f32 0.0, %v568
      %v570 = vpop.f32.mrb[0].mxu0
      %v571 = vpop.f32.mrb[0].mxu0
      %v572 = vadd.f32 0.0, %v571
      %v573 = vpop.f32.mrb[0].mxu0
      %574 = vmatprep.mubr.bf16.mxu0 0
      %575 = vmatmul.mubr.bf16.gmra.mrb[0].mxu0 %v434
      %v576 = vpop.f32.mrb[0].mxu0
      %v577 = vadd.f32 0.0, %v576
      %v578 = vpop.f32.mrb[0].mxu0
      %v579 = vpop.f32.mrb[0].mxu0
      %v580 = vadd.f32 0.0, %v579
      %v581 = vpop.f32.mrb[0].mxu0
      %582 = vmatprep.mubr.bf16.mxu0 0
      %583 = vmatmul.mubr.bf16.gmra.mrb[0].mxu0 %v435
      %v584 = vpop.f32.mrb[0].mxu0
      %v585 = vadd.f32 0.0, %v584
      %v586 = vpop.f32.mrb[0].mxu0
      %v587 = vpop.f32.mrb[0].mxu0
      %v588 = vadd.f32 0.0, %v587
      %v589 = vpop.f32.mrb[0].mxu0
      %590 = vmatprep.mubr.bf16.mxu0 0
      %591 = vmatmul.mubr.bf16.gmra.mrb[0].mxu0 %v436
      %v592 = vpop.f32.mrb[0].mxu0
      %v593 = vadd.f32 0.0, %v592
      %v594 = vpop.f32.mrb[0].mxu0
      %v595 = vpop.f32.mrb[0].mxu0
      %v596 = vadd.f32 0.0, %v595
      %v597 = vpop.f32.mrb[0].mxu0
      %598 = vmatprep.mubr.bf16.mxu0 0
      %599 = vmatmul.mubr.bf16.gmra.mrb[0].mxu0 %v437
      %v600 = vpop.f32.mrb[0].mxu0
      %v601 = vadd.f32 0.0, %v600
      %v602 = vpop.f32.mrb[0].mxu0
      %v603 = vpop.f32.mrb[0].mxu0
      %v604 = vadd.f32 0.0, %v603
      %v605 = vpop.f32.mrb[0].mxu0
      %606 = vmatprep.mubr.bf16.mxu0 0
      %607 = vmatmul.mubr.bf16.gmra.mrb[0].mxu0 %v438
      %v608 = vpop.f32.mrb[0].mxu0
      %v609 = vadd.f32 0.0, %v608
      %v610 = vpop.f32.mrb[0].mxu0
      %v611 = vpop.f32.mrb[0].mxu0
      %v612 = vadd.f32 0.0, %v611
      %v613 = vpop.f32.mrb[0].mxu0
      %614 = vmatprep.mubr.bf16.mxu0 0
      %615 = vmatmul.mubr.bf16.gmra.mrb[0].mxu0 %v439
      %v616 = vpop.f32.mrb[0].mxu0
      %v617 = vadd.f32 0.0, %v616
      %v618 = vpop.f32.mrb[0].mxu0
      %v619 = vpop.f32.mrb[0].mxu0
      %v620 = vadd.f32 0.0, %v619
      %v621 = vpop.f32.mrb[0].mxu0
      %622 = vmatprep.mubr.bf16.mxu0 0
      %623 = vmatmul.mubr.bf16.gmra.mrb[0].mxu0 %v440
      %v624 = vpop.f32.mrb[0].mxu0
      %v625 = vadd.f32 0.0, %v624
      %v626 = vpop.f32.mrb[0].mxu0
      %v627 = vpop.f32.mrb[0].mxu0
      %v628 = vadd.f32 0.0, %v627
      %v629 = vpop.f32.mrb[0].mxu0
      %630 = vmatprep.mubr.bf16.mxu0 0
      %631 = vmatmul.mubr.bf16.gmra.mrb[0].mxu0 %v441
      %v632 = vpop.f32.mrb[0].mxu0
      %v633 = vadd.f32 0.0, %v632
      %v634 = vpop.f32.mrb[0].mxu0
      %v635 = vpop.f32.mrb[0].mxu0
      %v636 = vadd.f32 0.0, %v635
      %v637 = vpop.f32.mrb[0].mxu0
      %638 = vmatprep.mubr.bf16.mxu0 0
      %639 = vmatmul.mubr.bf16.gmra.mrb[0].mxu0 %v442
      %v640 = vpop.f32.mrb[0].mxu0
      %v641 = vadd.f32 0.0, %v640
      %v642 = vpop.f32.mrb[0].mxu0
      %v643 = vpop.f32.mrb[0].mxu0
      %v644 = vadd.f32 0.0, %v643
      %v645 = vpop.f32.mrb[0].mxu0
      %646 = vmatprep.mubr.bf16.mxu0 0
      %647 = vmatmul.mubr.bf16.gmra.mrb[0].mxu0 %v443
      %v648 = vpop.f32.mrb[0].mxu0
      %v649 = vadd.f32 0.0, %v648
      %v650 = vpop.f32.mrb[0].mxu0
      %v651 = vpop.f32.mrb[0].mxu0
      %v652 = vadd.f32 0.0, %v651
      %v653 = vpop.f32.mrb[0].mxu0
      %654 = vmatprep.mubr.bf16.mxu0 0
      %655 = vmatmul.mubr.bf16.gmra.mrb[0].mxu0 %v444
      %v656 = vpop.f32.mrb[0].mxu0
      %v657 = vadd.f32 0.0, %v656
      %v658 = vpop.f32.mrb[0].mxu0
      %v659 = vpop.f32.mrb[0].mxu0
      %v660 = vadd.f32 0.0, %v659
      %v661 = vpop.f32.mrb[0].mxu0
      %662 = vmatprep.mubr.bf16.mxu0 0
      %663 = vmatmul.mubr.bf16.gmra.mrb[0].mxu0 %v445
      %v664 = vpop.f32.mrb[0].mxu0
      %v665 = vadd.f32 0.0, %v664
      %v666 = vpop.f32.mrb[0].mxu0
      %v667 = vpop.f32.mrb[0].mxu0
      %v668 = vadd.f32 0.0, %v667
      %v669 = vpop.f32.mrb[0].mxu0
      %670 = vdwg.mxu0
      %v671 = vadd.f32 %v545, %v548
      %v672 = vadd.f32 %v671, %v553
      %v673 = vadd.f32 %v672, %v556
      %v674 = vadd.f32 %v673, %v561
      %v675 = vadd.f32 %v674, %v564
      %v676 = vadd.f32 %v675, %v569
      %v677 = vadd.f32 %v676, %v572
      %v678 = vadd.f32 %v677, %v577
      %v679 = vadd.f32 %v678, %v580
      %v680 = vadd.f32 %v679, %v585
      %v681 = vadd.f32 %v680, %v588
      %v682 = vadd.f32 %v681, %v593
      %v683 = vadd.f32 %v682, %v596
      %v684 = vadd.f32 %v683, %v601
      %v685 = vadd.f32 %v684, %v604
      %v686 = vadd.f32 %v685, %v609
      %v687 = vadd.f32 %v686, %v612
      %v688 = vadd.f32 %v687, %v617
      %v689 = vadd.f32 %v688, %v620
      %v690 = vadd.f32 %v689, %v625
      %v691 = vadd.f32 %v690, %v628
      %v692 = vadd.f32 %v691, %v633
      %v693 = vadd.f32 %v692, %v636
      %v694 = vadd.f32 %v693, %v641
      %v695 = vadd.f32 %v694, %v644
      %v696 = vadd.f32 %v695, %v649
      %v697 = vadd.f32 %v696, %v652
      %v698 = vadd.f32 %v697, %v657
      %v699 = vadd.f32 %v698, %v660
      %v700 = vadd.f32 %v699, %v665
      %v701 = vadd.f32 %v700, %v668
      %v702 = vrot.slane %v701, 4
      %v703 = vadd.f32 %v701, %v702
      %v704 = vrot.slane %v703, 2
      %v705 = vadd.f32 %v703, %v704
      %v706 = vrot.slane %v705, 1
      %v707 = vadd.f32 %v705, %v706
      %v708 = vmul.f32 %v545, %v545
      %v709 = vmul.f32 %v548, %v548
      %v710 = vmul.f32 %v553, %v553
      %v711 = vmul.f32 %v556, %v556
      %v712 = vmul.f32 %v561, %v561
      %v713 = vmul.f32 %v564, %v564
      %v714 = vmul.f32 %v569, %v569
      %v715 = vmul.f32 %v572, %v572
      %v716 = vmul.f32 %v577, %v577
      %v717 = vmul.f32 %v580, %v580
      %v718 = vmul.f32 %v585, %v585
      %v719 = vmul.f32 %v588, %v588
      %v720 = vmul.f32 %v593, %v593
      %v721 = vmul.f32 %v596, %v596
      %v722 = vmul.f32 %v601, %v601
      %v723 = vmul.f32 %v604, %v604
      %v724 = vmul.f32 %v609, %v609
      %v725 = vmul.f32 %v612, %v612
      %v726 = vmul.f32 %v617, %v617
      %v727 = vmul.f32 %v620, %v620
      %v728 = vmul.f32 %v625, %v625
      %v729 = vmul.f32 %v628, %v628
      %v730 = vmul.f32 %v633, %v633
      %v731 = vmul.f32 %v636, %v636
      %v732 = vmul.f32 %v641, %v641
      %v733 = vmul.f32 %v644, %v644
      %v734 = vmul.f32 %v649, %v649
      %v735 = vmul.f32 %v652, %v652
      %v736 = vmul.f32 %v657, %v657
      %v737 = vmul.f32 %v660, %v660
      %v738 = vmul.f32 %v665, %v665
      %v739 = vmul.f32 %v668, %v668
      %v740 = vadd.f32 %v708, %v709
      %v741 = vadd.f32 %v740, %v710
      %v742 = vadd.f32 %v741, %v711
      %v743 = vadd.f32 %v742, %v712
      %v744 = vadd.f32 %v743, %v713
      %v745 = vadd.f32 %v744, %v714
      %v746 = vadd.f32 %v745, %v715
      %v747 = vadd.f32 %v746, %v716
      %v748 = vadd.f32 %v747, %v717
      %v749 = vadd.f32 %v748, %v718
      %v750 = vadd.f32 %v749, %v719
      %v751 = vadd.f32 %v750, %v720
      %v752 = vadd.f32 %v751, %v721
      %v753 = vadd.f32 %v752, %v722
      %v754 = vadd.f32 %v753, %v723
      %v755 = vadd.f32 %v754, %v724
      %v756 = vadd.f32 %v755, %v725
      %v757 = vadd.f32 %v756, %v726
      %v758 = vadd.f32 %v757, %v727
      %v759 = vadd.f32 %v758, %v728
      %v760 = vadd.f32 %v759, %v729
      %v761 = vadd.f32 %v760, %v730
      %v762 = vadd.f32 %v761, %v731
      %v763 = vadd.f32 %v762, %v732
      %v764 = vadd.f32 %v763, %v733
      %v765 = vadd.f32 %v764, %v734
      %v766 = vadd.f32 %v765, %v735
      %v767 = vadd.f32 %v766, %v736
      %v768 = vadd.f32 %v767, %v737
      %v769 = vadd.f32 %v768, %v738
      %v770 = vadd.f32 %v769, %v739
      %v771 = vrot.slane %v770, 4
      %v772 = vadd.f32 %v770, %v771
      %v773 = vrot.slane %v772, 2
      %v774 = vadd.f32 %v772, %v773
      %v775 = vrot.slane %v774, 1
      %v776 = vadd.f32 %v774, %v775
      %vm777 = vcmask 1040384
      %v778 = vsel %vm777, %v707, %v776
      %779 = vst [vmem:[%s224] sm:$0x3] %v778
      %p780 = scmp.lt.s32.totalorder %s16, 1
      %s781 = scalar_select %p780, %s16, 1
      %s782 = smul.addr %s781, 2
      %s783 = scalar_lea.vmem %s5, %s782
      // Predicated region
      $region41: #{coarse_feature_extractor.6} parent=39 // pred_check
        %p784 = pneg %p144
      $region42: #{coarse_feature_extractor.6} parent=39 // pred_check_branch
        %786 = sbr.rel (%p784) target = $region44
      $region43: #{coarse_feature_extractor.6} parent=39 // pred_region
        _
      $region44: #{coarse_feature_extractor.6} parent=39 // pred_fallthru
        _
    $region40: #{coarse_feature_extractor.6} parent=5 // pred_fallthru
      _
    %p787 = scmp.le.s32.totalorder 2, %s11
    // Predicated region
    $region45: #{coarse_feature_extractor.6} parent=5 // pred_check
      %p788 = pneg %p787
    $region46: #{coarse_feature_extractor.6} parent=5 // pred_check_branch
      %790 = sbr.rel (%p788) target = $region48
    $region47: #{coarse_feature_extractor.6} parent=5 // pred_region
      %s791 = ssub.s32 %s11, 2
      // Predicated region
      $region49: #{coarse_feature_extractor.6} parent=47 // pred_check
        %p792 = pneg %p150
      $region50: #{coarse_feature_extractor.6} parent=47 // pred_check_branch
        %794 = sbr.rel (%p792) target = $region52
      $region51: #{coarse_feature_extractor.6} parent=47 // pred_region
        %p795 = scmp.lt.s32.totalorder %s17, 1
        %s796 = scalar_select %p795, %s17, 1
        %s797 = smul.addr %s796, 2
        %s798 = scalar_lea.vmem %s5, %s797
      $region52: #{coarse_feature_extractor.6} parent=47 // pred_fallthru
        _
    $region48: #{coarse_feature_extractor.6} parent=5 // pred_fallthru
      _
  $region6: #{coarse_feature_extractor.6} parent=0 // loop_footer
    %s15 = sadd.s32 1, %s11
  $region7: #{coarse_feature_extractor.6} parent=0 // loop_footer_branch
    %10 = sbr.rel target = $region3
  $region8: #{coarse_feature_extractor.6} parent=0 // loop_exit
    _

// kernel: coarse_feature_extractor.7
$region0: #{coarse_feature_extractor.7}
  #allocation0 [shape = 'u32[]', space=smem, size = 0x4, offset = 0x4, fixed_abs, tag = 'smem constant byte address 0x4 - core index']
  #allocation1 [shape = 'u32[144,128]{1,0:T(1,128)}', space=vmem, size = 0x12000, scoped, tag = 'internal scratch']
  %s0 = inlined_call_operand.vmem [shape: bf16[512,128], index: 0, kind: input, shape index: {}]
  %s1 = inlined_call_operand.vmem [shape: f32[2,128], index: 1, kind: input, shape index: {}]
  %s2 = inlined_call_operand.vmem [shape: f32[1,128], index: 2, kind: input, shape index: {}]
  %s3 = inlined_call_operand.vmem [shape: f32[1,128], index: 3, kind: input, shape index: {}]
  %s4 = inlined_call_operand.vmem [shape: bf16[128,128], index: 4, kind: input, shape index: {}]
  %s5 = inlined_call_operand.vmem [shape: f32[2,128], index: 5, kind: input, shape index: {}]
  %s6 = inlined_call_operand.vmem [shape: f32[1,128], index: 6, kind: input, shape index: {}]
  %s7 = inlined_call_operand.vmem [shape: f32[1,128], index: 7, kind: input, shape index: {}]
  %s8 = inlined_call_operand.vmem [shape: bf16[512,128], index: 8, kind: input, shape index: {}]
  %s9 = inlined_call_operand.vmem [shape: f32[512,128], index: 9, kind: output, shape index: {}]
  %s10 = sld [smem:[#allocation0]]
  $region69: #{coarse_feature_extractor.7} parent=0
    _
  %s12 = ssub.s32 1, %s10
  %s13 = scalar_select 0, %s12, %s10
  loop: start=0, step=1, limit=4
  $region2: #{coarse_feature_extractor.7} parent=0 // loop_pre_header
    _
  $region3: #{coarse_feature_extractor.7} parent=0 // loop_header
    %s15 = sphi 0, %s19
    %p16 = scmp.ge.s32.totalorder %s15, 4
    %s25 = sphi 0, %s27
    %s28 = sphi 0, %s25
    %s29 = sphi 0, %s28
    %s45 = sphi 0, %s29
    %s49 = sphi 0, %s49
    %s51 = sphi 0, %s49
    %s52 = sphi 0, %s51
    %s66 = sphi 0, %s52
    %s70 = sphi 0, %s70
    %s72 = sphi 0, %s70
    %s73 = sphi 0, %s72
    %s87 = sphi 0, %s73
    %s91 = sphi 0, %s91
    %s93 = sphi 0, %s91
    %s94 = sphi 0, %s93
    %s108 = sphi 0, %s94
    %s112 = sphi 0, %s112
    %s114 = sphi 0, %s112
    %s115 = sphi 0, %s114
    %s129 = sphi 0, %s115
    %s133 = sphi 0, %s133
    %s135 = sphi 0, %s133
    %s136 = sphi 0, %s135
    %s150 = sphi 0, %s136
    %s154 = sphi 0, %s154
    %s156 = sphi 0, %s154
    %s157 = sphi 0, %s156
    %s171 = sphi 0, %s157
    %s175 = sphi 0, %s175
    %s177 = sphi 0, %s175
    %s178 = sphi 0, %s177
    %s192 = sphi 0, %s178
    %s198 = sphi 0, %s200
    %s201 = sphi 0, %s198
    %s202 = sphi 0, %s201
    %s218 = sphi 0, %s202
    %s224 = sphi 0, %s226
    %s227 = sphi 0, %s224
    %s228 = sphi 0, %s227
    %s244 = sphi 0, %s228
  $region4: #{coarse_feature_extractor.7} parent=0 // loop_header_branch
    %18 = sbr.rel (%p16) target = $region8
  $region5: #{coarse_feature_extractor.7} parent=0 // loop_body
    %s20 = ssub.s32 %s15, 1
    %s21 = ssub.s32 %s15, 2
    %s22 = sadd.s32 %s15, 1
    %s23 = ssub.s32 %s15, %s22
    %p24 = scmp.eq.s32.totalorder %s23, 0
    %s26 = sadd.s32 %s25, 1
    %s27 = scalar_select %p24, %s25, %s26
    %p30 = pneg %p24
    %p31 = scmp.eq.s32.totalorder %s15, 1
    %p32 = por %p30, %p31
    %p33 = scmp.ne.s32.totalorder %s25, %s28
    %p34 = scmp.eq.s32.totalorder %s15, 0
    %p35 = por %p33, %p34
    %p36 = scmp.ne.s32.totalorder %s25, %s28
    %p37 = scmp.eq.s32.totalorder %s20, 1
    %p38 = por %p36, %p37
    %p39 = scmp.ne.s32.totalorder %s28, %s29
    %p40 = scmp.eq.s32.totalorder %s20, 0
    %p41 = por %p39, %p40
    %p42 = scmp.ne.s32.totalorder %s28, %s29
    %p43 = scmp.eq.s32.totalorder %s21, 1
    %p44 = por %p42, %p43
    %p46 = scmp.ne.s32.totalorder %s29, %s45
    %p47 = scmp.eq.s32.totalorder %s21, 0
    %p48 = por %p46, %p47
    %s50 = sadd.s32 %s49, 1
    %p53 = scmp.eq.s32.totalorder %s15, 1
    %p54 = scmp.ne.s32.totalorder %s49, %s51
    %p55 = scmp.eq.s32.totalorder %s15, 0
    %p56 = por %p54, %p55
    %p57 = scmp.ne.s32.totalorder %s49, %s51
    %p58 = scmp.eq.s32.totalorder %s20, 1
    %p59 = por %p57, %p58
    %p60 = scmp.ne.s32.totalorder %s51, %s52
    %p61 = scmp.eq.s32.totalorder %s20, 0
    %p62 = por %p60, %p61
    %p63 = scmp.ne.s32.totalorder %s51, %s52
    %p64 = scmp.eq.s32.totalorder %s21, 1
    %p65 = por %p63, %p64
    %p67 = scmp.ne.s32.totalorder %s52, %s66
    %p68 = scmp.eq.s32.totalorder %s21, 0
    %p69 = por %p67, %p68
    %s71 = sadd.s32 %s70, 1
    %p74 = scmp.eq.s32.totalorder %s15, 1
    %p75 = scmp.ne.s32.totalorder %s70, %s72
    %p76 = scmp.eq.s32.totalorder %s15, 0
    %p77 = por %p75, %p76
    %p78 = scmp.ne.s32.totalorder %s70, %s72
    %p79 = scmp.eq.s32.totalorder %s20, 1
    %p80 = por %p78, %p79
    %p81 = scmp.ne.s32.totalorder %s72, %s73
    %p82 = scmp.eq.s32.totalorder %s20, 0
    %p83 = por %p81, %p82
    %p84 = scmp.ne.s32.totalorder %s72, %s73
    %p85 = scmp.eq.s32.totalorder %s21, 1
    %p86 = por %p84, %p85
    %p88 = scmp.ne.s32.totalorder %s73, %s87
    %p89 = scmp.eq.s32.totalorder %s21, 0
    %p90 = por %p88, %p89
    %s92 = sadd.s32 %s91, 1
    %p95 = scmp.eq.s32.totalorder %s15, 1
    %p96 = scmp.ne.s32.totalorder %s91, %s93
    %p97 = scmp.eq.s32.totalorder %s15, 0
    %p98 = por %p96, %p97
    %p99 = scmp.ne.s32.totalorder %s91, %s93
    %p100 = scmp.eq.s32.totalorder %s20, 1
    %p101 = por %p99, %p100
    %p102 = scmp.ne.s32.totalorder %s93, %s94
    %p103 = scmp.eq.s32.totalorder %s20, 0
    %p104 = por %p102, %p103
    %p105 = scmp.ne.s32.totalorder %s93, %s94
    %p106 = scmp.eq.s32.totalorder %s21, 1
    %p107 = por %p105, %p106
    %p109 = scmp.ne.s32.totalorder %s94, %s108
    %p110 = scmp.eq.s32.totalorder %s21, 0
    %p111 = por %p109, %p110
    %s113 = sadd.s32 %s112, 1
    %p116 = scmp.eq.s32.totalorder %s15, 1
    %p117 = scmp.ne.s32.totalorder %s112, %s114
    %p118 = scmp.eq.s32.totalorder %s15, 0
    %p119 = por %p117, %p118
    %p120 = scmp.ne.s32.totalorder %s112, %s114
    %p121 = scmp.eq.s32.totalorder %s20, 1
    %p122 = por %p120, %p121
    %p123 = scmp.ne.s32.totalorder %s114, %s115
    %p124 = scmp.eq.s32.totalorder %s20, 0
    %p125 = por %p123, %p124
    %p126 = scmp.ne.s32.totalorder %s114, %s115
    %p127 = scmp.eq.s32.totalorder %s21, 1
    %p128 = por %p126, %p127
    %p130 = scmp.ne.s32.totalorder %s115, %s129
    %p131 = scmp.eq.s32.totalorder %s21, 0
    %p132 = por %p130, %p131
    %s134 = sadd.s32 %s133, 1
    %p137 = scmp.eq.s32.totalorder %s15, 1
    %p138 = scmp.ne.s32.totalorder %s133, %s135
    %p139 = scmp.eq.s32.totalorder %s15, 0
    %p140 = por %p138, %p139
    %p141 = scmp.ne.s32.totalorder %s133, %s135
    %p142 = scmp.eq.s32.totalorder %s20, 1
    %p143 = por %p141, %p142
    %p144 = scmp.ne.s32.totalorder %s135, %s136
    %p145 = scmp.eq.s32.totalorder %s20, 0
    %p146 = por %p144, %p145
    %p147 = scmp.ne.s32.totalorder %s135, %s136
    %p148 = scmp.eq.s32.totalorder %s21, 1
    %p149 = por %p147, %p148
    %p151 = scmp.ne.s32.totalorder %s136, %s150
    %p152 = scmp.eq.s32.totalorder %s21, 0
    %p153 = por %p151, %p152
    %s155 = sadd.s32 %s154, 1
    %p158 = scmp.eq.s32.totalorder %s15, 1
    %p159 = scmp.ne.s32.totalorder %s154, %s156
    %p160 = scmp.eq.s32.totalorder %s15, 0
    %p161 = por %p159, %p160
    %p162 = scmp.ne.s32.totalorder %s154, %s156
    %p163 = scmp.eq.s32.totalorder %s20, 1
    %p164 = por %p162, %p163
    %p165 = scmp.ne.s32.totalorder %s156, %s157
    %p166 = scmp.eq.s32.totalorder %s20, 0
    %p167 = por %p165, %p166
    %p168 = scmp.ne.s32.totalorder %s156, %s157
    %p169 = scmp.eq.s32.totalorder %s21, 1
    %p170 = por %p168, %p169
    %p172 = scmp.ne.s32.totalorder %s157, %s171
    %p173 = scmp.eq.s32.totalorder %s21, 0
    %p174 = por %p172, %p173
    %s176 = sadd.s32 %s175, 1
    %p179 = scmp.eq.s32.totalorder %s15, 1
    %p180 = scmp.ne.s32.totalorder %s175, %s177
    %p181 = scmp.eq.s32.totalorder %s15, 0
    %p182 = por %p180, %p181
    %p183 = scmp.ne.s32.totalorder %s175, %s177
    %p184 = scmp.eq.s32.totalorder %s20, 1
    %p185 = por %p183, %p184
    %p186 = scmp.ne.s32.totalorder %s177, %s178
    %p187 = scmp.eq.s32.totalorder %s20, 0
    %p188 = por %p186, %p187
    %p189 = scmp.ne.s32.totalorder %s177, %s178
    %p190 = scmp.eq.s32.totalorder %s21, 1
    %p191 = por %p189, %p190
    %p193 = scmp.ne.s32.totalorder %s178, %s192
    %p194 = scmp.eq.s32.totalorder %s21, 0
    %p195 = por %p193, %p194
    %s196 = ssub.s32 %s15, %s22
    %p197 = scmp.eq.s32.totalorder %s196, 0
    %s199 = sadd.s32 %s198, 1
    %s200 = scalar_select %p197, %s198, %s199
    %p203 = pneg %p197
    %p204 = scmp.eq.s32.totalorder %s15, 1
    %p205 = por %p203, %p204
    %p206 = scmp.ne.s32.totalorder %s198, %s201
    %p207 = scmp.eq.s32.totalorder %s15, 0
    %p208 = por %p206, %p207
    %p209 = scmp.ne.s32.totalorder %s198, %s201
    %p210 = scmp.eq.s32.totalorder %s20, 1
    %p211 = por %p209, %p210
    %p212 = scmp.ne.s32.totalorder %s201, %s202
    %p213 = scmp.eq.s32.totalorder %s20, 0
    %p214 = por %p212, %p213
    %p215 = scmp.ne.s32.totalorder %s201, %s202
    %p216 = scmp.eq.s32.totalorder %s21, 1
    %p217 = por %p215, %p216
    %p219 = scmp.ne.s32.totalorder %s202, %s218
    %p220 = scmp.eq.s32.totalorder %s21, 0
    %p221 = por %p219, %p220
    %s222 = ssub.s32 %s15, %s22
    %p223 = scmp.eq.s32.totalorder %s222, 0
    %s225 = sadd.s32 %s224, 1
    %s226 = scalar_select %p223, %s224, %s225
    %p229 = pneg %p223
    %p230 = scmp.eq.s32.totalorder %s15, 1
    %p231 = por %p229, %p230
    %p232 = scmp.ne.s32.totalorder %s224, %s227
    %p233 = scmp.eq.s32.totalorder %s15, 0
    %p234 = por %p232, %p233
    %p235 = scmp.ne.s32.totalorder %s224, %s227
    %p236 = scmp.eq.s32.totalorder %s20, 1
    %p237 = por %p235, %p236
    %p238 = scmp.ne.s32.totalorder %s227, %s228
    %p239 = scmp.eq.s32.totalorder %s20, 0
    %p240 = por %p238, %p239
    %p241 = scmp.ne.s32.totalorder %s227, %s228
    %p242 = scmp.eq.s32.totalorder %s21, 1
    %p243 = por %p241, %p242
    %p245 = scmp.ne.s32.totalorder %s228, %s244
    %p246 = scmp.eq.s32.totalorder %s21, 0
    %p247 = por %p245, %p246
    %p248 = scmp.le.s32.totalorder 1, %s15
    %p249 = scmp.lt.s32.totalorder %s15, 3
    %p250 = pnand %p248, %p249
    %p251 = pneg %p250
    // Predicated region
    $region9: #{coarse_feature_extractor.7} parent=5 // pred_check
      _
    $region10: #{coarse_feature_extractor.7} parent=5 // pred_check_branch
      %253 = sbr.rel (%p250) target = $region12
    $region11: #{coarse_feature_extractor.7} parent=5 // pred_region
      %s254 = ssub.s32 %s15, 1
      // Predicated region
      $region13: #{coarse_feature_extractor.7} parent=11 // pred_check
        %p255 = pneg %p62
      $region14: #{coarse_feature_extractor.7} parent=11 // pred_check_branch
        %257 = sbr.rel (%p255) target = $region16
      $region15: #{coarse_feature_extractor.7} parent=11 // pred_region
        _
      $region16: #{coarse_feature_extractor.7} parent=11 // pred_fallthru
        _
      // Predicated region
      $region17: #{coarse_feature_extractor.7} parent=11 // pred_check
        %p258 = pneg %p83
      $region18: #{coarse_feature_extractor.7} parent=11 // pred_check_branch
        %260 = sbr.rel (%p258) target = $region20
      $region19: #{coarse_feature_extractor.7} parent=11 // pred_region
        _
      $region20: #{coarse_feature_extractor.7} parent=11 // pred_fallthru
        _
      // Predicated region
      $region21: #{coarse_feature_extractor.7} parent=11 // pred_check
        %p261 = pneg %p104
      $region22: #{coarse_feature_extractor.7} parent=11 // pred_check_branch
        %263 = sbr.rel (%p261) target = $region24
      $region23: #{coarse_feature_extractor.7} parent=11 // pred_region
        _
      $region24: #{coarse_feature_extractor.7} parent=11 // pred_fallthru
        _
      // Predicated region
      $region25: #{coarse_feature_extractor.7} parent=11 // pred_check
        %p264 = pneg %p125
      $region26: #{coarse_feature_extractor.7} parent=11 // pred_check_branch
        %266 = sbr.rel (%p264) target = $region28
      $region27: #{coarse_feature_extractor.7} parent=11 // pred_region
        _
      $region28: #{coarse_feature_extractor.7} parent=11 // pred_fallthru
        _
      // Predicated region
      $region29: #{coarse_feature_extractor.7} parent=11 // pred_check
        %p267 = pneg %p146
      $region30: #{coarse_feature_extractor.7} parent=11 // pred_check_branch
        %269 = sbr.rel (%p267) target = $region32
      $region31: #{coarse_feature_extractor.7} parent=11 // pred_region
        _
      $region32: #{coarse_feature_extractor.7} parent=11 // pred_fallthru
        _
      // Predicated region
      $region33: #{coarse_feature_extractor.7} parent=11 // pred_check
        %p270 = pneg %p167
      $region34: #{coarse_feature_extractor.7} parent=11 // pred_check_branch
        %272 = sbr.rel (%p270) target = $region36
      $region35: #{coarse_feature_extractor.7} parent=11 // pred_region
        _
      $region36: #{coarse_feature_extractor.7} parent=11 // pred_fallthru
        _
      // Predicated region
      $region37: #{coarse_feature_extractor.7} parent=11 // pred_check
        %p273 = pneg %p188
      $region38: #{coarse_feature_extractor.7} parent=11 // pred_check_branch
        %275 = sbr.rel (%p273) target = $region40
      $region39: #{coarse_feature_extractor.7} parent=11 // pred_region
        _
      $region40: #{coarse_feature_extractor.7} parent=11 // pred_fallthru
        _
    $region12: #{coarse_feature_extractor.7} parent=5 // pred_fallthru
      _
    %p276 = scmp.lt.s32.totalorder %s15, 2
    // Predicated region
    $region41: #{coarse_feature_extractor.7} parent=5 // pred_check
      %p277 = pneg %p276
    $region42: #{coarse_feature_extractor.7} parent=5 // pred_check_branch
      %279 = sbr.rel (%p277) target = $region44
    $region43: #{coarse_feature_extractor.7} parent=5 // pred_region
      // Predicated region
      $region45: #{coarse_feature_extractor.7} parent=43 // pred_check
        %p280 = pneg %p35
      $region46: #{coarse_feature_extractor.7} parent=43 // pred_check_branch
        %282 = sbr.rel (%p280) target = $region48
      $region47: #{coarse_feature_extractor.7} parent=43 // pred_region
        %s283 = smul.u32 32, %s15
        %p284 = scmp.lt.s32.totalorder %s283, 63
        %s285 = scalar_select %p284, %s283, 63
        %s286 = smul.addr %s285, 4
        %s287 = scalar_lea.vmem %s0, %s286
        %s288 = smul.u32 32, %s15
      $region48: #{coarse_feature_extractor.7} parent=43 // pred_fallthru
        _
      // Predicated region
      $region49: #{coarse_feature_extractor.7} parent=43 // pred_check
        %p289 = pneg %p208
      $region50: #{coarse_feature_extractor.7} parent=43 // pred_check_branch
        %291 = sbr.rel (%p289) target = $region52
      $region51: #{coarse_feature_extractor.7} parent=43 // pred_region
        %s292 = smul.u32 32, %s15
        %p293 = scmp.lt.s32.totalorder %s292, 63
        %s294 = scalar_select %p293, %s292, 63
        %s295 = smul.addr %s294, 4
        %s296 = scalar_lea.vmem %s8, %s295
        %s297 = smul.u32 32, %s15
      $region52: #{coarse_feature_extractor.7} parent=43 // pred_fallthru
        _
    $region44: #{coarse_feature_extractor.7} parent=5 // pred_fallthru
      _
    %p298 = scmp.le.s32.totalorder 1, %s15
    %p299 = scmp.lt.s32.totalorder %s15, 3
    %p300 = pnand %p298, %p299
    %p301 = pneg %p300
    // Predicated region
    $region53: #{coarse_feature_extractor.7} parent=5 // pred_check
      _
    $region54: #{coarse_feature_extractor.7} parent=5 // pred_check_branch
      %303 = sbr.rel (%p300) target = $region56
    $region55: #{coarse_feature_extractor.7} parent=5 // pred_region
      %s304 = ssub.s32 %s15, 1
      %s305 = smul.u32 32, %s20
      %p306 = scmp.lt.s32.totalorder %s305, 63
      %s307 = scalar_select %p306, %s305, 63
      %s308 = smul.addr %s307, 4
      %s309 = scalar_lea.vmem %s0, %s308
      %p310 = pneg %p41
      %p311 = pneg %p38
      %p312 = pneg %p62
      %p313 = pneg %p59
      %p314 = pneg %p83
      %p315 = pneg %p80
      %p316 = pneg %p104
      %p317 = pneg %p101
      %p318 = pneg %p125
      %p319 = pneg %p122
      %p320 = pneg %p146
      %p321 = pneg %p143
      %p322 = pneg %p167
      %p323 = pneg %p164
      %p324 = pneg %p188
      %p325 = pneg %p185
      %s326 = smul.u32 32, %s20
      %p327 = scmp.lt.s32.totalorder %s326, 63
      %s328 = scalar_select %p327, %s326, 63
      %s329 = smul.addr %s328, 4
      %s330 = scalar_lea.vmem %s8, %s329
      %p331 = pneg %p214
      %p332 = pneg %p211
      %p333 = pneg %p240
      %p334 = pneg %p237
      %s335 = smul.u32 32, %s20
      %p336 = scmp.lt.s32.totalorder %s335, 63
      %s337 = scalar_select %p336, %s335, 63
      %s338 = smul.addr %s337, 8
      %s339 = scalar_lea.vmem %s9, %s338
      %s340 = smul.u32 32, %s20
      %p341 = scmp.lt.s32.totalorder %s340, 63
      %s342 = scalar_select %p341, %s340, 63
      %s343 = smul.addr %s342, 4
      %s344 = scalar_lea.vmem %s0, %s343
      %s345 = smul.u32 32, %s20
      %s346 = smul.u32 32, %s20
      %p347 = scmp.lt.s32.totalorder %s346, 63
      %s348 = scalar_select %p347, %s346, 63
      %s349 = smul.addr %s348, 4
      %s350 = scalar_lea.vmem %s8, %s349
      %s351 = smul.u32 32, %s20
      %s352 = smul.u32 32, %s20
      %p353 = scmp.lt.s32.totalorder %s352, 63
      %s354 = scalar_select %p353, %s352, 63
      %s355 = smul.addr %s354, 8
      %s356 = scalar_lea.vmem %s9, %s355
      %s357 = smul.u32 32, %s20
      %v359 = vld [vmem:[%s1] sm:$0x3]
      %v360 = vld [vmem:[%s2] sm:$0x1]
      %v361 = vld [vmem:[%s3] sm:$0x1]
      %v362 = vmul.f32 %v359, 0.001953125
      %v363 = vmul.f32 %v362, %v362
      %v365 = vrot.slane %v363, 7
      %v367 = vsub.f32 %v362, %v365
      %v368 = vmax.f32 %v367, 0.0
      %v369 = vadd.f32 %v368, 1e-05
      %v370 = vrsqrt.pop %v369
      %v373 = vunpack.c.l.s4 1966171168
      %v374 = vunpack.c.0.s8 %v373
      %v375 = vlaneseq
      %v376 = vshrl.u32 %v375, 7
      %v377 = vsub.s32 %v374, %v376
      %v378 = vrot.slane %v370, %v377
      %v379 = vcombine.high %v378, %v378
      %v381 = vunpack.c.l.s4 1966171168
      %v382 = vunpack.c.0.s8 %v381
      %v383 = vlaneseq
      %v384 = vshrl.u32 %v383, 7
      %v385 = vsub.s32 %v382, %v384
      %v386 = vrot.slane %v379, %v385
      %v388 = vmul.f32 %v360, %v386
      %v389 = vmul.f32 %v362, %v388
      %v390 = vsub.f32 %v361, %v389
      %v391 = vld [vmem:[%s344] sm:$0xf]
      %v392 = vld [vmem:[%s344 + $0x4] sm:$0xf]
      %v393 = vld [vmem:[%s344 + $0x8] sm:$0xf]
      %v394 = vld [vmem:[%s344 + $0xc] sm:$0xf]
      %v395 = vld [vmem:[%s344 + $0x10] sm:$0xf]
      %v396 = vld [vmem:[%s344 + $0x14] sm:$0xf]
      %v397 = vld [vmem:[%s344 + $0x18] sm:$0xf]
      %v398 = vld [vmem:[%s344 + $0x1c] sm:$0xf]
      %v399 = vld [vmem:[%s344 + $0x20] sm:$0xf]
      %v400 = vld [vmem:[%s344 + $0x24] sm:$0xf]
      %v401 = vld [vmem:[%s344 + $0x28] sm:$0xf]
      %v402 = vld [vmem:[%s344 + $0x2c] sm:$0xf]
      %v403 = vld [vmem:[%s344 + $0x30] sm:$0xf]
      %v404 = vld [vmem:[%s344 + $0x34] sm:$0xf]
      %v405 = vld [vmem:[%s344 + $0x38] sm:$0xf]
      %v406 = vld [vmem:[%s344 + $0x3c] sm:$0xf]
      %v407 = vld [vmem:[%s344 + $0x40] sm:$0xf]
      %v408 = vld [vmem:[%s344 + $0x44] sm:$0xf]
      %v409 = vld [vmem:[%s344 + $0x48] sm:$0xf]
      %v410 = vld [vmem:[%s344 + $0x4c] sm:$0xf]
      %v411 = vld [vmem:[%s344 + $0x50] sm:$0xf]
      %v412 = vld [vmem:[%s344 + $0x54] sm:$0xf]
      %v413 = vld [vmem:[%s344 + $0x58] sm:$0xf]
      %v414 = vld [vmem:[%s344 + $0x5c] sm:$0xf]
      %v415 = vld [vmem:[%s344 + $0x60] sm:$0xf]
      %v416 = vld [vmem:[%s344 + $0x64] sm:$0xf]
      %v417 = vld [vmem:[%s344 + $0x68] sm:$0xf]
      %v418 = vld [vmem:[%s344 + $0x6c] sm:$0xf]
      %v419 = vld [vmem:[%s344 + $0x70] sm:$0xf]
      %v420 = vld [vmem:[%s344 + $0x74] sm:$0xf]
      %v421 = vld [vmem:[%s344 + $0x78] sm:$0xf]
      %v422 = vld [vmem:[%s344 + $0x7c] sm:$0xf]
      %v423 = vunpack.c.l.bf16 %v391
      %v424 = vunpack.c.l.bf16 %v392
      %v425 = vunpack.c.l.bf16 %v393
      %v426 = vunpack.c.l.bf16 %v394
      %v427 = vunpack.c.l.bf16 %v395
      %v428 = vunpack.c.l.bf16 %v396
      %v429 = vunpack.c.l.bf16 %v397
      %v430 = vunpack.c.l.bf16 %v398
      %v431 = vunpack.c.l.bf16 %v399
      %v432 = vunpack.c.l.bf16 %v400
      %v433 = vunpack.c.l.bf16 %v401
      %v434 = vunpack.c.l.bf16 %v402
      %v435 = vunpack.c.l.bf16 %v403
      %v436 = vunpack.c.l.bf16 %v404
      %v437 = vunpack.c.l.bf16 %v405
      %v438 = vunpack.c.l.bf16 %v406
      %v439 = vunpack.c.l.bf16 %v407
      %v440 = vunpack.c.l.bf16 %v408
      %v441 = vunpack.c.l.bf16 %v409
      %v442 = vunpack.c.l.bf16 %v410
      %v443 = vunpack.c.l.bf16 %v411
      %v444 = vunpack.c.l.bf16 %v412
      %v445 = vunpack.c.l.bf16 %v413
      %v446 = vunpack.c.l.bf16 %v414
      %v447 = vunpack.c.l.bf16 %v415
      %v448 = vunpack.c.l.bf16 %v416
      %v449 = vunpack.c.l.bf16 %v417
      %v450 = vunpack.c.l.bf16 %v418
      %v451 = vunpack.c.l.bf16 %v419
      %v452 = vunpack.c.l.bf16 %v420
      %v453 = vunpack.c.l.bf16 %v421
      %v454 = vunpack.c.l.bf16 %v422
      %v456 = vlaneseq
      %v457 = vshrl.u32 %v456, 7
      %v458 = vsub.s32 0, %v457
      %v459 = vrot.slane %v388, %v458
      %v461 = vmul.f32 %v423, %v459
      %v462 = vmul.f32 %v424, %v459
      %v463 = vmul.f32 %v425, %v459
      %v464 = vmul.f32 %v426, %v459
      %v465 = vmul.f32 %v427, %v459
      %v466 = vmul.f32 %v428, %v459
      %v467 = vmul.f32 %v429, %v459
      %v468 = vmul.f32 %v430, %v459
      %v469 = vmul.f32 %v431, %v459
      %v470 = vmul.f32 %v432, %v459
      %v471 = vmul.f32 %v433, %v459
      %v472 = vmul.f32 %v434, %v459
      %v473 = vmul.f32 %v435, %v459
      %v474 = vmul.f32 %v436, %v459
      %v475 = vmul.f32 %v437, %v459
      %v476 = vmul.f32 %v438, %v459
      %v477 = vmul.f32 %v439, %v459
      %v478 = vmul.f32 %v440, %v459
      %v479 = vmul.f32 %v441, %v459
      %v480 = vmul.f32 %v442, %v459
      %v481 = vmul.f32 %v443, %v459
      %v482 = vmul.f32 %v444, %v459
      %v483 = vmul.f32 %v445, %v459
      %v484 = vmul.f32 %v446, %v459
      %v485 = vmul.f32 %v447, %v459
      %v486 = vmul.f32 %v448, %v459
      %v487 = vmul.f32 %v449, %v459
      %v488 = vmul.f32 %v450, %v459
      %v489 = vmul.f32 %v451, %v459
      %v490 = vmul.f32 %v452, %v459
      %v491 = vmul.f32 %v453, %v459
      %v492 = vmul.f32 %v454, %v459
      %v494 = vlaneseq
      %v495 = vshrl.u32 %v494, 7
      %v496 = vsub.s32 0, %v495
      %v497 = vrot.slane %v390, %v496
      %v499 = vadd.f32 %v461, %v497
      %v500 = vadd.f32 %v462, %v497
      %v501 = vadd.f32 %v463, %v497
      %v502 = vadd.f32 %v464, %v497
      %v503 = vadd.f32 %v465, %v497
      %v504 = vadd.f32 %v466, %v497
      %v505 = vadd.f32 %v467, %v497
      %v506 = vadd.f32 %v468, %v497
      %v507 = vadd.f32 %v469, %v497
      %v508 = vadd.f32 %v470, %v497
      %v509 = vadd.f32 %v471, %v497
      %v510 = vadd.f32 %v472, %v497
      %v511 = vadd.f32 %v473, %v497
      %v512 = vadd.f32 %v474, %v497
      %v513 = vadd.f32 %v475, %v497
      %v514 = vadd.f32 %v476, %v497
      %v515 = vadd.f32 %v477, %v497
      %v516 = vadd.f32 %v478, %v497
      %v517 = vadd.f32 %v479, %v497
      %v518 = vadd.f32 %v480, %v497
      %v519 = vadd.f32 %v481, %v497
      %v520 = vadd.f32 %v482, %v497
      %v521 = vadd.f32 %v483, %v497
      %v522 = vadd.f32 %v484, %v497
      %v523 = vadd.f32 %v485, %v497
      %v524 = vadd.f32 %v486, %v497
      %v525 = vadd.f32 %v487, %v497
      %v526 = vadd.f32 %v488, %v497
      %v527 = vadd.f32 %v489, %v497
      %v528 = vadd.f32 %v490, %v497
      %v529 = vadd.f32 %v491, %v497
      %v530 = vadd.f32 %v492, %v497
      %v531 = vmax.f32 %v499, 0.0
      %v532 = vmax.f32 %v500, 0.0
      %v533 = vmax.f32 %v501, 0.0
      %v534 = vmax.f32 %v502, 0.0
      %v535 = vmax.f32 %v503, 0.0
      %v536 = vmax.f32 %v504, 0.0
      %v537 = vmax.f32 %v505, 0.0
      %v538 = vmax.f32 %v506, 0.0
      %v539 = vmax.f32 %v507, 0.0
      %v540 = vmax.f32 %v508, 0.0
      %v541 = vmax.f32 %v509, 0.0
      %v542 = vmax.f32 %v510, 0.0
      %v543 = vmax.f32 %v511, 0.0
      %v544 = vmax.f32 %v512, 0.0
      %v545 = vmax.f32 %v513, 0.0
      %v546 = vmax.f32 %v514, 0.0
      %v547 = vmax.f32 %v515, 0.0
      %v548 = vmax.f32 %v516, 0.0
      %v549 = vmax.f32 %v517, 0.0
      %v550 = vmax.f32 %v518, 0.0
      %v551 = vmax.f32 %v519, 0.0
      %v552 = vmax.f32 %v520, 0.0
      %v553 = vmax.f32 %v521, 0.0
      %v554 = vmax.f32 %v522, 0.0
      %v555 = vmax.f32 %v523, 0.0
      %v556 = vmax.f32 %v524, 0.0
      %v557 = vmax.f32 %v525, 0.0
      %v558 = vmax.f32 %v526, 0.0
      %v559 = vmax.f32 %v527, 0.0
      %v560 = vmax.f32 %v528, 0.0
      %v561 = vmax.f32 %v529, 0.0
      %v562 = vmax.f32 %v530, 0.0
      %v563 = vpack.c.bf16 %v532, %v531
      %v564 = vpack.c.bf16 %v534, %v533
      %v565 = vpack.c.bf16 %v536, %v535
      %v566 = vpack.c.bf16 %v538, %v537
      %v567 = vpack.c.bf16 %v540, %v539
      %v568 = vpack.c.bf16 %v542, %v541
      %v569 = vpack.c.bf16 %v544, %v543
      %v570 = vpack.c.bf16 %v546, %v545
      %v571 = vpack.c.bf16 %v548, %v547
      %v572 = vpack.c.bf16 %v550, %v549
      %v573 = vpack.c.bf16 %v552, %v551
      %v574 = vpack.c.bf16 %v554, %v553
      %v575 = vpack.c.bf16 %v556, %v555
      %v576 = vpack.c.bf16 %v558, %v557
      %v577 = vpack.c.bf16 %v560, %v559
      %v578 = vpack.c.bf16 %v562, %v561
      %v579 = vld [vmem:[%s4] sm:$0xf]
      %v580 = vld [vmem:[%s4 + $0x4] sm:$0xf]
      %v581 = vld [vmem:[%s4 + $0x8] sm:$0xf]
      %v582 = vld [vmem:[%s4 + $0xc] sm:$0xf]
      %v583 = vld [vmem:[%s4 + $0x10] sm:$0xf]
      %v584 = vld [vmem:[%s4 + $0x14] sm:$0xf]
      %v585 = vld [vmem:[%s4 + $0x18] sm:$0xf]
      %v586 = vld [vmem:[%s4 + $0x1c] sm:$0xf]
      %v587 = vld [vmem:[%s4 + $0x20] sm:$0xf]
      %v588 = vld [vmem:[%s4 + $0x24] sm:$0xf]
      %v589 = vld [vmem:[%s4 + $0x28] sm:$0xf]
      %v590 = vld [vmem:[%s4 + $0x2c] sm:$0xf]
      %v591 = vld [vmem:[%s4 + $0x30] sm:$0xf]
      %v592 = vld [vmem:[%s4 + $0x34] sm:$0xf]
      %v593 = vld [vmem:[%s4 + $0x38] sm:$0xf]
      %v594 = vld [vmem:[%s4 + $0x3c] sm:$0xf]
      %v611 = vunpack.c.l.b16 %v579
      %v612 = vunpack.c.l.b16 %v580
      %v613 = vunpack.c.l.b16 %v581
      %v614 = vunpack.c.l.b16 %v582
      %v615 = vunpack.c.l.b16 %v583
      %v616 = vunpack.c.l.b16 %v584
      %v617 = vunpack.c.l.b16 %v585
      %v618 = vunpack.c.l.b16 %v586
      %v619 = vunpack.c.l.b16 %v587
      %v620 = vunpack.c.l.b16 %v588
      %v621 = vunpack.c.l.b16 %v589
      %v622 = vunpack.c.l.b16 %v590
      %v623 = vunpack.c.l.b16 %v591
      %v624 = vunpack.c.l.b16 %v592
      %v625 = vunpack.c.l.b16 %v593
      %v626 = vunpack.c.l.b16 %v594
      %v627 = vpack.c.b16 %v612, %v611
      %v628 = vpack.c.b16 %v614, %v613
      %v629 = vpack.c.b16 %v616, %v615
      %v630 = vpack.c.b16 %v618, %v617
      %v631 = vpack.c.b16 %v620, %v619
      %v632 = vpack.c.b16 %v622, %v621
      %v633 = vpack.c.b16 %v624, %v623
      %v634 = vpack.c.b16 %v626, %v625
      %643 = vmatprep.subr.bf16.mxu0 0
      %644 = vmatpush1.bf16.msra.mxu0 %v627
      %645 = vmatprep.subr.bf16.mxu0 0
      %646 = vmatpush1.bf16.msra.mxu0 %v628
      %647 = vmatprep.subr.bf16.mxu0 0
      %648 = vmatpush1.bf16.msra.mxu0 %v629
      %649 = vmatprep.subr.bf16.mxu0 0
      %650 = vmatpush1.bf16.msra.mxu0 %v630
      %651 = vmatprep.subr.bf16.mxu0 0
      %652 = vmatpush1.bf16.msra.mxu0 %v631
      %653 = vmatprep.subr.bf16.mxu0 0
      %654 = vmatpush1.bf16.msra.mxu0 %v632
      %655 = vmatprep.subr.bf16.mxu0 0
      %656 = vmatpush1.bf16.msra.mxu0 %v633
      %657 = vmatprep.subr.bf16.mxu0 0
      %658 = vmatpush1.bf16.msra.mxu0 %v634
      %659 = vmatprep.subr.bf16.mxu0 0
      %660 = vmatpush1.bf16.msra.mxu0 0
      %661 = vmatprep.subr.bf16.mxu0 0
      %662 = vmatpush1.bf16.msra.mxu0 0
      %663 = vmatprep.subr.bf16.mxu0 0
      %664 = vmatpush1.bf16.msra.mxu0 0
      %665 = vmatprep.subr.bf16.mxu0 0
      %666 = vmatpush1.bf16.msra.mxu0 0
      %667 = vmatprep.subr.bf16.mxu0 0
      %668 = vmatpush1.bf16.msra.mxu0 0
      %669 = vmatprep.subr.bf16.mxu0 0
      %670 = vmatpush1.bf16.msra.mxu0 0
      %671 = vmatprep.subr.bf16.mxu0 0
      %672 = vmatpush1.bf16.msra.mxu0 0
      %673 = vmatprep.subr.bf16.mxu0 0
      %674 = vmatpush1.bf16.msra.mxu0 0
      %675 = vmatprep.mubr.bf16.mxu0 0
      %676 = vmatmul.mubr.bf16.gmra.mrb[0].mxu0 %v563
      %v677 = vpop.f32.mrb[0].mxu0
      %v678 = vadd.f32 0.0, %v677
      %v679 = vpop.f32.mrb[0].mxu0
      %v680 = vpop.f32.mrb[0].mxu0
      %v681 = vadd.f32 0.0, %v680
      %v682 = vpop.f32.mrb[0].mxu0
      %683 = vmatprep.mubr.bf16.mxu0 0
      %684 = vmatmul.mubr.bf16.gmra.mrb[0].mxu0 %v564
      %v685 = vpop.f32.mrb[0].mxu0
      %v686 = vadd.f32 0.0, %v685
      %v687 = vpop.f32.mrb[0].mxu0
      %v688 = vpop.f32.mrb[0].mxu0
      %v689 = vadd.f32 0.0, %v688
      %v690 = vpop.f32.mrb[0].mxu0
      %691 = vmatprep.mubr.bf16.mxu0 0
      %692 = vmatmul.mubr.bf16.gmra.mrb[0].mxu0 %v565
      %v693 = vpop.f32.mrb[0].mxu0
      %v694 = vadd.f32 0.0, %v693
      %v695 = vpop.f32.mrb[0].mxu0
      %v696 = vpop.f32.mrb[0].mxu0
      %v697 = vadd.f32 0.0, %v696
      %v698 = vpop.f32.mrb[0].mxu0
      %699 = vmatprep.mubr.bf16.mxu0 0
      %700 = vmatmul.mubr.bf16.gmra.mrb[0].mxu0 %v566
      %v701 = vpop.f32.mrb[0].mxu0
      %v702 = vadd.f32 0.0, %v701
      %v703 = vpop.f32.mrb[0].mxu0
      %v704 = vpop.f32.mrb[0].mxu0
      %v705 = vadd.f32 0.0, %v704
      %v706 = vpop.f32.mrb[0].mxu0
      %707 = vmatprep.mubr.bf16.mxu0 0
      %708 = vmatmul.mubr.bf16.gmra.mrb[0].mxu0 %v567
      %v709 = vpop.f32.mrb[0].mxu0
      %v710 = vadd.f32 0.0, %v709
      %v711 = vpop.f32.mrb[0].mxu0
      %v712 = vpop.f32.mrb[0].mxu0
      %v713 = vadd.f32 0.0, %v712
      %v714 = vpop.f32.mrb[0].mxu0
      %715 = vmatprep.mubr.bf16.mxu0 0
      %716 = vmatmul.mubr.bf16.gmra.mrb[0].mxu0 %v568
      %v717 = vpop.f32.mrb[0].mxu0
      %v718 = vadd.f32 0.0, %v717
      %v719 = vpop.f32.mrb[0].mxu0
      %v720 = vpop.f32.mrb[0].mxu0
      %v721 = vadd.f32 0.0, %v720
      %v722 = vpop.f32.mrb[0].mxu0
      %723 = vmatprep.mubr.bf16.mxu0 0
      %724 = vmatmul.mubr.bf16.gmra.mrb[0].mxu0 %v569
      %v725 = vpop.f32.mrb[0].mxu0
      %v726 = vadd.f32 0.0, %v725
      %v727 = vpop.f32.mrb[0].mxu0
      %v728 = vpop.f32.mrb[0].mxu0
      %v729 = vadd.f32 0.0, %v728
      %v730 = vpop.f32.mrb[0].mxu0
      %731 = vmatprep.mubr.bf16.mxu0 0
      %732 = vmatmul.mubr.bf16.gmra.mrb[0].mxu0 %v570
      %v733 = vpop.f32.mrb[0].mxu0
      %v734 = vadd.f32 0.0, %v733
      %v735 = vpop.f32.mrb[0].mxu0
      %v736 = vpop.f32.mrb[0].mxu0
      %v737 = vadd.f32 0.0, %v736
      %v738 = vpop.f32.mrb[0].mxu0
      %739 = vmatprep.mubr.bf16.mxu0 0
      %740 = vmatmul.mubr.bf16.gmra.mrb[0].mxu0 %v571
      %v741 = vpop.f32.mrb[0].mxu0
      %v742 = vadd.f32 0.0, %v741
      %v743 = vpop.f32.mrb[0].mxu0
      %v744 = vpop.f32.mrb[0].mxu0
      %v745 = vadd.f32 0.0, %v744
      %v746 = vpop.f32.mrb[0].mxu0
      %747 = vmatprep.mubr.bf16.mxu0 0
      %748 = vmatmul.mubr.bf16.gmra.mrb[0].mxu0 %v572
      %v749 = vpop.f32.mrb[0].mxu0
      %v750 = vadd.f32 0.0, %v749
      %v751 = vpop.f32.mrb[0].mxu0
      %v752 = vpop.f32.mrb[0].mxu0
      %v753 = vadd.f32 0.0, %v752
      %v754 = vpop.f32.mrb[0].mxu0
      %755 = vmatprep.mubr.bf16.mxu0 0
      %756 = vmatmul.mubr.bf16.gmra.mrb[0].mxu0 %v573
      %v757 = vpop.f32.mrb[0].mxu0
      %v758 = vadd.f32 0.0, %v757
      %v759 = vpop.f32.mrb[0].mxu0
      %v760 = vpop.f32.mrb[0].mxu0
      %v761 = vadd.f32 0.0, %v760
      %v762 = vpop.f32.mrb[0].mxu0
      %763 = vmatprep.mubr.bf16.mxu0 0
      %764 = vmatmul.mubr.bf16.gmra.mrb[0].mxu0 %v574
      %v765 = vpop.f32.mrb[0].mxu0
      %v766 = vadd.f32 0.0, %v765
      %v767 = vpop.f32.mrb[0].mxu0
      %v768 = vpop.f32.mrb[0].mxu0
      %v769 = vadd.f32 0.0, %v768
      %v770 = vpop.f32.mrb[0].mxu0
      %771 = vmatprep.mubr.bf16.mxu0 0
      %772 = vmatmul.mubr.bf16.gmra.mrb[0].mxu0 %v575
      %v773 = vpop.f32.mrb[0].mxu0
      %v774 = vadd.f32 0.0, %v773
      %v775 = vpop.f32.mrb[0].mxu0
      %v776 = vpop.f32.mrb[0].mxu0
      %v777 = vadd.f32 0.0, %v776
      %v778 = vpop.f32.mrb[0].mxu0
      %779 = vmatprep.mubr.bf16.mxu0 0
      %780 = vmatmul.mubr.bf16.gmra.mrb[0].mxu0 %v576
      %v781 = vpop.f32.mrb[0].mxu0
      %v782 = vadd.f32 0.0, %v781
      %v783 = vpop.f32.mrb[0].mxu0
      %v784 = vpop.f32.mrb[0].mxu0
      %v785 = vadd.f32 0.0, %v784
      %v786 = vpop.f32.mrb[0].mxu0
      %787 = vmatprep.mubr.bf16.mxu0 0
      %788 = vmatmul.mubr.bf16.gmra.mrb[0].mxu0 %v577
      %v789 = vpop.f32.mrb[0].mxu0
      %v790 = vadd.f32 0.0, %v789
      %v791 = vpop.f32.mrb[0].mxu0
      %v792 = vpop.f32.mrb[0].mxu0
      %v793 = vadd.f32 0.0, %v792
      %v794 = vpop.f32.mrb[0].mxu0
      %795 = vmatprep.mubr.bf16.mxu0 0
      %796 = vmatmul.mubr.bf16.gmra.mrb[0].mxu0 %v578
      %v797 = vpop.f32.mrb[0].mxu0
      %v798 = vadd.f32 0.0, %v797
      %v799 = vpop.f32.mrb[0].mxu0
      %v800 = vpop.f32.mrb[0].mxu0
      %v801 = vadd.f32 0.0, %v800
      %v802 = vpop.f32.mrb[0].mxu0
      %803 = vdwg.mxu0
      %v804 = vld [vmem:[%s5] sm:$0x3]
      %v805 = vld [vmem:[%s6] sm:$0x1]
      %v806 = vld [vmem:[%s7] sm:$0x1]
      %v807 = vmul.f32 %v804, 0.001953125
      %v808 = vmul.f32 %v807, %v807
      %v810 = vrot.slane %v808, 7
      %v812 = vsub.f32 %v807, %v810
      %v813 = vmax.f32 %v812, 0.0
      %v814 = vadd.f32 %v813, 1e-05
      %v815 = vrsqrt.pop %v814
      %v818 = vunpack.c.l.s4 1966171168
      %v819 = vunpack.c.0.s8 %v818
      %v820 = vlaneseq
      %v821 = vshrl.u32 %v820, 7
      %v822 = vsub.s32 %v819, %v821
      %v823 = vrot.slane %v815, %v822
      %v824 = vcombine.high %v823, %v823
      %v826 = vunpack.c.l.s4 1966171168
      %v827 = vunpack.c.0.s8 %v826
      %v828 = vlaneseq
      %v829 = vshrl.u32 %v828, 7
      %v830 = vsub.s32 %v827, %v829
      %v831 = vrot.slane %v824, %v830
      %v833 = vmul.f32 %v805, %v831
      %v834 = vmul.f32 %v807, %v833
      %v835 = vsub.f32 %v806, %v834
      %v837 = vlaneseq
      %v838 = vshrl.u32 %v837, 7
      %v839 = vsub.s32 0, %v838
      %v840 = vrot.slane %v833, %v839
      %v842 = vmul.f32 %v678, %v840
      %v843 = vmul.f32 %v681, %v840
      %v844 = vmul.f32 %v686, %v840
      %v845 = vmul.f32 %v689, %v840
      %v846 = vmul.f32 %v694, %v840
      %v847 = vmul.f32 %v697, %v840
      %v848 = vmul.f32 %v702, %v840
      %v849 = vmul.f32 %v705, %v840
      %v850 = vmul.f32 %v710, %v840
      %v851 = vmul.f32 %v713, %v840
      %v852 = vmul.f32 %v718, %v840
      %v853 = vmul.f32 %v721, %v840
      %v854 = vmul.f32 %v726, %v840
      %v855 = vmul.f32 %v729, %v840
      %v856 = vmul.f32 %v734, %v840
      %v857 = vmul.f32 %v737, %v840
      %v858 = vmul.f32 %v742, %v840
      %v859 = vmul.f32 %v745, %v840
      %v860 = vmul.f32 %v750, %v840
      %v861 = vmul.f32 %v753, %v840
      %v862 = vmul.f32 %v758, %v840
      %v863 = vmul.f32 %v761, %v840
      %v864 = vmul.f32 %v766, %v840
      %v865 = vmul.f32 %v769, %v840
      %v866 = vmul.f32 %v774, %v840
      %v867 = vmul.f32 %v777, %v840
      %v868 = vmul.f32 %v782, %v840
      %v869 = vmul.f32 %v785, %v840
      %v870 = vmul.f32 %v790, %v840
      %v871 = vmul.f32 %v793, %v840
      %v872 = vmul.f32 %v798, %v840
      %v873 = vmul.f32 %v801, %v840
      %v875 = vlaneseq
      %v876 = vshrl.u32 %v875, 7
      %v877 = vsub.s32 0, %v876
      %v878 = vrot.slane %v835, %v877
      %v880 = vadd.f32 %v842, %v878
      %v881 = vadd.f32 %v843, %v878
      %v882 = vadd.f32 %v844, %v878
      %v883 = vadd.f32 %v845, %v878
      %v884 = vadd.f32 %v846, %v878
      %v885 = vadd.f32 %v847, %v878
      %v886 = vadd.f32 %v848, %v878
      %v887 = vadd.f32 %v849, %v878
      %v888 = vadd.f32 %v850, %v878
      %v889 = vadd.f32 %v851, %v878
      %v890 = vadd.f32 %v852, %v878
      %v891 = vadd.f32 %v853, %v878
      %v892 = vadd.f32 %v854, %v878
      %v893 = vadd.f32 %v855, %v878
      %v894 = vadd.f32 %v856, %v878
      %v895 = vadd.f32 %v857, %v878
      %v896 = vadd.f32 %v858, %v878
      %v897 = vadd.f32 %v859, %v878
      %v898 = vadd.f32 %v860, %v878
      %v899 = vadd.f32 %v861, %v878
      %v900 = vadd.f32 %v862, %v878
      %v901 = vadd.f32 %v863, %v878
      %v902 = vadd.f32 %v864, %v878
      %v903 = vadd.f32 %v865, %v878
      %v904 = vadd.f32 %v866, %v878
      %v905 = vadd.f32 %v867, %v878
      %v906 = vadd.f32 %v868, %v878
      %v907 = vadd.f32 %v869, %v878
      %v908 = vadd.f32 %v870, %v878
      %v909 = vadd.f32 %v871, %v878
      %v910 = vadd.f32 %v872, %v878
      %v911 = vadd.f32 %v873, %v878
      %v912 = vld [vmem:[%s350] sm:$0xf]
      %v913 = vld [vmem:[%s350 + $0x4] sm:$0xf]
      %v914 = vld [vmem:[%s350 + $0x8] sm:$0xf]
      %v915 = vld [vmem:[%s350 + $0xc] sm:$0xf]
      %v916 = vld [vmem:[%s350 + $0x10] sm:$0xf]
      %v917 = vld [vmem:[%s350 + $0x14] sm:$0xf]
      %v918 = vld [vmem:[%s350 + $0x18] sm:$0xf]
      %v919 = vld [vmem:[%s350 + $0x1c] sm:$0xf]
      %v920 = vld [vmem:[%s350 + $0x20] sm:$0xf]
      %v921 = vld [vmem:[%s350 + $0x24] sm:$0xf]
      %v922 = vld [vmem:[%s350 + $0x28] sm:$0xf]
      %v923 = vld [vmem:[%s350 + $0x2c] sm:$0xf]
      %v924 = vld [vmem:[%s350 + $0x30] sm:$0xf]
      %v925 = vld [vmem:[%s350 + $0x34] sm:$0xf]
      %v926 = vld [vmem:[%s350 + $0x38] sm:$0xf]
      %v927 = vld [vmem:[%s350 + $0x3c] sm:$0xf]
      %v928 = vld [vmem:[%s350 + $0x40] sm:$0xf]
      %v929 = vld [vmem:[%s350 + $0x44] sm:$0xf]
      %v930 = vld [vmem:[%s350 + $0x48] sm:$0xf]
      %v931 = vld [vmem:[%s350 + $0x4c] sm:$0xf]
      %v932 = vld [vmem:[%s350 + $0x50] sm:$0xf]
      %v933 = vld [vmem:[%s350 + $0x54] sm:$0xf]
      %v934 = vld [vmem:[%s350 + $0x58] sm:$0xf]
      %v935 = vld [vmem:[%s350 + $0x5c] sm:$0xf]
      %v936 = vld [vmem:[%s350 + $0x60] sm:$0xf]
      %v937 = vld [vmem:[%s350 + $0x64] sm:$0xf]
      %v938 = vld [vmem:[%s350 + $0x68] sm:$0xf]
      %v939 = vld [vmem:[%s350 + $0x6c] sm:$0xf]
      %v940 = vld [vmem:[%s350 + $0x70] sm:$0xf]
      %v941 = vld [vmem:[%s350 + $0x74] sm:$0xf]
      %v942 = vld [vmem:[%s350 + $0x78] sm:$0xf]
      %v943 = vld [vmem:[%s350 + $0x7c] sm:$0xf]
      %v944 = vunpack.c.l.bf16 %v912
      %v945 = vunpack.c.l.bf16 %v913
      %v946 = vunpack.c.l.bf16 %v914
      %v947 = vunpack.c.l.bf16 %v915
      %v948 = vunpack.c.l.bf16 %v916
      %v949 = vunpack.c.l.bf16 %v917
      %v950 = vunpack.c.l.bf16 %v918
      %v951 = vunpack.c.l.bf16 %v919
      %v952 = vunpack.c.l.bf16 %v920
      %v953 = vunpack.c.l.bf16 %v921
      %v954 = vunpack.c.l.bf16 %v922
      %v955 = vunpack.c.l.bf16 %v923
      %v956 = vunpack.c.l.bf16 %v924
      %v957 = vunpack.c.l.bf16 %v925
      %v958 = vunpack.c.l.bf16 %v926
      %v959 = vunpack.c.l.bf16 %v927
      %v960 = vunpack.c.l.bf16 %v928
      %v961 = vunpack.c.l.bf16 %v929
      %v962 = vunpack.c.l.bf16 %v930
      %v963 = vunpack.c.l.bf16 %v931
      %v964 = vunpack.c.l.bf16 %v932
      %v965 = vunpack.c.l.bf16 %v933
      %v966 = vunpack.c.l.bf16 %v934
      %v967 = vunpack.c.l.bf16 %v935
      %v968 = vunpack.c.l.bf16 %v936
      %v969 = vunpack.c.l.bf16 %v937
      %v970 = vunpack.c.l.bf16 %v938
      %v971 = vunpack.c.l.bf16 %v939
      %v972 = vunpack.c.l.bf16 %v940
      %v973 = vunpack.c.l.bf16 %v941
      %v974 = vunpack.c.l.bf16 %v942
      %v975 = vunpack.c.l.bf16 %v943
      %v976 = vadd.f32 %v880, %v944
      %v977 = vadd.f32 %v881, %v945
      %v978 = vadd.f32 %v882, %v946
      %v979 = vadd.f32 %v883, %v947
      %v980 = vadd.f32 %v884, %v948
      %v981 = vadd.f32 %v885, %v949
      %v982 = vadd.f32 %v886, %v950
      %v983 = vadd.f32 %v887, %v951
      %v984 = vadd.f32 %v888, %v952
      %v985 = vadd.f32 %v889, %v953
      %v986 = vadd.f32 %v890, %v954
      %v987 = vadd.f32 %v891, %v955
      %v988 = vadd.f32 %v892, %v956
      %v989 = vadd.f32 %v893, %v957
      %v990 = vadd.f32 %v894, %v958
      %v991 = vadd.f32 %v895, %v959
      %v992 = vadd.f32 %v896, %v960
      %v993 = vadd.f32 %v897, %v961
      %v994 = vadd.f32 %v898, %v962
      %v995 = vadd.f32 %v899, %v963
      %v996 = vadd.f32 %v900, %v964
      %v997 = vadd.f32 %v901, %v965
      %v998 = vadd.f32 %v902, %v966
      %v999 = vadd.f32 %v903, %v967
      %v1000 = vadd.f32 %v904, %v968
      %v1001 = vadd.f32 %v905, %v969
      %v1002 = vadd.f32 %v906, %v970
      %v1003 = vadd.f32 %v907, %v971
      %v1004 = vadd.f32 %v908, %v972
      %v1005 = vadd.f32 %v909, %v973
      %v1006 = vadd.f32 %v910, %v974
      %v1007 = vadd.f32 %v911, %v975
      %v1008 = vmax.f32 %v976, 0.0
      %v1009 = vmax.f32 %v977, 0.0
      %v1010 = vmax.f32 %v978, 0.0
      %v1011 = vmax.f32 %v979, 0.0
      %v1012 = vmax.f32 %v980, 0.0
      %v1013 = vmax.f32 %v981, 0.0
      %v1014 = vmax.f32 %v982, 0.0
      %v1015 = vmax.f32 %v983, 0.0
      %v1016 = vmax.f32 %v984, 0.0
      %v1017 = vmax.f32 %v985, 0.0
      %v1018 = vmax.f32 %v986, 0.0
      %v1019 = vmax.f32 %v987, 0.0
      %v1020 = vmax.f32 %v988, 0.0
      %v1021 = vmax.f32 %v989, 0.0
      %v1022 = vmax.f32 %v990, 0.0
      %v1023 = vmax.f32 %v991, 0.0
      %v1024 = vmax.f32 %v992, 0.0
      %v1025 = vmax.f32 %v993, 0.0
      %v1026 = vmax.f32 %v994, 0.0
      %v1027 = vmax.f32 %v995, 0.0
      %v1028 = vmax.f32 %v996, 0.0
      %v1029 = vmax.f32 %v997, 0.0
      %v1030 = vmax.f32 %v998, 0.0
      %v1031 = vmax.f32 %v999, 0.0
      %v1032 = vmax.f32 %v1000, 0.0
      %v1033 = vmax.f32 %v1001, 0.0
      %v1034 = vmax.f32 %v1002, 0.0
      %v1035 = vmax.f32 %v1003, 0.0
      %v1036 = vmax.f32 %v1004, 0.0
      %v1037 = vmax.f32 %v1005, 0.0
      %v1038 = vmax.f32 %v1006, 0.0
      %v1039 = vmax.f32 %v1007, 0.0
      %1040 = vst [vmem:[%s356] sm:$0xff] %v1008
      %1041 = vst [vmem:[%s356 + $0x8] sm:$0xff] %v1009
      %1042 = vst [vmem:[%s356 + $0x10] sm:$0xff] %v1010
      %1043 = vst [vmem:[%s356 + $0x18] sm:$0xff] %v1011
      %1044 = vst [vmem:[%s356 + $0x20] sm:$0xff] %v1012
      %1045 = vst [vmem:[%s356 + $0x28] sm:$0xff] %v1013
      %1046 = vst [vmem:[%s356 + $0x30] sm:$0xff] %v1014
      %1047 = vst [vmem:[%s356 + $0x38] sm:$0xff] %v1015
      %1048 = vst [vmem:[%s356 + $0x40] sm:$0xff] %v1016
      %1049 = vst [vmem:[%s356 + $0x48] sm:$0xff] %v1017
      %1050 = vst [vmem:[%s356 + $0x50] sm:$0xff] %v1018
      %1051 = vst [vmem:[%s356 + $0x58] sm:$0xff] %v1019
      %1052 = vst [vmem:[%s356 + $0x60] sm:$0xff] %v1020
      %1053 = vst [vmem:[%s356 + $0x68] sm:$0xff] %v1021
      %1054 = vst [vmem:[%s356 + $0x70] sm:$0xff] %v1022
      %1055 = vst [vmem:[%s356 + $0x78] sm:$0xff] %v1023
      %1056 = vst [vmem:[%s356 + $0x80] sm:$0xff] %v1024
      %1057 = vst [vmem:[%s356 + $0x88] sm:$0xff] %v1025
      %1058 = vst [vmem:[%s356 + $0x90] sm:$0xff] %v1026
      %1059 = vst [vmem:[%s356 + $0x98] sm:$0xff] %v1027
      %1060 = vst [vmem:[%s356 + $0xa0] sm:$0xff] %v1028
      %1061 = vst [vmem:[%s356 + $0xa8] sm:$0xff] %v1029
      %1062 = vst [vmem:[%s356 + $0xb0] sm:$0xff] %v1030
      %1063 = vst [vmem:[%s356 + $0xb8] sm:$0xff] %v1031
      %1064 = vst [vmem:[%s356 + $0xc0] sm:$0xff] %v1032
      %1065 = vst [vmem:[%s356 + $0xc8] sm:$0xff] %v1033
      %1066 = vst [vmem:[%s356 + $0xd0] sm:$0xff] %v1034
      %1067 = vst [vmem:[%s356 + $0xd8] sm:$0xff] %v1035
      %1068 = vst [vmem:[%s356 + $0xe0] sm:$0xff] %v1036
      %1069 = vst [vmem:[%s356 + $0xe8] sm:$0xff] %v1037
      %1070 = vst [vmem:[%s356 + $0xf0] sm:$0xff] %v1038
      %1071 = vst [vmem:[%s356 + $0xf8] sm:$0xff] %v1039
      %s1072 = smul.u32 32, %s20
      %p1073 = scmp.lt.s32.totalorder %s1072, 63
      %s1074 = scalar_select %p1073, %s1072, 63
      %s1075 = smul.addr %s1074, 8
      %s1076 = scalar_lea.vmem %s9, %s1075
      // Predicated region
      $region57: #{coarse_feature_extractor.7} parent=55 // pred_check
        %p1077 = pneg %p237
      $region58: #{coarse_feature_extractor.7} parent=55 // pred_check_branch
        %1079 = sbr.rel (%p1077) target = $region60
      $region59: #{coarse_feature_extractor.7} parent=55 // pred_region
        %s1080 = smul.u32 32, %s20
      $region60: #{coarse_feature_extractor.7} parent=55 // pred_fallthru
        _
    $region56: #{coarse_feature_extractor.7} parent=5 // pred_fallthru
      _
    %p1081 = scmp.le.s32.totalorder 2, %s15
    // Predicated region
    $region61: #{coarse_feature_extractor.7} parent=5 // pred_check
      %p1082 = pneg %p1081
    $region62: #{coarse_feature_extractor.7} parent=5 // pred_check_branch
      %1084 = sbr.rel (%p1082) target = $region64
    $region63: #{coarse_feature_extractor.7} parent=5 // pred_region
      %s1085 = ssub.s32 %s15, 2
      // Predicated region
      $region65: #{coarse_feature_extractor.7} parent=63 // pred_check
        %p1086 = pneg %p243
      $region66: #{coarse_feature_extractor.7} parent=63 // pred_check_branch
        %1088 = sbr.rel (%p1086) target = $region68
      $region67: #{coarse_feature_extractor.7} parent=63 // pred_region
        %s1089 = smul.u32 32, %s21
        %p1090 = scmp.lt.s32.totalorder %s1089, 63
        %s1091 = scalar_select %p1090, %s1089, 63
        %s1092 = smul.addr %s1091, 8
        %s1093 = scalar_lea.vmem %s9, %s1092
      $region68: #{coarse_feature_extractor.7} parent=63 // pred_fallthru
        _
    $region64: #{coarse_feature_extractor.7} parent=5 // pred_fallthru
      _
  $region6: #{coarse_feature_extractor.7} parent=0 // loop_footer
    %s19 = sadd.s32 1, %s15
  $region7: #{coarse_feature_extractor.7} parent=0 // loop_footer_branch
    %14 = sbr.rel target = $region3
  $region8: #{coarse_feature_extractor.7} parent=0 // loop_exit
    _

// kernel: coarse_feature_extractor.5
$region0: #{coarse_feature_extractor.5}
  #allocation0 [shape = 'u32[]', space=smem, size = 0x4, offset = 0x4, fixed_abs, tag = 'smem constant byte address 0x4 - core index']
  #allocation1 [shape = 'u32[144,128]{1,0:T(1,128)}', space=vmem, size = 0x12000, scoped, tag = 'internal scratch']
  #allocation2 [shape = 'bf16[18,18,128]{2,1,0:T(8,128)(2,1)}', space=vmem, size = 0x1b000, scoped, tag = 'scratch operand']
  %s0 = inlined_call_operand.vmem [shape: bf16[2,16,16,128], index: 0, kind: input, shape index: {}]
  %s1 = inlined_call_operand.vmem [shape: f32[2,128], index: 1, kind: input, shape index: {}]
  %s2 = inlined_call_operand.vmem [shape: f32[1,128], index: 2, kind: input, shape index: {}]
  %s3 = inlined_call_operand.vmem [shape: f32[1,128], index: 3, kind: input, shape index: {}]
  %s4 = inlined_call_operand.vmem [shape: bf16[9,128,128], index: 4, kind: input, shape index: {}]
  %s5 = inlined_call_operand.vmem [shape: bf16[2,256,128], index: 5, kind: output, shape index: {0}]
  %s6 = inlined_call_operand.vmem [shape: f32[2,2,128], index: 6, kind: output, shape index: {1}]
  %7 = xla_tuple %s5, %s6
  %s8 = sld [smem:[#allocation0]]
  $region61: #{coarse_feature_extractor.5} parent=0
    _
  %s10 = ssub.s32 1, %s8
  %s11 = scalar_select 0, %s10, %s8
  loop: start=0, step=1, limit=4
  $region2: #{coarse_feature_extractor.5} parent=0 // loop_pre_header
    _
  $region3: #{coarse_feature_extractor.5} parent=0 // loop_header
    %s13 = sphi 0, %s17
    %p14 = scmp.ge.s32.totalorder %s13, 4
    %s23 = sphi 0, %s25
    %s26 = sphi 0, %s23
    %s27 = sphi 0, %s26
    %s43 = sphi 0, %s27
    %s47 = sphi 0, %s47
    %s49 = sphi 0, %s47
    %s50 = sphi 0, %s49
    %s64 = sphi 0, %s50
    %s68 = sphi 0, %s68
    %s70 = sphi 0, %s68
    %s71 = sphi 0, %s70
    %s85 = sphi 0, %s71
    %s89 = sphi 0, %s89
    %s91 = sphi 0, %s89
    %s92 = sphi 0, %s91
    %s106 = sphi 0, %s92
    %s110 = sphi 0, %s110
    %s112 = sphi 0, %s110
    %s113 = sphi 0, %s112
    %s127 = sphi 0, %s113
    %s133 = sphi 0, %s135
    %s136 = sphi 0, %s133
    %s137 = sphi 0, %s136
    %s153 = sphi 0, %s137
    %s159 = sphi 0, %s161
    %s162 = sphi 0, %s159
    %s163 = sphi 0, %s162
    %s179 = sphi 0, %s163
  $region4: #{coarse_feature_extractor.5} parent=0 // loop_header_branch
    %16 = sbr.rel (%p14) target = $region8
  $region5: #{coarse_feature_extractor.5} parent=0 // loop_body
    %s18 = ssub.s32 %s13, 1
    %s19 = ssub.s32 %s13, 2
    %s20 = sadd.s32 %s13, 1
    %s21 = ssub.s32 %s13, %s20
    %p22 = scmp.eq.s32.totalorder %s21, 0
    %s24 = sadd.s32 %s23, 1
    %s25 = scalar_select %p22, %s23, %s24
    %p28 = pneg %p22
    %p29 = scmp.eq.s32.totalorder %s13, 1
    %p30 = por %p28, %p29
    %p31 = scmp.ne.s32.totalorder %s23, %s26
    %p32 = scmp.eq.s32.totalorder %s13, 0
    %p33 = por %p31, %p32
    %p34 = scmp.ne.s32.totalorder %s23, %s26
    %p35 = scmp.eq.s32.totalorder %s18, 1
    %p36 = por %p34, %p35
    %p37 = scmp.ne.s32.totalorder %s26, %s27
    %p38 = scmp.eq.s32.totalorder %s18, 0
    %p39 = por %p37, %p38
    %p40 = scmp.ne.s32.totalorder %s26, %s27
    %p41 = scmp.eq.s32.totalorder %s19, 1
    %p42 = por %p40, %p41
    %p44 = scmp.ne.s32.totalorder %s27, %s43
    %p45 = scmp.eq.s32.totalorder %s19, 0
    %p46 = por %p44, %p45
    %s48 = sadd.s32 %s47, 1
    %p51 = scmp.eq.s32.totalorder %s13, 1
    %p52 = scmp.ne.s32.totalorder %s47, %s49
    %p53 = scmp.eq.s32.totalorder %s13, 0
    %p54 = por %p52, %p53
    %p55 = scmp.ne.s32.totalorder %s47, %s49
    %p56 = scmp.eq.s32.totalorder %s18, 1
    %p57 = por %p55, %p56
    %p58 = scmp.ne.s32.totalorder %s49, %s50
    %p59 = scmp.eq.s32.totalorder %s18, 0
    %p60 = por %p58, %p59
    %p61 = scmp.ne.s32.totalorder %s49, %s50
    %p62 = scmp.eq.s32.totalorder %s19, 1
    %p63 = por %p61, %p62
    %p65 = scmp.ne.s32.totalorder %s50, %s64
    %p66 = scmp.eq.s32.totalorder %s19, 0
    %p67 = por %p65, %p66
    %s69 = sadd.s32 %s68, 1
    %p72 = scmp.eq.s32.totalorder %s13, 1
    %p73 = scmp.ne.s32.totalorder %s68, %s70
    %p74 = scmp.eq.s32.totalorder %s13, 0
    %p75 = por %p73, %p74
    %p76 = scmp.ne.s32.totalorder %s68, %s70
    %p77 = scmp.eq.s32.totalorder %s18, 1
    %p78 = por %p76, %p77
    %p79 = scmp.ne.s32.totalorder %s70, %s71
    %p80 = scmp.eq.s32.totalorder %s18, 0
    %p81 = por %p79, %p80
    %p82 = scmp.ne.s32.totalorder %s70, %s71
    %p83 = scmp.eq.s32.totalorder %s19, 1
    %p84 = por %p82, %p83
    %p86 = scmp.ne.s32.totalorder %s71, %s85
    %p87 = scmp.eq.s32.totalorder %s19, 0
    %p88 = por %p86, %p87
    %s90 = sadd.s32 %s89, 1
    %p93 = scmp.eq.s32.totalorder %s13, 1
    %p94 = scmp.ne.s32.totalorder %s89, %s91
    %p95 = scmp.eq.s32.totalorder %s13, 0
    %p96 = por %p94, %p95
    %p97 = scmp.ne.s32.totalorder %s89, %s91
    %p98 = scmp.eq.s32.totalorder %s18, 1
    %p99 = por %p97, %p98
    %p100 = scmp.ne.s32.totalorder %s91, %s92
    %p101 = scmp.eq.s32.totalorder %s18, 0
    %p102 = por %p100, %p101
    %p103 = scmp.ne.s32.totalorder %s91, %s92
    %p104 = scmp.eq.s32.totalorder %s19, 1
    %p105 = por %p103, %p104
    %p107 = scmp.ne.s32.totalorder %s92, %s106
    %p108 = scmp.eq.s32.totalorder %s19, 0
    %p109 = por %p107, %p108
    %s111 = sadd.s32 %s110, 1
    %p114 = scmp.eq.s32.totalorder %s13, 1
    %p115 = scmp.ne.s32.totalorder %s110, %s112
    %p116 = scmp.eq.s32.totalorder %s13, 0
    %p117 = por %p115, %p116
    %p118 = scmp.ne.s32.totalorder %s110, %s112
    %p119 = scmp.eq.s32.totalorder %s18, 1
    %p120 = por %p118, %p119
    %p121 = scmp.ne.s32.totalorder %s112, %s113
    %p122 = scmp.eq.s32.totalorder %s18, 0
    %p123 = por %p121, %p122
    %p124 = scmp.ne.s32.totalorder %s112, %s113
    %p125 = scmp.eq.s32.totalorder %s19, 1
    %p126 = por %p124, %p125
    %p128 = scmp.ne.s32.totalorder %s113, %s127
    %p129 = scmp.eq.s32.totalorder %s19, 0
    %p130 = por %p128, %p129
    %s131 = ssub.s32 %s13, %s20
    %p132 = scmp.eq.s32.totalorder %s131, 0
    %s134 = sadd.s32 %s133, 1
    %s135 = scalar_select %p132, %s133, %s134
    %p138 = pneg %p132
    %p139 = scmp.eq.s32.totalorder %s13, 1
    %p140 = por %p138, %p139
    %p141 = scmp.ne.s32.totalorder %s133, %s136
    %p142 = scmp.eq.s32.totalorder %s13, 0
    %p143 = por %p141, %p142
    %p144 = scmp.ne.s32.totalorder %s133, %s136
    %p145 = scmp.eq.s32.totalorder %s18, 1
    %p146 = por %p144, %p145
    %p147 = scmp.ne.s32.totalorder %s136, %s137
    %p148 = scmp.eq.s32.totalorder %s18, 0
    %p149 = por %p147, %p148
    %p150 = scmp.ne.s32.totalorder %s136, %s137
    %p151 = scmp.eq.s32.totalorder %s19, 1
    %p152 = por %p150, %p151
    %p154 = scmp.ne.s32.totalorder %s137, %s153
    %p155 = scmp.eq.s32.totalorder %s19, 0
    %p156 = por %p154, %p155
    %s157 = ssub.s32 %s13, %s20
    %p158 = scmp.eq.s32.totalorder %s157, 0
    %s160 = sadd.s32 %s159, 1
    %s161 = scalar_select %p158, %s159, %s160
    %p164 = pneg %p158
    %p165 = scmp.eq.s32.totalorder %s13, 1
    %p166 = por %p164, %p165
    %p167 = scmp.ne.s32.totalorder %s159, %s162
    %p168 = scmp.eq.s32.totalorder %s13, 0
    %p169 = por %p167, %p168
    %p170 = scmp.ne.s32.totalorder %s159, %s162
    %p171 = scmp.eq.s32.totalorder %s18, 1
    %p172 = por %p170, %p171
    %p173 = scmp.ne.s32.totalorder %s162, %s163
    %p174 = scmp.eq.s32.totalorder %s18, 0
    %p175 = por %p173, %p174
    %p176 = scmp.ne.s32.totalorder %s162, %s163
    %p177 = scmp.eq.s32.totalorder %s19, 1
    %p178 = por %p176, %p177
    %p180 = scmp.ne.s32.totalorder %s163, %s179
    %p181 = scmp.eq.s32.totalorder %s19, 0
    %p182 = por %p180, %p181
    %p183 = scmp.le.s32.totalorder 1, %s13
    %p184 = scmp.lt.s32.totalorder %s13, 3
    %p185 = pnand %p183, %p184
    %p186 = pneg %p185
    // Predicated region
    $region9: #{coarse_feature_extractor.5} parent=5 // pred_check
      _
    $region10: #{coarse_feature_extractor.5} parent=5 // pred_check_branch
      %188 = sbr.rel (%p185) target = $region12
    $region11: #{coarse_feature_extractor.5} parent=5 // pred_region
      %s189 = ssub.s32 %s13, 1
      // Predicated region
      $region13: #{coarse_feature_extractor.5} parent=11 // pred_check
        %p190 = pneg %p60
      $region14: #{coarse_feature_extractor.5} parent=11 // pred_check_branch
        %192 = sbr.rel (%p190) target = $region16
      $region15: #{coarse_feature_extractor.5} parent=11 // pred_region
        _
      $region16: #{coarse_feature_extractor.5} parent=11 // pred_fallthru
        _
      // Predicated region
      $region17: #{coarse_feature_extractor.5} parent=11 // pred_check
        %p193 = pneg %p81
      $region18: #{coarse_feature_extractor.5} parent=11 // pred_check_branch
        %195 = sbr.rel (%p193) target = $region20
      $region19: #{coarse_feature_extractor.5} parent=11 // pred_region
        _
      $region20: #{coarse_feature_extractor.5} parent=11 // pred_fallthru
        _
      // Predicated region
      $region21: #{coarse_feature_extractor.5} parent=11 // pred_check
        %p196 = pneg %p102
      $region22: #{coarse_feature_extractor.5} parent=11 // pred_check_branch
        %198 = sbr.rel (%p196) target = $region24
      $region23: #{coarse_feature_extractor.5} parent=11 // pred_region
        _
      $region24: #{coarse_feature_extractor.5} parent=11 // pred_fallthru
        _
      // Predicated region
      $region25: #{coarse_feature_extractor.5} parent=11 // pred_check
        %p199 = pneg %p123
      $region26: #{coarse_feature_extractor.5} parent=11 // pred_check_branch
        %201 = sbr.rel (%p199) target = $region28
      $region27: #{coarse_feature_extractor.5} parent=11 // pred_region
        _
      $region28: #{coarse_feature_extractor.5} parent=11 // pred_fallthru
        _
    $region12: #{coarse_feature_extractor.5} parent=5 // pred_fallthru
      _
    %p202 = scmp.lt.s32.totalorder %s13, 2
    // Predicated region
    $region29: #{coarse_feature_extractor.5} parent=5 // pred_check
      %p203 = pneg %p202
    $region30: #{coarse_feature_extractor.5} parent=5 // pred_check_branch
      %205 = sbr.rel (%p203) target = $region32
    $region31: #{coarse_feature_extractor.5} parent=5 // pred_region
      // Predicated region
      $region33: #{coarse_feature_extractor.5} parent=31 // pred_check
        %p206 = pneg %p33
      $region34: #{coarse_feature_extractor.5} parent=31 // pred_check_branch
        %208 = sbr.rel (%p206) target = $region36
      $region35: #{coarse_feature_extractor.5} parent=31 // pred_region
        %p209 = scmp.lt.s32.totalorder %s13, 1
        %s210 = scalar_select %p209, %s13, 1
        %s211 = smul.addr %s210, 32
        %s212 = smul.addr %s211, 4
        %s213 = scalar_lea.vmem %s0, %s212
      $region36: #{coarse_feature_extractor.5} parent=31 // pred_fallthru
        _
    $region32: #{coarse_feature_extractor.5} parent=5 // pred_fallthru
      _
    %p214 = scmp.le.s32.totalorder 1, %s13
    %p215 = scmp.lt.s32.totalorder %s13, 3
    %p216 = pnand %p214, %p215
    %p217 = pneg %p216
    // Predicated region
    $region37: #{coarse_feature_extractor.5} parent=5 // pred_check
      _
    $region38: #{coarse_feature_extractor.5} parent=5 // pred_check_branch
      %219 = sbr.rel (%p216) target = $region40
    $region39: #{coarse_feature_extractor.5} parent=5 // pred_region
      %s220 = ssub.s32 %s13, 1
      %p221 = scmp.lt.s32.totalorder %s18, 1
      %s222 = scalar_select %p221, %s18, 1
      %s223 = smul.addr %s222, 32
      %s224 = smul.addr %s223, 4
      %s225 = scalar_lea.vmem %s0, %s224
      %p226 = pneg %p39
      %p227 = pneg %p36
      %p228 = pneg %p60
      %p229 = pneg %p57
      %p230 = pneg %p81
      %p231 = pneg %p78
      %p232 = pneg %p102
      %p233 = pneg %p99
      %p234 = pneg %p123
      %p235 = pneg %p120
      %p236 = pneg %p149
      %p237 = pneg %p146
      %p238 = scmp.lt.s32.totalorder %s18, 1
      %s239 = scalar_select %p238, %s18, 1
      %s240 = smul.addr %s239, 32
      %s241 = smul.addr %s240, 4
      %s242 = scalar_lea.vmem %s5, %s241
      %p243 = pneg %p175
      %p244 = pneg %p172
      %p245 = scmp.lt.s32.totalorder %s18, 1
      %s246 = scalar_select %p245, %s18, 1
      %s247 = smul.addr %s246, 2
      %s248 = scalar_lea.vmem %s6, %s247
      %p249 = scmp.lt.s32.totalorder %s18, 1
      %s250 = scalar_select %p249, %s18, 1
      %s251 = smul.addr %s250, 32
      %s252 = smul.addr %s251, 4
      %s253 = scalar_lea.vmem %s0, %s252
      %p254 = scmp.lt.s32.totalorder %s18, 1
      %s255 = scalar_select %p254, %s18, 1
      %s256 = smul.addr %s255, 32
      %s257 = smul.addr %s256, 4
      %s258 = scalar_lea.vmem %s5, %s257
      %p259 = scmp.lt.s32.totalorder %s18, 1
      %s260 = scalar_select %p259, %s18, 1
      %s261 = smul.addr %s260, 2
      %s262 = scalar_lea.vmem %s6, %s261
      %v264 = vld [vmem:[%s1] sm:$0x3]
      %v265 = vld [vmem:[%s2] sm:$0x1]
      %v266 = vld [vmem:[%s3] sm:$0x1]
      %v267 = vmul.f32 %v264, 0.001953125
      %v268 = vmul.f32 %v267, %v267
      %v270 = vrot.slane %v268, 7
      %v272 = vsub.f32 %v267, %v270
      %v273 = vmax.f32 %v272, 0.0
      %v274 = vadd.f32 %v273, 1e-05
      %v275 = vrsqrt.pop %v274
      %v278 = vunpack.c.l.s4 1966171168
      %v279 = vunpack.c.0.s8 %v278
      %v280 = vlaneseq
      %v281 = vshrl.u32 %v280, 7
      %v282 = vsub.s32 %v279, %v281
      %v283 = vrot.slane %v275, %v282
      %v284 = vcombine.high %v283, %v283
      %v286 = vunpack.c.l.s4 1966171168
      %v287 = vunpack.c.0.s8 %v286
      %v288 = vlaneseq
      %v289 = vshrl.u32 %v288, 7
      %v290 = vsub.s32 %v287, %v289
      %v291 = vrot.slane %v284, %v290
      %v293 = vmul.f32 %v265, %v291
      %v294 = vmul.f32 %v267, %v293
      %v295 = vsub.f32 %v266, %v294
      %v296 = vld [vmem:[%s253] sm:$0xf]
      %v297 = vld [vmem:[%s253 + $0x4] sm:$0xf]
      %v298 = vld [vmem:[%s253 + $0x8] sm:$0xf]
      %v299 = vld [vmem:[%s253 + $0xc] sm:$0xf]
      %v300 = vld [vmem:[%s253 + $0x10] sm:$0xf]
      %v301 = vld [vmem:[%s253 + $0x14] sm:$0xf]
      %v302 = vld [vmem:[%s253 + $0x18] sm:$0xf]
      %v303 = vld [vmem:[%s253 + $0x1c] sm:$0xf]
      %v304 = vld [vmem:[%s253 + $0x20] sm:$0xf]
      %v305 = vld [vmem:[%s253 + $0x24] sm:$0xf]
      %v306 = vld [vmem:[%s253 + $0x28] sm:$0xf]
      %v307 = vld [vmem:[%s253 + $0x2c] sm:$0xf]
      %v308 = vld [vmem:[%s253 + $0x30] sm:$0xf]
      %v309 = vld [vmem:[%s253 + $0x34] sm:$0xf]
      %v310 = vld [vmem:[%s253 + $0x38] sm:$0xf]
      %v311 = vld [vmem:[%s253 + $0x3c] sm:$0xf]
      %v312 = vld [vmem:[%s253 + $0x40] sm:$0xf]
      %v313 = vld [vmem:[%s253 + $0x44] sm:$0xf]
      %v314 = vld [vmem:[%s253 + $0x48] sm:$0xf]
      %v315 = vld [vmem:[%s253 + $0x4c] sm:$0xf]
      %v316 = vld [vmem:[%s253 + $0x50] sm:$0xf]
      %v317 = vld [vmem:[%s253 + $0x54] sm:$0xf]
      %v318 = vld [vmem:[%s253 + $0x58] sm:$0xf]
      %v319 = vld [vmem:[%s253 + $0x5c] sm:$0xf]
      %v320 = vld [vmem:[%s253 + $0x60] sm:$0xf]
      %v321 = vld [vmem:[%s253 + $0x64] sm:$0xf]
      %v322 = vld [vmem:[%s253 + $0x68] sm:$0xf]
      %v323 = vld [vmem:[%s253 + $0x6c] sm:$0xf]
      %v324 = vld [vmem:[%s253 + $0x70] sm:$0xf]
      %v325 = vld [vmem:[%s253 + $0x74] sm:$0xf]
      %v326 = vld [vmem:[%s253 + $0x78] sm:$0xf]
      %v327 = vld [vmem:[%s253 + $0x7c] sm:$0xf]
      %v328 = vunpack.c.l.bf16 %v296
      %v329 = vunpack.c.l.bf16 %v297
      %v330 = vunpack.c.l.bf16 %v298
      %v331 = vunpack.c.l.bf16 %v299
      %v332 = vunpack.c.l.bf16 %v300
      %v333 = vunpack.c.l.bf16 %v301
      %v334 = vunpack.c.l.bf16 %v302
      %v335 = vunpack.c.l.bf16 %v303
      %v336 = vunpack.c.l.bf16 %v304
      %v337 = vunpack.c.l.bf16 %v305
      %v338 = vunpack.c.l.bf16 %v306
      %v339 = vunpack.c.l.bf16 %v307
      %v340 = vunpack.c.l.bf16 %v308
      %v341 = vunpack.c.l.bf16 %v309
      %v342 = vunpack.c.l.bf16 %v310
      %v343 = vunpack.c.l.bf16 %v311
      %v344 = vunpack.c.l.bf16 %v312
      %v345 = vunpack.c.l.bf16 %v313
      %v346 = vunpack.c.l.bf16 %v314
      %v347 = vunpack.c.l.bf16 %v315
      %v348 = vunpack.c.l.bf16 %v316
      %v349 = vunpack.c.l.bf16 %v317
      %v350 = vunpack.c.l.bf16 %v318
      %v351 = vunpack.c.l.bf16 %v319
      %v352 = vunpack.c.l.bf16 %v320
      %v353 = vunpack.c.l.bf16 %v321
      %v354 = vunpack.c.l.bf16 %v322
      %v355 = vunpack.c.l.bf16 %v323
      %v356 = vunpack.c.l.bf16 %v324
      %v357 = vunpack.c.l.bf16 %v325
      %v358 = vunpack.c.l.bf16 %v326
      %v359 = vunpack.c.l.bf16 %v327
      %v361 = vlaneseq
      %v362 = vshrl.u32 %v361, 7
      %v363 = vsub.s32 0, %v362
      %v364 = vrot.slane %v293, %v363
      %v366 = vmul.f32 %v328, %v364
      %v367 = vmul.f32 %v329, %v364
      %v368 = vmul.f32 %v330, %v364
      %v369 = vmul.f32 %v331, %v364
      %v370 = vmul.f32 %v332, %v364
      %v371 = vmul.f32 %v333, %v364
      %v372 = vmul.f32 %v334, %v364
      %v373 = vmul.f32 %v335, %v364
      %v374 = vmul.f32 %v336, %v364
      %v375 = vmul.f32 %v337, %v364
      %v376 = vmul.f32 %v338, %v364
      %v377 = vmul.f32 %v339, %v364
      %v378 = vmul.f32 %v340, %v364
      %v379 = vmul.f32 %v341, %v364
      %v380 = vmul.f32 %v342, %v364
      %v381 = vmul.f32 %v343, %v364
      %v382 = vmul.f32 %v344, %v364
      %v383 = vmul.f32 %v345, %v364
      %v384 = vmul.f32 %v346, %v364
      %v385 = vmul.f32 %v347, %v364
      %v386 = vmul.f32 %v348, %v364
      %v387 = vmul.f32 %v349, %v364
      %v388 = vmul.f32 %v350, %v364
      %v389 = vmul.f32 %v351, %v364
      %v390 = vmul.f32 %v352, %v364
      %v391 = vmul.f32 %v353, %v364
      %v392 = vmul.f32 %v354, %v364
      %v393 = vmul.f32 %v355, %v364
      %v394 = vmul.f32 %v356, %v364
      %v395 = vmul.f32 %v357, %v364
      %v396 = vmul.f32 %v358, %v364
      %v397 = vmul.f32 %v359, %v364
      %v399 = vlaneseq
      %v400 = vshrl.u32 %v399, 7
      %v401 = vsub.s32 0, %v400
      %v402 = vrot.slane %v295, %v401
      %v404 = vadd.f32 %v366, %v402
      %v405 = vadd.f32 %v367, %v402
      %v406 = vadd.f32 %v368, %v402
      %v407 = vadd.f32 %v369, %v402
      %v408 = vadd.f32 %v370, %v402
      %v409 = vadd.f32 %v371, %v402
      %v410 = vadd.f32 %v372, %v402
      %v411 = vadd.f32 %v373, %v402
      %v412 = vadd.f32 %v374, %v402
      %v413 = vadd.f32 %v375, %v402
      %v414 = vadd.f32 %v376, %v402
      %v415 = vadd.f32 %v377, %v402
      %v416 = vadd.f32 %v378, %v402
      %v417 = vadd.f32 %v379, %v402
      %v418 = vadd.f32 %v380, %v402
      %v419 = vadd.f32 %v381, %v402
      %v420 = vadd.f32 %v382, %v402
      %v421 = vadd.f32 %v383, %v402
      %v422 = vadd.f32 %v384, %v402
      %v423 = vadd.f32 %v385, %v402
      %v424 = vadd.f32 %v386, %v402
      %v425 = vadd.f32 %v387, %v402
      %v426 = vadd.f32 %v388, %v402
      %v427 = vadd.f32 %v389, %v402
      %v428 = vadd.f32 %v390, %v402
      %v429 = vadd.f32 %v391, %v402
      %v430 = vadd.f32 %v392, %v402
      %v431 = vadd.f32 %v393, %v402
      %v432 = vadd.f32 %v394, %v402
      %v433 = vadd.f32 %v395, %v402
      %v434 = vadd.f32 %v396, %v402
      %v435 = vadd.f32 %v397, %v402
      %v436 = vmax.f32 %v404, 0.0
      %v437 = vmax.f32 %v405, 0.0
      %v438 = vmax.f32 %v406, 0.0
      %v439 = vmax.f32 %v407, 0.0
      %v440 = vmax.f32 %v408, 0.0
      %v441 = vmax.f32 %v409, 0.0
      %v442 = vmax.f32 %v410, 0.0
      %v443 = vmax.f32 %v411, 0.0
      %v444 = vmax.f32 %v412, 0.0
      %v445 = vmax.f32 %v413, 0.0
      %v446 = vmax.f32 %v414, 0.0
      %v447 = vmax.f32 %v415, 0.0
      %v448 = vmax.f32 %v416, 0.0
      %v449 = vmax.f32 %v417, 0.0
      %v450 = vmax.f32 %v418, 0.0
      %v451 = vmax.f32 %v419, 0.0
      %v452 = vmax.f32 %v420, 0.0
      %v453 = vmax.f32 %v421, 0.0
      %v454 = vmax.f32 %v422, 0.0
      %v455 = vmax.f32 %v423, 0.0
      %v456 = vmax.f32 %v424, 0.0
      %v457 = vmax.f32 %v425, 0.0
      %v458 = vmax.f32 %v426, 0.0
      %v459 = vmax.f32 %v427, 0.0
      %v460 = vmax.f32 %v428, 0.0
      %v461 = vmax.f32 %v429, 0.0
      %v462 = vmax.f32 %v430, 0.0
      %v463 = vmax.f32 %v431, 0.0
      %v464 = vmax.f32 %v432, 0.0
      %v465 = vmax.f32 %v433, 0.0
      %v466 = vmax.f32 %v434, 0.0
      %v467 = vmax.f32 %v435, 0.0
      %468 = vst [vmem:[#allocation2] sm:$0xf] 0
      %469 = vst [vmem:[#allocation2 + $0x4] sm:$0xf] 0
      %470 = vst [vmem:[#allocation2 + $0x8] sm:$0x1] 0
      %471 = vst [vmem:[#allocation2 + $0xc] sm:$0xf] 0
      %472 = vst [vmem:[#allocation2 + $0x10] sm:$0xf] 0
      %473 = vst [vmem:[#allocation2 + $0x14] sm:$0x1] 0
      %474 = vst [vmem:[#allocation2 + $0x18] sm:$0xf] 0
      %475 = vst [vmem:[#allocation2 + $0x1c] sm:$0xf] 0
      %476 = vst [vmem:[#allocation2 + $0x20] sm:$0x1] 0
      %477 = vst [vmem:[#allocation2 + $0x24] sm:$0xf] 0
      %478 = vst [vmem:[#allocation2 + $0x28] sm:$0xf] 0
      %479 = vst [vmem:[#allocation2 + $0x2c] sm:$0x1] 0
      %480 = vst [vmem:[#allocation2 + $0x30] sm:$0xf] 0
      %481 = vst [vmem:[#allocation2 + $0x34] sm:$0xf] 0
      %482 = vst [vmem:[#allocation2 + $0x38] sm:$0x1] 0
      %483 = vst [vmem:[#allocation2 + $0x3c] sm:$0xf] 0
      %484 = vst [vmem:[#allocation2 + $0x40] sm:$0xf] 0
      %485 = vst [vmem:[#allocation2 + $0x44] sm:$0x1] 0
      %486 = vst [vmem:[#allocation2 + $0x48] sm:$0xf] 0
      %487 = vst [vmem:[#allocation2 + $0x4c] sm:$0xf] 0
      %488 = vst [vmem:[#allocation2 + $0x50] sm:$0x1] 0
      %489 = vst [vmem:[#allocation2 + $0x54] sm:$0xf] 0
      %490 = vst [vmem:[#allocation2 + $0x58] sm:$0xf] 0
      %491 = vst [vmem:[#allocation2 + $0x5c] sm:$0x1] 0
      %492 = vst [vmem:[#allocation2 + $0x60] sm:$0xf] 0
      %493 = vst [vmem:[#allocation2 + $0x64] sm:$0xf] 0
      %494 = vst [vmem:[#allocation2 + $0x68] sm:$0x1] 0
      %495 = vst [vmem:[#allocation2 + $0x6c] sm:$0xf] 0
      %496 = vst [vmem:[#allocation2 + $0x70] sm:$0xf] 0
      %497 = vst [vmem:[#allocation2 + $0x74] sm:$0x1] 0
      %498 = vst [vmem:[#allocation2 + $0x78] sm:$0xf] 0
      %499 = vst [vmem:[#allocation2 + $0x7c] sm:$0xf] 0
      %500 = vst [vmem:[#allocation2 + $0x80] sm:$0x1] 0
      %501 = vst [vmem:[#allocation2 + $0x84] sm:$0xf] 0
      %502 = vst [vmem:[#allocation2 + $0x88] sm:$0xf] 0
      %503 = vst [vmem:[#allocation2 + $0x8c] sm:$0x1] 0
      %504 = vst [vmem:[#allocation2 + $0x90] sm:$0xf] 0
      %505 = vst [vmem:[#allocation2 + $0x94] sm:$0xf] 0
      %506 = vst [vmem:[#allocation2 + $0x98] sm:$0x1] 0
      %507 = vst [vmem:[#allocation2 + $0x9c] sm:$0xf] 0
      %508 = vst [vmem:[#allocation2 + $0xa0] sm:$0xf] 0
      %509 = vst [vmem:[#allocation2 + $0xa4] sm:$0x1] 0
      %510 = vst [vmem:[#allocation2 + $0xa8] sm:$0xf] 0
      %511 = vst [vmem:[#allocation2 + $0xac] sm:$0xf] 0
      %512 = vst [vmem:[#allocation2 + $0xb0] sm:$0x1] 0
      %513 = vst [vmem:[#allocation2 + $0xb4] sm:$0xf] 0
      %514 = vst [vmem:[#allocation2 + $0xb8] sm:$0xf] 0
      %515 = vst [vmem:[#allocation2 + $0xbc] sm:$0x1] 0
      %516 = vst [vmem:[#allocation2 + $0xc0] sm:$0xf] 0
      %517 = vst [vmem:[#allocation2 + $0xc4] sm:$0xf] 0
      %518 = vst [vmem:[#allocation2 + $0xc8] sm:$0x1] 0
      %519 = vst [vmem:[#allocation2 + $0xcc] sm:$0xf] 0
      %520 = vst [vmem:[#allocation2 + $0xd0] sm:$0xf] 0
      %521 = vst [vmem:[#allocation2 + $0xd4] sm:$0x1] 0
      %v522 = vpack.c.bf16 %v437, %v436
      %v523 = vpack.c.bf16 %v439, %v438
      %v524 = vpack.c.bf16 %v441, %v440
      %v525 = vpack.c.bf16 %v443, %v442
      %v526 = vpack.c.bf16 %v445, %v444
      %v527 = vpack.c.bf16 %v447, %v446
      %v528 = vpack.c.bf16 %v449, %v448
      %v529 = vpack.c.bf16 %v451, %v450
      %v530 = vpack.c.bf16 %v453, %v452
      %v531 = vpack.c.bf16 %v455, %v454
      %v532 = vpack.c.bf16 %v457, %v456
      %v533 = vpack.c.bf16 %v459, %v458
      %v534 = vpack.c.bf16 %v461, %v460
      %v535 = vpack.c.bf16 %v463, %v462
      %v536 = vpack.c.bf16 %v465, %v464
      %v537 = vpack.c.bf16 %v467, %v466
      %v554 = vunpack.c.l.b16 %v522
      %v555 = vunpack.c.h.b16 %v522
      %v556 = vunpack.c.l.b16 %v523
      %v557 = vunpack.c.h.b16 %v523
      %v558 = vunpack.c.l.b16 %v524
      %v559 = vunpack.c.h.b16 %v524
      %v560 = vunpack.c.l.b16 %v525
      %v561 = vunpack.c.h.b16 %v525
      %v562 = vunpack.c.l.b16 %v526
      %v563 = vunpack.c.h.b16 %v526
      %v564 = vunpack.c.l.b16 %v527
      %v565 = vunpack.c.h.b16 %v527
      %v566 = vunpack.c.l.b16 %v528
      %v567 = vunpack.c.h.b16 %v528
      %v568 = vunpack.c.l.b16 %v529
      %v569 = vunpack.c.h.b16 %v529
      %v570 = vunpack.c.l.b16 %v530
      %v571 = vunpack.c.h.b16 %v530
      %v572 = vunpack.c.l.b16 %v531
      %v573 = vunpack.c.h.b16 %v531
      %v574 = vunpack.c.l.b16 %v532
      %v575 = vunpack.c.h.b16 %v532
      %v576 = vunpack.c.l.b16 %v533
      %v577 = vunpack.c.h.b16 %v533
      %v578 = vunpack.c.l.b16 %v534
      %v579 = vunpack.c.h.b16 %v534
      %v580 = vunpack.c.l.b16 %v535
      %v581 = vunpack.c.h.b16 %v535
      %v582 = vunpack.c.l.b16 %v536
      %v583 = vunpack.c.h.b16 %v536
      %v584 = vunpack.c.l.b16 %v537
      %v585 = vunpack.c.h.b16 %v537
      %v586 = vpack.c.b16 %v554, %v554
      %v587 = vpack.c.b16 %v555, %v555
      %v588 = vpack.c.b16 %v556, %v556
      %v589 = vpack.c.b16 %v557, %v557
      %v590 = vpack.c.b16 %v558, %v558
      %v591 = vpack.c.b16 %v559, %v559
      %v592 = vpack.c.b16 %v560, %v560
      %v593 = vpack.c.b16 %v561, %v561
      %v594 = vpack.c.b16 %v562, %v562
      %v595 = vpack.c.b16 %v563, %v563
      %v596 = vpack.c.b16 %v564, %v564
      %v597 = vpack.c.b16 %v565, %v565
      %v598 = vpack.c.b16 %v566, %v566
      %v599 = vpack.c.b16 %v567, %v567
      %v600 = vpack.c.b16 %v568, %v568
      %v601 = vpack.c.b16 %v569, %v569
      %v602 = vpack.c.b16 %v570, %v570
      %v603 = vpack.c.b16 %v571, %v571
      %v604 = vpack.c.b16 %v572, %v572
      %v605 = vpack.c.b16 %v573, %v573
      %v606 = vpack.c.b16 %v574, %v574
      %v607 = vpack.c.b16 %v575, %v575
      %v608 = vpack.c.b16 %v576, %v576
      %v609 = vpack.c.b16 %v577, %v577
      %v610 = vpack.c.b16 %v578, %v578
      %v611 = vpack.c.b16 %v579, %v579
      %v612 = vpack.c.b16 %v580, %v580
      %v613 = vpack.c.b16 %v581, %v581
      %v614 = vpack.c.b16 %v582, %v582
      %v615 = vpack.c.b16 %v583, %v583
      %v616 = vpack.c.b16 %v584, %v584
      %v617 = vpack.c.b16 %v585, %v585
      %vm618 = vsmask.f32 256
      %vm619 = vsmask.f32 4368
      %vm620 = vmor %vm618, %vm619
      %v622 = vshrl.u32 %v586, 16
      %v624 = vrot.slane %v622, 7
      %v625 = vshll.u32 %v586, 16
      %v627 = vor.u32 %v624, %v625
      %v628 = vrot.slane %v624, 4
      %v630 = vshrl.u32 %v587, 16
      %v632 = vrot.slane %v630, 7
      %v633 = vshll.u32 %v587, 16
      %v635 = vor.u32 %v632, %v633
      %v636 = vsel %vm620, %v628, %v635
      %v637 = vrot.slane %v632, 4
      %v639 = vshrl.u32 %v588, 16
      %v641 = vrot.slane %v639, 7
      %v642 = vshll.u32 %v588, 16
      %v644 = vor.u32 %v641, %v642
      %v645 = vrot.slane %v641, 4
      %v647 = vshrl.u32 %v589, 16
      %v649 = vrot.slane %v647, 7
      %v650 = vshll.u32 %v589, 16
      %v652 = vor.u32 %v649, %v650
      %v653 = vsel %vm620, %v645, %v652
      %v654 = vrot.slane %v649, 4
      %v656 = vshrl.u32 %v590, 16
      %v658 = vrot.slane %v656, 7
      %v659 = vshll.u32 %v590, 16
      %v661 = vor.u32 %v658, %v659
      %v662 = vrot.slane %v658, 4
      %v664 = vshrl.u32 %v591, 16
      %v666 = vrot.slane %v664, 7
      %v667 = vshll.u32 %v591, 16
      %v669 = vor.u32 %v666, %v667
      %v670 = vsel %vm620, %v662, %v669
      %v671 = vrot.slane %v666, 4
      %v673 = vshrl.u32 %v592, 16
      %v675 = vrot.slane %v673, 7
      %v676 = vshll.u32 %v592, 16
      %v678 = vor.u32 %v675, %v676
      %v679 = vrot.slane %v675, 4
      %v681 = vshrl.u32 %v593, 16
      %v683 = vrot.slane %v681, 7
      %v684 = vshll.u32 %v593, 16
      %v686 = vor.u32 %v683, %v684
      %v687 = vsel %vm620, %v679, %v686
      %v688 = vrot.slane %v683, 4
      %v690 = vshrl.u32 %v594, 16
      %v692 = vrot.slane %v690, 7
      %v693 = vshll.u32 %v594, 16
      %v695 = vor.u32 %v692, %v693
      %v696 = vrot.slane %v692, 4
      %v698 = vshrl.u32 %v595, 16
      %v700 = vrot.slane %v698, 7
      %v701 = vshll.u32 %v595, 16
      %v703 = vor.u32 %v700, %v701
      %v704 = vsel %vm620, %v696, %v703
      %v705 = vrot.slane %v700, 4
      %v707 = vshrl.u32 %v596, 16
      %v709 = vrot.slane %v707, 7
      %v710 = vshll.u32 %v596, 16
      %v712 = vor.u32 %v709, %v710
      %v713 = vrot.slane %v709, 4
      %v715 = vshrl.u32 %v597, 16
      %v717 = vrot.slane %v715, 7
      %v718 = vshll.u32 %v597, 16
      %v720 = vor.u32 %v717, %v718
      %v721 = vsel %vm620, %v713, %v720
      %v722 = vrot.slane %v717, 4
      %v724 = vshrl.u32 %v598, 16
      %v726 = vrot.slane %v724, 7
      %v727 = vshll.u32 %v598, 16
      %v729 = vor.u32 %v726, %v727
      %v730 = vrot.slane %v726, 4
      %v732 = vshrl.u32 %v599, 16
      %v734 = vrot.slane %v732, 7
      %v735 = vshll.u32 %v599, 16
      %v737 = vor.u32 %v734, %v735
      %v738 = vsel %vm620, %v730, %v737
      %v739 = vrot.slane %v734, 4
      %v741 = vshrl.u32 %v600, 16
      %v743 = vrot.slane %v741, 7
      %v744 = vshll.u32 %v600, 16
      %v746 = vor.u32 %v743, %v744
      %v747 = vrot.slane %v743, 4
      %v749 = vshrl.u32 %v601, 16
      %v751 = vrot.slane %v749, 7
      %v752 = vshll.u32 %v601, 16
      %v754 = vor.u32 %v751, %v752
      %v755 = vsel %vm620, %v747, %v754
      %v756 = vrot.slane %v751, 4
      %v758 = vshrl.u32 %v602, 16
      %v760 = vrot.slane %v758, 7
      %v761 = vshll.u32 %v602, 16
      %v763 = vor.u32 %v760, %v761
      %v764 = vrot.slane %v760, 4
      %v766 = vshrl.u32 %v603, 16
      %v768 = vrot.slane %v766, 7
      %v769 = vshll.u32 %v603, 16
      %v771 = vor.u32 %v768, %v769
      %v772 = vsel %vm620, %v764, %v771
      %v773 = vrot.slane %v768, 4
      %v775 = vshrl.u32 %v604, 16
      %v777 = vrot.slane %v775, 7
      %v778 = vshll.u32 %v604, 16
      %v780 = vor.u32 %v777, %v778
      %v781 = vrot.slane %v777, 4
      %v783 = vshrl.u32 %v605, 16
      %v785 = vrot.slane %v783, 7
      %v786 = vshll.u32 %v605, 16
      %v788 = vor.u32 %v785, %v786
      %v789 = vsel %vm620, %v781, %v788
      %v790 = vrot.slane %v785, 4
      %v792 = vshrl.u32 %v606, 16
      %v794 = vrot.slane %v792, 7
      %v795 = vshll.u32 %v606, 16
      %v797 = vor.u32 %v794, %v795
      %v798 = vrot.slane %v794, 4
      %v800 = vshrl.u32 %v607, 16
      %v802 = vrot.slane %v800, 7
      %v803 = vshll.u32 %v607, 16
      %v805 = vor.u32 %v802, %v803
      %v806 = vsel %vm620, %v798, %v805
      %v807 = vrot.slane %v802, 4
      %v809 = vshrl.u32 %v608, 16
      %v811 = vrot.slane %v809, 7
      %v812 = vshll.u32 %v608, 16
      %v814 = vor.u32 %v811, %v812
      %v815 = vrot.slane %v811, 4
      %v817 = vshrl.u32 %v609, 16
      %v819 = vrot.slane %v817, 7
      %v820 = vshll.u32 %v609, 16
      %v822 = vor.u32 %v819, %v820
      %v823 = vsel %vm620, %v815, %v822
      %v824 = vrot.slane %v819, 4
      %v826 = vshrl.u32 %v610, 16
      %v828 = vrot.slane %v826, 7
      %v829 = vshll.u32 %v610, 16
      %v831 = vor.u32 %v828, %v829
      %v832 = vrot.slane %v828, 4
      %v834 = vshrl.u32 %v611, 16
      %v836 = vrot.slane %v834, 7
      %v837 = vshll.u32 %v611, 16
      %v839 = vor.u32 %v836, %v837
      %v840 = vsel %vm620, %v832, %v839
      %v841 = vrot.slane %v836, 4
      %v843 = vshrl.u32 %v612, 16
      %v845 = vrot.slane %v843, 7
      %v846 = vshll.u32 %v612, 16
      %v848 = vor.u32 %v845, %v846
      %v849 = vrot.slane %v845, 4
      %v851 = vshrl.u32 %v613, 16
      %v853 = vrot.slane %v851, 7
      %v854 = vshll.u32 %v613, 16
      %v856 = vor.u32 %v853, %v854
      %v857 = vsel %vm620, %v849, %v856
      %v858 = vrot.slane %v853, 4
      %v860 = vshrl.u32 %v614, 16
      %v862 = vrot.slane %v860, 7
      %v863 = vshll.u32 %v614, 16
      %v865 = vor.u32 %v862, %v863
      %v866 = vrot.slane %v862, 4
      %v868 = vshrl.u32 %v615, 16
      %v870 = vrot.slane %v868, 7
      %v871 = vshll.u32 %v615, 16
      %v873 = vor.u32 %v870, %v871
      %v874 = vsel %vm620, %v866, %v873
      %v875 = vrot.slane %v870, 4
      %v877 = vshrl.u32 %v616, 16
      %v879 = vrot.slane %v877, 7
      %v880 = vshll.u32 %v616, 16
      %v882 = vor.u32 %v879, %v880
      %v883 = vrot.slane %v879, 4
      %v885 = vshrl.u32 %v617, 16
      %v887 = vrot.slane %v885, 7
      %v888 = vshll.u32 %v617, 16
      %v890 = vor.u32 %v887, %v888
      %v891 = vsel %vm620, %v883, %v890
      %v892 = vrot.slane %v887, 4
      %s941 = scalar_lea.vmem [#allocation2], 12
      %vm942 = vcmask 1043456
      %vm943 = vsmask.f32 7938
      %vm944 = vmand %vm942, %vm943
      %v945 = vld [vmem:[%s941] sm:$0xf]
      %v946 = vsel %vm944, %v627, %v945
      %947 = vst [vmem:[%s941] sm:$0xf] %v946
      %948 = vst [vmem:[%s941 + $0x4] sm:$0xf] %v636
      %vm949 = vcmask 1040384
      %vm950 = vmand %vm949, %vm618
      %v951 = vld [vmem:[%s941 + $0x8] sm:$0x1]
      %v952 = vsel %vm950, %v637, %v951
      %953 = vst [vmem:[%s941 + $0x8] sm:$0x1] %v952
      %v954 = vld [vmem:[%s941 + $0xc] sm:$0xf]
      %v955 = vsel %vm944, %v644, %v954
      %956 = vst [vmem:[%s941 + $0xc] sm:$0xf] %v955
      %957 = vst [vmem:[%s941 + $0x10] sm:$0xf] %v653
      %v958 = vld [vmem:[%s941 + $0x14] sm:$0x1]
      %v959 = vsel %vm950, %v654, %v958
      %960 = vst [vmem:[%s941 + $0x14] sm:$0x1] %v959
      %v961 = vld [vmem:[%s941 + $0x18] sm:$0xf]
      %v962 = vsel %vm944, %v661, %v961
      %963 = vst [vmem:[%s941 + $0x18] sm:$0xf] %v962
      %964 = vst [vmem:[%s941 + $0x1c] sm:$0xf] %v670
      %v965 = vld [vmem:[%s941 + $0x20] sm:$0x1]
      %v966 = vsel %vm950, %v671, %v965
      %967 = vst [vmem:[%s941 + $0x20] sm:$0x1] %v966
      %v968 = vld [vmem:[%s941 + $0x24] sm:$0xf]
      %v969 = vsel %vm944, %v678, %v968
      %970 = vst [vmem:[%s941 + $0x24] sm:$0xf] %v969
      %971 = vst [vmem:[%s941 + $0x28] sm:$0xf] %v687
      %v972 = vld [vmem:[%s941 + $0x2c] sm:$0x1]
      %v973 = vsel %vm950, %v688, %v972
      %974 = vst [vmem:[%s941 + $0x2c] sm:$0x1] %v973
      %v975 = vld [vmem:[%s941 + $0x30] sm:$0xf]
      %v976 = vsel %vm944, %v695, %v975
      %977 = vst [vmem:[%s941 + $0x30] sm:$0xf] %v976
      %978 = vst [vmem:[%s941 + $0x34] sm:$0xf] %v704
      %v979 = vld [vmem:[%s941 + $0x38] sm:$0x1]
      %v980 = vsel %vm950, %v705, %v979
      %981 = vst [vmem:[%s941 + $0x38] sm:$0x1] %v980
      %v982 = vld [vmem:[%s941 + $0x3c] sm:$0xf]
      %v983 = vsel %vm944, %v712, %v982
      %984 = vst [vmem:[%s941 + $0x3c] sm:$0xf] %v983
      %985 = vst [vmem:[%s941 + $0x40] sm:$0xf] %v721
      %v986 = vld [vmem:[%s941 + $0x44] sm:$0x1]
      %v987 = vsel %vm950, %v722, %v986
      %988 = vst [vmem:[%s941 + $0x44] sm:$0x1] %v987
      %v989 = vld [vmem:[%s941 + $0x48] sm:$0xf]
      %v990 = vsel %vm944, %v729, %v989
      %991 = vst [vmem:[%s941 + $0x48] sm:$0xf] %v990
      %992 = vst [vmem:[%s941 + $0x4c] sm:$0xf] %v738
      %v993 = vld [vmem:[%s941 + $0x50] sm:$0x1]
      %v994 = vsel %vm950, %v739, %v993
      %995 = vst [vmem:[%s941 + $0x50] sm:$0x1] %v994
      %v996 = vld [vmem:[%s941 + $0x54] sm:$0xf]
      %v997 = vsel %vm944, %v746, %v996
      %998 = vst [vmem:[%s941 + $0x54] sm:$0xf] %v997
      %999 = vst [vmem:[%s941 + $0x58] sm:$0xf] %v755
      %v1000 = vld [vmem:[%s941 + $0x5c] sm:$0x1]
      %v1001 = vsel %vm950, %v756, %v1000
      %1002 = vst [vmem:[%s941 + $0x5c] sm:$0x1] %v1001
      %v1003 = vld [vmem:[%s941 + $0x60] sm:$0xf]
      %v1004 = vsel %vm944, %v763, %v1003
      %1005 = vst [vmem:[%s941 + $0x60] sm:$0xf] %v1004
      %1006 = vst [vmem:[%s941 + $0x64] sm:$0xf] %v772
      %v1007 = vld [vmem:[%s941 + $0x68] sm:$0x1]
      %v1008 = vsel %vm950, %v773, %v1007
      %1009 = vst [vmem:[%s941 + $0x68] sm:$0x1] %v1008
      %v1010 = vld [vmem:[%s941 + $0x6c] sm:$0xf]
      %v1011 = vsel %vm944, %v780, %v1010
      %1012 = vst [vmem:[%s941 + $0x6c] sm:$0xf] %v1011
      %1013 = vst [vmem:[%s941 + $0x70] sm:$0xf] %v789
      %v1014 = vld [vmem:[%s941 + $0x74] sm:$0x1]
      %v1015 = vsel %vm950, %v790, %v1014
      %1016 = vst [vmem:[%s941 + $0x74] sm:$0x1] %v1015
      %v1017 = vld [vmem:[%s941 + $0x78] sm:$0xf]
      %v1018 = vsel %vm944, %v797, %v1017
      %1019 = vst [vmem:[%s941 + $0x78] sm:$0xf] %v1018
      %1020 = vst [vmem:[%s941 + $0x7c] sm:$0xf] %v806
      %v1021 = vld [vmem:[%s941 + $0x80] sm:$0x1]
      %v1022 = vsel %vm950, %v807, %v1021
      %1023 = vst [vmem:[%s941 + $0x80] sm:$0x1] %v1022
      %v1024 = vld [vmem:[%s941 + $0x84] sm:$0xf]
      %v1025 = vsel %vm944, %v814, %v1024
      %1026 = vst [vmem:[%s941 + $0x84] sm:$0xf] %v1025
      %1027 = vst [vmem:[%s941 + $0x88] sm:$0xf] %v823
      %v1028 = vld [vmem:[%s941 + $0x8c] sm:$0x1]
      %v1029 = vsel %vm950, %v824, %v1028
      %1030 = vst [vmem:[%s941 + $0x8c] sm:$0x1] %v1029
      %v1031 = vld [vmem:[%s941 + $0x90] sm:$0xf]
      %v1032 = vsel %vm944, %v831, %v1031
      %1033 = vst [vmem:[%s941 + $0x90] sm:$0xf] %v1032
      %1034 = vst [vmem:[%s941 + $0x94] sm:$0xf] %v840
      %v1035 = vld [vmem:[%s941 + $0x98] sm:$0x1]
      %v1036 = vsel %vm950, %v841, %v1035
      %1037 = vst [vmem:[%s941 + $0x98] sm:$0x1] %v1036
      %v1038 = vld [vmem:[%s941 + $0x9c] sm:$0xf]
      %v1039 = vsel %vm944, %v848, %v1038
      %1040 = vst [vmem:[%s941 + $0x9c] sm:$0xf] %v1039
      %1041 = vst [vmem:[%s941 + $0xa0] sm:$0xf] %v857
      %v1042 = vld [vmem:[%s941 + $0xa4] sm:$0x1]
      %v1043 = vsel %vm950, %v858, %v1042
      %1044 = vst [vmem:[%s941 + $0xa4] sm:$0x1] %v1043
      %v1045 = vld [vmem:[%s941 + $0xa8] sm:$0xf]
      %v1046 = vsel %vm944, %v865, %v1045
      %1047 = vst [vmem:[%s941 + $0xa8] sm:$0xf] %v1046
      %1048 = vst [vmem:[%s941 + $0xac] sm:$0xf] %v874
      %v1049 = vld [vmem:[%s941 + $0xb0] sm:$0x1]
      %v1050 = vsel %vm950, %v875, %v1049
      %1051 = vst [vmem:[%s941 + $0xb0] sm:$0x1] %v1050
      %v1052 = vld [vmem:[%s941 + $0xb4] sm:$0xf]
      %v1053 = vsel %vm944, %v882, %v1052
      %1054 = vst [vmem:[%s941 + $0xb4] sm:$0xf] %v1053
      %1055 = vst [vmem:[%s941 + $0xb8] sm:$0xf] %v891
      %v1056 = vld [vmem:[%s941 + $0xbc] sm:$0x1]
      %v1057 = vsel %vm950, %v892, %v1056
      %1058 = vst [vmem:[%s941 + $0xbc] sm:$0x1] %v1057
      %v1059 = vld [vmem:[#allocation2] sm:$0xf]
      %v1060 = vld [vmem:[#allocation2 + $0x4] sm:$0xf]
      %v1061 = vld [vmem:[#allocation2 + $0xc] sm:$0xf]
      %v1062 = vld [vmem:[#allocation2 + $0x10] sm:$0xf]
      %v1063 = vld [vmem:[#allocation2 + $0x18] sm:$0xf]
      %v1064 = vld [vmem:[#allocation2 + $0x1c] sm:$0xf]
      %v1065 = vld [vmem:[#allocation2 + $0x24] sm:$0xf]
      %v1066 = vld [vmem:[#allocation2 + $0x28] sm:$0xf]
      %v1067 = vld [vmem:[#allocation2 + $0x30] sm:$0xf]
      %v1068 = vld [vmem:[#allocation2 + $0x34] sm:$0xf]
      %v1069 = vld [vmem:[#allocation2 + $0x3c] sm:$0xf]
      %v1070 = vld [vmem:[#allocation2 + $0x40] sm:$0xf]
      %v1071 = vld [vmem:[#allocation2 + $0x48] sm:$0xf]
      %v1072 = vld [vmem:[#allocation2 + $0x4c] sm:$0xf]
      %v1073 = vld [vmem:[#allocation2 + $0x54] sm:$0xf]
      %v1074 = vld [vmem:[#allocation2 + $0x58] sm:$0xf]
      %v1075 = vld [vmem:[#allocation2 + $0x60] sm:$0xf]
      %v1076 = vld [vmem:[#allocation2 + $0x64] sm:$0xf]
      %v1077 = vld [vmem:[#allocation2 + $0x6c] sm:$0xf]
      %v1078 = vld [vmem:[#allocation2 + $0x70] sm:$0xf]
      %v1079 = vld [vmem:[#allocation2 + $0x78] sm:$0xf]
      %v1080 = vld [vmem:[#allocation2 + $0x7c] sm:$0xf]
      %v1081 = vld [vmem:[#allocation2 + $0x84] sm:$0xf]
      %v1082 = vld [vmem:[#allocation2 + $0x88] sm:$0xf]
      %v1083 = vld [vmem:[#allocation2 + $0x90] sm:$0xf]
      %v1084 = vld [vmem:[#allocation2 + $0x94] sm:$0xf]
      %v1085 = vld [vmem:[#allocation2 + $0x9c] sm:$0xf]
      %v1086 = vld [vmem:[#allocation2 + $0xa0] sm:$0xf]
      %v1087 = vld [vmem:[#allocation2 + $0xa8] sm:$0xf]
      %v1088 = vld [vmem:[#allocation2 + $0xac] sm:$0xf]
      %v1089 = vld [vmem:[#allocation2 + $0xb4] sm:$0xf]
      %v1090 = vld [vmem:[#allocation2 + $0xb8] sm:$0xf]
      %v1091 = vld [vmem:[%s4] sm:$0xf]
      %v1092 = vld [vmem:[%s4 + $0x4] sm:$0xf]
      %v1093 = vld [vmem:[%s4 + $0x8] sm:$0xf]
      %v1094 = vld [vmem:[%s4 + $0xc] sm:$0xf]
      %v1095 = vld [vmem:[%s4 + $0x10] sm:$0xf]
      %v1096 = vld [vmem:[%s4 + $0x14] sm:$0xf]
      %v1097 = vld [vmem:[%s4 + $0x18] sm:$0xf]
      %v1098 = vld [vmem:[%s4 + $0x1c] sm:$0xf]
      %v1099 = vld [vmem:[%s4 + $0x20] sm:$0xf]
      %v1100 = vld [vmem:[%s4 + $0x24] sm:$0xf]
      %v1101 = vld [vmem:[%s4 + $0x28] sm:$0xf]
      %v1102 = vld [vmem:[%s4 + $0x2c] sm:$0xf]
      %v1103 = vld [vmem:[%s4 + $0x30] sm:$0xf]
      %v1104 = vld [vmem:[%s4 + $0x34] sm:$0xf]
      %v1105 = vld [vmem:[%s4 + $0x38] sm:$0xf]
      %v1106 = vld [vmem:[%s4 + $0x3c] sm:$0xf]
      %v1107 = vld [vmem:[#allocation2 + $0x8] sm:$0x1]
      %v1108 = vld [vmem:[#allocation2 + $0x14] sm:$0x1]
      %v1109 = vld [vmem:[#allocation2 + $0x20] sm:$0x1]
      %v1110 = vld [vmem:[#allocation2 + $0x2c] sm:$0x1]
      %v1111 = vld [vmem:[#allocation2 + $0x38] sm:$0x1]
      %v1112 = vld [vmem:[#allocation2 + $0x44] sm:$0x1]
      %v1113 = vld [vmem:[#allocation2 + $0x50] sm:$0x1]
      %v1114 = vld [vmem:[#allocation2 + $0x5c] sm:$0x1]
      %v1115 = vld [vmem:[#allocation2 + $0x68] sm:$0x1]
      %v1116 = vld [vmem:[#allocation2 + $0x74] sm:$0x1]
      %v1117 = vld [vmem:[#allocation2 + $0x80] sm:$0x1]
      %v1118 = vld [vmem:[#allocation2 + $0x8c] sm:$0x1]
      %v1119 = vld [vmem:[#allocation2 + $0x98] sm:$0x1]
      %v1120 = vld [vmem:[#allocation2 + $0xa4] sm:$0x1]
      %v1121 = vld [vmem:[#allocation2 + $0xb0] sm:$0x1]
      %v1122 = vld [vmem:[#allocation2 + $0xbc] sm:$0x1]
      %vm1123 = vsmask.f32 3328
      %vm1124 = vsmask.f32 7440
      %vm1125 = vmor %vm1123, %vm1124
      %v1127 = vshrl.u32 %v1059, 16
      %v1129 = vrot.slane %v1127, 4
      %v1130 = vshll.u32 %v1059, 16
      %v1132 = vrot.slane %v1130, 5
      %v1133 = vor.u32 %v1129, %v1132
      %v1134 = vrot.slane %v1133, 4
      %v1136 = vshll.u32 %v1060, 16
      %v1138 = vrot.slane %v1136, 5
      %v1139 = vsel %vm1125, %v1134, %v1138
      %v1140 = vshrl.u32 %v1060, 16
      %v1142 = vrot.slane %v1140, 4
      %v1143 = vor.u32 %v1142, %v1138
      %v1144 = vrot.slane %v1143, 4
      %v1146 = vshll.u32 %v1107, 16
      %v1148 = vrot.slane %v1146, 5
      %v1149 = vsel %vm1125, %v1144, %v1148
      %v1151 = vshrl.u32 %v1061, 16
      %v1153 = vrot.slane %v1151, 4
      %v1154 = vshll.u32 %v1061, 16
      %v1156 = vrot.slane %v1154, 5
      %v1157 = vor.u32 %v1153, %v1156
      %v1158 = vrot.slane %v1157, 4
      %v1160 = vshll.u32 %v1062, 16
      %v1162 = vrot.slane %v1160, 5
      %v1163 = vsel %vm1125, %v1158, %v1162
      %v1164 = vshrl.u32 %v1062, 16
      %v1166 = vrot.slane %v1164, 4
      %v1167 = vor.u32 %v1166, %v1162
      %v1168 = vrot.slane %v1167, 4
      %v1170 = vshll.u32 %v1108, 16
      %v1172 = vrot.slane %v1170, 5
      %v1173 = vsel %vm1125, %v1168, %v1172
      %v1175 = vshrl.u32 %v1063, 16
      %v1177 = vrot.slane %v1175, 4
      %v1178 = vshll.u32 %v1063, 16
      %v1180 = vrot.slane %v1178, 5
      %v1181 = vor.u32 %v1177, %v1180
      %v1182 = vrot.slane %v1181, 4
      %v1184 = vshll.u32 %v1064, 16
      %v1186 = vrot.slane %v1184, 5
      %v1187 = vsel %vm1125, %v1182, %v1186
      %v1188 = vshrl.u32 %v1064, 16
      %v1190 = vrot.slane %v1188, 4
      %v1191 = vor.u32 %v1190, %v1186
      %v1192 = vrot.slane %v1191, 4
      %v1194 = vshll.u32 %v1109, 16
      %v1196 = vrot.slane %v1194, 5
      %v1197 = vsel %vm1125, %v1192, %v1196
      %v1199 = vshrl.u32 %v1065, 16
      %v1201 = vrot.slane %v1199, 4
      %v1202 = vshll.u32 %v1065, 16
      %v1204 = vrot.slane %v1202, 5
      %v1205 = vor.u32 %v1201, %v1204
      %v1206 = vrot.slane %v1205, 4
      %v1208 = vshll.u32 %v1066, 16
      %v1210 = vrot.slane %v1208, 5
      %v1211 = vsel %vm1125, %v1206, %v1210
      %v1212 = vshrl.u32 %v1066, 16
      %v1214 = vrot.slane %v1212, 4
      %v1215 = vor.u32 %v1214, %v1210
      %v1216 = vrot.slane %v1215, 4
      %v1218 = vshll.u32 %v1110, 16
      %v1220 = vrot.slane %v1218, 5
      %v1221 = vsel %vm1125, %v1216, %v1220
      %v1223 = vshrl.u32 %v1067, 16
      %v1225 = vrot.slane %v1223, 4
      %v1226 = vshll.u32 %v1067, 16
      %v1228 = vrot.slane %v1226, 5
      %v1229 = vor.u32 %v1225, %v1228
      %v1230 = vrot.slane %v1229, 4
      %v1232 = vshll.u32 %v1068, 16
      %v1234 = vrot.slane %v1232, 5
      %v1235 = vsel %vm1125, %v1230, %v1234
      %v1236 = vshrl.u32 %v1068, 16
      %v1238 = vrot.slane %v1236, 4
      %v1239 = vor.u32 %v1238, %v1234
      %v1240 = vrot.slane %v1239, 4
      %v1242 = vshll.u32 %v1111, 16
      %v1244 = vrot.slane %v1242, 5
      %v1245 = vsel %vm1125, %v1240, %v1244
      %v1247 = vshrl.u32 %v1069, 16
      %v1249 = vrot.slane %v1247, 4
      %v1250 = vshll.u32 %v1069, 16
      %v1252 = vrot.slane %v1250, 5
      %v1253 = vor.u32 %v1249, %v1252
      %v1254 = vrot.slane %v1253, 4
      %v1256 = vshll.u32 %v1070, 16
      %v1258 = vrot.slane %v1256, 5
      %v1259 = vsel %vm1125, %v1254, %v1258
      %v1260 = vshrl.u32 %v1070, 16
      %v1262 = vrot.slane %v1260, 4
      %v1263 = vor.u32 %v1262, %v1258
      %v1264 = vrot.slane %v1263, 4
      %v1266 = vshll.u32 %v1112, 16
      %v1268 = vrot.slane %v1266, 5
      %v1269 = vsel %vm1125, %v1264, %v1268
      %v1271 = vshrl.u32 %v1071, 16
      %v1273 = vrot.slane %v1271, 4
      %v1274 = vshll.u32 %v1071, 16
      %v1276 = vrot.slane %v1274, 5
      %v1277 = vor.u32 %v1273, %v1276
      %v1278 = vrot.slane %v1277, 4
      %v1280 = vshll.u32 %v1072, 16
      %v1282 = vrot.slane %v1280, 5
      %v1283 = vsel %vm1125, %v1278, %v1282
      %v1284 = vshrl.u32 %v1072, 16
      %v1286 = vrot.slane %v1284, 4
      %v1287 = vor.u32 %v1286, %v1282
      %v1288 = vrot.slane %v1287, 4
      %v1290 = vshll.u32 %v1113, 16
      %v1292 = vrot.slane %v1290, 5
      %v1293 = vsel %vm1125, %v1288, %v1292
      %v1295 = vshrl.u32 %v1073, 16
      %v1297 = vrot.slane %v1295, 4
      %v1298 = vshll.u32 %v1073, 16
      %v1300 = vrot.slane %v1298, 5
      %v1301 = vor.u32 %v1297, %v1300
      %v1302 = vrot.slane %v1301, 4
      %v1304 = vshll.u32 %v1074, 16
      %v1306 = vrot.slane %v1304, 5
      %v1307 = vsel %vm1125, %v1302, %v1306
      %v1308 = vshrl.u32 %v1074, 16
      %v1310 = vrot.slane %v1308, 4
      %v1311 = vor.u32 %v1310, %v1306
      %v1312 = vrot.slane %v1311, 4
      %v1314 = vshll.u32 %v1114, 16
      %v1316 = vrot.slane %v1314, 5
      %v1317 = vsel %vm1125, %v1312, %v1316
      %v1319 = vshrl.u32 %v1075, 16
      %v1321 = vrot.slane %v1319, 4
      %v1322 = vshll.u32 %v1075, 16
      %v1324 = vrot.slane %v1322, 5
      %v1325 = vor.u32 %v1321, %v1324
      %v1326 = vrot.slane %v1325, 4
      %v1328 = vshll.u32 %v1076, 16
      %v1330 = vrot.slane %v1328, 5
      %v1331 = vsel %vm1125, %v1326, %v1330
      %v1332 = vshrl.u32 %v1076, 16
      %v1334 = vrot.slane %v1332, 4
      %v1335 = vor.u32 %v1334, %v1330
      %v1336 = vrot.slane %v1335, 4
      %v1338 = vshll.u32 %v1115, 16
      %v1340 = vrot.slane %v1338, 5
      %v1341 = vsel %vm1125, %v1336, %v1340
      %v1343 = vshrl.u32 %v1077, 16
      %v1345 = vrot.slane %v1343, 4
      %v1346 = vshll.u32 %v1077, 16
      %v1348 = vrot.slane %v1346, 5
      %v1349 = vor.u32 %v1345, %v1348
      %v1350 = vrot.slane %v1349, 4
      %v1352 = vshll.u32 %v1078, 16
      %v1354 = vrot.slane %v1352, 5
      %v1355 = vsel %vm1125, %v1350, %v1354
      %v1356 = vshrl.u32 %v1078, 16
      %v1358 = vrot.slane %v1356, 4
      %v1359 = vor.u32 %v1358, %v1354
      %v1360 = vrot.slane %v1359, 4
      %v1362 = vshll.u32 %v1116, 16
      %v1364 = vrot.slane %v1362, 5
      %v1365 = vsel %vm1125, %v1360, %v1364
      %v1367 = vshrl.u32 %v1079, 16
      %v1369 = vrot.slane %v1367, 4
      %v1370 = vshll.u32 %v1079, 16
      %v1372 = vrot.slane %v1370, 5
      %v1373 = vor.u32 %v1369, %v1372
      %v1374 = vrot.slane %v1373, 4
      %v1376 = vshll.u32 %v1080, 16
      %v1378 = vrot.slane %v1376, 5
      %v1379 = vsel %vm1125, %v1374, %v1378
      %v1380 = vshrl.u32 %v1080, 16
      %v1382 = vrot.slane %v1380, 4
      %v1383 = vor.u32 %v1382, %v1378
      %v1384 = vrot.slane %v1383, 4
      %v1386 = vshll.u32 %v1117, 16
      %v1388 = vrot.slane %v1386, 5
      %v1389 = vsel %vm1125, %v1384, %v1388
      %v1391 = vshrl.u32 %v1081, 16
      %v1393 = vrot.slane %v1391, 4
      %v1394 = vshll.u32 %v1081, 16
      %v1396 = vrot.slane %v1394, 5
      %v1397 = vor.u32 %v1393, %v1396
      %v1398 = vrot.slane %v1397, 4
      %v1400 = vshll.u32 %v1082, 16
      %v1402 = vrot.slane %v1400, 5
      %v1403 = vsel %vm1125, %v1398, %v1402
      %v1404 = vshrl.u32 %v1082, 16
      %v1406 = vrot.slane %v1404, 4
      %v1407 = vor.u32 %v1406, %v1402
      %v1408 = vrot.slane %v1407, 4
      %v1410 = vshll.u32 %v1118, 16
      %v1412 = vrot.slane %v1410, 5
      %v1413 = vsel %vm1125, %v1408, %v1412
      %v1415 = vshrl.u32 %v1083, 16
      %v1417 = vrot.slane %v1415, 4
      %v1418 = vshll.u32 %v1083, 16
      %v1420 = vrot.slane %v1418, 5
      %v1421 = vor.u32 %v1417, %v1420
      %v1422 = vrot.slane %v1421, 4
      %v1424 = vshll.u32 %v1084, 16
      %v1426 = vrot.slane %v1424, 5
      %v1427 = vsel %vm1125, %v1422, %v1426
      %v1428 = vshrl.u32 %v1084, 16
      %v1430 = vrot.slane %v1428, 4
      %v1431 = vor.u32 %v1430, %v1426
      %v1432 = vrot.slane %v1431, 4
      %v1434 = vshll.u32 %v1119, 16
      %v1436 = vrot.slane %v1434, 5
      %v1437 = vsel %vm1125, %v1432, %v1436
      %v1439 = vshrl.u32 %v1085, 16
      %v1441 = vrot.slane %v1439, 4
      %v1442 = vshll.u32 %v1085, 16
      %v1444 = vrot.slane %v1442, 5
      %v1445 = vor.u32 %v1441, %v1444
      %v1446 = vrot.slane %v1445, 4
      %v1448 = vshll.u32 %v1086, 16
      %v1450 = vrot.slane %v1448, 5
      %v1451 = vsel %vm1125, %v1446, %v1450
      %v1452 = vshrl.u32 %v1086, 16
      %v1454 = vrot.slane %v1452, 4
      %v1455 = vor.u32 %v1454, %v1450
      %v1456 = vrot.slane %v1455, 4
      %v1458 = vshll.u32 %v1120, 16
      %v1460 = vrot.slane %v1458, 5
      %v1461 = vsel %vm1125, %v1456, %v1460
      %v1463 = vshrl.u32 %v1087, 16
      %v1465 = vrot.slane %v1463, 4
      %v1466 = vshll.u32 %v1087, 16
      %v1468 = vrot.slane %v1466, 5
      %v1469 = vor.u32 %v1465, %v1468
      %v1470 = vrot.slane %v1469, 4
      %v1472 = vshll.u32 %v1088, 16
      %v1474 = vrot.slane %v1472, 5
      %v1475 = vsel %vm1125, %v1470, %v1474
      %v1476 = vshrl.u32 %v1088, 16
      %v1478 = vrot.slane %v1476, 4
      %v1479 = vor.u32 %v1478, %v1474
      %v1480 = vrot.slane %v1479, 4
      %v1482 = vshll.u32 %v1121, 16
      %v1484 = vrot.slane %v1482, 5
      %v1485 = vsel %vm1125, %v1480, %v1484
      %v1487 = vshrl.u32 %v1089, 16
      %v1489 = vrot.slane %v1487, 4
      %v1490 = vshll.u32 %v1089, 16
      %v1492 = vrot.slane %v1490, 5
      %v1493 = vor.u32 %v1489, %v1492
      %v1494 = vrot.slane %v1493, 4
      %v1496 = vshll.u32 %v1090, 16
      %v1498 = vrot.slane %v1496, 5
      %v1499 = vsel %vm1125, %v1494, %v1498
      %v1500 = vshrl.u32 %v1090, 16
      %v1502 = vrot.slane %v1500, 4
      %v1503 = vor.u32 %v1502, %v1498
      %v1504 = vrot.slane %v1503, 4
      %v1506 = vshll.u32 %v1122, 16
      %v1508 = vrot.slane %v1506, 5
      %v1509 = vsel %vm1125, %v1504, %v1508
      %s1510 = scalar_lea.vmem %s4, 64
      %v1511 = vld [vmem:[%s1510] sm:$0xf]
      %v1512 = vld [vmem:[%s1510 + $0x4] sm:$0xf]
      %v1513 = vld [vmem:[%s1510 + $0x8] sm:$0xf]
      %v1514 = vld [vmem:[%s1510 + $0xc] sm:$0xf]
      %v1515 = vld [vmem:[%s1510 + $0x10] sm:$0xf]
      %v1516 = vld [vmem:[%s1510 + $0x14] sm:$0xf]
      %v1517 = vld [vmem:[%s1510 + $0x18] sm:$0xf]
      %v1518 = vld [vmem:[%s1510 + $0x1c] sm:$0xf]
      %v1519 = vld [vmem:[%s1510 + $0x20] sm:$0xf]
      %v1520 = vld [vmem:[%s1510 + $0x24] sm:$0xf]
      %v1521 = vld [vmem:[%s1510 + $0x28] sm:$0xf]
      %v1522 = vld [vmem:[%s1510 + $0x2c] sm:$0xf]
      %v1523 = vld [vmem:[%s1510 + $0x30] sm:$0xf]
      %v1524 = vld [vmem:[%s1510 + $0x34] sm:$0xf]
      %v1525 = vld [vmem:[%s1510 + $0x38] sm:$0xf]
      %v1526 = vld [vmem:[%s1510 + $0x3c] sm:$0xf]
      %v1527 = vunpack.c.l.b16 %v1139
      %v1528 = vunpack.c.l.b16 %v1149
      %v1529 = vunpack.c.l.b16 %v1163
      %v1530 = vunpack.c.l.b16 %v1173
      %v1531 = vunpack.c.l.b16 %v1187
      %v1532 = vunpack.c.l.b16 %v1197
      %v1533 = vunpack.c.l.b16 %v1211
      %v1534 = vunpack.c.l.b16 %v1221
      %v1535 = vunpack.c.l.b16 %v1235
      %v1536 = vunpack.c.l.b16 %v1245
      %v1537 = vunpack.c.l.b16 %v1259
      %v1538 = vunpack.c.l.b16 %v1269
      %v1539 = vunpack.c.l.b16 %v1283
      %v1540 = vunpack.c.l.b16 %v1293
      %v1541 = vunpack.c.l.b16 %v1307
      %v1542 = vunpack.c.l.b16 %v1317
      %v1543 = vunpack.c.l.b16 %v1331
      %v1544 = vunpack.c.l.b16 %v1341
      %v1545 = vunpack.c.l.b16 %v1355
      %v1546 = vunpack.c.l.b16 %v1365
      %v1547 = vunpack.c.l.b16 %v1379
      %v1548 = vunpack.c.l.b16 %v1389
      %v1549 = vunpack.c.l.b16 %v1403
      %v1550 = vunpack.c.l.b16 %v1413
      %v1551 = vunpack.c.l.b16 %v1427
      %v1552 = vunpack.c.l.b16 %v1437
      %v1553 = vunpack.c.l.b16 %v1451
      %v1554 = vunpack.c.l.b16 %v1461
      %v1555 = vunpack.c.l.b16 %v1475
      %v1556 = vunpack.c.l.b16 %v1485
      %v1557 = vunpack.c.l.b16 %v1499
      %v1558 = vunpack.c.l.b16 %v1509
      %v1559 = vpack.c.b16 %v1528, %v1527
      %v1560 = vpack.c.b16 %v1530, %v1529
      %v1561 = vpack.c.b16 %v1532, %v1531
      %v1562 = vpack.c.b16 %v1534, %v1533
      %v1563 = vpack.c.b16 %v1536, %v1535
      %v1564 = vpack.c.b16 %v1538, %v1537
      %v1565 = vpack.c.b16 %v1540, %v1539
      %v1566 = vpack.c.b16 %v1542, %v1541
      %v1567 = vpack.c.b16 %v1544, %v1543
      %v1568 = vpack.c.b16 %v1546, %v1545
      %v1569 = vpack.c.b16 %v1548, %v1547
      %v1570 = vpack.c.b16 %v1550, %v1549
      %v1571 = vpack.c.b16 %v1552, %v1551
      %v1572 = vpack.c.b16 %v1554, %v1553
      %v1573 = vpack.c.b16 %v1556, %v1555
      %v1574 = vpack.c.b16 %v1558, %v1557
      %v1607 = vunpack.c.l.b16 %v1511
      %v1608 = vunpack.c.l.b16 %v1512
      %v1609 = vunpack.c.l.b16 %v1513
      %v1610 = vunpack.c.l.b16 %v1514
      %v1611 = vunpack.c.l.b16 %v1515
      %v1612 = vunpack.c.l.b16 %v1516
      %v1613 = vunpack.c.l.b16 %v1517
      %v1614 = vunpack.c.l.b16 %v1518
      %v1615 = vunpack.c.l.b16 %v1519
      %v1616 = vunpack.c.l.b16 %v1520
      %v1617 = vunpack.c.l.b16 %v1521
      %v1618 = vunpack.c.l.b16 %v1522
      %v1619 = vunpack.c.l.b16 %v1523
      %v1620 = vunpack.c.l.b16 %v1524
      %v1621 = vunpack.c.l.b16 %v1525
      %v1622 = vunpack.c.l.b16 %v1526
      %v1623 = vpack.c.b16 %v1608, %v1607
      %v1624 = vpack.c.b16 %v1610, %v1609
      %v1625 = vpack.c.b16 %v1612, %v1611
      %v1626 = vpack.c.b16 %v1614, %v1613
      %v1627 = vpack.c.b16 %v1616, %v1615
      %v1628 = vpack.c.b16 %v1618, %v1617
      %v1629 = vpack.c.b16 %v1620, %v1619
      %v1630 = vpack.c.b16 %v1622, %v1621
      %1639 = vmatprep.subr.bf16.mxu0 0
      %1640 = vmatpush1.bf16.msra.mxu0 %v1623
      %1641 = vmatprep.subr.bf16.mxu0 0
      %1642 = vmatpush1.bf16.msra.mxu0 %v1624
      %1643 = vmatprep.subr.bf16.mxu0 0
      %1644 = vmatpush1.bf16.msra.mxu0 %v1625
      %1645 = vmatprep.subr.bf16.mxu0 0
      %1646 = vmatpush1.bf16.msra.mxu0 %v1626
      %1647 = vmatprep.subr.bf16.mxu0 0
      %1648 = vmatpush1.bf16.msra.mxu0 %v1627
      %1649 = vmatprep.subr.bf16.mxu0 0
      %1650 = vmatpush1.bf16.msra.mxu0 %v1628
      %1651 = vmatprep.subr.bf16.mxu0 0
      %1652 = vmatpush1.bf16.msra.mxu0 %v1629
      %1653 = vmatprep.subr.bf16.mxu0 0
      %1654 = vmatpush1.bf16.msra.mxu0 %v1630
      %1655 = vmatprep.subr.bf16.mxu0 0
      %1656 = vmatpush1.bf16.msra.mxu0 0
      %1657 = vmatprep.subr.bf16.mxu0 0
      %1658 = vmatpush1.bf16.msra.mxu0 0
      %1659 = vmatprep.subr.bf16.mxu0 0
      %1660 = vmatpush1.bf16.msra.mxu0 0
      %1661 = vmatprep.subr.bf16.mxu0 0
      %1662 = vmatpush1.bf16.msra.mxu0 0
      %1663 = vmatprep.subr.bf16.mxu0 0
      %1664 = vmatpush1.bf16.msra.mxu0 0
      %1665 = vmatprep.subr.bf16.mxu0 0
      %1666 = vmatpush1.bf16.msra.mxu0 0
      %1667 = vmatprep.subr.bf16.mxu0 0
      %1668 = vmatpush1.bf16.msra.mxu0 0
      %1669 = vmatprep.subr.bf16.mxu0 0
      %1670 = vmatpush1.bf16.msra.mxu0 0
      %1671 = vmatprep.mubr.bf16.mxu0 0
      %1672 = vmatmul.mubr.bf16.gmra.mrb[0].mxu0 %v1559
      %v1673 = vpop.f32.mrb[0].mxu0
      %v1674 = vadd.f32 0.0, %v1673
      %v1675 = vpop.f32.mrb[0].mxu0
      %v1676 = vpop.f32.mrb[0].mxu0
      %v1677 = vadd.f32 0.0, %v1676
      %v1678 = vpop.f32.mrb[0].mxu0
      %1679 = vmatprep.mubr.bf16.mxu0 0
      %1680 = vmatmul.mubr.bf16.gmra.mrb[0].mxu0 %v1560
      %v1681 = vpop.f32.mrb[0].mxu0
      %v1682 = vadd.f32 0.0, %v1681
      %v1683 = vpop.f32.mrb[0].mxu0
      %v1684 = vpop.f32.mrb[0].mxu0
      %v1685 = vadd.f32 0.0, %v1684
      %v1686 = vpop.f32.mrb[0].mxu0
      %1687 = vmatprep.mubr.bf16.mxu0 0
      %1688 = vmatmul.mubr.bf16.gmra.mrb[0].mxu0 %v1561
      %v1689 = vpop.f32.mrb[0].mxu0
      %v1690 = vadd.f32 0.0, %v1689
      %v1691 = vpop.f32.mrb[0].mxu0
      %v1692 = vpop.f32.mrb[0].mxu0
      %v1693 = vadd.f32 0.0, %v1692
      %v1694 = vpop.f32.mrb[0].mxu0
      %1695 = vmatprep.mubr.bf16.mxu0 0
      %1696 = vmatmul.mubr.bf16.gmra.mrb[0].mxu0 %v1562
      %v1697 = vpop.f32.mrb[0].mxu0
      %v1698 = vadd.f32 0.0, %v1697
      %v1699 = vpop.f32.mrb[0].mxu0
      %v1700 = vpop.f32.mrb[0].mxu0
      %v1701 = vadd.f32 0.0, %v1700
      %v1702 = vpop.f32.mrb[0].mxu0
      %1703 = vmatprep.mubr.bf16.mxu0 0
      %1704 = vmatmul.mubr.bf16.gmra.mrb[0].mxu0 %v1563
      %v1705 = vpop.f32.mrb[0].mxu0
      %v1706 = vadd.f32 0.0, %v1705
      %v1707 = vpop.f32.mrb[0].mxu0
      %v1708 = vpop.f32.mrb[0].mxu0
      %v1709 = vadd.f32 0.0, %v1708
      %v1710 = vpop.f32.mrb[0].mxu0
      %1711 = vmatprep.mubr.bf16.mxu0 0
      %1712 = vmatmul.mubr.bf16.gmra.mrb[0].mxu0 %v1564
      %v1713 = vpop.f32.mrb[0].mxu0
      %v1714 = vadd.f32 0.0, %v1713
      %v1715 = vpop.f32.mrb[0].mxu0
      %v1716 = vpop.f32.mrb[0].mxu0
      %v1717 = vadd.f32 0.0, %v1716
      %v1718 = vpop.f32.mrb[0].mxu0
      %1719 = vmatprep.mubr.bf16.mxu0 0
      %1720 = vmatmul.mubr.bf16.gmra.mrb[0].mxu0 %v1565
      %v1721 = vpop.f32.mrb[0].mxu0
      %v1722 = vadd.f32 0.0, %v1721
      %v1723 = vpop.f32.mrb[0].mxu0
      %v1724 = vpop.f32.mrb[0].mxu0
      %v1725 = vadd.f32 0.0, %v1724
      %v1726 = vpop.f32.mrb[0].mxu0
      %1727 = vmatprep.mubr.bf16.mxu0 0
      %1728 = vmatmul.mubr.bf16.gmra.mrb[0].mxu0 %v1566
      %v1729 = vpop.f32.mrb[0].mxu0
      %v1730 = vadd.f32 0.0, %v1729
      %v1731 = vpop.f32.mrb[0].mxu0
      %v1732 = vpop.f32.mrb[0].mxu0
      %v1733 = vadd.f32 0.0, %v1732
      %v1734 = vpop.f32.mrb[0].mxu0
      %1735 = vmatprep.mubr.bf16.mxu0 0
      %1736 = vmatmul.mubr.bf16.gmra.mrb[0].mxu0 %v1567
      %v1737 = vpop.f32.mrb[0].mxu0
      %v1738 = vadd.f32 0.0, %v1737
      %v1739 = vpop.f32.mrb[0].mxu0
      %v1740 = vpop.f32.mrb[0].mxu0
      %v1741 = vadd.f32 0.0, %v1740
      %v1742 = vpop.f32.mrb[0].mxu0
      %1743 = vmatprep.mubr.bf16.mxu0 0
      %1744 = vmatmul.mubr.bf16.gmra.mrb[0].mxu0 %v1568
      %v1745 = vpop.f32.mrb[0].mxu0
      %v1746 = vadd.f32 0.0, %v1745
      %v1747 = vpop.f32.mrb[0].mxu0
      %v1748 = vpop.f32.mrb[0].mxu0
      %v1749 = vadd.f32 0.0, %v1748
      %v1750 = vpop.f32.mrb[0].mxu0
      %1751 = vmatprep.mubr.bf16.mxu0 0
      %1752 = vmatmul.mubr.bf16.gmra.mrb[0].mxu0 %v1569
      %v1753 = vpop.f32.mrb[0].mxu0
      %v1754 = vadd.f32 0.0, %v1753
      %v1755 = vpop.f32.mrb[0].mxu0
      %v1756 = vpop.f32.mrb[0].mxu0
      %v1757 = vadd.f32 0.0, %v1756
      %v1758 = vpop.f32.mrb[0].mxu0
      %1759 = vmatprep.mubr.bf16.mxu0 0
      %1760 = vmatmul.mubr.bf16.gmra.mrb[0].mxu0 %v1570
      %v1761 = vpop.f32.mrb[0].mxu0
      %v1762 = vadd.f32 0.0, %v1761
      %v1763 = vpop.f32.mrb[0].mxu0
      %v1764 = vpop.f32.mrb[0].mxu0
      %v1765 = vadd.f32 0.0, %v1764
      %v1766 = vpop.f32.mrb[0].mxu0
      %1767 = vmatprep.mubr.bf16.mxu0 0
      %1768 = vmatmul.mubr.bf16.gmra.mrb[0].mxu0 %v1571
      %v1769 = vpop.f32.mrb[0].mxu0
      %v1770 = vadd.f32 0.0, %v1769
      %v1771 = vpop.f32.mrb[0].mxu0
      %v1772 = vpop.f32.mrb[0].mxu0
      %v1773 = vadd.f32 0.0, %v1772
      %v1774 = vpop.f32.mrb[0].mxu0
      %1775 = vmatprep.mubr.bf16.mxu0 0
      %1776 = vmatmul.mubr.bf16.gmra.mrb[0].mxu0 %v1572
      %v1777 = vpop.f32.mrb[0].mxu0
      %v1778 = vadd.f32 0.0, %v1777
      %v1779 = vpop.f32.mrb[0].mxu0
      %v1780 = vpop.f32.mrb[0].mxu0
      %v1781 = vadd.f32 0.0, %v1780
      %v1782 = vpop.f32.mrb[0].mxu0
      %1783 = vmatprep.mubr.bf16.mxu0 0
      %1784 = vmatmul.mubr.bf16.gmra.mrb[0].mxu0 %v1573
      %v1785 = vpop.f32.mrb[0].mxu0
      %v1786 = vadd.f32 0.0, %v1785
      %v1787 = vpop.f32.mrb[0].mxu0
      %v1788 = vpop.f32.mrb[0].mxu0
      %v1789 = vadd.f32 0.0, %v1788
      %v1790 = vpop.f32.mrb[0].mxu0
      %1791 = vmatprep.mubr.bf16.mxu0 0
      %1792 = vmatmul.mubr.bf16.gmra.mrb[0].mxu0 %v1574
      %v1793 = vpop.f32.mrb[0].mxu0
      %v1794 = vadd.f32 0.0, %v1793
      %v1795 = vpop.f32.mrb[0].mxu0
      %v1796 = vpop.f32.mrb[0].mxu0
      %v1797 = vadd.f32 0.0, %v1796
      %v1798 = vpop.f32.mrb[0].mxu0
      %1799 = vdwg.mxu0
      %v1832 = vunpack.c.l.b16 %v1059
      %v1833 = vunpack.c.l.b16 %v1060
      %v1834 = vunpack.c.l.b16 %v1061
      %v1835 = vunpack.c.l.b16 %v1062
      %v1836 = vunpack.c.l.b16 %v1063
      %v1837 = vunpack.c.l.b16 %v1064
      %v1838 = vunpack.c.l.b16 %v1065
      %v1839 = vunpack.c.l.b16 %v1066
      %v1840 = vunpack.c.l.b16 %v1067
      %v1841 = vunpack.c.l.b16 %v1068
      %v1842 = vunpack.c.l.b16 %v1069
      %v1843 = vunpack.c.l.b16 %v1070
      %v1844 = vunpack.c.l.b16 %v1071
      %v1845 = vunpack.c.l.b16 %v1072
      %v1846 = vunpack.c.l.b16 %v1073
      %v1847 = vunpack.c.l.b16 %v1074
      %v1848 = vunpack.c.l.b16 %v1075
      %v1849 = vunpack.c.l.b16 %v1076
      %v1850 = vunpack.c.l.b16 %v1077
      %v1851 = vunpack.c.l.b16 %v1078
      %v1852 = vunpack.c.l.b16 %v1079
      %v1853 = vunpack.c.l.b16 %v1080
      %v1854 = vunpack.c.l.b16 %v1081
      %v1855 = vunpack.c.l.b16 %v1082
      %v1856 = vunpack.c.l.b16 %v1083
      %v1857 = vunpack.c.l.b16 %v1084
      %v1858 = vunpack.c.l.b16 %v1085
      %v1859 = vunpack.c.l.b16 %v1086
      %v1860 = vunpack.c.l.b16 %v1087
      %v1861 = vunpack.c.l.b16 %v1088
      %v1862 = vunpack.c.l.b16 %v1089
      %v1863 = vunpack.c.l.b16 %v1090
      %v1864 = vpack.c.b16 %v1833, %v1832
      %v1865 = vpack.c.b16 %v1835, %v1834
      %v1866 = vpack.c.b16 %v1837, %v1836
      %v1867 = vpack.c.b16 %v1839, %v1838
      %v1868 = vpack.c.b16 %v1841, %v1840
      %v1869 = vpack.c.b16 %v1843, %v1842
      %v1870 = vpack.c.b16 %v1845, %v1844
      %v1871 = vpack.c.b16 %v1847, %v1846
      %v1872 = vpack.c.b16 %v1849, %v1848
      %v1873 = vpack.c.b16 %v1851, %v1850
      %v1874 = vpack.c.b16 %v1853, %v1852
      %v1875 = vpack.c.b16 %v1855, %v1854
      %v1876 = vpack.c.b16 %v1857, %v1856
      %v1877 = vpack.c.b16 %v1859, %v1858
      %v1878 = vpack.c.b16 %v1861, %v1860
      %v1879 = vpack.c.b16 %v1863, %v1862
      %v1912 = vunpack.c.l.b16 %v1091
      %v1913 = vunpack.c.l.b16 %v1092
      %v1914 = vunpack.c.l.b16 %v1093
      %v1915 = vunpack.c.l.b16 %v1094
      %v1916 = vunpack.c.l.b16 %v1095
      %v1917 = vunpack.c.l.b16 %v1096
      %v1918 = vunpack.c.l.b16 %v1097
      %v1919 = vunpack.c.l.b16 %v1098
      %v1920 = vunpack.c.l.b16 %v1099
      %v1921 = vunpack.c.l.b16 %v1100
      %v1922 = vunpack.c.l.b16 %v1101
      %v1923 = vunpack.c.l.b16 %v1102
      %v1924 = vunpack.c.l.b16 %v1103
      %v1925 = vunpack.c.l.b16 %v1104
      %v1926 = vunpack.c.l.b16 %v1105
      %v1927 = vunpack.c.l.b16 %v1106
      %v1928 = vpack.c.b16 %v1913, %v1912
      %v1929 = vpack.c.b16 %v1915, %v1914
      %v1930 = vpack.c.b16 %v1917, %v1916
      %v1931 = vpack.c.b16 %v1919, %v1918
      %v1932 = vpack.c.b16 %v1921, %v1920
      %v1933 = vpack.c.b16 %v1923, %v1922
      %v1934 = vpack.c.b16 %v1925, %v1924
      %v1935 = vpack.c.b16 %v1927, %v1926
      %1944 = vmatprep.subr.bf16.mxu0 0
      %1945 = vmatpush1.bf16.msra.mxu0 %v1928
      %1946 = vmatprep.subr.bf16.mxu0 0
      %1947 = vmatpush1.bf16.msra.mxu0 %v1929
      %1948 = vmatprep.subr.bf16.mxu0 0
      %1949 = vmatpush1.bf16.msra.mxu0 %v1930
      %1950 = vmatprep.subr.bf16.mxu0 0
      %1951 = vmatpush1.bf16.msra.mxu0 %v1931
      %1952 = vmatprep.subr.bf16.mxu0 0
      %1953 = vmatpush1.bf16.msra.mxu0 %v1932
      %1954 = vmatprep.subr.bf16.mxu0 0
      %1955 = vmatpush1.bf16.msra.mxu0 %v1933
      %1956 = vmatprep.subr.bf16.mxu0 0
      %1957 = vmatpush1.bf16.msra.mxu0 %v1934
      %1958 = vmatprep.subr.bf16.mxu0 0
      %1959 = vmatpush1.bf16.msra.mxu0 %v1935
      %1960 = vmatprep.subr.bf16.mxu0 0
      %1961 = vmatpush1.bf16.msra.mxu0 0
      %1962 = vmatprep.subr.bf16.mxu0 0
      %1963 = vmatpush1.bf16.msra.mxu0 0
      %1964 = vmatprep.subr.bf16.mxu0 0
      %1965 = vmatpush1.bf16.msra.mxu0 0
      %1966 = vmatprep.subr.bf16.mxu0 0
      %1967 = vmatpush1.bf16.msra.mxu0 0
      %1968 = vmatprep.subr.bf16.mxu0 0
      %1969 = vmatpush1.bf16.msra.mxu0 0
      %1970 = vmatprep.subr.bf16.mxu0 0
      %1971 = vmatpush1.bf16.msra.mxu0 0
      %1972 = vmatprep.subr.bf16.mxu0 0
      %1973 = vmatpush1.bf16.msra.mxu0 0
      %1974 = vmatprep.subr.bf16.mxu0 0
      %1975 = vmatpush1.bf16.msra.mxu0 0
      %1976 = vmatprep.mubr.bf16.mxu0 0
      %1977 = vmatmul.mubr.bf16.gmra.mrb[0].mxu0 %v1864
      %v1978 = vpop.f32.mrb[0].mxu0
      %v1979 = vadd.f32 %v1674, %v1978
      %v1980 = vpop.f32.mrb[0].mxu0
      %v1981 = vpop.f32.mrb[0].mxu0
      %v1982 = vadd.f32 %v1677, %v1981
      %v1983 = vpop.f32.mrb[0].mxu0
      %1984 = vmatprep.mubr.bf16.mxu0 0
      %1985 = vmatmul.mubr.bf16.gmra.mrb[0].mxu0 %v1865
      %v1986 = vpop.f32.mrb[0].mxu0
      %v1987 = vadd.f32 %v1682, %v1986
      %v1988 = vpop.f32.mrb[0].mxu0
      %v1989 = vpop.f32.mrb[0].mxu0
      %v1990 = vadd.f32 %v1685, %v1989
      %v1991 = vpop.f32.mrb[0].mxu0
      %1992 = vmatprep.mubr.bf16.mxu0 0
      %1993 = vmatmul.mubr.bf16.gmra.mrb[0].mxu0 %v1866
      %v1994 = vpop.f32.mrb[0].mxu0
      %v1995 = vadd.f32 %v1690, %v1994
      %v1996 = vpop.f32.mrb[0].mxu0
      %v1997 = vpop.f32.mrb[0].mxu0
      %v1998 = vadd.f32 %v1693, %v1997
      %v1999 = vpop.f32.mrb[0].mxu0
      %2000 = vmatprep.mubr.bf16.mxu0 0
      %2001 = vmatmul.mubr.bf16.gmra.mrb[0].mxu0 %v1867
      %v2002 = vpop.f32.mrb[0].mxu0
      %v2003 = vadd.f32 %v1698, %v2002
      %v2004 = vpop.f32.mrb[0].mxu0
      %v2005 = vpop.f32.mrb[0].mxu0
      %v2006 = vadd.f32 %v1701, %v2005
      %v2007 = vpop.f32.mrb[0].mxu0
      %2008 = vmatprep.mubr.bf16.mxu0 0
      %2009 = vmatmul.mubr.bf16.gmra.mrb[0].mxu0 %v1868
      %v2010 = vpop.f32.mrb[0].mxu0
      %v2011 = vadd.f32 %v1706, %v2010
      %v2012 = vpop.f32.mrb[0].mxu0
      %v2013 = vpop.f32.mrb[0].mxu0
      %v2014 = vadd.f32 %v1709, %v2013
      %v2015 = vpop.f32.mrb[0].mxu0
      %2016 = vmatprep.mubr.bf16.mxu0 0
      %2017 = vmatmul.mubr.bf16.gmra.mrb[0].mxu0 %v1869
      %v2018 = vpop.f32.mrb[0].mxu0
      %v2019 = vadd.f32 %v1714, %v2018
      %v2020 = vpop.f32.mrb[0].mxu0
      %v2021 = vpop.f32.mrb[0].mxu0
      %v2022 = vadd.f32 %v1717, %v2021
      %v2023 = vpop.f32.mrb[0].mxu0
      %2024 = vmatprep.mubr.bf16.mxu0 0
      %2025 = vmatmul.mubr.bf16.gmra.mrb[0].mxu0 %v1870
      %v2026 = vpop.f32.mrb[0].mxu0
      %v2027 = vadd.f32 %v1722, %v2026
      %v2028 = vpop.f32.mrb[0].mxu0
      %v2029 = vpop.f32.mrb[0].mxu0
      %v2030 = vadd.f32 %v1725, %v2029
      %v2031 = vpop.f32.mrb[0].mxu0
      %2032 = vmatprep.mubr.bf16.mxu0 0
      %2033 = vmatmul.mubr.bf16.gmra.mrb[0].mxu0 %v1871
      %v2034 = vpop.f32.mrb[0].mxu0
      %v2035 = vadd.f32 %v1730, %v2034
      %v2036 = vpop.f32.mrb[0].mxu0
      %v2037 = vpop.f32.mrb[0].mxu0
      %v2038 = vadd.f32 %v1733, %v2037
      %v2039 = vpop.f32.mrb[0].mxu0
      %2040 = vmatprep.mubr.bf16.mxu0 0
      %2041 = vmatmul.mubr.bf16.gmra.mrb[0].mxu0 %v1872
      %v2042 = vpop.f32.mrb[0].mxu0
      %v2043 = vadd.f32 %v1738, %v2042
      %v2044 = vpop.f32.mrb[0].mxu0
      %v2045 = vpop.f32.mrb[0].mxu0
      %v2046 = vadd.f32 %v1741, %v2045
      %v2047 = vpop.f32.mrb[0].mxu0
      %2048 = vmatprep.mubr.bf16.mxu0 0
      %2049 = vmatmul.mubr.bf16.gmra.mrb[0].mxu0 %v1873
      %v2050 = vpop.f32.mrb[0].mxu0
      %v2051 = vadd.f32 %v1746, %v2050
      %v2052 = vpop.f32.mrb[0].mxu0
      %v2053 = vpop.f32.mrb[0].mxu0
      %v2054 = vadd.f32 %v1749, %v2053
      %v2055 = vpop.f32.mrb[0].mxu0
      %2056 = vmatprep.mubr.bf16.mxu0 0
      %2057 = vmatmul.mubr.bf16.gmra.mrb[0].mxu0 %v1874
      %v2058 = vpop.f32.mrb[0].mxu0
      %v2059 = vadd.f32 %v1754, %v2058
      %v2060 = vpop.f32.mrb[0].mxu0
      %v2061 = vpop.f32.mrb[0].mxu0
      %v2062 = vadd.f32 %v1757, %v2061
      %v2063 = vpop.f32.mrb[0].mxu0
      %2064 = vmatprep.mubr.bf16.mxu0 0
      %2065 = vmatmul.mubr.bf16.gmra.mrb[0].mxu0 %v1875
      %v2066 = vpop.f32.mrb[0].mxu0
      %v2067 = vadd.f32 %v1762, %v2066
      %v2068 = vpop.f32.mrb[0].mxu0
      %v2069 = vpop.f32.mrb[0].mxu0
      %v2070 = vadd.f32 %v1765, %v2069
      %v2071 = vpop.f32.mrb[0].mxu0
      %2072 = vmatprep.mubr.bf16.mxu0 0
      %2073 = vmatmul.mubr.bf16.gmra.mrb[0].mxu0 %v1876
      %v2074 = vpop.f32.mrb[0].mxu0
      %v2075 = vadd.f32 %v1770, %v2074
      %v2076 = vpop.f32.mrb[0].mxu0
      %v2077 = vpop.f32.mrb[0].mxu0
      %v2078 = vadd.f32 %v1773, %v2077
      %v2079 = vpop.f32.mrb[0].mxu0
      %2080 = vmatprep.mubr.bf16.mxu0 0
      %2081 = vmatmul.mubr.bf16.gmra.mrb[0].mxu0 %v1877
      %v2082 = vpop.f32.mrb[0].mxu0
      %v2083 = vadd.f32 %v1778, %v2082
      %v2084 = vpop.f32.mrb[0].mxu0
      %v2085 = vpop.f32.mrb[0].mxu0
      %v2086 = vadd.f32 %v1781, %v2085
      %v2087 = vpop.f32.mrb[0].mxu0
      %2088 = vmatprep.mubr.bf16.mxu0 0
      %2089 = vmatmul.mubr.bf16.gmra.mrb[0].mxu0 %v1878
      %v2090 = vpop.f32.mrb[0].mxu0
      %v2091 = vadd.f32 %v1786, %v2090
      %v2092 = vpop.f32.mrb[0].mxu0
      %v2093 = vpop.f32.mrb[0].mxu0
      %v2094 = vadd.f32 %v1789, %v2093
      %v2095 = vpop.f32.mrb[0].mxu0
      %2096 = vmatprep.mubr.bf16.mxu0 0
      %2097 = vmatmul.mubr.bf16.gmra.mrb[0].mxu0 %v1879
      %v2098 = vpop.f32.mrb[0].mxu0
      %v2099 = vadd.f32 %v1794, %v2098
      %v2100 = vpop.f32.mrb[0].mxu0
      %v2101 = vpop.f32.mrb[0].mxu0
      %v2102 = vadd.f32 %v1797, %v2101
      %v2103 = vpop.f32.mrb[0].mxu0
      %2104 = vdwg.mxu0
      %v2105 = vld [vmem:[#allocation2] sm:$0xe]
      %v2106 = vld [vmem:[#allocation2 + $0xc] sm:$0xe]
      %v2107 = vld [vmem:[#allocation2 + $0x18] sm:$0xe]
      %v2108 = vld [vmem:[#allocation2 + $0x24] sm:$0xe]
      %v2109 = vld [vmem:[#allocation2 + $0x30] sm:$0xe]
      %v2110 = vld [vmem:[#allocation2 + $0x3c] sm:$0xe]
      %v2111 = vld [vmem:[#allocation2 + $0x48] sm:$0xe]
      %v2112 = vld [vmem:[#allocation2 + $0x54] sm:$0xe]
      %v2113 = vld [vmem:[#allocation2 + $0x60] sm:$0xe]
      %v2114 = vld [vmem:[#allocation2 + $0x6c] sm:$0xe]
      %v2115 = vld [vmem:[#allocation2 + $0x78] sm:$0xe]
      %v2116 = vld [vmem:[#allocation2 + $0x84] sm:$0xe]
      %v2117 = vld [vmem:[#allocation2 + $0x90] sm:$0xe]
      %v2118 = vld [vmem:[#allocation2 + $0x9c] sm:$0xe]
      %v2119 = vld [vmem:[#allocation2 + $0xa8] sm:$0xe]
      %v2120 = vld [vmem:[#allocation2 + $0xb4] sm:$0xe]
      %vm2153 = vcmask 1042432
      %vm2154 = vcmask 1046532
      %vm2155 = vmor %vm2153, %vm2154
      %v2156 = vrot.slane %v2105, 5
      %v2157 = vrot.slane %v2156, 4
      %v2158 = vrot.slane %v1060, 5
      %v2159 = vsel %vm2155, %v2157, %v2158
      %v2160 = vrot.slane %v2158, 4
      %v2161 = vrot.slane %v1107, 5
      %v2162 = vsel %vm2155, %v2160, %v2161
      %v2163 = vrot.slane %v2106, 5
      %v2164 = vrot.slane %v2163, 4
      %v2165 = vrot.slane %v1062, 5
      %v2166 = vsel %vm2155, %v2164, %v2165
      %v2167 = vrot.slane %v2165, 4
      %v2168 = vrot.slane %v1108, 5
      %v2169 = vsel %vm2155, %v2167, %v2168
      %v2170 = vrot.slane %v2107, 5
      %v2171 = vrot.slane %v2170, 4
      %v2172 = vrot.slane %v1064, 5
      %v2173 = vsel %vm2155, %v2171, %v2172
      %v2174 = vrot.slane %v2172, 4
      %v2175 = vrot.slane %v1109, 5
      %v2176 = vsel %vm2155, %v2174, %v2175
      %v2177 = vrot.slane %v2108, 5
      %v2178 = vrot.slane %v2177, 4
      %v2179 = vrot.slane %v1066, 5
      %v2180 = vsel %vm2155, %v2178, %v2179
      %v2181 = vrot.slane %v2179, 4
      %v2182 = vrot.slane %v1110, 5
      %v2183 = vsel %vm2155, %v2181, %v2182
      %v2184 = vrot.slane %v2109, 5
      %v2185 = vrot.slane %v2184, 4
      %v2186 = vrot.slane %v1068, 5
      %v2187 = vsel %vm2155, %v2185, %v2186
      %v2188 = vrot.slane %v2186, 4
      %v2189 = vrot.slane %v1111, 5
      %v2190 = vsel %vm2155, %v2188, %v2189
      %v2191 = vrot.slane %v2110, 5
      %v2192 = vrot.slane %v2191, 4
      %v2193 = vrot.slane %v1070, 5
      %v2194 = vsel %vm2155, %v2192, %v2193
      %v2195 = vrot.slane %v2193, 4
      %v2196 = vrot.slane %v1112, 5
      %v2197 = vsel %vm2155, %v2195, %v2196
      %v2198 = vrot.slane %v2111, 5
      %v2199 = vrot.slane %v2198, 4
      %v2200 = vrot.slane %v1072, 5
      %v2201 = vsel %vm2155, %v2199, %v2200
      %v2202 = vrot.slane %v2200, 4
      %v2203 = vrot.slane %v1113, 5
      %v2204 = vsel %vm2155, %v2202, %v2203
      %v2205 = vrot.slane %v2112, 5
      %v2206 = vrot.slane %v2205, 4
      %v2207 = vrot.slane %v1074, 5
      %v2208 = vsel %vm2155, %v2206, %v2207
      %v2209 = vrot.slane %v2207, 4
      %v2210 = vrot.slane %v1114, 5
      %v2211 = vsel %vm2155, %v2209, %v2210
      %v2212 = vrot.slane %v2113, 5
      %v2213 = vrot.slane %v2212, 4
      %v2214 = vrot.slane %v1076, 5
      %v2215 = vsel %vm2155, %v2213, %v2214
      %v2216 = vrot.slane %v2214, 4
      %v2217 = vrot.slane %v1115, 5
      %v2218 = vsel %vm2155, %v2216, %v2217
      %v2219 = vrot.slane %v2114, 5
      %v2220 = vrot.slane %v2219, 4
      %v2221 = vrot.slane %v1078, 5
      %v2222 = vsel %vm2155, %v2220, %v2221
      %v2223 = vrot.slane %v2221, 4
      %v2224 = vrot.slane %v1116, 5
      %v2225 = vsel %vm2155, %v2223, %v2224
      %v2226 = vrot.slane %v2115, 5
      %v2227 = vrot.slane %v2226, 4
      %v2228 = vrot.slane %v1080, 5
      %v2229 = vsel %vm2155, %v2227, %v2228
      %v2230 = vrot.slane %v2228, 4
      %v2231 = vrot.slane %v1117, 5
      %v2232 = vsel %vm2155, %v2230, %v2231
      %v2233 = vrot.slane %v2116, 5
      %v2234 = vrot.slane %v2233, 4
      %v2235 = vrot.slane %v1082, 5
      %v2236 = vsel %vm2155, %v2234, %v2235
      %v2237 = vrot.slane %v2235, 4
      %v2238 = vrot.slane %v1118, 5
      %v2239 = vsel %vm2155, %v2237, %v2238
      %v2240 = vrot.slane %v2117, 5
      %v2241 = vrot.slane %v2240, 4
      %v2242 = vrot.slane %v1084, 5
      %v2243 = vsel %vm2155, %v2241, %v2242
      %v2244 = vrot.slane %v2242, 4
      %v2245 = vrot.slane %v1119, 5
      %v2246 = vsel %vm2155, %v2244, %v2245
      %v2247 = vrot.slane %v2118, 5
      %v2248 = vrot.slane %v2247, 4
      %v2249 = vrot.slane %v1086, 5
      %v2250 = vsel %vm2155, %v2248, %v2249
      %v2251 = vrot.slane %v2249, 4
      %v2252 = vrot.slane %v1120, 5
      %v2253 = vsel %vm2155, %v2251, %v2252
      %v2254 = vrot.slane %v2119, 5
      %v2255 = vrot.slane %v2254, 4
      %v2256 = vrot.slane %v1088, 5
      %v2257 = vsel %vm2155, %v2255, %v2256
      %v2258 = vrot.slane %v2256, 4
      %v2259 = vrot.slane %v1121, 5
      %v2260 = vsel %vm2155, %v2258, %v2259
      %v2261 = vrot.slane %v2120, 5
      %v2262 = vrot.slane %v2261, 4
      %v2263 = vrot.slane %v1090, 5
      %v2264 = vsel %vm2155, %v2262, %v2263
      %v2265 = vrot.slane %v2263, 4
      %v2266 = vrot.slane %v1122, 5
      %v2267 = vsel %vm2155, %v2265, %v2266
      %s2268 = scalar_lea.vmem %s4, 128
      %v2269 = vld [vmem:[%s2268] sm:$0xf]
      %v2270 = vld [vmem:[%s2268 + $0x4] sm:$0xf]
      %v2271 = vld [vmem:[%s2268 + $0x8] sm:$0xf]
      %v2272 = vld [vmem:[%s2268 + $0xc] sm:$0xf]
      %v2273 = vld [vmem:[%s2268 + $0x10] sm:$0xf]
      %v2274 = vld [vmem:[%s2268 + $0x14] sm:$0xf]
      %v2275 = vld [vmem:[%s2268 + $0x18] sm:$0xf]
      %v2276 = vld [vmem:[%s2268 + $0x1c] sm:$0xf]
      %v2277 = vld [vmem:[%s2268 + $0x20] sm:$0xf]
      %v2278 = vld [vmem:[%s2268 + $0x24] sm:$0xf]
      %v2279 = vld [vmem:[%s2268 + $0x28] sm:$0xf]
      %v2280 = vld [vmem:[%s2268 + $0x2c] sm:$0xf]
      %v2281 = vld [vmem:[%s2268 + $0x30] sm:$0xf]
      %v2282 = vld [vmem:[%s2268 + $0x34] sm:$0xf]
      %v2283 = vld [vmem:[%s2268 + $0x38] sm:$0xf]
      %v2284 = vld [vmem:[%s2268 + $0x3c] sm:$0xf]
      %v2285 = vunpack.c.l.b16 %v2159
      %v2286 = vunpack.c.l.b16 %v2162
      %v2287 = vunpack.c.l.b16 %v2166
      %v2288 = vunpack.c.l.b16 %v2169
      %v2289 = vunpack.c.l.b16 %v2173
      %v2290 = vunpack.c.l.b16 %v2176
      %v2291 = vunpack.c.l.b16 %v2180
      %v2292 = vunpack.c.l.b16 %v2183
      %v2293 = vunpack.c.l.b16 %v2187
      %v2294 = vunpack.c.l.b16 %v2190
      %v2295 = vunpack.c.l.b16 %v2194
      %v2296 = vunpack.c.l.b16 %v2197
      %v2297 = vunpack.c.l.b16 %v2201
      %v2298 = vunpack.c.l.b16 %v2204
      %v2299 = vunpack.c.l.b16 %v2208
      %v2300 = vunpack.c.l.b16 %v2211
      %v2301 = vunpack.c.l.b16 %v2215
      %v2302 = vunpack.c.l.b16 %v2218
      %v2303 = vunpack.c.l.b16 %v2222
      %v2304 = vunpack.c.l.b16 %v2225
      %v2305 = vunpack.c.l.b16 %v2229
      %v2306 = vunpack.c.l.b16 %v2232
      %v2307 = vunpack.c.l.b16 %v2236
      %v2308 = vunpack.c.l.b16 %v2239
      %v2309 = vunpack.c.l.b16 %v2243
      %v2310 = vunpack.c.l.b16 %v2246
      %v2311 = vunpack.c.l.b16 %v2250
      %v2312 = vunpack.c.l.b16 %v2253
      %v2313 = vunpack.c.l.b16 %v2257
      %v2314 = vunpack.c.l.b16 %v2260
      %v2315 = vunpack.c.l.b16 %v2264
      %v2316 = vunpack.c.l.b16 %v2267
      %v2317 = vpack.c.b16 %v2286, %v2285
      %v2318 = vpack.c.b16 %v2288, %v2287
      %v2319 = vpack.c.b16 %v2290, %v2289
      %v2320 = vpack.c.b16 %v2292, %v2291
      %v2321 = vpack.c.b16 %v2294, %v2293
      %v2322 = vpack.c.b16 %v2296, %v2295
      %v2323 = vpack.c.b16 %v2298, %v2297
      %v2324 = vpack.c.b16 %v2300, %v2299
      %v2325 = vpack.c.b16 %v2302, %v2301
      %v2326 = vpack.c.b16 %v2304, %v2303
      %v2327 = vpack.c.b16 %v2306, %v2305
      %v2328 = vpack.c.b16 %v2308, %v2307
      %v2329 = vpack.c.b16 %v2310, %v2309
      %v2330 = vpack.c.b16 %v2312, %v2311
      %v2331 = vpack.c.b16 %v2314, %v2313
      %v2332 = vpack.c.b16 %v2316, %v2315
      %v2365 = vunpack.c.l.b16 %v2269
      %v2366 = vunpack.c.l.b16 %v2270
      %v2367 = vunpack.c.l.b16 %v2271
      %v2368 = vunpack.c.l.b16 %v2272
      %v2369 = vunpack.c.l.b16 %v2273
      %v2370 = vunpack.c.l.b16 %v2274
      %v2371 = vunpack.c.l.b16 %v2275
      %v2372 = vunpack.c.l.b16 %v2276
      %v2373 = vunpack.c.l.b16 %v2277
      %v2374 = vunpack.c.l.b16 %v2278
      %v2375 = vunpack.c.l.b16 %v2279
      %v2376 = vunpack.c.l.b16 %v2280
      %v2377 = vunpack.c.l.b16 %v2281
      %v2378 = vunpack.c.l.b16 %v2282
      %v2379 = vunpack.c.l.b16 %v2283
      %v2380 = vunpack.c.l.b16 %v2284
      %v2381 = vpack.c.b16 %v2366, %v2365
      %v2382 = vpack.c.b16 %v2368, %v2367
      %v2383 = vpack.c.b16 %v2370, %v2369
      %v2384 = vpack.c.b16 %v2372, %v2371
      %v2385 = vpack.c.b16 %v2374, %v2373
      %v2386 = vpack.c.b16 %v2376, %v2375
      %v2387 = vpack.c.b16 %v2378, %v2377
      %v2388 = vpack.c.b16 %v2380, %v2379
      %2397 = vmatprep.subr.bf16.mxu0 0
      %2398 = vmatpush1.bf16.msra.mxu0 %v2381
      %2399 = vmatprep.subr.bf16.mxu0 0
      %2400 = vmatpush1.bf16.msra.mxu0 %v2382
      %2401 = vmatprep.subr.bf16.mxu0 0
      %2402 = vmatpush1.bf16.msra.mxu0 %v2383
      %2403 = vmatprep.subr.bf16.mxu0 0
      %2404 = vmatpush1.bf16.msra.mxu0 %v2384
      %2405 = vmatprep.subr.bf16.mxu0 0
      %2406 = vmatpush1.bf16.msra.mxu0 %v2385
      %2407 = vmatprep.subr.bf16.mxu0 0
      %2408 = vmatpush1.bf16.msra.mxu0 %v2386
      %2409 = vmatprep.subr.bf16.mxu0 0
      %2410 = vmatpush1.bf16.msra.mxu0 %v2387
      %2411 = vmatprep.subr.bf16.mxu0 0
      %2412 = vmatpush1.bf16.msra.mxu0 %v2388
      %2413 = vmatprep.subr.bf16.mxu0 0
      %2414 = vmatpush1.bf16.msra.mxu0 0
      %2415 = vmatprep.subr.bf16.mxu0 0
      %2416 = vmatpush1.bf16.msra.mxu0 0
      %2417 = vmatprep.subr.bf16.mxu0 0
      %2418 = vmatpush1.bf16.msra.mxu0 0
      %2419 = vmatprep.subr.bf16.mxu0 0
      %2420 = vmatpush1.bf16.msra.mxu0 0
      %2421 = vmatprep.subr.bf16.mxu0 0
      %2422 = vmatpush1.bf16.msra.mxu0 0
      %2423 = vmatprep.subr.bf16.mxu0 0
      %2424 = vmatpush1.bf16.msra.mxu0 0
      %2425 = vmatprep.subr.bf16.mxu0 0
      %2426 = vmatpush1.bf16.msra.mxu0 0
      %2427 = vmatprep.subr.bf16.mxu0 0
      %2428 = vmatpush1.bf16.msra.mxu0 0
      %2429 = vmatprep.mubr.bf16.mxu0 0
      %2430 = vmatmul.mubr.bf16.gmra.mrb[0].mxu0 %v2317
      %v2431 = vpop.f32.mrb[0].mxu0
      %v2432 = vadd.f32 0.0, %v2431
      %v2433 = vpop.f32.mrb[0].mxu0
      %v2434 = vpop.f32.mrb[0].mxu0
      %v2435 = vadd.f32 0.0, %v2434
      %v2436 = vpop.f32.mrb[0].mxu0
      %2437 = vmatprep.mubr.bf16.mxu0 0
      %2438 = vmatmul.mubr.bf16.gmra.mrb[0].mxu0 %v2318
      %v2439 = vpop.f32.mrb[0].mxu0
      %v2440 = vadd.f32 0.0, %v2439
      %v2441 = vpop.f32.mrb[0].mxu0
      %v2442 = vpop.f32.mrb[0].mxu0
      %v2443 = vadd.f32 0.0, %v2442
      %v2444 = vpop.f32.mrb[0].mxu0
      %2445 = vmatprep.mubr.bf16.mxu0 0
      %2446 = vmatmul.mubr.bf16.gmra.mrb[0].mxu0 %v2319
      %v2447 = vpop.f32.mrb[0].mxu0
      %v2448 = vadd.f32 0.0, %v2447
      %v2449 = vpop.f32.mrb[0].mxu0
      %v2450 = vpop.f32.mrb[0].mxu0
      %v2451 = vadd.f32 0.0, %v2450
      %v2452 = vpop.f32.mrb[0].mxu0
      %2453 = vmatprep.mubr.bf16.mxu0 0
      %2454 = vmatmul.mubr.bf16.gmra.mrb[0].mxu0 %v2320
      %v2455 = vpop.f32.mrb[0].mxu0
      %v2456 = vadd.f32 0.0, %v2455
      %v2457 = vpop.f32.mrb[0].mxu0
      %v2458 = vpop.f32.mrb[0].mxu0
      %v2459 = vadd.f32 0.0, %v2458
      %v2460 = vpop.f32.mrb[0].mxu0
      %2461 = vmatprep.mubr.bf16.mxu0 0
      %2462 = vmatmul.mubr.bf16.gmra.mrb[0].mxu0 %v2321
      %v2463 = vpop.f32.mrb[0].mxu0
      %v2464 = vadd.f32 0.0, %v2463
      %v2465 = vpop.f32.mrb[0].mxu0
      %v2466 = vpop.f32.mrb[0].mxu0
      %v2467 = vadd.f32 0.0, %v2466
      %v2468 = vpop.f32.mrb[0].mxu0
      %2469 = vmatprep.mubr.bf16.mxu0 0
      %2470 = vmatmul.mubr.bf16.gmra.mrb[0].mxu0 %v2322
      %v2471 = vpop.f32.mrb[0].mxu0
      %v2472 = vadd.f32 0.0, %v2471
      %v2473 = vpop.f32.mrb[0].mxu0
      %v2474 = vpop.f32.mrb[0].mxu0
      %v2475 = vadd.f32 0.0, %v2474
      %v2476 = vpop.f32.mrb[0].mxu0
      %2477 = vmatprep.mubr.bf16.mxu0 0
      %2478 = vmatmul.mubr.bf16.gmra.mrb[0].mxu0 %v2323
      %v2479 = vpop.f32.mrb[0].mxu0
      %v2480 = vadd.f32 0.0, %v2479
      %v2481 = vpop.f32.mrb[0].mxu0
      %v2482 = vpop.f32.mrb[0].mxu0
      %v2483 = vadd.f32 0.0, %v2482
      %v2484 = vpop.f32.mrb[0].mxu0
      %2485 = vmatprep.mubr.bf16.mxu0 0
      %2486 = vmatmul.mubr.bf16.gmra.mrb[0].mxu0 %v2324
      %v2487 = vpop.f32.mrb[0].mxu0
      %v2488 = vadd.f32 0.0, %v2487
      %v2489 = vpop.f32.mrb[0].mxu0
      %v2490 = vpop.f32.mrb[0].mxu0
      %v2491 = vadd.f32 0.0, %v2490
      %v2492 = vpop.f32.mrb[0].mxu0
      %2493 = vmatprep.mubr.bf16.mxu0 0
      %2494 = vmatmul.mubr.bf16.gmra.mrb[0].mxu0 %v2325
      %v2495 = vpop.f32.mrb[0].mxu0
      %v2496 = vadd.f32 0.0, %v2495
      %v2497 = vpop.f32.mrb[0].mxu0
      %v2498 = vpop.f32.mrb[0].mxu0
      %v2499 = vadd.f32 0.0, %v2498
      %v2500 = vpop.f32.mrb[0].mxu0
      %2501 = vmatprep.mubr.bf16.mxu0 0
      %2502 = vmatmul.mubr.bf16.gmra.mrb[0].mxu0 %v2326
      %v2503 = vpop.f32.mrb[0].mxu0
      %v2504 = vadd.f32 0.0, %v2503
      %v2505 = vpop.f32.mrb[0].mxu0
      %v2506 = vpop.f32.mrb[0].mxu0
      %v2507 = vadd.f32 0.0, %v2506
      %v2508 = vpop.f32.mrb[0].mxu0
      %2509 = vmatprep.mubr.bf16.mxu0 0
      %2510 = vmatmul.mubr.bf16.gmra.mrb[0].mxu0 %v2327
      %v2511 = vpop.f32.mrb[0].mxu0
      %v2512 = vadd.f32 0.0, %v2511
      %v2513 = vpop.f32.mrb[0].mxu0
      %v2514 = vpop.f32.mrb[0].mxu0
      %v2515 = vadd.f32 0.0, %v2514
      %v2516 = vpop.f32.mrb[0].mxu0
      %2517 = vmatprep.mubr.bf16.mxu0 0
      %2518 = vmatmul.mubr.bf16.gmra.mrb[0].mxu0 %v2328
      %v2519 = vpop.f32.mrb[0].mxu0
      %v2520 = vadd.f32 0.0, %v2519
      %v2521 = vpop.f32.mrb[0].mxu0
      %v2522 = vpop.f32.mrb[0].mxu0
      %v2523 = vadd.f32 0.0, %v2522
      %v2524 = vpop.f32.mrb[0].mxu0
      %2525 = vmatprep.mubr.bf16.mxu0 0
      %2526 = vmatmul.mubr.bf16.gmra.mrb[0].mxu0 %v2329
      %v2527 = vpop.f32.mrb[0].mxu0
      %v2528 = vadd.f32 0.0, %v2527
      %v2529 = vpop.f32.mrb[0].mxu0
      %v2530 = vpop.f32.mrb[0].mxu0
      %v2531 = vadd.f32 0.0, %v2530
      %v2532 = vpop.f32.mrb[0].mxu0
      %2533 = vmatprep.mubr.bf16.mxu0 0
      %2534 = vmatmul.mubr.bf16.gmra.mrb[0].mxu0 %v2330
      %v2535 = vpop.f32.mrb[0].mxu0
      %v2536 = vadd.f32 0.0, %v2535
      %v2537 = vpop.f32.mrb[0].mxu0
      %v2538 = vpop.f32.mrb[0].mxu0
      %v2539 = vadd.f32 0.0, %v2538
      %v2540 = vpop.f32.mrb[0].mxu0
      %2541 = vmatprep.mubr.bf16.mxu0 0
      %2542 = vmatmul.mubr.bf16.gmra.mrb[0].mxu0 %v2331
      %v2543 = vpop.f32.mrb[0].mxu0
      %v2544 = vadd.f32 0.0, %v2543
      %v2545 = vpop.f32.mrb[0].mxu0
      %v2546 = vpop.f32.mrb[0].mxu0
      %v2547 = vadd.f32 0.0, %v2546
      %v2548 = vpop.f32.mrb[0].mxu0
      %2549 = vmatprep.mubr.bf16.mxu0 0
      %2550 = vmatmul.mubr.bf16.gmra.mrb[0].mxu0 %v2332
      %v2551 = vpop.f32.mrb[0].mxu0
      %v2552 = vadd.f32 0.0, %v2551
      %v2553 = vpop.f32.mrb[0].mxu0
      %v2554 = vpop.f32.mrb[0].mxu0
      %v2555 = vadd.f32 0.0, %v2554
      %v2556 = vpop.f32.mrb[0].mxu0
      %2557 = vdwg.mxu0
      %v2558 = vadd.f32 %v1979, %v2432
      %v2559 = vadd.f32 %v1982, %v2435
      %v2560 = vadd.f32 %v1987, %v2440
      %v2561 = vadd.f32 %v1990, %v2443
      %v2562 = vadd.f32 %v1995, %v2448
      %v2563 = vadd.f32 %v1998, %v2451
      %v2564 = vadd.f32 %v2003, %v2456
      %v2565 = vadd.f32 %v2006, %v2459
      %v2566 = vadd.f32 %v2011, %v2464
      %v2567 = vadd.f32 %v2014, %v2467
      %v2568 = vadd.f32 %v2019, %v2472
      %v2569 = vadd.f32 %v2022, %v2475
      %v2570 = vadd.f32 %v2027, %v2480
      %v2571 = vadd.f32 %v2030, %v2483
      %v2572 = vadd.f32 %v2035, %v2488
      %v2573 = vadd.f32 %v2038, %v2491
      %v2574 = vadd.f32 %v2043, %v2496
      %v2575 = vadd.f32 %v2046, %v2499
      %v2576 = vadd.f32 %v2051, %v2504
      %v2577 = vadd.f32 %v2054, %v2507
      %v2578 = vadd.f32 %v2059, %v2512
      %v2579 = vadd.f32 %v2062, %v2515
      %v2580 = vadd.f32 %v2067, %v2520
      %v2581 = vadd.f32 %v2070, %v2523
      %v2582 = vadd.f32 %v2075, %v2528
      %v2583 = vadd.f32 %v2078, %v2531
      %v2584 = vadd.f32 %v2083, %v2536
      %v2585 = vadd.f32 %v2086, %v2539
      %v2586 = vadd.f32 %v2091, %v2544
      %v2587 = vadd.f32 %v2094, %v2547
      %v2588 = vadd.f32 %v2099, %v2552
      %v2589 = vadd.f32 %v2102, %v2555
      %v2590 = vld [vmem:[%s941] sm:$0xf]
      %v2591 = vld [vmem:[%s941 + $0x4] sm:$0xf]
      %v2592 = vld [vmem:[%s941 + $0xc] sm:$0xf]
      %v2593 = vld [vmem:[%s941 + $0x10] sm:$0xf]
      %v2594 = vld [vmem:[%s941 + $0x18] sm:$0xf]
      %v2595 = vld [vmem:[%s941 + $0x1c] sm:$0xf]
      %v2596 = vld [vmem:[%s941 + $0x24] sm:$0xf]
      %v2597 = vld [vmem:[%s941 + $0x28] sm:$0xf]
      %v2598 = vld [vmem:[%s941 + $0x30] sm:$0xf]
      %v2599 = vld [vmem:[%s941 + $0x34] sm:$0xf]
      %v2600 = vld [vmem:[%s941 + $0x3c] sm:$0xf]
      %v2601 = vld [vmem:[%s941 + $0x40] sm:$0xf]
      %v2602 = vld [vmem:[%s941 + $0x48] sm:$0xf]
      %v2603 = vld [vmem:[%s941 + $0x4c] sm:$0xf]
      %v2604 = vld [vmem:[%s941 + $0x54] sm:$0xf]
      %v2605 = vld [vmem:[%s941 + $0x58] sm:$0xf]
      %v2606 = vld [vmem:[%s941 + $0x60] sm:$0xf]
      %v2607 = vld [vmem:[%s941 + $0x64] sm:$0xf]
      %v2608 = vld [vmem:[%s941 + $0x6c] sm:$0xf]
      %v2609 = vld [vmem:[%s941 + $0x70] sm:$0xf]
      %v2610 = vld [vmem:[%s941 + $0x78] sm:$0xf]
      %v2611 = vld [vmem:[%s941 + $0x7c] sm:$0xf]
      %v2612 = vld [vmem:[%s941 + $0x84] sm:$0xf]
      %v2613 = vld [vmem:[%s941 + $0x88] sm:$0xf]
      %v2614 = vld [vmem:[%s941 + $0x90] sm:$0xf]
      %v2615 = vld [vmem:[%s941 + $0x94] sm:$0xf]
      %v2616 = vld [vmem:[%s941 + $0x9c] sm:$0xf]
      %v2617 = vld [vmem:[%s941 + $0xa0] sm:$0xf]
      %v2618 = vld [vmem:[%s941 + $0xa8] sm:$0xf]
      %v2619 = vld [vmem:[%s941 + $0xac] sm:$0xf]
      %v2620 = vld [vmem:[%s941 + $0xb4] sm:$0xf]
      %v2621 = vld [vmem:[%s941 + $0xb8] sm:$0xf]
      %s2622 = scalar_lea.vmem %s4, 192
      %v2623 = vld [vmem:[%s2622] sm:$0xf]
      %v2624 = vld [vmem:[%s2622 + $0x4] sm:$0xf]
      %v2625 = vld [vmem:[%s2622 + $0x8] sm:$0xf]
      %v2626 = vld [vmem:[%s2622 + $0xc] sm:$0xf]
      %v2627 = vld [vmem:[%s2622 + $0x10] sm:$0xf]
      %v2628 = vld [vmem:[%s2622 + $0x14] sm:$0xf]
      %v2629 = vld [vmem:[%s2622 + $0x18] sm:$0xf]
      %v2630 = vld [vmem:[%s2622 + $0x1c] sm:$0xf]
      %v2631 = vld [vmem:[%s2622 + $0x20] sm:$0xf]
      %v2632 = vld [vmem:[%s2622 + $0x24] sm:$0xf]
      %v2633 = vld [vmem:[%s2622 + $0x28] sm:$0xf]
      %v2634 = vld [vmem:[%s2622 + $0x2c] sm:$0xf]
      %v2635 = vld [vmem:[%s2622 + $0x30] sm:$0xf]
      %v2636 = vld [vmem:[%s2622 + $0x34] sm:$0xf]
      %v2637 = vld [vmem:[%s2622 + $0x38] sm:$0xf]
      %v2638 = vld [vmem:[%s2622 + $0x3c] sm:$0xf]
      %v2671 = vunpack.c.l.b16 %v2590
      %v2672 = vunpack.c.l.b16 %v2591
      %v2673 = vunpack.c.l.b16 %v2592
      %v2674 = vunpack.c.l.b16 %v2593
      %v2675 = vunpack.c.l.b16 %v2594
      %v2676 = vunpack.c.l.b16 %v2595
      %v2677 = vunpack.c.l.b16 %v2596
      %v2678 = vunpack.c.l.b16 %v2597
      %v2679 = vunpack.c.l.b16 %v2598
      %v2680 = vunpack.c.l.b16 %v2599
      %v2681 = vunpack.c.l.b16 %v2600
      %v2682 = vunpack.c.l.b16 %v2601
      %v2683 = vunpack.c.l.b16 %v2602
      %v2684 = vunpack.c.l.b16 %v2603
      %v2685 = vunpack.c.l.b16 %v2604
      %v2686 = vunpack.c.l.b16 %v2605
      %v2687 = vunpack.c.l.b16 %v2606
      %v2688 = vunpack.c.l.b16 %v2607
      %v2689 = vunpack.c.l.b16 %v2608
      %v2690 = vunpack.c.l.b16 %v2609
      %v2691 = vunpack.c.l.b16 %v2610
      %v2692 = vunpack.c.l.b16 %v2611
      %v2693 = vunpack.c.l.b16 %v2612
      %v2694 = vunpack.c.l.b16 %v2613
      %v2695 = vunpack.c.l.b16 %v2614
      %v2696 = vunpack.c.l.b16 %v2615
      %v2697 = vunpack.c.l.b16 %v2616
      %v2698 = vunpack.c.l.b16 %v2617
      %v2699 = vunpack.c.l.b16 %v2618
      %v2700 = vunpack.c.l.b16 %v2619
      %v2701 = vunpack.c.l.b16 %v2620
      %v2702 = vunpack.c.l.b16 %v2621
      %v2703 = vpack.c.b16 %v2672, %v2671
      %v2704 = vpack.c.b16 %v2674, %v2673
      %v2705 = vpack.c.b16 %v2676, %v2675
      %v2706 = vpack.c.b16 %v2678, %v2677
      %v2707 = vpack.c.b16 %v2680, %v2679
      %v2708 = vpack.c.b16 %v2682, %v2681
      %v2709 = vpack.c.b16 %v2684, %v2683
      %v2710 = vpack.c.b16 %v2686, %v2685
      %v2711 = vpack.c.b16 %v2688, %v2687
      %v2712 = vpack.c.b16 %v2690, %v2689
      %v2713 = vpack.c.b16 %v2692, %v2691
      %v2714 = vpack.c.b16 %v2694, %v2693
      %v2715 = vpack.c.b16 %v2696, %v2695
      %v2716 = vpack.c.b16 %v2698, %v2697
      %v2717 = vpack.c.b16 %v2700, %v2699
      %v2718 = vpack.c.b16 %v2702, %v2701
      %v2751 = vunpack.c.l.b16 %v2623
      %v2752 = vunpack.c.l.b16 %v2624
      %v2753 = vunpack.c.l.b16 %v2625
      %v2754 = vunpack.c.l.b16 %v2626
      %v2755 = vunpack.c.l.b16 %v2627
      %v2756 = vunpack.c.l.b16 %v2628
      %v2757 = vunpack.c.l.b16 %v2629
      %v2758 = vunpack.c.l.b16 %v2630
      %v2759 = vunpack.c.l.b16 %v2631
      %v2760 = vunpack.c.l.b16 %v2632
      %v2761 = vunpack.c.l.b16 %v2633
      %v2762 = vunpack.c.l.b16 %v2634
      %v2763 = vunpack.c.l.b16 %v2635
      %v2764 = vunpack.c.l.b16 %v2636
      %v2765 = vunpack.c.l.b16 %v2637
      %v2766 = vunpack.c.l.b16 %v2638
      %v2767 = vpack.c.b16 %v2752, %v2751
      %v2768 = vpack.c.b16 %v2754, %v2753
      %v2769 = vpack.c.b16 %v2756, %v2755
      %v2770 = vpack.c.b16 %v2758, %v2757
      %v2771 = vpack.c.b16 %v2760, %v2759
      %v2772 = vpack.c.b16 %v2762, %v2761
      %v2773 = vpack.c.b16 %v2764, %v2763
      %v2774 = vpack.c.b16 %v2766, %v2765
      %2783 = vmatprep.subr.bf16.mxu0 0
      %2784 = vmatpush1.bf16.msra.mxu0 %v2767
      %2785 = vmatprep.subr.bf16.mxu0 0
      %2786 = vmatpush1.bf16.msra.mxu0 %v2768
      %2787 = vmatprep.subr.bf16.mxu0 0
      %2788 = vmatpush1.bf16.msra.mxu0 %v2769
      %2789 = vmatprep.subr.bf16.mxu0 0
      %2790 = vmatpush1.bf16.msra.mxu0 %v2770
      %2791 = vmatprep.subr.bf16.mxu0 0
      %2792 = vmatpush1.bf16.msra.mxu0 %v2771
      %2793 = vmatprep.subr.bf16.mxu0 0
      %2794 = vmatpush1.bf16.msra.mxu0 %v2772
      %2795 = vmatprep.subr.bf16.mxu0 0
      %2796 = vmatpush1.bf16.msra.mxu0 %v2773
      %2797 = vmatprep.subr.bf16.mxu0 0
      %2798 = vmatpush1.bf16.msra.mxu0 %v2774
      %2799 = vmatprep.subr.bf16.mxu0 0
      %2800 = vmatpush1.bf16.msra.mxu0 0
      %2801 = vmatprep.subr.bf16.mxu0 0
      %2802 = vmatpush1.bf16.msra.mxu0 0
      %2803 = vmatprep.subr.bf16.mxu0 0
      %2804 = vmatpush1.bf16.msra.mxu0 0
      %2805 = vmatprep.subr.bf16.mxu0 0
      %2806 = vmatpush1.bf16.msra.mxu0 0
      %2807 = vmatprep.subr.bf16.mxu0 0
      %2808 = vmatpush1.bf16.msra.mxu0 0
      %2809 = vmatprep.subr.bf16.mxu0 0
      %2810 = vmatpush1.bf16.msra.mxu0 0
      %2811 = vmatprep.subr.bf16.mxu0 0
      %2812 = vmatpush1.bf16.msra.mxu0 0
      %2813 = vmatprep.subr.bf16.mxu0 0
      %2814 = vmatpush1.bf16.msra.mxu0 0
      %2815 = vmatprep.mubr.bf16.mxu0 0
      %2816 = vmatmul.mubr.bf16.gmra.mrb[0].mxu0 %v2703
      %v2817 = vpop.f32.mrb[0].mxu0
      %v2818 = vadd.f32 0.0, %v2817
      %v2819 = vpop.f32.mrb[0].mxu0
      %v2820 = vpop.f32.mrb[0].mxu0
      %v2821 = vadd.f32 0.0, %v2820
      %v2822 = vpop.f32.mrb[0].mxu0
      %2823 = vmatprep.mubr.bf16.mxu0 0
      %2824 = vmatmul.mubr.bf16.gmra.mrb[0].mxu0 %v2704
      %v2825 = vpop.f32.mrb[0].mxu0
      %v2826 = vadd.f32 0.0, %v2825
      %v2827 = vpop.f32.mrb[0].mxu0
      %v2828 = vpop.f32.mrb[0].mxu0
      %v2829 = vadd.f32 0.0, %v2828
      %v2830 = vpop.f32.mrb[0].mxu0
      %2831 = vmatprep.mubr.bf16.mxu0 0
      %2832 = vmatmul.mubr.bf16.gmra.mrb[0].mxu0 %v2705
      %v2833 = vpop.f32.mrb[0].mxu0
      %v2834 = vadd.f32 0.0, %v2833
      %v2835 = vpop.f32.mrb[0].mxu0
      %v2836 = vpop.f32.mrb[0].mxu0
      %v2837 = vadd.f32 0.0, %v2836
      %v2838 = vpop.f32.mrb[0].mxu0
      %2839 = vmatprep.mubr.bf16.mxu0 0
      %2840 = vmatmul.mubr.bf16.gmra.mrb[0].mxu0 %v2706
      %v2841 = vpop.f32.mrb[0].mxu0
      %v2842 = vadd.f32 0.0, %v2841
      %v2843 = vpop.f32.mrb[0].mxu0
      %v2844 = vpop.f32.mrb[0].mxu0
      %v2845 = vadd.f32 0.0, %v2844
      %v2846 = vpop.f32.mrb[0].mxu0
      %2847 = vmatprep.mubr.bf16.mxu0 0
      %2848 = vmatmul.mubr.bf16.gmra.mrb[0].mxu0 %v2707
      %v2849 = vpop.f32.mrb[0].mxu0
      %v2850 = vadd.f32 0.0, %v2849
      %v2851 = vpop.f32.mrb[0].mxu0
      %v2852 = vpop.f32.mrb[0].mxu0
      %v2853 = vadd.f32 0.0, %v2852
      %v2854 = vpop.f32.mrb[0].mxu0
      %2855 = vmatprep.mubr.bf16.mxu0 0
      %2856 = vmatmul.mubr.bf16.gmra.mrb[0].mxu0 %v2708
      %v2857 = vpop.f32.mrb[0].mxu0
      %v2858 = vadd.f32 0.0, %v2857
      %v2859 = vpop.f32.mrb[0].mxu0
      %v2860 = vpop.f32.mrb[0].mxu0
      %v2861 = vadd.f32 0.0, %v2860
      %v2862 = vpop.f32.mrb[0].mxu0
      %2863 = vmatprep.mubr.bf16.mxu0 0
      %2864 = vmatmul.mubr.bf16.gmra.mrb[0].mxu0 %v2709
      %v2865 = vpop.f32.mrb[0].mxu0
      %v2866 = vadd.f32 0.0, %v2865
      %v2867 = vpop.f32.mrb[0].mxu0
      %v2868 = vpop.f32.mrb[0].mxu0
      %v2869 = vadd.f32 0.0, %v2868
      %v2870 = vpop.f32.mrb[0].mxu0
      %2871 = vmatprep.mubr.bf16.mxu0 0
      %2872 = vmatmul.mubr.bf16.gmra.mrb[0].mxu0 %v2710
      %v2873 = vpop.f32.mrb[0].mxu0
      %v2874 = vadd.f32 0.0, %v2873
      %v2875 = vpop.f32.mrb[0].mxu0
      %v2876 = vpop.f32.mrb[0].mxu0
      %v2877 = vadd.f32 0.0, %v2876
      %v2878 = vpop.f32.mrb[0].mxu0
      %2879 = vmatprep.mubr.bf16.mxu0 0
      %2880 = vmatmul.mubr.bf16.gmra.mrb[0].mxu0 %v2711
      %v2881 = vpop.f32.mrb[0].mxu0
      %v2882 = vadd.f32 0.0, %v2881
      %v2883 = vpop.f32.mrb[0].mxu0
      %v2884 = vpop.f32.mrb[0].mxu0
      %v2885 = vadd.f32 0.0, %v2884
      %v2886 = vpop.f32.mrb[0].mxu0
      %2887 = vmatprep.mubr.bf16.mxu0 0
      %2888 = vmatmul.mubr.bf16.gmra.mrb[0].mxu0 %v2712
      %v2889 = vpop.f32.mrb[0].mxu0
      %v2890 = vadd.f32 0.0, %v2889
      %v2891 = vpop.f32.mrb[0].mxu0
      %v2892 = vpop.f32.mrb[0].mxu0
      %v2893 = vadd.f32 0.0, %v2892
      %v2894 = vpop.f32.mrb[0].mxu0
      %2895 = vmatprep.mubr.bf16.mxu0 0
      %2896 = vmatmul.mubr.bf16.gmra.mrb[0].mxu0 %v2713
      %v2897 = vpop.f32.mrb[0].mxu0
      %v2898 = vadd.f32 0.0, %v2897
      %v2899 = vpop.f32.mrb[0].mxu0
      %v2900 = vpop.f32.mrb[0].mxu0
      %v2901 = vadd.f32 0.0, %v2900
      %v2902 = vpop.f32.mrb[0].mxu0
      %2903 = vmatprep.mubr.bf16.mxu0 0
      %2904 = vmatmul.mubr.bf16.gmra.mrb[0].mxu0 %v2714
      %v2905 = vpop.f32.mrb[0].mxu0
      %v2906 = vadd.f32 0.0, %v2905
      %v2907 = vpop.f32.mrb[0].mxu0
      %v2908 = vpop.f32.mrb[0].mxu0
      %v2909 = vadd.f32 0.0, %v2908
      %v2910 = vpop.f32.mrb[0].mxu0
      %2911 = vmatprep.mubr.bf16.mxu0 0
      %2912 = vmatmul.mubr.bf16.gmra.mrb[0].mxu0 %v2715
      %v2913 = vpop.f32.mrb[0].mxu0
      %v2914 = vadd.f32 0.0, %v2913
      %v2915 = vpop.f32.mrb[0].mxu0
      %v2916 = vpop.f32.mrb[0].mxu0
      %v2917 = vadd.f32 0.0, %v2916
      %v2918 = vpop.f32.mrb[0].mxu0
      %2919 = vmatprep.mubr.bf16.mxu0 0
      %2920 = vmatmul.mubr.bf16.gmra.mrb[0].mxu0 %v2716
      %v2921 = vpop.f32.mrb[0].mxu0
      %v2922 = vadd.f32 0.0, %v2921
      %v2923 = vpop.f32.mrb[0].mxu0
      %v2924 = vpop.f32.mrb[0].mxu0
      %v2925 = vadd.f32 0.0, %v2924
      %v2926 = vpop.f32.mrb[0].mxu0
      %2927 = vmatprep.mubr.bf16.mxu0 0
      %2928 = vmatmul.mubr.bf16.gmra.mrb[0].mxu0 %v2717
      %v2929 = vpop.f32.mrb[0].mxu0
      %v2930 = vadd.f32 0.0, %v2929
      %v2931 = vpop.f32.mrb[0].mxu0
      %v2932 = vpop.f32.mrb[0].mxu0
      %v2933 = vadd.f32 0.0, %v2932
      %v2934 = vpop.f32.mrb[0].mxu0
      %2935 = vmatprep.mubr.bf16.mxu0 0
      %2936 = vmatmul.mubr.bf16.gmra.mrb[0].mxu0 %v2718
      %v2937 = vpop.f32.mrb[0].mxu0
      %v2938 = vadd.f32 0.0, %v2937
      %v2939 = vpop.f32.mrb[0].mxu0
      %v2940 = vpop.f32.mrb[0].mxu0
      %v2941 = vadd.f32 0.0, %v2940
      %v2942 = vpop.f32.mrb[0].mxu0
      %2943 = vdwg.mxu0
      %v2944 = vadd.f32 %v2558, %v2818
      %v2945 = vadd.f32 %v2559, %v2821
      %v2946 = vadd.f32 %v2560, %v2826
      %v2947 = vadd.f32 %v2561, %v2829
      %v2948 = vadd.f32 %v2562, %v2834
      %v2949 = vadd.f32 %v2563, %v2837
      %v2950 = vadd.f32 %v2564, %v2842
      %v2951 = vadd.f32 %v2565, %v2845
      %v2952 = vadd.f32 %v2566, %v2850
      %v2953 = vadd.f32 %v2567, %v2853
      %v2954 = vadd.f32 %v2568, %v2858
      %v2955 = vadd.f32 %v2569, %v2861
      %v2956 = vadd.f32 %v2570, %v2866
      %v2957 = vadd.f32 %v2571, %v2869
      %v2958 = vadd.f32 %v2572, %v2874
      %v2959 = vadd.f32 %v2573, %v2877
      %v2960 = vadd.f32 %v2574, %v2882
      %v2961 = vadd.f32 %v2575, %v2885
      %v2962 = vadd.f32 %v2576, %v2890
      %v2963 = vadd.f32 %v2577, %v2893
      %v2964 = vadd.f32 %v2578, %v2898
      %v2965 = vadd.f32 %v2579, %v2901
      %v2966 = vadd.f32 %v2580, %v2906
      %v2967 = vadd.f32 %v2581, %v2909
      %v2968 = vadd.f32 %v2582, %v2914
      %v2969 = vadd.f32 %v2583, %v2917
      %v2970 = vadd.f32 %v2584, %v2922
      %v2971 = vadd.f32 %v2585, %v2925
      %v2972 = vadd.f32 %v2586, %v2930
      %v2973 = vadd.f32 %v2587, %v2933
      %v2974 = vadd.f32 %v2588, %v2938
      %v2975 = vadd.f32 %v2589, %v2941
      %v2976 = vld [vmem:[%s941] sm:$0xf]
      %v2977 = vld [vmem:[%s941 + $0x4] sm:$0xf]
      %v2978 = vld [vmem:[%s941 + $0x8] sm:$0x1]
      %v2979 = vld [vmem:[%s941 + $0xc] sm:$0xf]
      %v2980 = vld [vmem:[%s941 + $0x10] sm:$0xf]
      %v2981 = vld [vmem:[%s941 + $0x14] sm:$0x1]
      %v2982 = vld [vmem:[%s941 + $0x18] sm:$0xf]
      %v2983 = vld [vmem:[%s941 + $0x1c] sm:$0xf]
      %v2984 = vld [vmem:[%s941 + $0x20] sm:$0x1]
      %v2985 = vld [vmem:[%s941 + $0x24] sm:$0xf]
      %v2986 = vld [vmem:[%s941 + $0x28] sm:$0xf]
      %v2987 = vld [vmem:[%s941 + $0x2c] sm:$0x1]
      %v2988 = vld [vmem:[%s941 + $0x30] sm:$0xf]
      %v2989 = vld [vmem:[%s941 + $0x34] sm:$0xf]
      %v2990 = vld [vmem:[%s941 + $0x38] sm:$0x1]
      %v2991 = vld [vmem:[%s941 + $0x3c] sm:$0xf]
      %v2992 = vld [vmem:[%s941 + $0x40] sm:$0xf]
      %v2993 = vld [vmem:[%s941 + $0x44] sm:$0x1]
      %v2994 = vld [vmem:[%s941 + $0x48] sm:$0xf]
      %v2995 = vld [vmem:[%s941 + $0x4c] sm:$0xf]
      %v2996 = vld [vmem:[%s941 + $0x50] sm:$0x1]
      %v2997 = vld [vmem:[%s941 + $0x54] sm:$0xf]
      %v2998 = vld [vmem:[%s941 + $0x58] sm:$0xf]
      %v2999 = vld [vmem:[%s941 + $0x5c] sm:$0x1]
      %v3000 = vld [vmem:[%s941 + $0x60] sm:$0xf]
      %v3001 = vld [vmem:[%s941 + $0x64] sm:$0xf]
      %v3002 = vld [vmem:[%s941 + $0x68] sm:$0x1]
      %v3003 = vld [vmem:[%s941 + $0x6c] sm:$0xf]
      %v3004 = vld [vmem:[%s941 + $0x70] sm:$0xf]
      %v3005 = vld [vmem:[%s941 + $0x74] sm:$0x1]
      %v3006 = vld [vmem:[%s941 + $0x78] sm:$0xf]
      %v3007 = vld [vmem:[%s941 + $0x7c] sm:$0xf]
      %v3008 = vld [vmem:[%s941 + $0x80] sm:$0x1]
      %v3009 = vld [vmem:[%s941 + $0x84] sm:$0xf]
      %v3010 = vld [vmem:[%s941 + $0x88] sm:$0xf]
      %v3011 = vld [vmem:[%s941 + $0x8c] sm:$0x1]
      %v3012 = vld [vmem:[%s941 + $0x90] sm:$0xf]
      %v3013 = vld [vmem:[%s941 + $0x94] sm:$0xf]
      %v3014 = vld [vmem:[%s941 + $0x98] sm:$0x1]
      %v3015 = vld [vmem:[%s941 + $0x9c] sm:$0xf]
      %v3016 = vld [vmem:[%s941 + $0xa0] sm:$0xf]
      %v3017 = vld [vmem:[%s941 + $0xa4] sm:$0x1]
      %v3018 = vld [vmem:[%s941 + $0xa8] sm:$0xf]
      %v3019 = vld [vmem:[%s941 + $0xac] sm:$0xf]
      %v3020 = vld [vmem:[%s941 + $0xb0] sm:$0x1]
      %v3021 = vld [vmem:[%s941 + $0xb4] sm:$0xf]
      %v3022 = vld [vmem:[%s941 + $0xb8] sm:$0xf]
      %v3023 = vld [vmem:[%s941 + $0xbc] sm:$0x1]
      %v3025 = vshrl.u32 %v2976, 16
      %v3027 = vrot.slane %v3025, 4
      %v3028 = vshll.u32 %v2976, 16
      %v3030 = vrot.slane %v3028, 5
      %v3031 = vor.u32 %v3027, %v3030
      %v3032 = vrot.slane %v3031, 4
      %v3034 = vshll.u32 %v2977, 16
      %v3036 = vrot.slane %v3034, 5
      %v3037 = vsel %vm1125, %v3032, %v3036
      %v3038 = vshrl.u32 %v2977, 16
      %v3040 = vrot.slane %v3038, 4
      %v3041 = vor.u32 %v3040, %v3036
      %v3042 = vrot.slane %v3041, 4
      %v3044 = vshll.u32 %v2978, 16
      %v3046 = vrot.slane %v3044, 5
      %v3047 = vsel %vm1125, %v3042, %v3046
      %v3049 = vshrl.u32 %v2979, 16
      %v3051 = vrot.slane %v3049, 4
      %v3052 = vshll.u32 %v2979, 16
      %v3054 = vrot.slane %v3052, 5
      %v3055 = vor.u32 %v3051, %v3054
      %v3056 = vrot.slane %v3055, 4
      %v3058 = vshll.u32 %v2980, 16
      %v3060 = vrot.slane %v3058, 5
      %v3061 = vsel %vm1125, %v3056, %v3060
      %v3062 = vshrl.u32 %v2980, 16
      %v3064 = vrot.slane %v3062, 4
      %v3065 = vor.u32 %v3064, %v3060
      %v3066 = vrot.slane %v3065, 4
      %v3068 = vshll.u32 %v2981, 16
      %v3070 = vrot.slane %v3068, 5
      %v3071 = vsel %vm1125, %v3066, %v3070
      %v3073 = vshrl.u32 %v2982, 16
      %v3075 = vrot.slane %v3073, 4
      %v3076 = vshll.u32 %v2982, 16
      %v3078 = vrot.slane %v3076, 5
      %v3079 = vor.u32 %v3075, %v3078
      %v3080 = vrot.slane %v3079, 4
      %v3082 = vshll.u32 %v2983, 16
      %v3084 = vrot.slane %v3082, 5
      %v3085 = vsel %vm1125, %v3080, %v3084
      %v3086 = vshrl.u32 %v2983, 16
      %v3088 = vrot.slane %v3086, 4
      %v3089 = vor.u32 %v3088, %v3084
      %v3090 = vrot.slane %v3089, 4
      %v3092 = vshll.u32 %v2984, 16
      %v3094 = vrot.slane %v3092, 5
      %v3095 = vsel %vm1125, %v3090, %v3094
      %v3097 = vshrl.u32 %v2985, 16
      %v3099 = vrot.slane %v3097, 4
      %v3100 = vshll.u32 %v2985, 16
      %v3102 = vrot.slane %v3100, 5
      %v3103 = vor.u32 %v3099, %v3102
      %v3104 = vrot.slane %v3103, 4
      %v3106 = vshll.u32 %v2986, 16
      %v3108 = vrot.slane %v3106, 5
      %v3109 = vsel %vm1125, %v3104, %v3108
      %v3110 = vshrl.u32 %v2986, 16
      %v3112 = vrot.slane %v3110, 4
      %v3113 = vor.u32 %v3112, %v3108
      %v3114 = vrot.slane %v3113, 4
      %v3116 = vshll.u32 %v2987, 16
      %v3118 = vrot.slane %v3116, 5
      %v3119 = vsel %vm1125, %v3114, %v3118
      %v3121 = vshrl.u32 %v2988, 16
      %v3123 = vrot.slane %v3121, 4
      %v3124 = vshll.u32 %v2988, 16
      %v3126 = vrot.slane %v3124, 5
      %v3127 = vor.u32 %v3123, %v3126
      %v3128 = vrot.slane %v3127, 4
      %v3130 = vshll.u32 %v2989, 16
      %v3132 = vrot.slane %v3130, 5
      %v3133 = vsel %vm1125, %v3128, %v3132
      %v3134 = vshrl.u32 %v2989, 16
      %v3136 = vrot.slane %v3134, 4
      %v3137 = vor.u32 %v3136, %v3132
      %v3138 = vrot.slane %v3137, 4
      %v3140 = vshll.u32 %v2990, 16
      %v3142 = vrot.slane %v3140, 5
      %v3143 = vsel %vm1125, %v3138, %v3142
      %v3145 = vshrl.u32 %v2991, 16
      %v3147 = vrot.slane %v3145, 4
      %v3148 = vshll.u32 %v2991, 16
      %v3150 = vrot.slane %v3148, 5
      %v3151 = vor.u32 %v3147, %v3150
      %v3152 = vrot.slane %v3151, 4
      %v3154 = vshll.u32 %v2992, 16
      %v3156 = vrot.slane %v3154, 5
      %v3157 = vsel %vm1125, %v3152, %v3156
      %v3158 = vshrl.u32 %v2992, 16
      %v3160 = vrot.slane %v3158, 4
      %v3161 = vor.u32 %v3160, %v3156
      %v3162 = vrot.slane %v3161, 4
      %v3164 = vshll.u32 %v2993, 16
      %v3166 = vrot.slane %v3164, 5
      %v3167 = vsel %vm1125, %v3162, %v3166
      %v3169 = vshrl.u32 %v2994, 16
      %v3171 = vrot.slane %v3169, 4
      %v3172 = vshll.u32 %v2994, 16
      %v3174 = vrot.slane %v3172, 5
      %v3175 = vor.u32 %v3171, %v3174
      %v3176 = vrot.slane %v3175, 4
      %v3178 = vshll.u32 %v2995, 16
      %v3180 = vrot.slane %v3178, 5
      %v3181 = vsel %vm1125, %v3176, %v3180
      %v3182 = vshrl.u32 %v2995, 16
      %v3184 = vrot.slane %v3182, 4
      %v3185 = vor.u32 %v3184, %v3180
      %v3186 = vrot.slane %v3185, 4
      %v3188 = vshll.u32 %v2996, 16
      %v3190 = vrot.slane %v3188, 5
      %v3191 = vsel %vm1125, %v3186, %v3190
      %v3193 = vshrl.u32 %v2997, 16
      %v3195 = vrot.slane %v3193, 4
      %v3196 = vshll.u32 %v2997, 16
      %v3198 = vrot.slane %v3196, 5
      %v3199 = vor.u32 %v3195, %v3198
      %v3200 = vrot.slane %v3199, 4
      %v3202 = vshll.u32 %v2998, 16
      %v3204 = vrot.slane %v3202, 5
      %v3205 = vsel %vm1125, %v3200, %v3204
      %v3206 = vshrl.u32 %v2998, 16
      %v3208 = vrot.slane %v3206, 4
      %v3209 = vor.u32 %v3208, %v3204
      %v3210 = vrot.slane %v3209, 4
      %v3212 = vshll.u32 %v2999, 16
      %v3214 = vrot.slane %v3212, 5
      %v3215 = vsel %vm1125, %v3210, %v3214
      %v3217 = vshrl.u32 %v3000, 16
      %v3219 = vrot.slane %v3217, 4
      %v3220 = vshll.u32 %v3000, 16
      %v3222 = vrot.slane %v3220, 5
      %v3223 = vor.u32 %v3219, %v3222
      %v3224 = vrot.slane %v3223, 4
      %v3226 = vshll.u32 %v3001, 16
      %v3228 = vrot.slane %v3226, 5
      %v3229 = vsel %vm1125, %v3224, %v3228
      %v3230 = vshrl.u32 %v3001, 16
      %v3232 = vrot.slane %v3230, 4
      %v3233 = vor.u32 %v3232, %v3228
      %v3234 = vrot.slane %v3233, 4
      %v3236 = vshll.u32 %v3002, 16
      %v3238 = vrot.slane %v3236, 5
      %v3239 = vsel %vm1125, %v3234, %v3238
      %v3241 = vshrl.u32 %v3003, 16
      %v3243 = vrot.slane %v3241, 4
      %v3244 = vshll.u32 %v3003, 16
      %v3246 = vrot.slane %v3244, 5
      %v3247 = vor.u32 %v3243, %v3246
      %v3248 = vrot.slane %v3247, 4
      %v3250 = vshll.u32 %v3004, 16
      %v3252 = vrot.slane %v3250, 5
      %v3253 = vsel %vm1125, %v3248, %v3252
      %v3254 = vshrl.u32 %v3004, 16
      %v3256 = vrot.slane %v3254, 4
      %v3257 = vor.u32 %v3256, %v3252
      %v3258 = vrot.slane %v3257, 4
      %v3260 = vshll.u32 %v3005, 16
      %v3262 = vrot.slane %v3260, 5
      %v3263 = vsel %vm1125, %v3258, %v3262
      %v3265 = vshrl.u32 %v3006, 16
      %v3267 = vrot.slane %v3265, 4
      %v3268 = vshll.u32 %v3006, 16
      %v3270 = vrot.slane %v3268, 5
      %v3271 = vor.u32 %v3267, %v3270
      %v3272 = vrot.slane %v3271, 4
      %v3274 = vshll.u32 %v3007, 16
      %v3276 = vrot.slane %v3274, 5
      %v3277 = vsel %vm1125, %v3272, %v3276
      %v3278 = vshrl.u32 %v3007, 16
      %v3280 = vrot.slane %v3278, 4
      %v3281 = vor.u32 %v3280, %v3276
      %v3282 = vrot.slane %v3281, 4
      %v3284 = vshll.u32 %v3008, 16
      %v3286 = vrot.slane %v3284, 5
      %v3287 = vsel %vm1125, %v3282, %v3286
      %v3289 = vshrl.u32 %v3009, 16
      %v3291 = vrot.slane %v3289, 4
      %v3292 = vshll.u32 %v3009, 16
      %v3294 = vrot.slane %v3292, 5
      %v3295 = vor.u32 %v3291, %v3294
      %v3296 = vrot.slane %v3295, 4
      %v3298 = vshll.u32 %v3010, 16
      %v3300 = vrot.slane %v3298, 5
      %v3301 = vsel %vm1125, %v3296, %v3300
      %v3302 = vshrl.u32 %v3010, 16
      %v3304 = vrot.slane %v3302, 4
      %v3305 = vor.u32 %v3304, %v3300
      %v3306 = vrot.slane %v3305, 4
      %v3308 = vshll.u32 %v3011, 16
      %v3310 = vrot.slane %v3308, 5
      %v3311 = vsel %vm1125, %v3306, %v3310
      %v3313 = vshrl.u32 %v3012, 16
      %v3315 = vrot.slane %v3313, 4
      %v3316 = vshll.u32 %v3012, 16
      %v3318 = vrot.slane %v3316, 5
      %v3319 = vor.u32 %v3315, %v3318
      %v3320 = vrot.slane %v3319, 4
      %v3322 = vshll.u32 %v3013, 16
      %v3324 = vrot.slane %v3322, 5
      %v3325 = vsel %vm1125, %v3320, %v3324
      %v3326 = vshrl.u32 %v3013, 16
      %v3328 = vrot.slane %v3326, 4
      %v3329 = vor.u32 %v3328, %v3324
      %v3330 = vrot.slane %v3329, 4
      %v3332 = vshll.u32 %v3014, 16
      %v3334 = vrot.slane %v3332, 5
      %v3335 = vsel %vm1125, %v3330, %v3334
      %v3337 = vshrl.u32 %v3015, 16
      %v3339 = vrot.slane %v3337, 4
      %v3340 = vshll.u32 %v3015, 16
      %v3342 = vrot.slane %v3340, 5
      %v3343 = vor.u32 %v3339, %v3342
      %v3344 = vrot.slane %v3343, 4
      %v3346 = vshll.u32 %v3016, 16
      %v3348 = vrot.slane %v3346, 5
      %v3349 = vsel %vm1125, %v3344, %v3348
      %v3350 = vshrl.u32 %v3016, 16
      %v3352 = vrot.slane %v3350, 4
      %v3353 = vor.u32 %v3352, %v3348
      %v3354 = vrot.slane %v3353, 4
      %v3356 = vshll.u32 %v3017, 16
      %v3358 = vrot.slane %v3356, 5
      %v3359 = vsel %vm1125, %v3354, %v3358
      %v3361 = vshrl.u32 %v3018, 16
      %v3363 = vrot.slane %v3361, 4
      %v3364 = vshll.u32 %v3018, 16
      %v3366 = vrot.slane %v3364, 5
      %v3367 = vor.u32 %v3363, %v3366
      %v3368 = vrot.slane %v3367, 4
      %v3370 = vshll.u32 %v3019, 16
      %v3372 = vrot.slane %v3370, 5
      %v3373 = vsel %vm1125, %v3368, %v3372
      %v3374 = vshrl.u32 %v3019, 16
      %v3376 = vrot.slane %v3374, 4
      %v3377 = vor.u32 %v3376, %v3372
      %v3378 = vrot.slane %v3377, 4
      %v3380 = vshll.u32 %v3020, 16
      %v3382 = vrot.slane %v3380, 5
      %v3383 = vsel %vm1125, %v3378, %v3382
      %v3385 = vshrl.u32 %v3021, 16
      %v3387 = vrot.slane %v3385, 4
      %v3388 = vshll.u32 %v3021, 16
      %v3390 = vrot.slane %v3388, 5
      %v3391 = vor.u32 %v3387, %v3390
      %v3392 = vrot.slane %v3391, 4
      %v3394 = vshll.u32 %v3022, 16
      %v3396 = vrot.slane %v3394, 5
      %v3397 = vsel %vm1125, %v3392, %v3396
      %v3398 = vshrl.u32 %v3022, 16
      %v3400 = vrot.slane %v3398, 4
      %v3401 = vor.u32 %v3400, %v3396
      %v3402 = vrot.slane %v3401, 4
      %v3404 = vshll.u32 %v3023, 16
      %v3406 = vrot.slane %v3404, 5
      %v3407 = vsel %vm1125, %v3402, %v3406
      %s3408 = scalar_lea.vmem %s4, 256
      %v3409 = vld [vmem:[%s3408] sm:$0xf]
      %v3410 = vld [vmem:[%s3408 + $0x4] sm:$0xf]
      %v3411 = vld [vmem:[%s3408 + $0x8] sm:$0xf]
      %v3412 = vld [vmem:[%s3408 + $0xc] sm:$0xf]
      %v3413 = vld [vmem:[%s3408 + $0x10] sm:$0xf]
      %v3414 = vld [vmem:[%s3408 + $0x14] sm:$0xf]
      %v3415 = vld [vmem:[%s3408 + $0x18] sm:$0xf]
      %v3416 = vld [vmem:[%s3408 + $0x1c] sm:$0xf]
      %v3417 = vld [vmem:[%s3408 + $0x20] sm:$0xf]
      %v3418 = vld [vmem:[%s3408 + $0x24] sm:$0xf]
      %v3419 = vld [vmem:[%s3408 + $0x28] sm:$0xf]
      %v3420 = vld [vmem:[%s3408 + $0x2c] sm:$0xf]
      %v3421 = vld [vmem:[%s3408 + $0x30] sm:$0xf]
      %v3422 = vld [vmem:[%s3408 + $0x34] sm:$0xf]
      %v3423 = vld [vmem:[%s3408 + $0x38] sm:$0xf]
      %v3424 = vld [vmem:[%s3408 + $0x3c] sm:$0xf]
      %v3425 = vunpack.c.l.b16 %v3037
      %v3426 = vunpack.c.l.b16 %v3047
      %v3427 = vunpack.c.l.b16 %v3061
      %v3428 = vunpack.c.l.b16 %v3071
      %v3429 = vunpack.c.l.b16 %v3085
      %v3430 = vunpack.c.l.b16 %v3095
      %v3431 = vunpack.c.l.b16 %v3109
      %v3432 = vunpack.c.l.b16 %v3119
      %v3433 = vunpack.c.l.b16 %v3133
      %v3434 = vunpack.c.l.b16 %v3143
      %v3435 = vunpack.c.l.b16 %v3157
      %v3436 = vunpack.c.l.b16 %v3167
      %v3437 = vunpack.c.l.b16 %v3181
      %v3438 = vunpack.c.l.b16 %v3191
      %v3439 = vunpack.c.l.b16 %v3205
      %v3440 = vunpack.c.l.b16 %v3215
      %v3441 = vunpack.c.l.b16 %v3229
      %v3442 = vunpack.c.l.b16 %v3239
      %v3443 = vunpack.c.l.b16 %v3253
      %v3444 = vunpack.c.l.b16 %v3263
      %v3445 = vunpack.c.l.b16 %v3277
      %v3446 = vunpack.c.l.b16 %v3287
      %v3447 = vunpack.c.l.b16 %v3301
      %v3448 = vunpack.c.l.b16 %v3311
      %v3449 = vunpack.c.l.b16 %v3325
      %v3450 = vunpack.c.l.b16 %v3335
      %v3451 = vunpack.c.l.b16 %v3349
      %v3452 = vunpack.c.l.b16 %v3359
      %v3453 = vunpack.c.l.b16 %v3373
      %v3454 = vunpack.c.l.b16 %v3383
      %v3455 = vunpack.c.l.b16 %v3397
      %v3456 = vunpack.c.l.b16 %v3407
      %v3457 = vpack.c.b16 %v3426, %v3425
      %v3458 = vpack.c.b16 %v3428, %v3427
      %v3459 = vpack.c.b16 %v3430, %v3429
      %v3460 = vpack.c.b16 %v3432, %v3431
      %v3461 = vpack.c.b16 %v3434, %v3433
      %v3462 = vpack.c.b16 %v3436, %v3435
      %v3463 = vpack.c.b16 %v3438, %v3437
      %v3464 = vpack.c.b16 %v3440, %v3439
      %v3465 = vpack.c.b16 %v3442, %v3441
      %v3466 = vpack.c.b16 %v3444, %v3443
      %v3467 = vpack.c.b16 %v3446, %v3445
      %v3468 = vpack.c.b16 %v3448, %v3447
      %v3469 = vpack.c.b16 %v3450, %v3449
      %v3470 = vpack.c.b16 %v3452, %v3451
      %v3471 = vpack.c.b16 %v3454, %v3453
      %v3472 = vpack.c.b16 %v3456, %v3455
      %v3505 = vunpack.c.l.b16 %v3409
      %v3506 = vunpack.c.l.b16 %v3410
      %v3507 = vunpack.c.l.b16 %v3411
      %v3508 = vunpack.c.l.b16 %v3412
      %v3509 = vunpack.c.l.b16 %v3413
      %v3510 = vunpack.c.l.b16 %v3414
      %v3511 = vunpack.c.l.b16 %v3415
      %v3512 = vunpack.c.l.b16 %v3416
      %v3513 = vunpack.c.l.b16 %v3417
      %v3514 = vunpack.c.l.b16 %v3418
      %v3515 = vunpack.c.l.b16 %v3419
      %v3516 = vunpack.c.l.b16 %v3420
      %v3517 = vunpack.c.l.b16 %v3421
      %v3518 = vunpack.c.l.b16 %v3422
      %v3519 = vunpack.c.l.b16 %v3423
      %v3520 = vunpack.c.l.b16 %v3424
      %v3521 = vpack.c.b16 %v3506, %v3505
      %v3522 = vpack.c.b16 %v3508, %v3507
      %v3523 = vpack.c.b16 %v3510, %v3509
      %v3524 = vpack.c.b16 %v3512, %v3511
      %v3525 = vpack.c.b16 %v3514, %v3513
      %v3526 = vpack.c.b16 %v3516, %v3515
      %v3527 = vpack.c.b16 %v3518, %v3517
      %v3528 = vpack.c.b16 %v3520, %v3519
      %3537 = vmatprep.subr.bf16.mxu0 0
      %3538 = vmatpush1.bf16.msra.mxu0 %v3521
      %3539 = vmatprep.subr.bf16.mxu0 0
      %3540 = vmatpush1.bf16.msra.mxu0 %v3522
      %3541 = vmatprep.subr.bf16.mxu0 0
      %3542 = vmatpush1.bf16.msra.mxu0 %v3523
      %3543 = vmatprep.subr.bf16.mxu0 0
      %3544 = vmatpush1.bf16.msra.mxu0 %v3524
      %3545 = vmatprep.subr.bf16.mxu0 0
      %3546 = vmatpush1.bf16.msra.mxu0 %v3525
      %3547 = vmatprep.subr.bf16.mxu0 0
      %3548 = vmatpush1.bf16.msra.mxu0 %v3526
      %3549 = vmatprep.subr.bf16.mxu0 0
      %3550 = vmatpush1.bf16.msra.mxu0 %v3527
      %3551 = vmatprep.subr.bf16.mxu0 0
      %3552 = vmatpush1.bf16.msra.mxu0 %v3528
      %3553 = vmatprep.subr.bf16.mxu0 0
      %3554 = vmatpush1.bf16.msra.mxu0 0
      %3555 = vmatprep.subr.bf16.mxu0 0
      %3556 = vmatpush1.bf16.msra.mxu0 0
      %3557 = vmatprep.subr.bf16.mxu0 0
      %3558 = vmatpush1.bf16.msra.mxu0 0
      %3559 = vmatprep.subr.bf16.mxu0 0
      %3560 = vmatpush1.bf16.msra.mxu0 0
      %3561 = vmatprep.subr.bf16.mxu0 0
      %3562 = vmatpush1.bf16.msra.mxu0 0
      %3563 = vmatprep.subr.bf16.mxu0 0
      %3564 = vmatpush1.bf16.msra.mxu0 0
      %3565 = vmatprep.subr.bf16.mxu0 0
      %3566 = vmatpush1.bf16.msra.mxu0 0
      %3567 = vmatprep.subr.bf16.mxu0 0
      %3568 = vmatpush1.bf16.msra.mxu0 0
      %3569 = vmatprep.mubr.bf16.mxu0 0
      %3570 = vmatmul.mubr.bf16.gmra.mrb[0].mxu0 %v3457
      %v3571 = vpop.f32.mrb[0].mxu0
      %v3572 = vadd.f32 0.0, %v3571
      %v3573 = vpop.f32.mrb[0].mxu0
      %v3574 = vpop.f32.mrb[0].mxu0
      %v3575 = vadd.f32 0.0, %v3574
      %v3576 = vpop.f32.mrb[0].mxu0
      %3577 = vmatprep.mubr.bf16.mxu0 0
      %3578 = vmatmul.mubr.bf16.gmra.mrb[0].mxu0 %v3458
      %v3579 = vpop.f32.mrb[0].mxu0
      %v3580 = vadd.f32 0.0, %v3579
      %v3581 = vpop.f32.mrb[0].mxu0
      %v3582 = vpop.f32.mrb[0].mxu0
      %v3583 = vadd.f32 0.0, %v3582
      %v3584 = vpop.f32.mrb[0].mxu0
      %3585 = vmatprep.mubr.bf16.mxu0 0
      %3586 = vmatmul.mubr.bf16.gmra.mrb[0].mxu0 %v3459
      %v3587 = vpop.f32.mrb[0].mxu0
      %v3588 = vadd.f32 0.0, %v3587
      %v3589 = vpop.f32.mrb[0].mxu0
      %v3590 = vpop.f32.mrb[0].mxu0
      %v3591 = vadd.f32 0.0, %v3590
      %v3592 = vpop.f32.mrb[0].mxu0
      %3593 = vmatprep.mubr.bf16.mxu0 0
      %3594 = vmatmul.mubr.bf16.gmra.mrb[0].mxu0 %v3460
      %v3595 = vpop.f32.mrb[0].mxu0
      %v3596 = vadd.f32 0.0, %v3595
      %v3597 = vpop.f32.mrb[0].mxu0
      %v3598 = vpop.f32.mrb[0].mxu0
      %v3599 = vadd.f32 0.0, %v3598
      %v3600 = vpop.f32.mrb[0].mxu0
      %3601 = vmatprep.mubr.bf16.mxu0 0
      %3602 = vmatmul.mubr.bf16.gmra.mrb[0].mxu0 %v3461
      %v3603 = vpop.f32.mrb[0].mxu0
      %v3604 = vadd.f32 0.0, %v3603
      %v3605 = vpop.f32.mrb[0].mxu0
      %v3606 = vpop.f32.mrb[0].mxu0
      %v3607 = vadd.f32 0.0, %v3606
      %v3608 = vpop.f32.mrb[0].mxu0
      %3609 = vmatprep.mubr.bf16.mxu0 0
      %3610 = vmatmul.mubr.bf16.gmra.mrb[0].mxu0 %v3462
      %v3611 = vpop.f32.mrb[0].mxu0
      %v3612 = vadd.f32 0.0, %v3611
      %v3613 = vpop.f32.mrb[0].mxu0
      %v3614 = vpop.f32.mrb[0].mxu0
      %v3615 = vadd.f32 0.0, %v3614
      %v3616 = vpop.f32.mrb[0].mxu0
      %3617 = vmatprep.mubr.bf16.mxu0 0
      %3618 = vmatmul.mubr.bf16.gmra.mrb[0].mxu0 %v3463
      %v3619 = vpop.f32.mrb[0].mxu0
      %v3620 = vadd.f32 0.0, %v3619
      %v3621 = vpop.f32.mrb[0].mxu0
      %v3622 = vpop.f32.mrb[0].mxu0
      %v3623 = vadd.f32 0.0, %v3622
      %v3624 = vpop.f32.mrb[0].mxu0
      %3625 = vmatprep.mubr.bf16.mxu0 0
      %3626 = vmatmul.mubr.bf16.gmra.mrb[0].mxu0 %v3464
      %v3627 = vpop.f32.mrb[0].mxu0
      %v3628 = vadd.f32 0.0, %v3627
      %v3629 = vpop.f32.mrb[0].mxu0
      %v3630 = vpop.f32.mrb[0].mxu0
      %v3631 = vadd.f32 0.0, %v3630
      %v3632 = vpop.f32.mrb[0].mxu0
      %3633 = vmatprep.mubr.bf16.mxu0 0
      %3634 = vmatmul.mubr.bf16.gmra.mrb[0].mxu0 %v3465
      %v3635 = vpop.f32.mrb[0].mxu0
      %v3636 = vadd.f32 0.0, %v3635
      %v3637 = vpop.f32.mrb[0].mxu0
      %v3638 = vpop.f32.mrb[0].mxu0
      %v3639 = vadd.f32 0.0, %v3638
      %v3640 = vpop.f32.mrb[0].mxu0
      %3641 = vmatprep.mubr.bf16.mxu0 0
      %3642 = vmatmul.mubr.bf16.gmra.mrb[0].mxu0 %v3466
      %v3643 = vpop.f32.mrb[0].mxu0
      %v3644 = vadd.f32 0.0, %v3643
      %v3645 = vpop.f32.mrb[0].mxu0
      %v3646 = vpop.f32.mrb[0].mxu0
      %v3647 = vadd.f32 0.0, %v3646
      %v3648 = vpop.f32.mrb[0].mxu0
      %3649 = vmatprep.mubr.bf16.mxu0 0
      %3650 = vmatmul.mubr.bf16.gmra.mrb[0].mxu0 %v3467
      %v3651 = vpop.f32.mrb[0].mxu0
      %v3652 = vadd.f32 0.0, %v3651
      %v3653 = vpop.f32.mrb[0].mxu0
      %v3654 = vpop.f32.mrb[0].mxu0
      %v3655 = vadd.f32 0.0, %v3654
      %v3656 = vpop.f32.mrb[0].mxu0
      %3657 = vmatprep.mubr.bf16.mxu0 0
      %3658 = vmatmul.mubr.bf16.gmra.mrb[0].mxu0 %v3468
      %v3659 = vpop.f32.mrb[0].mxu0
      %v3660 = vadd.f32 0.0, %v3659
      %v3661 = vpop.f32.mrb[0].mxu0
      %v3662 = vpop.f32.mrb[0].mxu0
      %v3663 = vadd.f32 0.0, %v3662
      %v3664 = vpop.f32.mrb[0].mxu0
      %3665 = vmatprep.mubr.bf16.mxu0 0
      %3666 = vmatmul.mubr.bf16.gmra.mrb[0].mxu0 %v3469
      %v3667 = vpop.f32.mrb[0].mxu0
      %v3668 = vadd.f32 0.0, %v3667
      %v3669 = vpop.f32.mrb[0].mxu0
      %v3670 = vpop.f32.mrb[0].mxu0
      %v3671 = vadd.f32 0.0, %v3670
      %v3672 = vpop.f32.mrb[0].mxu0
      %3673 = vmatprep.mubr.bf16.mxu0 0
      %3674 = vmatmul.mubr.bf16.gmra.mrb[0].mxu0 %v3470
      %v3675 = vpop.f32.mrb[0].mxu0
      %v3676 = vadd.f32 0.0, %v3675
      %v3677 = vpop.f32.mrb[0].mxu0
      %v3678 = vpop.f32.mrb[0].mxu0
      %v3679 = vadd.f32 0.0, %v3678
      %v3680 = vpop.f32.mrb[0].mxu0
      %3681 = vmatprep.mubr.bf16.mxu0 0
      %3682 = vmatmul.mubr.bf16.gmra.mrb[0].mxu0 %v3471
      %v3683 = vpop.f32.mrb[0].mxu0
      %v3684 = vadd.f32 0.0, %v3683
      %v3685 = vpop.f32.mrb[0].mxu0
      %v3686 = vpop.f32.mrb[0].mxu0
      %v3687 = vadd.f32 0.0, %v3686
      %v3688 = vpop.f32.mrb[0].mxu0
      %3689 = vmatprep.mubr.bf16.mxu0 0
      %3690 = vmatmul.mubr.bf16.gmra.mrb[0].mxu0 %v3472
      %v3691 = vpop.f32.mrb[0].mxu0
      %v3692 = vadd.f32 0.0, %v3691
      %v3693 = vpop.f32.mrb[0].mxu0
      %v3694 = vpop.f32.mrb[0].mxu0
      %v3695 = vadd.f32 0.0, %v3694
      %v3696 = vpop.f32.mrb[0].mxu0
      %3697 = vdwg.mxu0
      %v3698 = vadd.f32 %v2944, %v3572
      %v3699 = vadd.f32 %v2945, %v3575
      %v3700 = vadd.f32 %v2946, %v3580
      %v3701 = vadd.f32 %v2947, %v3583
      %v3702 = vadd.f32 %v2948, %v3588
      %v3703 = vadd.f32 %v2949, %v3591
      %v3704 = vadd.f32 %v2950, %v3596
      %v3705 = vadd.f32 %v2951, %v3599
      %v3706 = vadd.f32 %v2952, %v3604
      %v3707 = vadd.f32 %v2953, %v3607
      %v3708 = vadd.f32 %v2954, %v3612
      %v3709 = vadd.f32 %v2955, %v3615
      %v3710 = vadd.f32 %v2956, %v3620
      %v3711 = vadd.f32 %v2957, %v3623
      %v3712 = vadd.f32 %v2958, %v3628
      %v3713 = vadd.f32 %v2959, %v3631
      %v3714 = vadd.f32 %v2960, %v3636
      %v3715 = vadd.f32 %v2961, %v3639
      %v3716 = vadd.f32 %v2962, %v3644
      %v3717 = vadd.f32 %v2963, %v3647
      %v3718 = vadd.f32 %v2964, %v3652
      %v3719 = vadd.f32 %v2965, %v3655
      %v3720 = vadd.f32 %v2966, %v3660
      %v3721 = vadd.f32 %v2967, %v3663
      %v3722 = vadd.f32 %v2968, %v3668
      %v3723 = vadd.f32 %v2969, %v3671
      %v3724 = vadd.f32 %v2970, %v3676
      %v3725 = vadd.f32 %v2971, %v3679
      %v3726 = vadd.f32 %v2972, %v3684
      %v3727 = vadd.f32 %v2973, %v3687
      %v3728 = vadd.f32 %v2974, %v3692
      %v3729 = vadd.f32 %v2975, %v3695
      %v3730 = vld [vmem:[%s941] sm:$0xe]
      %v3731 = vld [vmem:[%s941 + $0xc] sm:$0xe]
      %v3732 = vld [vmem:[%s941 + $0x18] sm:$0xe]
      %v3733 = vld [vmem:[%s941 + $0x24] sm:$0xe]
      %v3734 = vld [vmem:[%s941 + $0x30] sm:$0xe]
      %v3735 = vld [vmem:[%s941 + $0x3c] sm:$0xe]
      %v3736 = vld [vmem:[%s941 + $0x48] sm:$0xe]
      %v3737 = vld [vmem:[%s941 + $0x54] sm:$0xe]
      %v3738 = vld [vmem:[%s941 + $0x60] sm:$0xe]
      %v3739 = vld [vmem:[%s941 + $0x6c] sm:$0xe]
      %v3740 = vld [vmem:[%s941 + $0x78] sm:$0xe]
      %v3741 = vld [vmem:[%s941 + $0x84] sm:$0xe]
      %v3742 = vld [vmem:[%s941 + $0x90] sm:$0xe]
      %v3743 = vld [vmem:[%s941 + $0x9c] sm:$0xe]
      %v3744 = vld [vmem:[%s941 + $0xa8] sm:$0xe]
      %v3745 = vld [vmem:[%s941 + $0xb4] sm:$0xe]
      %v3794 = vrot.slane %v3730, 5
      %v3795 = vrot.slane %v3794, 4
      %v3796 = vrot.slane %v2977, 5
      %v3797 = vsel %vm2155, %v3795, %v3796
      %v3798 = vrot.slane %v3796, 4
      %v3799 = vrot.slane %v2978, 5
      %v3800 = vsel %vm2155, %v3798, %v3799
      %v3801 = vrot.slane %v3731, 5
      %v3802 = vrot.slane %v3801, 4
      %v3803 = vrot.slane %v2980, 5
      %v3804 = vsel %vm2155, %v3802, %v3803
      %v3805 = vrot.slane %v3803, 4
      %v3806 = vrot.slane %v2981, 5
      %v3807 = vsel %vm2155, %v3805, %v3806
      %v3808 = vrot.slane %v3732, 5
      %v3809 = vrot.slane %v3808, 4
      %v3810 = vrot.slane %v2983, 5
      %v3811 = vsel %vm2155, %v3809, %v3810
      %v3812 = vrot.slane %v3810, 4
      %v3813 = vrot.slane %v2984, 5
      %v3814 = vsel %vm2155, %v3812, %v3813
      %v3815 = vrot.slane %v3733, 5
      %v3816 = vrot.slane %v3815, 4
      %v3817 = vrot.slane %v2986, 5
      %v3818 = vsel %vm2155, %v3816, %v3817
      %v3819 = vrot.slane %v3817, 4
      %v3820 = vrot.slane %v2987, 5
      %v3821 = vsel %vm2155, %v3819, %v3820
      %v3822 = vrot.slane %v3734, 5
      %v3823 = vrot.slane %v3822, 4
      %v3824 = vrot.slane %v2989, 5
      %v3825 = vsel %vm2155, %v3823, %v3824
      %v3826 = vrot.slane %v3824, 4
      %v3827 = vrot.slane %v2990, 5
      %v3828 = vsel %vm2155, %v3826, %v3827
      %v3829 = vrot.slane %v3735, 5
      %v3830 = vrot.slane %v3829, 4
      %v3831 = vrot.slane %v2992, 5
      %v3832 = vsel %vm2155, %v3830, %v3831
      %v3833 = vrot.slane %v3831, 4
      %v3834 = vrot.slane %v2993, 5
      %v3835 = vsel %vm2155, %v3833, %v3834
      %v3836 = vrot.slane %v3736, 5
      %v3837 = vrot.slane %v3836, 4
      %v3838 = vrot.slane %v2995, 5
      %v3839 = vsel %vm2155, %v3837, %v3838
      %v3840 = vrot.slane %v3838, 4
      %v3841 = vrot.slane %v2996, 5
      %v3842 = vsel %vm2155, %v3840, %v3841
      %v3843 = vrot.slane %v3737, 5
      %v3844 = vrot.slane %v3843, 4
      %v3845 = vrot.slane %v2998, 5
      %v3846 = vsel %vm2155, %v3844, %v3845
      %v3847 = vrot.slane %v3845, 4
      %v3848 = vrot.slane %v2999, 5
      %v3849 = vsel %vm2155, %v3847, %v3848
      %v3850 = vrot.slane %v3738, 5
      %v3851 = vrot.slane %v3850, 4
      %v3852 = vrot.slane %v3001, 5
      %v3853 = vsel %vm2155, %v3851, %v3852
      %v3854 = vrot.slane %v3852, 4
      %v3855 = vrot.slane %v3002, 5
      %v3856 = vsel %vm2155, %v3854, %v3855
      %v3857 = vrot.slane %v3739, 5
      %v3858 = vrot.slane %v3857, 4
      %v3859 = vrot.slane %v3004, 5
      %v3860 = vsel %vm2155, %v3858, %v3859
      %v3861 = vrot.slane %v3859, 4
      %v3862 = vrot.slane %v3005, 5
      %v3863 = vsel %vm2155, %v3861, %v3862
      %v3864 = vrot.slane %v3740, 5
      %v3865 = vrot.slane %v3864, 4
      %v3866 = vrot.slane %v3007, 5
      %v3867 = vsel %vm2155, %v3865, %v3866
      %v3868 = vrot.slane %v3866, 4
      %v3869 = vrot.slane %v3008, 5
      %v3870 = vsel %vm2155, %v3868, %v3869
      %v3871 = vrot.slane %v3741, 5
      %v3872 = vrot.slane %v3871, 4
      %v3873 = vrot.slane %v3010, 5
      %v3874 = vsel %vm2155, %v3872, %v3873
      %v3875 = vrot.slane %v3873, 4
      %v3876 = vrot.slane %v3011, 5
      %v3877 = vsel %vm2155, %v3875, %v3876
      %v3878 = vrot.slane %v3742, 5
      %v3879 = vrot.slane %v3878, 4
      %v3880 = vrot.slane %v3013, 5
      %v3881 = vsel %vm2155, %v3879, %v3880
      %v3882 = vrot.slane %v3880, 4
      %v3883 = vrot.slane %v3014, 5
      %v3884 = vsel %vm2155, %v3882, %v3883
      %v3885 = vrot.slane %v3743, 5
      %v3886 = vrot.slane %v3885, 4
      %v3887 = vrot.slane %v3016, 5
      %v3888 = vsel %vm2155, %v3886, %v3887
      %v3889 = vrot.slane %v3887, 4
      %v3890 = vrot.slane %v3017, 5
      %v3891 = vsel %vm2155, %v3889, %v3890
      %v3892 = vrot.slane %v3744, 5
      %v3893 = vrot.slane %v3892, 4
      %v3894 = vrot.slane %v3019, 5
      %v3895 = vsel %vm2155, %v3893, %v3894
      %v3896 = vrot.slane %v3894, 4
      %v3897 = vrot.slane %v3020, 5
      %v3898 = vsel %vm2155, %v3896, %v3897
      %v3899 = vrot.slane %v3745, 5
      %v3900 = vrot.slane %v3899, 4
      %v3901 = vrot.slane %v3022, 5
      %v3902 = vsel %vm2155, %v3900, %v3901
      %v3903 = vrot.slane %v3901, 4
      %v3904 = vrot.slane %v3023, 5
      %v3905 = vsel %vm2155, %v3903, %v3904
      %s3906 = scalar_lea.vmem %s4, 320
      %v3907 = vld [vmem:[%s3906] sm:$0xf]
      %v3908 = vld [vmem:[%s3906 + $0x4] sm:$0xf]
      %v3909 = vld [vmem:[%s3906 + $0x8] sm:$0xf]
      %v3910 = vld [vmem:[%s3906 + $0xc] sm:$0xf]
      %v3911 = vld [vmem:[%s3906 + $0x10] sm:$0xf]
      %v3912 = vld [vmem:[%s3906 + $0x14] sm:$0xf]
      %v3913 = vld [vmem:[%s3906 + $0x18] sm:$0xf]
      %v3914 = vld [vmem:[%s3906 + $0x1c] sm:$0xf]
      %v3915 = vld [vmem:[%s3906 + $0x20] sm:$0xf]
      %v3916 = vld [vmem:[%s3906 + $0x24] sm:$0xf]
      %v3917 = vld [vmem:[%s3906 + $0x28] sm:$0xf]
      %v3918 = vld [vmem:[%s3906 + $0x2c] sm:$0xf]
      %v3919 = vld [vmem:[%s3906 + $0x30] sm:$0xf]
      %v3920 = vld [vmem:[%s3906 + $0x34] sm:$0xf]
      %v3921 = vld [vmem:[%s3906 + $0x38] sm:$0xf]
      %v3922 = vld [vmem:[%s3906 + $0x3c] sm:$0xf]
      %v3923 = vunpack.c.l.b16 %v3797
      %v3924 = vunpack.c.l.b16 %v3800
      %v3925 = vunpack.c.l.b16 %v3804
      %v3926 = vunpack.c.l.b16 %v3807
      %v3927 = vunpack.c.l.b16 %v3811
      %v3928 = vunpack.c.l.b16 %v3814
      %v3929 = vunpack.c.l.b16 %v3818
      %v3930 = vunpack.c.l.b16 %v3821
      %v3931 = vunpack.c.l.b16 %v3825
      %v3932 = vunpack.c.l.b16 %v3828
      %v3933 = vunpack.c.l.b16 %v3832
      %v3934 = vunpack.c.l.b16 %v3835
      %v3935 = vunpack.c.l.b16 %v3839
      %v3936 = vunpack.c.l.b16 %v3842
      %v3937 = vunpack.c.l.b16 %v3846
      %v3938 = vunpack.c.l.b16 %v3849
      %v3939 = vunpack.c.l.b16 %v3853
      %v3940 = vunpack.c.l.b16 %v3856
      %v3941 = vunpack.c.l.b16 %v3860
      %v3942 = vunpack.c.l.b16 %v3863
      %v3943 = vunpack.c.l.b16 %v3867
      %v3944 = vunpack.c.l.b16 %v3870
      %v3945 = vunpack.c.l.b16 %v3874
      %v3946 = vunpack.c.l.b16 %v3877
      %v3947 = vunpack.c.l.b16 %v3881
      %v3948 = vunpack.c.l.b16 %v3884
      %v3949 = vunpack.c.l.b16 %v3888
      %v3950 = vunpack.c.l.b16 %v3891
      %v3951 = vunpack.c.l.b16 %v3895
      %v3952 = vunpack.c.l.b16 %v3898
      %v3953 = vunpack.c.l.b16 %v3902
      %v3954 = vunpack.c.l.b16 %v3905
      %v3955 = vpack.c.b16 %v3924, %v3923
      %v3956 = vpack.c.b16 %v3926, %v3925
      %v3957 = vpack.c.b16 %v3928, %v3927
      %v3958 = vpack.c.b16 %v3930, %v3929
      %v3959 = vpack.c.b16 %v3932, %v3931
      %v3960 = vpack.c.b16 %v3934, %v3933
      %v3961 = vpack.c.b16 %v3936, %v3935
      %v3962 = vpack.c.b16 %v3938, %v3937
      %v3963 = vpack.c.b16 %v3940, %v3939
      %v3964 = vpack.c.b16 %v3942, %v3941
      %v3965 = vpack.c.b16 %v3944, %v3943
      %v3966 = vpack.c.b16 %v3946, %v3945
      %v3967 = vpack.c.b16 %v3948, %v3947
      %v3968 = vpack.c.b16 %v3950, %v3949
      %v3969 = vpack.c.b16 %v3952, %v3951
      %v3970 = vpack.c.b16 %v3954, %v3953
      %v4003 = vunpack.c.l.b16 %v3907
      %v4004 = vunpack.c.l.b16 %v3908
      %v4005 = vunpack.c.l.b16 %v3909
      %v4006 = vunpack.c.l.b16 %v3910
      %v4007 = vunpack.c.l.b16 %v3911
      %v4008 = vunpack.c.l.b16 %v3912
      %v4009 = vunpack.c.l.b16 %v3913
      %v4010 = vunpack.c.l.b16 %v3914
      %v4011 = vunpack.c.l.b16 %v3915
      %v4012 = vunpack.c.l.b16 %v3916
      %v4013 = vunpack.c.l.b16 %v3917
      %v4014 = vunpack.c.l.b16 %v3918
      %v4015 = vunpack.c.l.b16 %v3919
      %v4016 = vunpack.c.l.b16 %v3920
      %v4017 = vunpack.c.l.b16 %v3921
      %v4018 = vunpack.c.l.b16 %v3922
      %v4019 = vpack.c.b16 %v4004, %v4003
      %v4020 = vpack.c.b16 %v4006, %v4005
      %v4021 = vpack.c.b16 %v4008, %v4007
      %v4022 = vpack.c.b16 %v4010, %v4009
      %v4023 = vpack.c.b16 %v4012, %v4011
      %v4024 = vpack.c.b16 %v4014, %v4013
      %v4025 = vpack.c.b16 %v4016, %v4015
      %v4026 = vpack.c.b16 %v4018, %v4017
      %4035 = vmatprep.subr.bf16.mxu0 0
      %4036 = vmatpush1.bf16.msra.mxu0 %v4019
      %4037 = vmatprep.subr.bf16.mxu0 0
      %4038 = vmatpush1.bf16.msra.mxu0 %v4020
      %4039 = vmatprep.subr.bf16.mxu0 0
      %4040 = vmatpush1.bf16.msra.mxu0 %v4021
      %4041 = vmatprep.subr.bf16.mxu0 0
      %4042 = vmatpush1.bf16.msra.mxu0 %v4022
      %4043 = vmatprep.subr.bf16.mxu0 0
      %4044 = vmatpush1.bf16.msra.mxu0 %v4023
      %4045 = vmatprep.subr.bf16.mxu0 0
      %4046 = vmatpush1.bf16.msra.mxu0 %v4024
      %4047 = vmatprep.subr.bf16.mxu0 0
      %4048 = vmatpush1.bf16.msra.mxu0 %v4025
      %4049 = vmatprep.subr.bf16.mxu0 0
      %4050 = vmatpush1.bf16.msra.mxu0 %v4026
      %4051 = vmatprep.subr.bf16.mxu0 0
      %4052 = vmatpush1.bf16.msra.mxu0 0
      %4053 = vmatprep.subr.bf16.mxu0 0
      %4054 = vmatpush1.bf16.msra.mxu0 0
      %4055 = vmatprep.subr.bf16.mxu0 0
      %4056 = vmatpush1.bf16.msra.mxu0 0
      %4057 = vmatprep.subr.bf16.mxu0 0
      %4058 = vmatpush1.bf16.msra.mxu0 0
      %4059 = vmatprep.subr.bf16.mxu0 0
      %4060 = vmatpush1.bf16.msra.mxu0 0
      %4061 = vmatprep.subr.bf16.mxu0 0
      %4062 = vmatpush1.bf16.msra.mxu0 0
      %4063 = vmatprep.subr.bf16.mxu0 0
      %4064 = vmatpush1.bf16.msra.mxu0 0
      %4065 = vmatprep.subr.bf16.mxu0 0
      %4066 = vmatpush1.bf16.msra.mxu0 0
      %4067 = vmatprep.mubr.bf16.mxu0 0
      %4068 = vmatmul.mubr.bf16.gmra.mrb[0].mxu0 %v3955
      %v4069 = vpop.f32.mrb[0].mxu0
      %v4070 = vadd.f32 0.0, %v4069
      %v4071 = vpop.f32.mrb[0].mxu0
      %v4072 = vpop.f32.mrb[0].mxu0
      %v4073 = vadd.f32 0.0, %v4072
      %v4074 = vpop.f32.mrb[0].mxu0
      %4075 = vmatprep.mubr.bf16.mxu0 0
      %4076 = vmatmul.mubr.bf16.gmra.mrb[0].mxu0 %v3956
      %v4077 = vpop.f32.mrb[0].mxu0
      %v4078 = vadd.f32 0.0, %v4077
      %v4079 = vpop.f32.mrb[0].mxu0
      %v4080 = vpop.f32.mrb[0].mxu0
      %v4081 = vadd.f32 0.0, %v4080
      %v4082 = vpop.f32.mrb[0].mxu0
      %4083 = vmatprep.mubr.bf16.mxu0 0
      %4084 = vmatmul.mubr.bf16.gmra.mrb[0].mxu0 %v3957
      %v4085 = vpop.f32.mrb[0].mxu0
      %v4086 = vadd.f32 0.0, %v4085
      %v4087 = vpop.f32.mrb[0].mxu0
      %v4088 = vpop.f32.mrb[0].mxu0
      %v4089 = vadd.f32 0.0, %v4088
      %v4090 = vpop.f32.mrb[0].mxu0
      %4091 = vmatprep.mubr.bf16.mxu0 0
      %4092 = vmatmul.mubr.bf16.gmra.mrb[0].mxu0 %v3958
      %v4093 = vpop.f32.mrb[0].mxu0
      %v4094 = vadd.f32 0.0, %v4093
      %v4095 = vpop.f32.mrb[0].mxu0
      %v4096 = vpop.f32.mrb[0].mxu0
      %v4097 = vadd.f32 0.0, %v4096
      %v4098 = vpop.f32.mrb[0].mxu0
      %4099 = vmatprep.mubr.bf16.mxu0 0
      %4100 = vmatmul.mubr.bf16.gmra.mrb[0].mxu0 %v3959
      %v4101 = vpop.f32.mrb[0].mxu0
      %v4102 = vadd.f32 0.0, %v4101
      %v4103 = vpop.f32.mrb[0].mxu0
      %v4104 = vpop.f32.mrb[0].mxu0
      %v4105 = vadd.f32 0.0, %v4104
      %v4106 = vpop.f32.mrb[0].mxu0
      %4107 = vmatprep.mubr.bf16.mxu0 0
      %4108 = vmatmul.mubr.bf16.gmra.mrb[0].mxu0 %v3960
      %v4109 = vpop.f32.mrb[0].mxu0
      %v4110 = vadd.f32 0.0, %v4109
      %v4111 = vpop.f32.mrb[0].mxu0
      %v4112 = vpop.f32.mrb[0].mxu0
      %v4113 = vadd.f32 0.0, %v4112
      %v4114 = vpop.f32.mrb[0].mxu0
      %4115 = vmatprep.mubr.bf16.mxu0 0
      %4116 = vmatmul.mubr.bf16.gmra.mrb[0].mxu0 %v3961
      %v4117 = vpop.f32.mrb[0].mxu0
      %v4118 = vadd.f32 0.0, %v4117
      %v4119 = vpop.f32.mrb[0].mxu0
      %v4120 = vpop.f32.mrb[0].mxu0
      %v4121 = vadd.f32 0.0, %v4120
      %v4122 = vpop.f32.mrb[0].mxu0
      %4123 = vmatprep.mubr.bf16.mxu0 0
      %4124 = vmatmul.mubr.bf16.gmra.mrb[0].mxu0 %v3962
      %v4125 = vpop.f32.mrb[0].mxu0
      %v4126 = vadd.f32 0.0, %v4125
      %v4127 = vpop.f32.mrb[0].mxu0
      %v4128 = vpop.f32.mrb[0].mxu0
      %v4129 = vadd.f32 0.0, %v4128
      %v4130 = vpop.f32.mrb[0].mxu0
      %4131 = vmatprep.mubr.bf16.mxu0 0
      %4132 = vmatmul.mubr.bf16.gmra.mrb[0].mxu0 %v3963
      %v4133 = vpop.f32.mrb[0].mxu0
      %v4134 = vadd.f32 0.0, %v4133
      %v4135 = vpop.f32.mrb[0].mxu0
      %v4136 = vpop.f32.mrb[0].mxu0
      %v4137 = vadd.f32 0.0, %v4136
      %v4138 = vpop.f32.mrb[0].mxu0
      %4139 = vmatprep.mubr.bf16.mxu0 0
      %4140 = vmatmul.mubr.bf16.gmra.mrb[0].mxu0 %v3964
      %v4141 = vpop.f32.mrb[0].mxu0
      %v4142 = vadd.f32 0.0, %v4141
      %v4143 = vpop.f32.mrb[0].mxu0
      %v4144 = vpop.f32.mrb[0].mxu0
      %v4145 = vadd.f32 0.0, %v4144
      %v4146 = vpop.f32.mrb[0].mxu0
      %4147 = vmatprep.mubr.bf16.mxu0 0
      %4148 = vmatmul.mubr.bf16.gmra.mrb[0].mxu0 %v3965
      %v4149 = vpop.f32.mrb[0].mxu0
      %v4150 = vadd.f32 0.0, %v4149
      %v4151 = vpop.f32.mrb[0].mxu0
      %v4152 = vpop.f32.mrb[0].mxu0
      %v4153 = vadd.f32 0.0, %v4152
      %v4154 = vpop.f32.mrb[0].mxu0
      %4155 = vmatprep.mubr.bf16.mxu0 0
      %4156 = vmatmul.mubr.bf16.gmra.mrb[0].mxu0 %v3966
      %v4157 = vpop.f32.mrb[0].mxu0
      %v4158 = vadd.f32 0.0, %v4157
      %v4159 = vpop.f32.mrb[0].mxu0
      %v4160 = vpop.f32.mrb[0].mxu0
      %v4161 = vadd.f32 0.0, %v4160
      %v4162 = vpop.f32.mrb[0].mxu0
      %4163 = vmatprep.mubr.bf16.mxu0 0
      %4164 = vmatmul.mubr.bf16.gmra.mrb[0].mxu0 %v3967
      %v4165 = vpop.f32.mrb[0].mxu0
      %v4166 = vadd.f32 0.0, %v4165
      %v4167 = vpop.f32.mrb[0].mxu0
      %v4168 = vpop.f32.mrb[0].mxu0
      %v4169 = vadd.f32 0.0, %v4168
      %v4170 = vpop.f32.mrb[0].mxu0
      %4171 = vmatprep.mubr.bf16.mxu0 0
      %4172 = vmatmul.mubr.bf16.gmra.mrb[0].mxu0 %v3968
      %v4173 = vpop.f32.mrb[0].mxu0
      %v4174 = vadd.f32 0.0, %v4173
      %v4175 = vpop.f32.mrb[0].mxu0
      %v4176 = vpop.f32.mrb[0].mxu0
      %v4177 = vadd.f32 0.0, %v4176
      %v4178 = vpop.f32.mrb[0].mxu0
      %4179 = vmatprep.mubr.bf16.mxu0 0
      %4180 = vmatmul.mubr.bf16.gmra.mrb[0].mxu0 %v3969
      %v4181 = vpop.f32.mrb[0].mxu0
      %v4182 = vadd.f32 0.0, %v4181
      %v4183 = vpop.f32.mrb[0].mxu0
      %v4184 = vpop.f32.mrb[0].mxu0
      %v4185 = vadd.f32 0.0, %v4184
      %v4186 = vpop.f32.mrb[0].mxu0
      %4187 = vmatprep.mubr.bf16.mxu0 0
      %4188 = vmatmul.mubr.bf16.gmra.mrb[0].mxu0 %v3970
      %v4189 = vpop.f32.mrb[0].mxu0
      %v4190 = vadd.f32 0.0, %v4189
      %v4191 = vpop.f32.mrb[0].mxu0
      %v4192 = vpop.f32.mrb[0].mxu0
      %v4193 = vadd.f32 0.0, %v4192
      %v4194 = vpop.f32.mrb[0].mxu0
      %4195 = vdwg.mxu0
      %v4196 = vadd.f32 %v3698, %v4070
      %v4197 = vadd.f32 %v3699, %v4073
      %v4198 = vadd.f32 %v3700, %v4078
      %v4199 = vadd.f32 %v3701, %v4081
      %v4200 = vadd.f32 %v3702, %v4086
      %v4201 = vadd.f32 %v3703, %v4089
      %v4202 = vadd.f32 %v3704, %v4094
      %v4203 = vadd.f32 %v3705, %v4097
      %v4204 = vadd.f32 %v3706, %v4102
      %v4205 = vadd.f32 %v3707, %v4105
      %v4206 = vadd.f32 %v3708, %v4110
      %v4207 = vadd.f32 %v3709, %v4113
      %v4208 = vadd.f32 %v3710, %v4118
      %v4209 = vadd.f32 %v3711, %v4121
      %v4210 = vadd.f32 %v3712, %v4126
      %v4211 = vadd.f32 %v3713, %v4129
      %v4212 = vadd.f32 %v3714, %v4134
      %v4213 = vadd.f32 %v3715, %v4137
      %v4214 = vadd.f32 %v3716, %v4142
      %v4215 = vadd.f32 %v3717, %v4145
      %v4216 = vadd.f32 %v3718, %v4150
      %v4217 = vadd.f32 %v3719, %v4153
      %v4218 = vadd.f32 %v3720, %v4158
      %v4219 = vadd.f32 %v3721, %v4161
      %v4220 = vadd.f32 %v3722, %v4166
      %v4221 = vadd.f32 %v3723, %v4169
      %v4222 = vadd.f32 %v3724, %v4174
      %v4223 = vadd.f32 %v3725, %v4177
      %v4224 = vadd.f32 %v3726, %v4182
      %v4225 = vadd.f32 %v3727, %v4185
      %v4226 = vadd.f32 %v3728, %v4190
      %v4227 = vadd.f32 %v3729, %v4193
      %s4228 = scalar_lea.vmem [#allocation2], 24
      %v4229 = vld [vmem:[%s4228] sm:$0xf]
      %v4230 = vld [vmem:[%s4228 + $0x4] sm:$0xf]
      %v4231 = vld [vmem:[%s4228 + $0xc] sm:$0xf]
      %v4232 = vld [vmem:[%s4228 + $0x10] sm:$0xf]
      %v4233 = vld [vmem:[%s4228 + $0x18] sm:$0xf]
      %v4234 = vld [vmem:[%s4228 + $0x1c] sm:$0xf]
      %v4235 = vld [vmem:[%s4228 + $0x24] sm:$0xf]
      %v4236 = vld [vmem:[%s4228 + $0x28] sm:$0xf]
      %v4237 = vld [vmem:[%s4228 + $0x30] sm:$0xf]
      %v4238 = vld [vmem:[%s4228 + $0x34] sm:$0xf]
      %v4239 = vld [vmem:[%s4228 + $0x3c] sm:$0xf]
      %v4240 = vld [vmem:[%s4228 + $0x40] sm:$0xf]
      %v4241 = vld [vmem:[%s4228 + $0x48] sm:$0xf]
      %v4242 = vld [vmem:[%s4228 + $0x4c] sm:$0xf]
      %v4243 = vld [vmem:[%s4228 + $0x54] sm:$0xf]
      %v4244 = vld [vmem:[%s4228 + $0x58] sm:$0xf]
      %v4245 = vld [vmem:[%s4228 + $0x60] sm:$0xf]
      %v4246 = vld [vmem:[%s4228 + $0x64] sm:$0xf]
      %v4247 = vld [vmem:[%s4228 + $0x6c] sm:$0xf]
      %v4248 = vld [vmem:[%s4228 + $0x70] sm:$0xf]
      %v4249 = vld [vmem:[%s4228 + $0x78] sm:$0xf]
      %v4250 = vld [vmem:[%s4228 + $0x7c] sm:$0xf]
      %v4251 = vld [vmem:[%s4228 + $0x84] sm:$0xf]
      %v4252 = vld [vmem:[%s4228 + $0x88] sm:$0xf]
      %v4253 = vld [vmem:[%s4228 + $0x90] sm:$0xf]
      %v4254 = vld [vmem:[%s4228 + $0x94] sm:$0xf]
      %v4255 = vld [vmem:[%s4228 + $0x9c] sm:$0xf]
      %v4256 = vld [vmem:[%s4228 + $0xa0] sm:$0xf]
      %v4257 = vld [vmem:[%s4228 + $0xa8] sm:$0xf]
      %v4258 = vld [vmem:[%s4228 + $0xac] sm:$0xf]
      %v4259 = vld [vmem:[%s4228 + $0xb4] sm:$0xf]
      %v4260 = vld [vmem:[%s4228 + $0xb8] sm:$0xf]
      %s4261 = scalar_lea.vmem %s4, 384
      %v4262 = vld [vmem:[%s4261] sm:$0xf]
      %v4263 = vld [vmem:[%s4261 + $0x4] sm:$0xf]
      %v4264 = vld [vmem:[%s4261 + $0x8] sm:$0xf]
      %v4265 = vld [vmem:[%s4261 + $0xc] sm:$0xf]
      %v4266 = vld [vmem:[%s4261 + $0x10] sm:$0xf]
      %v4267 = vld [vmem:[%s4261 + $0x14] sm:$0xf]
      %v4268 = vld [vmem:[%s4261 + $0x18] sm:$0xf]
      %v4269 = vld [vmem:[%s4261 + $0x1c] sm:$0xf]
      %v4270 = vld [vmem:[%s4261 + $0x20] sm:$0xf]
      %v4271 = vld [vmem:[%s4261 + $0x24] sm:$0xf]
      %v4272 = vld [vmem:[%s4261 + $0x28] sm:$0xf]
      %v4273 = vld [vmem:[%s4261 + $0x2c] sm:$0xf]
      %v4274 = vld [vmem:[%s4261 + $0x30] sm:$0xf]
      %v4275 = vld [vmem:[%s4261 + $0x34] sm:$0xf]
      %v4276 = vld [vmem:[%s4261 + $0x38] sm:$0xf]
      %v4277 = vld [vmem:[%s4261 + $0x3c] sm:$0xf]
      %v4310 = vunpack.c.l.b16 %v4229
      %v4311 = vunpack.c.l.b16 %v4230
      %v4312 = vunpack.c.l.b16 %v4231
      %v4313 = vunpack.c.l.b16 %v4232
      %v4314 = vunpack.c.l.b16 %v4233
      %v4315 = vunpack.c.l.b16 %v4234
      %v4316 = vunpack.c.l.b16 %v4235
      %v4317 = vunpack.c.l.b16 %v4236
      %v4318 = vunpack.c.l.b16 %v4237
      %v4319 = vunpack.c.l.b16 %v4238
      %v4320 = vunpack.c.l.b16 %v4239
      %v4321 = vunpack.c.l.b16 %v4240
      %v4322 = vunpack.c.l.b16 %v4241
      %v4323 = vunpack.c.l.b16 %v4242
      %v4324 = vunpack.c.l.b16 %v4243
      %v4325 = vunpack.c.l.b16 %v4244
      %v4326 = vunpack.c.l.b16 %v4245
      %v4327 = vunpack.c.l.b16 %v4246
      %v4328 = vunpack.c.l.b16 %v4247
      %v4329 = vunpack.c.l.b16 %v4248
      %v4330 = vunpack.c.l.b16 %v4249
      %v4331 = vunpack.c.l.b16 %v4250
      %v4332 = vunpack.c.l.b16 %v4251
      %v4333 = vunpack.c.l.b16 %v4252
      %v4334 = vunpack.c.l.b16 %v4253
      %v4335 = vunpack.c.l.b16 %v4254
      %v4336 = vunpack.c.l.b16 %v4255
      %v4337 = vunpack.c.l.b16 %v4256
      %v4338 = vunpack.c.l.b16 %v4257
      %v4339 = vunpack.c.l.b16 %v4258
      %v4340 = vunpack.c.l.b16 %v4259
      %v4341 = vunpack.c.l.b16 %v4260
      %v4342 = vpack.c.b16 %v4311, %v4310
      %v4343 = vpack.c.b16 %v4313, %v4312
      %v4344 = vpack.c.b16 %v4315, %v4314
      %v4345 = vpack.c.b16 %v4317, %v4316
      %v4346 = vpack.c.b16 %v4319, %v4318
      %v4347 = vpack.c.b16 %v4321, %v4320
      %v4348 = vpack.c.b16 %v4323, %v4322
      %v4349 = vpack.c.b16 %v4325, %v4324
      %v4350 = vpack.c.b16 %v4327, %v4326
      %v4351 = vpack.c.b16 %v4329, %v4328
      %v4352 = vpack.c.b16 %v4331, %v4330
      %v4353 = vpack.c.b16 %v4333, %v4332
      %v4354 = vpack.c.b16 %v4335, %v4334
      %v4355 = vpack.c.b16 %v4337, %v4336
      %v4356 = vpack.c.b16 %v4339, %v4338
      %v4357 = vpack.c.b16 %v4341, %v4340
      %v4390 = vunpack.c.l.b16 %v4262
      %v4391 = vunpack.c.l.b16 %v4263
      %v4392 = vunpack.c.l.b16 %v4264
      %v4393 = vunpack.c.l.b16 %v4265
      %v4394 = vunpack.c.l.b16 %v4266
      %v4395 = vunpack.c.l.b16 %v4267
      %v4396 = vunpack.c.l.b16 %v4268
      %v4397 = vunpack.c.l.b16 %v4269
      %v4398 = vunpack.c.l.b16 %v4270
      %v4399 = vunpack.c.l.b16 %v4271
      %v4400 = vunpack.c.l.b16 %v4272
      %v4401 = vunpack.c.l.b16 %v4273
      %v4402 = vunpack.c.l.b16 %v4274
      %v4403 = vunpack.c.l.b16 %v4275
      %v4404 = vunpack.c.l.b16 %v4276
      %v4405 = vunpack.c.l.b16 %v4277
      %v4406 = vpack.c.b16 %v4391, %v4390
      %v4407 = vpack.c.b16 %v4393, %v4392
      %v4408 = vpack.c.b16 %v4395, %v4394
      %v4409 = vpack.c.b16 %v4397, %v4396
      %v4410 = vpack.c.b16 %v4399, %v4398
      %v4411 = vpack.c.b16 %v4401, %v4400
      %v4412 = vpack.c.b16 %v4403, %v4402
      %v4413 = vpack.c.b16 %v4405, %v4404
      %4422 = vmatprep.subr.bf16.mxu0 0
      %4423 = vmatpush1.bf16.msra.mxu0 %v4406
      %4424 = vmatprep.subr.bf16.mxu0 0
      %4425 = vmatpush1.bf16.msra.mxu0 %v4407
      %4426 = vmatprep.subr.bf16.mxu0 0
      %4427 = vmatpush1.bf16.msra.mxu0 %v4408
      %4428 = vmatprep.subr.bf16.mxu0 0
      %4429 = vmatpush1.bf16.msra.mxu0 %v4409
      %4430 = vmatprep.subr.bf16.mxu0 0
      %4431 = vmatpush1.bf16.msra.mxu0 %v4410
      %4432 = vmatprep.subr.bf16.mxu0 0
      %4433 = vmatpush1.bf16.msra.mxu0 %v4411
      %4434 = vmatprep.subr.bf16.mxu0 0
      %4435 = vmatpush1.bf16.msra.mxu0 %v4412
      %4436 = vmatprep.subr.bf16.mxu0 0
      %4437 = vmatpush1.bf16.msra.mxu0 %v4413
      %4438 = vmatprep.subr.bf16.mxu0 0
      %4439 = vmatpush1.bf16.msra.mxu0 0
      %4440 = vmatprep.subr.bf16.mxu0 0
      %4441 = vmatpush1.bf16.msra.mxu0 0
      %4442 = vmatprep.subr.bf16.mxu0 0
      %4443 = vmatpush1.bf16.msra.mxu0 0
      %4444 = vmatprep.subr.bf16.mxu0 0
      %4445 = vmatpush1.bf16.msra.mxu0 0
      %4446 = vmatprep.subr.bf16.mxu0 0
      %4447 = vmatpush1.bf16.msra.mxu0 0
      %4448 = vmatprep.subr.bf16.mxu0 0
      %4449 = vmatpush1.bf16.msra.mxu0 0
      %4450 = vmatprep.subr.bf16.mxu0 0
      %4451 = vmatpush1.bf16.msra.mxu0 0
      %4452 = vmatprep.subr.bf16.mxu0 0
      %4453 = vmatpush1.bf16.msra.mxu0 0
      %4454 = vmatprep.mubr.bf16.mxu0 0
      %4455 = vmatmul.mubr.bf16.gmra.mrb[0].mxu0 %v4342
      %v4456 = vpop.f32.mrb[0].mxu0
      %v4457 = vadd.f32 0.0, %v4456
      %v4458 = vpop.f32.mrb[0].mxu0
      %v4459 = vpop.f32.mrb[0].mxu0
      %v4460 = vadd.f32 0.0, %v4459
      %v4461 = vpop.f32.mrb[0].mxu0
      %4462 = vmatprep.mubr.bf16.mxu0 0
      %4463 = vmatmul.mubr.bf16.gmra.mrb[0].mxu0 %v4343
      %v4464 = vpop.f32.mrb[0].mxu0
      %v4465 = vadd.f32 0.0, %v4464
      %v4466 = vpop.f32.mrb[0].mxu0
      %v4467 = vpop.f32.mrb[0].mxu0
      %v4468 = vadd.f32 0.0, %v4467
      %v4469 = vpop.f32.mrb[0].mxu0
      %4470 = vmatprep.mubr.bf16.mxu0 0
      %4471 = vmatmul.mubr.bf16.gmra.mrb[0].mxu0 %v4344
      %v4472 = vpop.f32.mrb[0].mxu0
      %v4473 = vadd.f32 0.0, %v4472
      %v4474 = vpop.f32.mrb[0].mxu0
      %v4475 = vpop.f32.mrb[0].mxu0
      %v4476 = vadd.f32 0.0, %v4475
      %v4477 = vpop.f32.mrb[0].mxu0
      %4478 = vmatprep.mubr.bf16.mxu0 0
      %4479 = vmatmul.mubr.bf16.gmra.mrb[0].mxu0 %v4345
      %v4480 = vpop.f32.mrb[0].mxu0
      %v4481 = vadd.f32 0.0, %v4480
      %v4482 = vpop.f32.mrb[0].mxu0
      %v4483 = vpop.f32.mrb[0].mxu0
      %v4484 = vadd.f32 0.0, %v4483
      %v4485 = vpop.f32.mrb[0].mxu0
      %4486 = vmatprep.mubr.bf16.mxu0 0
      %4487 = vmatmul.mubr.bf16.gmra.mrb[0].mxu0 %v4346
      %v4488 = vpop.f32.mrb[0].mxu0
      %v4489 = vadd.f32 0.0, %v4488
      %v4490 = vpop.f32.mrb[0].mxu0
      %v4491 = vpop.f32.mrb[0].mxu0
      %v4492 = vadd.f32 0.0, %v4491
      %v4493 = vpop.f32.mrb[0].mxu0
      %4494 = vmatprep.mubr.bf16.mxu0 0
      %4495 = vmatmul.mubr.bf16.gmra.mrb[0].mxu0 %v4347
      %v4496 = vpop.f32.mrb[0].mxu0
      %v4497 = vadd.f32 0.0, %v4496
      %v4498 = vpop.f32.mrb[0].mxu0
      %v4499 = vpop.f32.mrb[0].mxu0
      %v4500 = vadd.f32 0.0, %v4499
      %v4501 = vpop.f32.mrb[0].mxu0
      %4502 = vmatprep.mubr.bf16.mxu0 0
      %4503 = vmatmul.mubr.bf16.gmra.mrb[0].mxu0 %v4348
      %v4504 = vpop.f32.mrb[0].mxu0
      %v4505 = vadd.f32 0.0, %v4504
      %v4506 = vpop.f32.mrb[0].mxu0
      %v4507 = vpop.f32.mrb[0].mxu0
      %v4508 = vadd.f32 0.0, %v4507
      %v4509 = vpop.f32.mrb[0].mxu0
      %4510 = vmatprep.mubr.bf16.mxu0 0
      %4511 = vmatmul.mubr.bf16.gmra.mrb[0].mxu0 %v4349
      %v4512 = vpop.f32.mrb[0].mxu0
      %v4513 = vadd.f32 0.0, %v4512
      %v4514 = vpop.f32.mrb[0].mxu0
      %v4515 = vpop.f32.mrb[0].mxu0
      %v4516 = vadd.f32 0.0, %v4515
      %v4517 = vpop.f32.mrb[0].mxu0
      %4518 = vmatprep.mubr.bf16.mxu0 0
      %4519 = vmatmul.mubr.bf16.gmra.mrb[0].mxu0 %v4350
      %v4520 = vpop.f32.mrb[0].mxu0
      %v4521 = vadd.f32 0.0, %v4520
      %v4522 = vpop.f32.mrb[0].mxu0
      %v4523 = vpop.f32.mrb[0].mxu0
      %v4524 = vadd.f32 0.0, %v4523
      %v4525 = vpop.f32.mrb[0].mxu0
      %4526 = vmatprep.mubr.bf16.mxu0 0
      %4527 = vmatmul.mubr.bf16.gmra.mrb[0].mxu0 %v4351
      %v4528 = vpop.f32.mrb[0].mxu0
      %v4529 = vadd.f32 0.0, %v4528
      %v4530 = vpop.f32.mrb[0].mxu0
      %v4531 = vpop.f32.mrb[0].mxu0
      %v4532 = vadd.f32 0.0, %v4531
      %v4533 = vpop.f32.mrb[0].mxu0
      %4534 = vmatprep.mubr.bf16.mxu0 0
      %4535 = vmatmul.mubr.bf16.gmra.mrb[0].mxu0 %v4352
      %v4536 = vpop.f32.mrb[0].mxu0
      %v4537 = vadd.f32 0.0, %v4536
      %v4538 = vpop.f32.mrb[0].mxu0
      %v4539 = vpop.f32.mrb[0].mxu0
      %v4540 = vadd.f32 0.0, %v4539
      %v4541 = vpop.f32.mrb[0].mxu0
      %4542 = vmatprep.mubr.bf16.mxu0 0
      %4543 = vmatmul.mubr.bf16.gmra.mrb[0].mxu0 %v4353
      %v4544 = vpop.f32.mrb[0].mxu0
      %v4545 = vadd.f32 0.0, %v4544
      %v4546 = vpop.f32.mrb[0].mxu0
      %v4547 = vpop.f32.mrb[0].mxu0
      %v4548 = vadd.f32 0.0, %v4547
      %v4549 = vpop.f32.mrb[0].mxu0
      %4550 = vmatprep.mubr.bf16.mxu0 0
      %4551 = vmatmul.mubr.bf16.gmra.mrb[0].mxu0 %v4354
      %v4552 = vpop.f32.mrb[0].mxu0
      %v4553 = vadd.f32 0.0, %v4552
      %v4554 = vpop.f32.mrb[0].mxu0
      %v4555 = vpop.f32.mrb[0].mxu0
      %v4556 = vadd.f32 0.0, %v4555
      %v4557 = vpop.f32.mrb[0].mxu0
      %4558 = vmatprep.mubr.bf16.mxu0 0
      %4559 = vmatmul.mubr.bf16.gmra.mrb[0].mxu0 %v4355
      %v4560 = vpop.f32.mrb[0].mxu0
      %v4561 = vadd.f32 0.0, %v4560
      %v4562 = vpop.f32.mrb[0].mxu0
      %v4563 = vpop.f32.mrb[0].mxu0
      %v4564 = vadd.f32 0.0, %v4563
      %v4565 = vpop.f32.mrb[0].mxu0
      %4566 = vmatprep.mubr.bf16.mxu0 0
      %4567 = vmatmul.mubr.bf16.gmra.mrb[0].mxu0 %v4356
      %v4568 = vpop.f32.mrb[0].mxu0
      %v4569 = vadd.f32 0.0, %v4568
      %v4570 = vpop.f32.mrb[0].mxu0
      %v4571 = vpop.f32.mrb[0].mxu0
      %v4572 = vadd.f32 0.0, %v4571
      %v4573 = vpop.f32.mrb[0].mxu0
      %4574 = vmatprep.mubr.bf16.mxu0 0
      %4575 = vmatmul.mubr.bf16.gmra.mrb[0].mxu0 %v4357
      %v4576 = vpop.f32.mrb[0].mxu0
      %v4577 = vadd.f32 0.0, %v4576
      %v4578 = vpop.f32.mrb[0].mxu0
      %v4579 = vpop.f32.mrb[0].mxu0
      %v4580 = vadd.f32 0.0, %v4579
      %v4581 = vpop.f32.mrb[0].mxu0
      %4582 = vdwg.mxu0
      %v4583 = vadd.f32 %v4196, %v4457
      %v4584 = vadd.f32 %v4197, %v4460
      %v4585 = vadd.f32 %v4198, %v4465
      %v4586 = vadd.f32 %v4199, %v4468
      %v4587 = vadd.f32 %v4200, %v4473
      %v4588 = vadd.f32 %v4201, %v4476
      %v4589 = vadd.f32 %v4202, %v4481
      %v4590 = vadd.f32 %v4203, %v4484
      %v4591 = vadd.f32 %v4204, %v4489
      %v4592 = vadd.f32 %v4205, %v4492
      %v4593 = vadd.f32 %v4206, %v4497
      %v4594 = vadd.f32 %v4207, %v4500
      %v4595 = vadd.f32 %v4208, %v4505
      %v4596 = vadd.f32 %v4209, %v4508
      %v4597 = vadd.f32 %v4210, %v4513
      %v4598 = vadd.f32 %v4211, %v4516
      %v4599 = vadd.f32 %v4212, %v4521
      %v4600 = vadd.f32 %v4213, %v4524
      %v4601 = vadd.f32 %v4214, %v4529
      %v4602 = vadd.f32 %v4215, %v4532
      %v4603 = vadd.f32 %v4216, %v4537
      %v4604 = vadd.f32 %v4217, %v4540
      %v4605 = vadd.f32 %v4218, %v4545
      %v4606 = vadd.f32 %v4219, %v4548
      %v4607 = vadd.f32 %v4220, %v4553
      %v4608 = vadd.f32 %v4221, %v4556
      %v4609 = vadd.f32 %v4222, %v4561
      %v4610 = vadd.f32 %v4223, %v4564
      %v4611 = vadd.f32 %v4224, %v4569
      %v4612 = vadd.f32 %v4225, %v4572
      %v4613 = vadd.f32 %v4226, %v4577
      %v4614 = vadd.f32 %v4227, %v4580
      %v4615 = vld [vmem:[%s4228] sm:$0xf]
      %v4616 = vld [vmem:[%s4228 + $0x4] sm:$0xf]
      %v4617 = vld [vmem:[%s4228 + $0x8] sm:$0x1]
      %v4618 = vld [vmem:[%s4228 + $0xc] sm:$0xf]
      %v4619 = vld [vmem:[%s4228 + $0x10] sm:$0xf]
      %v4620 = vld [vmem:[%s4228 + $0x14] sm:$0x1]
      %v4621 = vld [vmem:[%s4228 + $0x18] sm:$0xf]
      %v4622 = vld [vmem:[%s4228 + $0x1c] sm:$0xf]
      %v4623 = vld [vmem:[%s4228 + $0x20] sm:$0x1]
      %v4624 = vld [vmem:[%s4228 + $0x24] sm:$0xf]
      %v4625 = vld [vmem:[%s4228 + $0x28] sm:$0xf]
      %v4626 = vld [vmem:[%s4228 + $0x2c] sm:$0x1]
      %v4627 = vld [vmem:[%s4228 + $0x30] sm:$0xf]
      %v4628 = vld [vmem:[%s4228 + $0x34] sm:$0xf]
      %v4629 = vld [vmem:[%s4228 + $0x38] sm:$0x1]
      %v4630 = vld [vmem:[%s4228 + $0x3c] sm:$0xf]
      %v4631 = vld [vmem:[%s4228 + $0x40] sm:$0xf]
      %v4632 = vld [vmem:[%s4228 + $0x44] sm:$0x1]
      %v4633 = vld [vmem:[%s4228 + $0x48] sm:$0xf]
      %v4634 = vld [vmem:[%s4228 + $0x4c] sm:$0xf]
      %v4635 = vld [vmem:[%s4228 + $0x50] sm:$0x1]
      %v4636 = vld [vmem:[%s4228 + $0x54] sm:$0xf]
      %v4637 = vld [vmem:[%s4228 + $0x58] sm:$0xf]
      %v4638 = vld [vmem:[%s4228 + $0x5c] sm:$0x1]
      %v4639 = vld [vmem:[%s4228 + $0x60] sm:$0xf]
      %v4640 = vld [vmem:[%s4228 + $0x64] sm:$0xf]
      %v4641 = vld [vmem:[%s4228 + $0x68] sm:$0x1]
      %v4642 = vld [vmem:[%s4228 + $0x6c] sm:$0xf]
      %v4643 = vld [vmem:[%s4228 + $0x70] sm:$0xf]
      %v4644 = vld [vmem:[%s4228 + $0x74] sm:$0x1]
      %v4645 = vld [vmem:[%s4228 + $0x78] sm:$0xf]
      %v4646 = vld [vmem:[%s4228 + $0x7c] sm:$0xf]
      %v4647 = vld [vmem:[%s4228 + $0x80] sm:$0x1]
      %v4648 = vld [vmem:[%s4228 + $0x84] sm:$0xf]
      %v4649 = vld [vmem:[%s4228 + $0x88] sm:$0xf]
      %v4650 = vld [vmem:[%s4228 + $0x8c] sm:$0x1]
      %v4651 = vld [vmem:[%s4228 + $0x90] sm:$0xf]
      %v4652 = vld [vmem:[%s4228 + $0x94] sm:$0xf]
      %v4653 = vld [vmem:[%s4228 + $0x98] sm:$0x1]
      %v4654 = vld [vmem:[%s4228 + $0x9c] sm:$0xf]
      %v4655 = vld [vmem:[%s4228 + $0xa0] sm:$0xf]
      %v4656 = vld [vmem:[%s4228 + $0xa4] sm:$0x1]
      %v4657 = vld [vmem:[%s4228 + $0xa8] sm:$0xf]
      %v4658 = vld [vmem:[%s4228 + $0xac] sm:$0xf]
      %v4659 = vld [vmem:[%s4228 + $0xb0] sm:$0x1]
      %v4660 = vld [vmem:[%s4228 + $0xb4] sm:$0xf]
      %v4661 = vld [vmem:[%s4228 + $0xb8] sm:$0xf]
      %v4662 = vld [vmem:[%s4228 + $0xbc] sm:$0x1]
      %v4664 = vshrl.u32 %v4615, 16
      %v4666 = vrot.slane %v4664, 4
      %v4667 = vshll.u32 %v4615, 16
      %v4669 = vrot.slane %v4667, 5
      %v4670 = vor.u32 %v4666, %v4669
      %v4671 = vrot.slane %v4670, 4
      %v4673 = vshll.u32 %v4616, 16
      %v4675 = vrot.slane %v4673, 5
      %v4676 = vsel %vm1125, %v4671, %v4675
      %v4677 = vshrl.u32 %v4616, 16
      %v4679 = vrot.slane %v4677, 4
      %v4680 = vor.u32 %v4679, %v4675
      %v4681 = vrot.slane %v4680, 4
      %v4683 = vshll.u32 %v4617, 16
      %v4685 = vrot.slane %v4683, 5
      %v4686 = vsel %vm1125, %v4681, %v4685
      %v4688 = vshrl.u32 %v4618, 16
      %v4690 = vrot.slane %v4688, 4
      %v4691 = vshll.u32 %v4618, 16
      %v4693 = vrot.slane %v4691, 5
      %v4694 = vor.u32 %v4690, %v4693
      %v4695 = vrot.slane %v4694, 4
      %v4697 = vshll.u32 %v4619, 16
      %v4699 = vrot.slane %v4697, 5
      %v4700 = vsel %vm1125, %v4695, %v4699
      %v4701 = vshrl.u32 %v4619, 16
      %v4703 = vrot.slane %v4701, 4
      %v4704 = vor.u32 %v4703, %v4699
      %v4705 = vrot.slane %v4704, 4
      %v4707 = vshll.u32 %v4620, 16
      %v4709 = vrot.slane %v4707, 5
      %v4710 = vsel %vm1125, %v4705, %v4709
      %v4712 = vshrl.u32 %v4621, 16
      %v4714 = vrot.slane %v4712, 4
      %v4715 = vshll.u32 %v4621, 16
      %v4717 = vrot.slane %v4715, 5
      %v4718 = vor.u32 %v4714, %v4717
      %v4719 = vrot.slane %v4718, 4
      %v4721 = vshll.u32 %v4622, 16
      %v4723 = vrot.slane %v4721, 5
      %v4724 = vsel %vm1125, %v4719, %v4723
      %v4725 = vshrl.u32 %v4622, 16
      %v4727 = vrot.slane %v4725, 4
      %v4728 = vor.u32 %v4727, %v4723
      %v4729 = vrot.slane %v4728, 4
      %v4731 = vshll.u32 %v4623, 16
      %v4733 = vrot.slane %v4731, 5
      %v4734 = vsel %vm1125, %v4729, %v4733
      %v4736 = vshrl.u32 %v4624, 16
      %v4738 = vrot.slane %v4736, 4
      %v4739 = vshll.u32 %v4624, 16
      %v4741 = vrot.slane %v4739, 5
      %v4742 = vor.u32 %v4738, %v4741
      %v4743 = vrot.slane %v4742, 4
      %v4745 = vshll.u32 %v4625, 16
      %v4747 = vrot.slane %v4745, 5
      %v4748 = vsel %vm1125, %v4743, %v4747
      %v4749 = vshrl.u32 %v4625, 16
      %v4751 = vrot.slane %v4749, 4
      %v4752 = vor.u32 %v4751, %v4747
      %v4753 = vrot.slane %v4752, 4
      %v4755 = vshll.u32 %v4626, 16
      %v4757 = vrot.slane %v4755, 5
      %v4758 = vsel %vm1125, %v4753, %v4757
      %v4760 = vshrl.u32 %v4627, 16
      %v4762 = vrot.slane %v4760, 4
      %v4763 = vshll.u32 %v4627, 16
      %v4765 = vrot.slane %v4763, 5
      %v4766 = vor.u32 %v4762, %v4765
      %v4767 = vrot.slane %v4766, 4
      %v4769 = vshll.u32 %v4628, 16
      %v4771 = vrot.slane %v4769, 5
      %v4772 = vsel %vm1125, %v4767, %v4771
      %v4773 = vshrl.u32 %v4628, 16
      %v4775 = vrot.slane %v4773, 4
      %v4776 = vor.u32 %v4775, %v4771
      %v4777 = vrot.slane %v4776, 4
      %v4779 = vshll.u32 %v4629, 16
      %v4781 = vrot.slane %v4779, 5
      %v4782 = vsel %vm1125, %v4777, %v4781
      %v4784 = vshrl.u32 %v4630, 16
      %v4786 = vrot.slane %v4784, 4
      %v4787 = vshll.u32 %v4630, 16
      %v4789 = vrot.slane %v4787, 5
      %v4790 = vor.u32 %v4786, %v4789
      %v4791 = vrot.slane %v4790, 4
      %v4793 = vshll.u32 %v4631, 16
      %v4795 = vrot.slane %v4793, 5
      %v4796 = vsel %vm1125, %v4791, %v4795
      %v4797 = vshrl.u32 %v4631, 16
      %v4799 = vrot.slane %v4797, 4
      %v4800 = vor.u32 %v4799, %v4795
      %v4801 = vrot.slane %v4800, 4
      %v4803 = vshll.u32 %v4632, 16
      %v4805 = vrot.slane %v4803, 5
      %v4806 = vsel %vm1125, %v4801, %v4805
      %v4808 = vshrl.u32 %v4633, 16
      %v4810 = vrot.slane %v4808, 4
      %v4811 = vshll.u32 %v4633, 16
      %v4813 = vrot.slane %v4811, 5
      %v4814 = vor.u32 %v4810, %v4813
      %v4815 = vrot.slane %v4814, 4
      %v4817 = vshll.u32 %v4634, 16
      %v4819 = vrot.slane %v4817, 5
      %v4820 = vsel %vm1125, %v4815, %v4819
      %v4821 = vshrl.u32 %v4634, 16
      %v4823 = vrot.slane %v4821, 4
      %v4824 = vor.u32 %v4823, %v4819
      %v4825 = vrot.slane %v4824, 4
      %v4827 = vshll.u32 %v4635, 16
      %v4829 = vrot.slane %v4827, 5
      %v4830 = vsel %vm1125, %v4825, %v4829
      %v4832 = vshrl.u32 %v4636, 16
      %v4834 = vrot.slane %v4832, 4
      %v4835 = vshll.u32 %v4636, 16
      %v4837 = vrot.slane %v4835, 5
      %v4838 = vor.u32 %v4834, %v4837
      %v4839 = vrot.slane %v4838, 4
      %v4841 = vshll.u32 %v4637, 16
      %v4843 = vrot.slane %v4841, 5
      %v4844 = vsel %vm1125, %v4839, %v4843
      %v4845 = vshrl.u32 %v4637, 16
      %v4847 = vrot.slane %v4845, 4
      %v4848 = vor.u32 %v4847, %v4843
      %v4849 = vrot.slane %v4848, 4
      %v4851 = vshll.u32 %v4638, 16
      %v4853 = vrot.slane %v4851, 5
      %v4854 = vsel %vm1125, %v4849, %v4853
      %v4856 = vshrl.u32 %v4639, 16
      %v4858 = vrot.slane %v4856, 4
      %v4859 = vshll.u32 %v4639, 16
      %v4861 = vrot.slane %v4859, 5
      %v4862 = vor.u32 %v4858, %v4861
      %v4863 = vrot.slane %v4862, 4
      %v4865 = vshll.u32 %v4640, 16
      %v4867 = vrot.slane %v4865, 5
      %v4868 = vsel %vm1125, %v4863, %v4867
      %v4869 = vshrl.u32 %v4640, 16
      %v4871 = vrot.slane %v4869, 4
      %v4872 = vor.u32 %v4871, %v4867
      %v4873 = vrot.slane %v4872, 4
      %v4875 = vshll.u32 %v4641, 16
      %v4877 = vrot.slane %v4875, 5
      %v4878 = vsel %vm1125, %v4873, %v4877
      %v4880 = vshrl.u32 %v4642, 16
      %v4882 = vrot.slane %v4880, 4
      %v4883 = vshll.u32 %v4642, 16
      %v4885 = vrot.slane %v4883, 5
      %v4886 = vor.u32 %v4882, %v4885
      %v4887 = vrot.slane %v4886, 4
      %v4889 = vshll.u32 %v4643, 16
      %v4891 = vrot.slane %v4889, 5
      %v4892 = vsel %vm1125, %v4887, %v4891
      %v4893 = vshrl.u32 %v4643, 16
      %v4895 = vrot.slane %v4893, 4
      %v4896 = vor.u32 %v4895, %v4891
      %v4897 = vrot.slane %v4896, 4
      %v4899 = vshll.u32 %v4644, 16
      %v4901 = vrot.slane %v4899, 5
      %v4902 = vsel %vm1125, %v4897, %v4901
      %v4904 = vshrl.u32 %v4645, 16
      %v4906 = vrot.slane %v4904, 4
      %v4907 = vshll.u32 %v4645, 16
      %v4909 = vrot.slane %v4907, 5
      %v4910 = vor.u32 %v4906, %v4909
      %v4911 = vrot.slane %v4910, 4
      %v4913 = vshll.u32 %v4646, 16
      %v4915 = vrot.slane %v4913, 5
      %v4916 = vsel %vm1125, %v4911, %v4915
      %v4917 = vshrl.u32 %v4646, 16
      %v4919 = vrot.slane %v4917, 4
      %v4920 = vor.u32 %v4919, %v4915
      %v4921 = vrot.slane %v4920, 4
      %v4923 = vshll.u32 %v4647, 16
      %v4925 = vrot.slane %v4923, 5
      %v4926 = vsel %vm1125, %v4921, %v4925
      %v4928 = vshrl.u32 %v4648, 16
      %v4930 = vrot.slane %v4928, 4
      %v4931 = vshll.u32 %v4648, 16
      %v4933 = vrot.slane %v4931, 5
      %v4934 = vor.u32 %v4930, %v4933
      %v4935 = vrot.slane %v4934, 4
      %v4937 = vshll.u32 %v4649, 16
      %v4939 = vrot.slane %v4937, 5
      %v4940 = vsel %vm1125, %v4935, %v4939
      %v4941 = vshrl.u32 %v4649, 16
      %v4943 = vrot.slane %v4941, 4
      %v4944 = vor.u32 %v4943, %v4939
      %v4945 = vrot.slane %v4944, 4
      %v4947 = vshll.u32 %v4650, 16
      %v4949 = vrot.slane %v4947, 5
      %v4950 = vsel %vm1125, %v4945, %v4949
      %v4952 = vshrl.u32 %v4651, 16
      %v4954 = vrot.slane %v4952, 4
      %v4955 = vshll.u32 %v4651, 16
      %v4957 = vrot.slane %v4955, 5
      %v4958 = vor.u32 %v4954, %v4957
      %v4959 = vrot.slane %v4958, 4
      %v4961 = vshll.u32 %v4652, 16
      %v4963 = vrot.slane %v4961, 5
      %v4964 = vsel %vm1125, %v4959, %v4963
      %v4965 = vshrl.u32 %v4652, 16
      %v4967 = vrot.slane %v4965, 4
      %v4968 = vor.u32 %v4967, %v4963
      %v4969 = vrot.slane %v4968, 4
      %v4971 = vshll.u32 %v4653, 16
      %v4973 = vrot.slane %v4971, 5
      %v4974 = vsel %vm1125, %v4969, %v4973
      %v4976 = vshrl.u32 %v4654, 16
      %v4978 = vrot.slane %v4976, 4
      %v4979 = vshll.u32 %v4654, 16
      %v4981 = vrot.slane %v4979, 5
      %v4982 = vor.u32 %v4978, %v4981
      %v4983 = vrot.slane %v4982, 4
      %v4985 = vshll.u32 %v4655, 16
      %v4987 = vrot.slane %v4985, 5
      %v4988 = vsel %vm1125, %v4983, %v4987
      %v4989 = vshrl.u32 %v4655, 16
      %v4991 = vrot.slane %v4989, 4
      %v4992 = vor.u32 %v4991, %v4987
      %v4993 = vrot.slane %v4992, 4
      %v4995 = vshll.u32 %v4656, 16
      %v4997 = vrot.slane %v4995, 5
      %v4998 = vsel %vm1125, %v4993, %v4997
      %v5000 = vshrl.u32 %v4657, 16
      %v5002 = vrot.slane %v5000, 4
      %v5003 = vshll.u32 %v4657, 16
      %v5005 = vrot.slane %v5003, 5
      %v5006 = vor.u32 %v5002, %v5005
      %v5007 = vrot.slane %v5006, 4
      %v5009 = vshll.u32 %v4658, 16
      %v5011 = vrot.slane %v5009, 5
      %v5012 = vsel %vm1125, %v5007, %v5011
      %v5013 = vshrl.u32 %v4658, 16
      %v5015 = vrot.slane %v5013, 4
      %v5016 = vor.u32 %v5015, %v5011
      %v5017 = vrot.slane %v5016, 4
      %v5019 = vshll.u32 %v4659, 16
      %v5021 = vrot.slane %v5019, 5
      %v5022 = vsel %vm1125, %v5017, %v5021
      %v5024 = vshrl.u32 %v4660, 16
      %v5026 = vrot.slane %v5024, 4
      %v5027 = vshll.u32 %v4660, 16
      %v5029 = vrot.slane %v5027, 5
      %v5030 = vor.u32 %v5026, %v5029
      %v5031 = vrot.slane %v5030, 4
      %v5033 = vshll.u32 %v4661, 16
      %v5035 = vrot.slane %v5033, 5
      %v5036 = vsel %vm1125, %v5031, %v5035
      %v5037 = vshrl.u32 %v4661, 16
      %v5039 = vrot.slane %v5037, 4
      %v5040 = vor.u32 %v5039, %v5035
      %v5041 = vrot.slane %v5040, 4
      %v5043 = vshll.u32 %v4662, 16
      %v5045 = vrot.slane %v5043, 5
      %v5046 = vsel %vm1125, %v5041, %v5045
      %s5047 = scalar_lea.vmem %s4, 448
      %v5048 = vld [vmem:[%s5047] sm:$0xf]
      %v5049 = vld [vmem:[%s5047 + $0x4] sm:$0xf]
      %v5050 = vld [vmem:[%s5047 + $0x8] sm:$0xf]
      %v5051 = vld [vmem:[%s5047 + $0xc] sm:$0xf]
      %v5052 = vld [vmem:[%s5047 + $0x10] sm:$0xf]
      %v5053 = vld [vmem:[%s5047 + $0x14] sm:$0xf]
      %v5054 = vld [vmem:[%s5047 + $0x18] sm:$0xf]
      %v5055 = vld [vmem:[%s5047 + $0x1c] sm:$0xf]
      %v5056 = vld [vmem:[%s5047 + $0x20] sm:$0xf]
      %v5057 = vld [vmem:[%s5047 + $0x24] sm:$0xf]
      %v5058 = vld [vmem:[%s5047 + $0x28] sm:$0xf]
      %v5059 = vld [vmem:[%s5047 + $0x2c] sm:$0xf]
      %v5060 = vld [vmem:[%s5047 + $0x30] sm:$0xf]
      %v5061 = vld [vmem:[%s5047 + $0x34] sm:$0xf]
      %v5062 = vld [vmem:[%s5047 + $0x38] sm:$0xf]
      %v5063 = vld [vmem:[%s5047 + $0x3c] sm:$0xf]
      %v5064 = vunpack.c.l.b16 %v4676
      %v5065 = vunpack.c.l.b16 %v4686
      %v5066 = vunpack.c.l.b16 %v4700
      %v5067 = vunpack.c.l.b16 %v4710
      %v5068 = vunpack.c.l.b16 %v4724
      %v5069 = vunpack.c.l.b16 %v4734
      %v5070 = vunpack.c.l.b16 %v4748
      %v5071 = vunpack.c.l.b16 %v4758
      %v5072 = vunpack.c.l.b16 %v4772
      %v5073 = vunpack.c.l.b16 %v4782
      %v5074 = vunpack.c.l.b16 %v4796
      %v5075 = vunpack.c.l.b16 %v4806
      %v5076 = vunpack.c.l.b16 %v4820
      %v5077 = vunpack.c.l.b16 %v4830
      %v5078 = vunpack.c.l.b16 %v4844
      %v5079 = vunpack.c.l.b16 %v4854
      %v5080 = vunpack.c.l.b16 %v4868
      %v5081 = vunpack.c.l.b16 %v4878
      %v5082 = vunpack.c.l.b16 %v4892
      %v5083 = vunpack.c.l.b16 %v4902
      %v5084 = vunpack.c.l.b16 %v4916
      %v5085 = vunpack.c.l.b16 %v4926
      %v5086 = vunpack.c.l.b16 %v4940
      %v5087 = vunpack.c.l.b16 %v4950
      %v5088 = vunpack.c.l.b16 %v4964
      %v5089 = vunpack.c.l.b16 %v4974
      %v5090 = vunpack.c.l.b16 %v4988
      %v5091 = vunpack.c.l.b16 %v4998
      %v5092 = vunpack.c.l.b16 %v5012
      %v5093 = vunpack.c.l.b16 %v5022
      %v5094 = vunpack.c.l.b16 %v5036
      %v5095 = vunpack.c.l.b16 %v5046
      %v5096 = vpack.c.b16 %v5065, %v5064
      %v5097 = vpack.c.b16 %v5067, %v5066
      %v5098 = vpack.c.b16 %v5069, %v5068
      %v5099 = vpack.c.b16 %v5071, %v5070
      %v5100 = vpack.c.b16 %v5073, %v5072
      %v5101 = vpack.c.b16 %v5075, %v5074
      %v5102 = vpack.c.b16 %v5077, %v5076
      %v5103 = vpack.c.b16 %v5079, %v5078
      %v5104 = vpack.c.b16 %v5081, %v5080
      %v5105 = vpack.c.b16 %v5083, %v5082
      %v5106 = vpack.c.b16 %v5085, %v5084
      %v5107 = vpack.c.b16 %v5087, %v5086
      %v5108 = vpack.c.b16 %v5089, %v5088
      %v5109 = vpack.c.b16 %v5091, %v5090
      %v5110 = vpack.c.b16 %v5093, %v5092
      %v5111 = vpack.c.b16 %v5095, %v5094
      %v5144 = vunpack.c.l.b16 %v5048
      %v5145 = vunpack.c.l.b16 %v5049
      %v5146 = vunpack.c.l.b16 %v5050
      %v5147 = vunpack.c.l.b16 %v5051
      %v5148 = vunpack.c.l.b16 %v5052
      %v5149 = vunpack.c.l.b16 %v5053
      %v5150 = vunpack.c.l.b16 %v5054
      %v5151 = vunpack.c.l.b16 %v5055
      %v5152 = vunpack.c.l.b16 %v5056
      %v5153 = vunpack.c.l.b16 %v5057
      %v5154 = vunpack.c.l.b16 %v5058
      %v5155 = vunpack.c.l.b16 %v5059
      %v5156 = vunpack.c.l.b16 %v5060
      %v5157 = vunpack.c.l.b16 %v5061
      %v5158 = vunpack.c.l.b16 %v5062
      %v5159 = vunpack.c.l.b16 %v5063
      %v5160 = vpack.c.b16 %v5145, %v5144
      %v5161 = vpack.c.b16 %v5147, %v5146
      %v5162 = vpack.c.b16 %v5149, %v5148
      %v5163 = vpack.c.b16 %v5151, %v5150
      %v5164 = vpack.c.b16 %v5153, %v5152
      %v5165 = vpack.c.b16 %v5155, %v5154
      %v5166 = vpack.c.b16 %v5157, %v5156
      %v5167 = vpack.c.b16 %v5159, %v5158
      %5176 = vmatprep.subr.bf16.mxu0 0
      %5177 = vmatpush1.bf16.msra.mxu0 %v5160
      %5178 = vmatprep.subr.bf16.mxu0 0
      %5179 = vmatpush1.bf16.msra.mxu0 %v5161
      %5180 = vmatprep.subr.bf16.mxu0 0
      %5181 = vmatpush1.bf16.msra.mxu0 %v5162
      %5182 = vmatprep.subr.bf16.mxu0 0
      %5183 = vmatpush1.bf16.msra.mxu0 %v5163
      %5184 = vmatprep.subr.bf16.mxu0 0
      %5185 = vmatpush1.bf16.msra.mxu0 %v5164
      %5186 = vmatprep.subr.bf16.mxu0 0
      %5187 = vmatpush1.bf16.msra.mxu0 %v5165
      %5188 = vmatprep.subr.bf16.mxu0 0
      %5189 = vmatpush1.bf16.msra.mxu0 %v5166
      %5190 = vmatprep.subr.bf16.mxu0 0
      %5191 = vmatpush1.bf16.msra.mxu0 %v5167
      %5192 = vmatprep.subr.bf16.mxu0 0
      %5193 = vmatpush1.bf16.msra.mxu0 0
      %5194 = vmatprep.subr.bf16.mxu0 0
      %5195 = vmatpush1.bf16.msra.mxu0 0
      %5196 = vmatprep.subr.bf16.mxu0 0
      %5197 = vmatpush1.bf16.msra.mxu0 0
      %5198 = vmatprep.subr.bf16.mxu0 0
      %5199 = vmatpush1.bf16.msra.mxu0 0
      %5200 = vmatprep.subr.bf16.mxu0 0
      %5201 = vmatpush1.bf16.msra.mxu0 0
      %5202 = vmatprep.subr.bf16.mxu0 0
      %5203 = vmatpush1.bf16.msra.mxu0 0
      %5204 = vmatprep.subr.bf16.mxu0 0
      %5205 = vmatpush1.bf16.msra.mxu0 0
      %5206 = vmatprep.subr.bf16.mxu0 0
      %5207 = vmatpush1.bf16.msra.mxu0 0
      %5208 = vmatprep.mubr.bf16.mxu0 0
      %5209 = vmatmul.mubr.bf16.gmra.mrb[0].mxu0 %v5096
      %v5210 = vpop.f32.mrb[0].mxu0
      %v5211 = vadd.f32 0.0, %v5210
      %v5212 = vpop.f32.mrb[0].mxu0
      %v5213 = vpop.f32.mrb[0].mxu0
      %v5214 = vadd.f32 0.0, %v5213
      %v5215 = vpop.f32.mrb[0].mxu0
      %5216 = vmatprep.mubr.bf16.mxu0 0
      %5217 = vmatmul.mubr.bf16.gmra.mrb[0].mxu0 %v5097
      %v5218 = vpop.f32.mrb[0].mxu0
      %v5219 = vadd.f32 0.0, %v5218
      %v5220 = vpop.f32.mrb[0].mxu0
      %v5221 = vpop.f32.mrb[0].mxu0
      %v5222 = vadd.f32 0.0, %v5221
      %v5223 = vpop.f32.mrb[0].mxu0
      %5224 = vmatprep.mubr.bf16.mxu0 0
      %5225 = vmatmul.mubr.bf16.gmra.mrb[0].mxu0 %v5098
      %v5226 = vpop.f32.mrb[0].mxu0
      %v5227 = vadd.f32 0.0, %v5226
      %v5228 = vpop.f32.mrb[0].mxu0
      %v5229 = vpop.f32.mrb[0].mxu0
      %v5230 = vadd.f32 0.0, %v5229
      %v5231 = vpop.f32.mrb[0].mxu0
      %5232 = vmatprep.mubr.bf16.mxu0 0
      %5233 = vmatmul.mubr.bf16.gmra.mrb[0].mxu0 %v5099
      %v5234 = vpop.f32.mrb[0].mxu0
      %v5235 = vadd.f32 0.0, %v5234
      %v5236 = vpop.f32.mrb[0].mxu0
      %v5237 = vpop.f32.mrb[0].mxu0
      %v5238 = vadd.f32 0.0, %v5237
      %v5239 = vpop.f32.mrb[0].mxu0
      %5240 = vmatprep.mubr.bf16.mxu0 0
      %5241 = vmatmul.mubr.bf16.gmra.mrb[0].mxu0 %v5100
      %v5242 = vpop.f32.mrb[0].mxu0
      %v5243 = vadd.f32 0.0, %v5242
      %v5244 = vpop.f32.mrb[0].mxu0
      %v5245 = vpop.f32.mrb[0].mxu0
      %v5246 = vadd.f32 0.0, %v5245
      %v5247 = vpop.f32.mrb[0].mxu0
      %5248 = vmatprep.mubr.bf16.mxu0 0
      %5249 = vmatmul.mubr.bf16.gmra.mrb[0].mxu0 %v5101
      %v5250 = vpop.f32.mrb[0].mxu0
      %v5251 = vadd.f32 0.0, %v5250
      %v5252 = vpop.f32.mrb[0].mxu0
      %v5253 = vpop.f32.mrb[0].mxu0
      %v5254 = vadd.f32 0.0, %v5253
      %v5255 = vpop.f32.mrb[0].mxu0
      %5256 = vmatprep.mubr.bf16.mxu0 0
      %5257 = vmatmul.mubr.bf16.gmra.mrb[0].mxu0 %v5102
      %v5258 = vpop.f32.mrb[0].mxu0
      %v5259 = vadd.f32 0.0, %v5258
      %v5260 = vpop.f32.mrb[0].mxu0
      %v5261 = vpop.f32.mrb[0].mxu0
      %v5262 = vadd.f32 0.0, %v5261
      %v5263 = vpop.f32.mrb[0].mxu0
      %5264 = vmatprep.mubr.bf16.mxu0 0
      %5265 = vmatmul.mubr.bf16.gmra.mrb[0].mxu0 %v5103
      %v5266 = vpop.f32.mrb[0].mxu0
      %v5267 = vadd.f32 0.0, %v5266
      %v5268 = vpop.f32.mrb[0].mxu0
      %v5269 = vpop.f32.mrb[0].mxu0
      %v5270 = vadd.f32 0.0, %v5269
      %v5271 = vpop.f32.mrb[0].mxu0
      %5272 = vmatprep.mubr.bf16.mxu0 0
      %5273 = vmatmul.mubr.bf16.gmra.mrb[0].mxu0 %v5104
      %v5274 = vpop.f32.mrb[0].mxu0
      %v5275 = vadd.f32 0.0, %v5274
      %v5276 = vpop.f32.mrb[0].mxu0
      %v5277 = vpop.f32.mrb[0].mxu0
      %v5278 = vadd.f32 0.0, %v5277
      %v5279 = vpop.f32.mrb[0].mxu0
      %5280 = vmatprep.mubr.bf16.mxu0 0
      %5281 = vmatmul.mubr.bf16.gmra.mrb[0].mxu0 %v5105
      %v5282 = vpop.f32.mrb[0].mxu0
      %v5283 = vadd.f32 0.0, %v5282
      %v5284 = vpop.f32.mrb[0].mxu0
      %v5285 = vpop.f32.mrb[0].mxu0
      %v5286 = vadd.f32 0.0, %v5285
      %v5287 = vpop.f32.mrb[0].mxu0
      %5288 = vmatprep.mubr.bf16.mxu0 0
      %5289 = vmatmul.mubr.bf16.gmra.mrb[0].mxu0 %v5106
      %v5290 = vpop.f32.mrb[0].mxu0
      %v5291 = vadd.f32 0.0, %v5290
      %v5292 = vpop.f32.mrb[0].mxu0
      %v5293 = vpop.f32.mrb[0].mxu0
      %v5294 = vadd.f32 0.0, %v5293
      %v5295 = vpop.f32.mrb[0].mxu0
      %5296 = vmatprep.mubr.bf16.mxu0 0
      %5297 = vmatmul.mubr.bf16.gmra.mrb[0].mxu0 %v5107
      %v5298 = vpop.f32.mrb[0].mxu0
      %v5299 = vadd.f32 0.0, %v5298
      %v5300 = vpop.f32.mrb[0].mxu0
      %v5301 = vpop.f32.mrb[0].mxu0
      %v5302 = vadd.f32 0.0, %v5301
      %v5303 = vpop.f32.mrb[0].mxu0
      %5304 = vmatprep.mubr.bf16.mxu0 0
      %5305 = vmatmul.mubr.bf16.gmra.mrb[0].mxu0 %v5108
      %v5306 = vpop.f32.mrb[0].mxu0
      %v5307 = vadd.f32 0.0, %v5306
      %v5308 = vpop.f32.mrb[0].mxu0
      %v5309 = vpop.f32.mrb[0].mxu0
      %v5310 = vadd.f32 0.0, %v5309
      %v5311 = vpop.f32.mrb[0].mxu0
      %5312 = vmatprep.mubr.bf16.mxu0 0
      %5313 = vmatmul.mubr.bf16.gmra.mrb[0].mxu0 %v5109
      %v5314 = vpop.f32.mrb[0].mxu0
      %v5315 = vadd.f32 0.0, %v5314
      %v5316 = vpop.f32.mrb[0].mxu0
      %v5317 = vpop.f32.mrb[0].mxu0
      %v5318 = vadd.f32 0.0, %v5317
      %v5319 = vpop.f32.mrb[0].mxu0
      %5320 = vmatprep.mubr.bf16.mxu0 0
      %5321 = vmatmul.mubr.bf16.gmra.mrb[0].mxu0 %v5110
      %v5322 = vpop.f32.mrb[0].mxu0
      %v5323 = vadd.f32 0.0, %v5322
      %v5324 = vpop.f32.mrb[0].mxu0
      %v5325 = vpop.f32.mrb[0].mxu0
      %v5326 = vadd.f32 0.0, %v5325
      %v5327 = vpop.f32.mrb[0].mxu0
      %5328 = vmatprep.mubr.bf16.mxu0 0
      %5329 = vmatmul.mubr.bf16.gmra.mrb[0].mxu0 %v5111
      %v5330 = vpop.f32.mrb[0].mxu0
      %v5331 = vadd.f32 0.0, %v5330
      %v5332 = vpop.f32.mrb[0].mxu0
      %v5333 = vpop.f32.mrb[0].mxu0
      %v5334 = vadd.f32 0.0, %v5333
      %v5335 = vpop.f32.mrb[0].mxu0
      %5336 = vdwg.mxu0
      %v5337 = vadd.f32 %v4583, %v5211
      %v5338 = vadd.f32 %v4584, %v5214
      %v5339 = vadd.f32 %v4585, %v5219
      %v5340 = vadd.f32 %v4586, %v5222
      %v5341 = vadd.f32 %v4587, %v5227
      %v5342 = vadd.f32 %v4588, %v5230
      %v5343 = vadd.f32 %v4589, %v5235
      %v5344 = vadd.f32 %v4590, %v5238
      %v5345 = vadd.f32 %v4591, %v5243
      %v5346 = vadd.f32 %v4592, %v5246
      %v5347 = vadd.f32 %v4593, %v5251
      %v5348 = vadd.f32 %v4594, %v5254
      %v5349 = vadd.f32 %v4595, %v5259
      %v5350 = vadd.f32 %v4596, %v5262
      %v5351 = vadd.f32 %v4597, %v5267
      %v5352 = vadd.f32 %v4598, %v5270
      %v5353 = vadd.f32 %v4599, %v5275
      %v5354 = vadd.f32 %v4600, %v5278
      %v5355 = vadd.f32 %v4601, %v5283
      %v5356 = vadd.f32 %v4602, %v5286
      %v5357 = vadd.f32 %v4603, %v5291
      %v5358 = vadd.f32 %v4604, %v5294
      %v5359 = vadd.f32 %v4605, %v5299
      %v5360 = vadd.f32 %v4606, %v5302
      %v5361 = vadd.f32 %v4607, %v5307
      %v5362 = vadd.f32 %v4608, %v5310
      %v5363 = vadd.f32 %v4609, %v5315
      %v5364 = vadd.f32 %v4610, %v5318
      %v5365 = vadd.f32 %v4611, %v5323
      %v5366 = vadd.f32 %v4612, %v5326
      %v5367 = vadd.f32 %v4613, %v5331
      %v5368 = vadd.f32 %v4614, %v5334
      %v5369 = vld [vmem:[%s4228] sm:$0xe]
      %v5370 = vld [vmem:[%s4228 + $0xc] sm:$0xe]
      %v5371 = vld [vmem:[%s4228 + $0x18] sm:$0xe]
      %v5372 = vld [vmem:[%s4228 + $0x24] sm:$0xe]
      %v5373 = vld [vmem:[%s4228 + $0x30] sm:$0xe]
      %v5374 = vld [vmem:[%s4228 + $0x3c] sm:$0xe]
      %v5375 = vld [vmem:[%s4228 + $0x48] sm:$0xe]
      %v5376 = vld [vmem:[%s4228 + $0x54] sm:$0xe]
      %v5377 = vld [vmem:[%s4228 + $0x60] sm:$0xe]
      %v5378 = vld [vmem:[%s4228 + $0x6c] sm:$0xe]
      %v5379 = vld [vmem:[%s4228 + $0x78] sm:$0xe]
      %v5380 = vld [vmem:[%s4228 + $0x84] sm:$0xe]
      %v5381 = vld [vmem:[%s4228 + $0x90] sm:$0xe]
      %v5382 = vld [vmem:[%s4228 + $0x9c] sm:$0xe]
      %v5383 = vld [vmem:[%s4228 + $0xa8] sm:$0xe]
      %v5384 = vld [vmem:[%s4228 + $0xb4] sm:$0xe]
      %v5433 = vrot.slane %v5369, 5
      %v5434 = vrot.slane %v5433, 4
      %v5435 = vrot.slane %v4616, 5
      %v5436 = vsel %vm2155, %v5434, %v5435
      %v5437 = vrot.slane %v5435, 4
      %v5438 = vrot.slane %v4617, 5
      %v5439 = vsel %vm2155, %v5437, %v5438
      %v5440 = vrot.slane %v5370, 5
      %v5441 = vrot.slane %v5440, 4
      %v5442 = vrot.slane %v4619, 5
      %v5443 = vsel %vm2155, %v5441, %v5442
      %v5444 = vrot.slane %v5442, 4
      %v5445 = vrot.slane %v4620, 5
      %v5446 = vsel %vm2155, %v5444, %v5445
      %v5447 = vrot.slane %v5371, 5
      %v5448 = vrot.slane %v5447, 4
      %v5449 = vrot.slane %v4622, 5
      %v5450 = vsel %vm2155, %v5448, %v5449
      %v5451 = vrot.slane %v5449, 4
      %v5452 = vrot.slane %v4623, 5
      %v5453 = vsel %vm2155, %v5451, %v5452
      %v5454 = vrot.slane %v5372, 5
      %v5455 = vrot.slane %v5454, 4
      %v5456 = vrot.slane %v4625, 5
      %v5457 = vsel %vm2155, %v5455, %v5456
      %v5458 = vrot.slane %v5456, 4
      %v5459 = vrot.slane %v4626, 5
      %v5460 = vsel %vm2155, %v5458, %v5459
      %v5461 = vrot.slane %v5373, 5
      %v5462 = vrot.slane %v5461, 4
      %v5463 = vrot.slane %v4628, 5
      %v5464 = vsel %vm2155, %v5462, %v5463
      %v5465 = vrot.slane %v5463, 4
      %v5466 = vrot.slane %v4629, 5
      %v5467 = vsel %vm2155, %v5465, %v5466
      %v5468 = vrot.slane %v5374, 5
      %v5469 = vrot.slane %v5468, 4
      %v5470 = vrot.slane %v4631, 5
      %v5471 = vsel %vm2155, %v5469, %v5470
      %v5472 = vrot.slane %v5470, 4
      %v5473 = vrot.slane %v4632, 5
      %v5474 = vsel %vm2155, %v5472, %v5473
      %v5475 = vrot.slane %v5375, 5
      %v5476 = vrot.slane %v5475, 4
      %v5477 = vrot.slane %v4634, 5
      %v5478 = vsel %vm2155, %v5476, %v5477
      %v5479 = vrot.slane %v5477, 4
      %v5480 = vrot.slane %v4635, 5
      %v5481 = vsel %vm2155, %v5479, %v5480
      %v5482 = vrot.slane %v5376, 5
      %v5483 = vrot.slane %v5482, 4
      %v5484 = vrot.slane %v4637, 5
      %v5485 = vsel %vm2155, %v5483, %v5484
      %v5486 = vrot.slane %v5484, 4
      %v5487 = vrot.slane %v4638, 5
      %v5488 = vsel %vm2155, %v5486, %v5487
      %v5489 = vrot.slane %v5377, 5
      %v5490 = vrot.slane %v5489, 4
      %v5491 = vrot.slane %v4640, 5
      %v5492 = vsel %vm2155, %v5490, %v5491
      %v5493 = vrot.slane %v5491, 4
      %v5494 = vrot.slane %v4641, 5
      %v5495 = vsel %vm2155, %v5493, %v5494
      %v5496 = vrot.slane %v5378, 5
      %v5497 = vrot.slane %v5496, 4
      %v5498 = vrot.slane %v4643, 5
      %v5499 = vsel %vm2155, %v5497, %v5498
      %v5500 = vrot.slane %v5498, 4
      %v5501 = vrot.slane %v4644, 5
      %v5502 = vsel %vm2155, %v5500, %v5501
      %v5503 = vrot.slane %v5379, 5
      %v5504 = vrot.slane %v5503, 4
      %v5505 = vrot.slane %v4646, 5
      %v5506 = vsel %vm2155, %v5504, %v5505
      %v5507 = vrot.slane %v5505, 4
      %v5508 = vrot.slane %v4647, 5
      %v5509 = vsel %vm2155, %v5507, %v5508
      %v5510 = vrot.slane %v5380, 5
      %v5511 = vrot.slane %v5510, 4
      %v5512 = vrot.slane %v4649, 5
      %v5513 = vsel %vm2155, %v5511, %v5512
      %v5514 = vrot.slane %v5512, 4
      %v5515 = vrot.slane %v4650, 5
      %v5516 = vsel %vm2155, %v5514, %v5515
      %v5517 = vrot.slane %v5381, 5
      %v5518 = vrot.slane %v5517, 4
      %v5519 = vrot.slane %v4652, 5
      %v5520 = vsel %vm2155, %v5518, %v5519
      %v5521 = vrot.slane %v5519, 4
      %v5522 = vrot.slane %v4653, 5
      %v5523 = vsel %vm2155, %v5521, %v5522
      %v5524 = vrot.slane %v5382, 5
      %v5525 = vrot.slane %v5524, 4
      %v5526 = vrot.slane %v4655, 5
      %v5527 = vsel %vm2155, %v5525, %v5526
      %v5528 = vrot.slane %v5526, 4
      %v5529 = vrot.slane %v4656, 5
      %v5530 = vsel %vm2155, %v5528, %v5529
      %v5531 = vrot.slane %v5383, 5
      %v5532 = vrot.slane %v5531, 4
      %v5533 = vrot.slane %v4658, 5
      %v5534 = vsel %vm2155, %v5532, %v5533
      %v5535 = vrot.slane %v5533, 4
      %v5536 = vrot.slane %v4659, 5
      %v5537 = vsel %vm2155, %v5535, %v5536
      %v5538 = vrot.slane %v5384, 5
      %v5539 = vrot.slane %v5538, 4
      %v5540 = vrot.slane %v4661, 5
      %v5541 = vsel %vm2155, %v5539, %v5540
      %v5542 = vrot.slane %v5540, 4
      %v5543 = vrot.slane %v4662, 5
      %v5544 = vsel %vm2155, %v5542, %v5543
      %s5545 = scalar_lea.vmem %s4, 512
      %v5546 = vld [vmem:[%s5545] sm:$0xf]
      %v5547 = vld [vmem:[%s5545 + $0x4] sm:$0xf]
      %v5548 = vld [vmem:[%s5545 + $0x8] sm:$0xf]
      %v5549 = vld [vmem:[%s5545 + $0xc] sm:$0xf]
      %v5550 = vld [vmem:[%s5545 + $0x10] sm:$0xf]
      %v5551 = vld [vmem:[%s5545 + $0x14] sm:$0xf]
      %v5552 = vld [vmem:[%s5545 + $0x18] sm:$0xf]
      %v5553 = vld [vmem:[%s5545 + $0x1c] sm:$0xf]
      %v5554 = vld [vmem:[%s5545 + $0x20] sm:$0xf]
      %v5555 = vld [vmem:[%s5545 + $0x24] sm:$0xf]
      %v5556 = vld [vmem:[%s5545 + $0x28] sm:$0xf]
      %v5557 = vld [vmem:[%s5545 + $0x2c] sm:$0xf]
      %v5558 = vld [vmem:[%s5545 + $0x30] sm:$0xf]
      %v5559 = vld [vmem:[%s5545 + $0x34] sm:$0xf]
      %v5560 = vld [vmem:[%s5545 + $0x38] sm:$0xf]
      %v5561 = vld [vmem:[%s5545 + $0x3c] sm:$0xf]
      %v5562 = vunpack.c.l.b16 %v5436
      %v5563 = vunpack.c.l.b16 %v5439
      %v5564 = vunpack.c.l.b16 %v5443
      %v5565 = vunpack.c.l.b16 %v5446
      %v5566 = vunpack.c.l.b16 %v5450
      %v5567 = vunpack.c.l.b16 %v5453
      %v5568 = vunpack.c.l.b16 %v5457
      %v5569 = vunpack.c.l.b16 %v5460
      %v5570 = vunpack.c.l.b16 %v5464
      %v5571 = vunpack.c.l.b16 %v5467
      %v5572 = vunpack.c.l.b16 %v5471
      %v5573 = vunpack.c.l.b16 %v5474
      %v5574 = vunpack.c.l.b16 %v5478
      %v5575 = vunpack.c.l.b16 %v5481
      %v5576 = vunpack.c.l.b16 %v5485
      %v5577 = vunpack.c.l.b16 %v5488
      %v5578 = vunpack.c.l.b16 %v5492
      %v5579 = vunpack.c.l.b16 %v5495
      %v5580 = vunpack.c.l.b16 %v5499
      %v5581 = vunpack.c.l.b16 %v5502
      %v5582 = vunpack.c.l.b16 %v5506
      %v5583 = vunpack.c.l.b16 %v5509
      %v5584 = vunpack.c.l.b16 %v5513
      %v5585 = vunpack.c.l.b16 %v5516
      %v5586 = vunpack.c.l.b16 %v5520
      %v5587 = vunpack.c.l.b16 %v5523
      %v5588 = vunpack.c.l.b16 %v5527
      %v5589 = vunpack.c.l.b16 %v5530
      %v5590 = vunpack.c.l.b16 %v5534
      %v5591 = vunpack.c.l.b16 %v5537
      %v5592 = vunpack.c.l.b16 %v5541
      %v5593 = vunpack.c.l.b16 %v5544
      %v5594 = vpack.c.b16 %v5563, %v5562
      %v5595 = vpack.c.b16 %v5565, %v5564
      %v5596 = vpack.c.b16 %v5567, %v5566
      %v5597 = vpack.c.b16 %v5569, %v5568
      %v5598 = vpack.c.b16 %v5571, %v5570
      %v5599 = vpack.c.b16 %v5573, %v5572
      %v5600 = vpack.c.b16 %v5575, %v5574
      %v5601 = vpack.c.b16 %v5577, %v5576
      %v5602 = vpack.c.b16 %v5579, %v5578
      %v5603 = vpack.c.b16 %v5581, %v5580
      %v5604 = vpack.c.b16 %v5583, %v5582
      %v5605 = vpack.c.b16 %v5585, %v5584
      %v5606 = vpack.c.b16 %v5587, %v5586
      %v5607 = vpack.c.b16 %v5589, %v5588
      %v5608 = vpack.c.b16 %v5591, %v5590
      %v5609 = vpack.c.b16 %v5593, %v5592
      %v5642 = vunpack.c.l.b16 %v5546
      %v5643 = vunpack.c.l.b16 %v5547
      %v5644 = vunpack.c.l.b16 %v5548
      %v5645 = vunpack.c.l.b16 %v5549
      %v5646 = vunpack.c.l.b16 %v5550
      %v5647 = vunpack.c.l.b16 %v5551
      %v5648 = vunpack.c.l.b16 %v5552
      %v5649 = vunpack.c.l.b16 %v5553
      %v5650 = vunpack.c.l.b16 %v5554
      %v5651 = vunpack.c.l.b16 %v5555
      %v5652 = vunpack.c.l.b16 %v5556
      %v5653 = vunpack.c.l.b16 %v5557
      %v5654 = vunpack.c.l.b16 %v5558
      %v5655 = vunpack.c.l.b16 %v5559
      %v5656 = vunpack.c.l.b16 %v5560
      %v5657 = vunpack.c.l.b16 %v5561
      %v5658 = vpack.c.b16 %v5643, %v5642
      %v5659 = vpack.c.b16 %v5645, %v5644
      %v5660 = vpack.c.b16 %v5647, %v5646
      %v5661 = vpack.c.b16 %v5649, %v5648
      %v5662 = vpack.c.b16 %v5651, %v5650
      %v5663 = vpack.c.b16 %v5653, %v5652
      %v5664 = vpack.c.b16 %v5655, %v5654
      %v5665 = vpack.c.b16 %v5657, %v5656
      %5674 = vmatprep.subr.bf16.mxu0 0
      %5675 = vmatpush1.bf16.msra.mxu0 %v5658
      %5676 = vmatprep.subr.bf16.mxu0 0
      %5677 = vmatpush1.bf16.msra.mxu0 %v5659
      %5678 = vmatprep.subr.bf16.mxu0 0
      %5679 = vmatpush1.bf16.msra.mxu0 %v5660
      %5680 = vmatprep.subr.bf16.mxu0 0
      %5681 = vmatpush1.bf16.msra.mxu0 %v5661
      %5682 = vmatprep.subr.bf16.mxu0 0
      %5683 = vmatpush1.bf16.msra.mxu0 %v5662
      %5684 = vmatprep.subr.bf16.mxu0 0
      %5685 = vmatpush1.bf16.msra.mxu0 %v5663
      %5686 = vmatprep.subr.bf16.mxu0 0
      %5687 = vmatpush1.bf16.msra.mxu0 %v5664
      %5688 = vmatprep.subr.bf16.mxu0 0
      %5689 = vmatpush1.bf16.msra.mxu0 %v5665
      %5690 = vmatprep.subr.bf16.mxu0 0
      %5691 = vmatpush1.bf16.msra.mxu0 0
      %5692 = vmatprep.subr.bf16.mxu0 0
      %5693 = vmatpush1.bf16.msra.mxu0 0
      %5694 = vmatprep.subr.bf16.mxu0 0
      %5695 = vmatpush1.bf16.msra.mxu0 0
      %5696 = vmatprep.subr.bf16.mxu0 0
      %5697 = vmatpush1.bf16.msra.mxu0 0
      %5698 = vmatprep.subr.bf16.mxu0 0
      %5699 = vmatpush1.bf16.msra.mxu0 0
      %5700 = vmatprep.subr.bf16.mxu0 0
      %5701 = vmatpush1.bf16.msra.mxu0 0
      %5702 = vmatprep.subr.bf16.mxu0 0
      %5703 = vmatpush1.bf16.msra.mxu0 0
      %5704 = vmatprep.subr.bf16.mxu0 0
      %5705 = vmatpush1.bf16.msra.mxu0 0
      %5706 = vmatprep.mubr.bf16.mxu0 0
      %5707 = vmatmul.mubr.bf16.gmra.mrb[0].mxu0 %v5594
      %v5708 = vpop.f32.mrb[0].mxu0
      %v5709 = vadd.f32 0.0, %v5708
      %v5710 = vpop.f32.mrb[0].mxu0
      %v5711 = vpop.f32.mrb[0].mxu0
      %v5712 = vadd.f32 0.0, %v5711
      %v5713 = vpop.f32.mrb[0].mxu0
      %5714 = vmatprep.mubr.bf16.mxu0 0
      %5715 = vmatmul.mubr.bf16.gmra.mrb[0].mxu0 %v5595
      %v5716 = vpop.f32.mrb[0].mxu0
      %v5717 = vadd.f32 0.0, %v5716
      %v5718 = vpop.f32.mrb[0].mxu0
      %v5719 = vpop.f32.mrb[0].mxu0
      %v5720 = vadd.f32 0.0, %v5719
      %v5721 = vpop.f32.mrb[0].mxu0
      %5722 = vmatprep.mubr.bf16.mxu0 0
      %5723 = vmatmul.mubr.bf16.gmra.mrb[0].mxu0 %v5596
      %v5724 = vpop.f32.mrb[0].mxu0
      %v5725 = vadd.f32 0.0, %v5724
      %v5726 = vpop.f32.mrb[0].mxu0
      %v5727 = vpop.f32.mrb[0].mxu0
      %v5728 = vadd.f32 0.0, %v5727
      %v5729 = vpop.f32.mrb[0].mxu0
      %5730 = vmatprep.mubr.bf16.mxu0 0
      %5731 = vmatmul.mubr.bf16.gmra.mrb[0].mxu0 %v5597
      %v5732 = vpop.f32.mrb[0].mxu0
      %v5733 = vadd.f32 0.0, %v5732
      %v5734 = vpop.f32.mrb[0].mxu0
      %v5735 = vpop.f32.mrb[0].mxu0
      %v5736 = vadd.f32 0.0, %v5735
      %v5737 = vpop.f32.mrb[0].mxu0
      %5738 = vmatprep.mubr.bf16.mxu0 0
      %5739 = vmatmul.mubr.bf16.gmra.mrb[0].mxu0 %v5598
      %v5740 = vpop.f32.mrb[0].mxu0
      %v5741 = vadd.f32 0.0, %v5740
      %v5742 = vpop.f32.mrb[0].mxu0
      %v5743 = vpop.f32.mrb[0].mxu0
      %v5744 = vadd.f32 0.0, %v5743
      %v5745 = vpop.f32.mrb[0].mxu0
      %5746 = vmatprep.mubr.bf16.mxu0 0
      %5747 = vmatmul.mubr.bf16.gmra.mrb[0].mxu0 %v5599
      %v5748 = vpop.f32.mrb[0].mxu0
      %v5749 = vadd.f32 0.0, %v5748
      %v5750 = vpop.f32.mrb[0].mxu0
      %v5751 = vpop.f32.mrb[0].mxu0
      %v5752 = vadd.f32 0.0, %v5751
      %v5753 = vpop.f32.mrb[0].mxu0
      %5754 = vmatprep.mubr.bf16.mxu0 0
      %5755 = vmatmul.mubr.bf16.gmra.mrb[0].mxu0 %v5600
      %v5756 = vpop.f32.mrb[0].mxu0
      %v5757 = vadd.f32 0.0, %v5756
      %v5758 = vpop.f32.mrb[0].mxu0
      %v5759 = vpop.f32.mrb[0].mxu0
      %v5760 = vadd.f32 0.0, %v5759
      %v5761 = vpop.f32.mrb[0].mxu0
      %5762 = vmatprep.mubr.bf16.mxu0 0
      %5763 = vmatmul.mubr.bf16.gmra.mrb[0].mxu0 %v5601
      %v5764 = vpop.f32.mrb[0].mxu0
      %v5765 = vadd.f32 0.0, %v5764
      %v5766 = vpop.f32.mrb[0].mxu0
      %v5767 = vpop.f32.mrb[0].mxu0
      %v5768 = vadd.f32 0.0, %v5767
      %v5769 = vpop.f32.mrb[0].mxu0
      %5770 = vmatprep.mubr.bf16.mxu0 0
      %5771 = vmatmul.mubr.bf16.gmra.mrb[0].mxu0 %v5602
      %v5772 = vpop.f32.mrb[0].mxu0
      %v5773 = vadd.f32 0.0, %v5772
      %v5774 = vpop.f32.mrb[0].mxu0
      %v5775 = vpop.f32.mrb[0].mxu0
      %v5776 = vadd.f32 0.0, %v5775
      %v5777 = vpop.f32.mrb[0].mxu0
      %5778 = vmatprep.mubr.bf16.mxu0 0
      %5779 = vmatmul.mubr.bf16.gmra.mrb[0].mxu0 %v5603
      %v5780 = vpop.f32.mrb[0].mxu0
      %v5781 = vadd.f32 0.0, %v5780
      %v5782 = vpop.f32.mrb[0].mxu0
      %v5783 = vpop.f32.mrb[0].mxu0
      %v5784 = vadd.f32 0.0, %v5783
      %v5785 = vpop.f32.mrb[0].mxu0
      %5786 = vmatprep.mubr.bf16.mxu0 0
      %5787 = vmatmul.mubr.bf16.gmra.mrb[0].mxu0 %v5604
      %v5788 = vpop.f32.mrb[0].mxu0
      %v5789 = vadd.f32 0.0, %v5788
      %v5790 = vpop.f32.mrb[0].mxu0
      %v5791 = vpop.f32.mrb[0].mxu0
      %v5792 = vadd.f32 0.0, %v5791
      %v5793 = vpop.f32.mrb[0].mxu0
      %5794 = vmatprep.mubr.bf16.mxu0 0
      %5795 = vmatmul.mubr.bf16.gmra.mrb[0].mxu0 %v5605
      %v5796 = vpop.f32.mrb[0].mxu0
      %v5797 = vadd.f32 0.0, %v5796
      %v5798 = vpop.f32.mrb[0].mxu0
      %v5799 = vpop.f32.mrb[0].mxu0
      %v5800 = vadd.f32 0.0, %v5799
      %v5801 = vpop.f32.mrb[0].mxu0
      %5802 = vmatprep.mubr.bf16.mxu0 0
      %5803 = vmatmul.mubr.bf16.gmra.mrb[0].mxu0 %v5606
      %v5804 = vpop.f32.mrb[0].mxu0
      %v5805 = vadd.f32 0.0, %v5804
      %v5806 = vpop.f32.mrb[0].mxu0
      %v5807 = vpop.f32.mrb[0].mxu0
      %v5808 = vadd.f32 0.0, %v5807
      %v5809 = vpop.f32.mrb[0].mxu0
      %5810 = vmatprep.mubr.bf16.mxu0 0
      %5811 = vmatmul.mubr.bf16.gmra.mrb[0].mxu0 %v5607
      %v5812 = vpop.f32.mrb[0].mxu0
      %v5813 = vadd.f32 0.0, %v5812
      %v5814 = vpop.f32.mrb[0].mxu0
      %v5815 = vpop.f32.mrb[0].mxu0
      %v5816 = vadd.f32 0.0, %v5815
      %v5817 = vpop.f32.mrb[0].mxu0
      %5818 = vmatprep.mubr.bf16.mxu0 0
      %5819 = vmatmul.mubr.bf16.gmra.mrb[0].mxu0 %v5608
      %v5820 = vpop.f32.mrb[0].mxu0
      %v5821 = vadd.f32 0.0, %v5820
      %v5822 = vpop.f32.mrb[0].mxu0
      %v5823 = vpop.f32.mrb[0].mxu0
      %v5824 = vadd.f32 0.0, %v5823
      %v5825 = vpop.f32.mrb[0].mxu0
      %5826 = vmatprep.mubr.bf16.mxu0 0
      %5827 = vmatmul.mubr.bf16.gmra.mrb[0].mxu0 %v5609
      %v5828 = vpop.f32.mrb[0].mxu0
      %v5829 = vadd.f32 0.0, %v5828
      %v5830 = vpop.f32.mrb[0].mxu0
      %v5831 = vpop.f32.mrb[0].mxu0
      %v5832 = vadd.f32 0.0, %v5831
      %v5833 = vpop.f32.mrb[0].mxu0
      %5834 = vdwg.mxu0
      %v5835 = vadd.f32 %v5337, %v5709
      %v5836 = vadd.f32 %v5338, %v5712
      %v5837 = vadd.f32 %v5339, %v5717
      %v5838 = vadd.f32 %v5340, %v5720
      %v5839 = vadd.f32 %v5341, %v5725
      %v5840 = vadd.f32 %v5342, %v5728
      %v5841 = vadd.f32 %v5343, %v5733
      %v5842 = vadd.f32 %v5344, %v5736
      %v5843 = vadd.f32 %v5345, %v5741
      %v5844 = vadd.f32 %v5346, %v5744
      %v5845 = vadd.f32 %v5347, %v5749
      %v5846 = vadd.f32 %v5348, %v5752
      %v5847 = vadd.f32 %v5349, %v5757
      %v5848 = vadd.f32 %v5350, %v5760
      %v5849 = vadd.f32 %v5351, %v5765
      %v5850 = vadd.f32 %v5352, %v5768
      %v5851 = vadd.f32 %v5353, %v5773
      %v5852 = vadd.f32 %v5354, %v5776
      %v5853 = vadd.f32 %v5355, %v5781
      %v5854 = vadd.f32 %v5356, %v5784
      %v5855 = vadd.f32 %v5357, %v5789
      %v5856 = vadd.f32 %v5358, %v5792
      %v5857 = vadd.f32 %v5359, %v5797
      %v5858 = vadd.f32 %v5360, %v5800
      %v5859 = vadd.f32 %v5361, %v5805
      %v5860 = vadd.f32 %v5362, %v5808
      %v5861 = vadd.f32 %v5363, %v5813
      %v5862 = vadd.f32 %v5364, %v5816
      %v5863 = vadd.f32 %v5365, %v5821
      %v5864 = vadd.f32 %v5366, %v5824
      %v5865 = vadd.f32 %v5367, %v5829
      %v5866 = vadd.f32 %v5368, %v5832
      %v5867 = vpack.c.bf16 %v5836, %v5835
      %v5868 = vpack.c.bf16 %v5838, %v5837
      %v5869 = vpack.c.bf16 %v5840, %v5839
      %v5870 = vpack.c.bf16 %v5842, %v5841
      %v5871 = vpack.c.bf16 %v5844, %v5843
      %v5872 = vpack.c.bf16 %v5846, %v5845
      %v5873 = vpack.c.bf16 %v5848, %v5847
      %v5874 = vpack.c.bf16 %v5850, %v5849
      %v5875 = vpack.c.bf16 %v5852, %v5851
      %v5876 = vpack.c.bf16 %v5854, %v5853
      %v5877 = vpack.c.bf16 %v5856, %v5855
      %v5878 = vpack.c.bf16 %v5858, %v5857
      %v5879 = vpack.c.bf16 %v5860, %v5859
      %v5880 = vpack.c.bf16 %v5862, %v5861
      %v5881 = vpack.c.bf16 %v5864, %v5863
      %v5882 = vpack.c.bf16 %v5866, %v5865
      %v5899 = vunpack.c.l.b16 %v5867
      %v5900 = vunpack.c.h.b16 %v5867
      %v5901 = vunpack.c.l.b16 %v5868
      %v5902 = vunpack.c.h.b16 %v5868
      %v5903 = vunpack.c.l.b16 %v5869
      %v5904 = vunpack.c.h.b16 %v5869
      %v5905 = vunpack.c.l.b16 %v5870
      %v5906 = vunpack.c.h.b16 %v5870
      %v5907 = vunpack.c.l.b16 %v5871
      %v5908 = vunpack.c.h.b16 %v5871
      %v5909 = vunpack.c.l.b16 %v5872
      %v5910 = vunpack.c.h.b16 %v5872
      %v5911 = vunpack.c.l.b16 %v5873
      %v5912 = vunpack.c.h.b16 %v5873
      %v5913 = vunpack.c.l.b16 %v5874
      %v5914 = vunpack.c.h.b16 %v5874
      %v5915 = vunpack.c.l.b16 %v5875
      %v5916 = vunpack.c.h.b16 %v5875
      %v5917 = vunpack.c.l.b16 %v5876
      %v5918 = vunpack.c.h.b16 %v5876
      %v5919 = vunpack.c.l.b16 %v5877
      %v5920 = vunpack.c.h.b16 %v5877
      %v5921 = vunpack.c.l.b16 %v5878
      %v5922 = vunpack.c.h.b16 %v5878
      %v5923 = vunpack.c.l.b16 %v5879
      %v5924 = vunpack.c.h.b16 %v5879
      %v5925 = vunpack.c.l.b16 %v5880
      %v5926 = vunpack.c.h.b16 %v5880
      %v5927 = vunpack.c.l.b16 %v5881
      %v5928 = vunpack.c.h.b16 %v5881
      %v5929 = vunpack.c.l.b16 %v5882
      %v5930 = vunpack.c.h.b16 %v5882
      %v5931 = vpack.c.b16 %v5899, %v5899
      %v5932 = vpack.c.b16 %v5900, %v5900
      %v5933 = vpack.c.b16 %v5901, %v5901
      %v5934 = vpack.c.b16 %v5902, %v5902
      %v5935 = vpack.c.b16 %v5903, %v5903
      %v5936 = vpack.c.b16 %v5904, %v5904
      %v5937 = vpack.c.b16 %v5905, %v5905
      %v5938 = vpack.c.b16 %v5906, %v5906
      %v5939 = vpack.c.b16 %v5907, %v5907
      %v5940 = vpack.c.b16 %v5908, %v5908
      %v5941 = vpack.c.b16 %v5909, %v5909
      %v5942 = vpack.c.b16 %v5910, %v5910
      %v5943 = vpack.c.b16 %v5911, %v5911
      %v5944 = vpack.c.b16 %v5912, %v5912
      %v5945 = vpack.c.b16 %v5913, %v5913
      %v5946 = vpack.c.b16 %v5914, %v5914
      %v5947 = vpack.c.b16 %v5915, %v5915
      %v5948 = vpack.c.b16 %v5916, %v5916
      %v5949 = vpack.c.b16 %v5917, %v5917
      %v5950 = vpack.c.b16 %v5918, %v5918
      %v5951 = vpack.c.b16 %v5919, %v5919
      %v5952 = vpack.c.b16 %v5920, %v5920
      %v5953 = vpack.c.b16 %v5921, %v5921
      %v5954 = vpack.c.b16 %v5922, %v5922
      %v5955 = vpack.c.b16 %v5923, %v5923
      %v5956 = vpack.c.b16 %v5924, %v5924
      %v5957 = vpack.c.b16 %v5925, %v5925
      %v5958 = vpack.c.b16 %v5926, %v5926
      %v5959 = vpack.c.b16 %v5927, %v5927
      %v5960 = vpack.c.b16 %v5928, %v5928
      %v5961 = vpack.c.b16 %v5929, %v5929
      %v5962 = vpack.c.b16 %v5930, %v5930
      %5995 = vst [vmem:[%s258] sm:$0xf] %v5931
      %5996 = vst [vmem:[%s258 + $0x4] sm:$0xf] %v5932
      %5997 = vst [vmem:[%s258 + $0x8] sm:$0xf] %v5933
      %5998 = vst [vmem:[%s258 + $0xc] sm:$0xf] %v5934
      %5999 = vst [vmem:[%s258 + $0x10] sm:$0xf] %v5935
      %6000 = vst [vmem:[%s258 + $0x14] sm:$0xf] %v5936
      %6001 = vst [vmem:[%s258 + $0x18] sm:$0xf] %v5937
      %6002 = vst [vmem:[%s258 + $0x1c] sm:$0xf] %v5938
      %6003 = vst [vmem:[%s258 + $0x20] sm:$0xf] %v5939
      %6004 = vst [vmem:[%s258 + $0x24] sm:$0xf] %v5940
      %6005 = vst [vmem:[%s258 + $0x28] sm:$0xf] %v5941
      %6006 = vst [vmem:[%s258 + $0x2c] sm:$0xf] %v5942
      %6007 = vst [vmem:[%s258 + $0x30] sm:$0xf] %v5943
      %6008 = vst [vmem:[%s258 + $0x34] sm:$0xf] %v5944
      %6009 = vst [vmem:[%s258 + $0x38] sm:$0xf] %v5945
      %6010 = vst [vmem:[%s258 + $0x3c] sm:$0xf] %v5946
      %6011 = vst [vmem:[%s258 + $0x40] sm:$0xf] %v5947
      %6012 = vst [vmem:[%s258 + $0x44] sm:$0xf] %v5948
      %6013 = vst [vmem:[%s258 + $0x48] sm:$0xf] %v5949
      %6014 = vst [vmem:[%s258 + $0x4c] sm:$0xf] %v5950
      %6015 = vst [vmem:[%s258 + $0x50] sm:$0xf] %v5951
      %6016 = vst [vmem:[%s258 + $0x54] sm:$0xf] %v5952
      %6017 = vst [vmem:[%s258 + $0x58] sm:$0xf] %v5953
      %6018 = vst [vmem:[%s258 + $0x5c] sm:$0xf] %v5954
      %6019 = vst [vmem:[%s258 + $0x60] sm:$0xf] %v5955
      %6020 = vst [vmem:[%s258 + $0x64] sm:$0xf] %v5956
      %6021 = vst [vmem:[%s258 + $0x68] sm:$0xf] %v5957
      %6022 = vst [vmem:[%s258 + $0x6c] sm:$0xf] %v5958
      %6023 = vst [vmem:[%s258 + $0x70] sm:$0xf] %v5959
      %6024 = vst [vmem:[%s258 + $0x74] sm:$0xf] %v5960
      %6025 = vst [vmem:[%s258 + $0x78] sm:$0xf] %v5961
      %6026 = vst [vmem:[%s258 + $0x7c] sm:$0xf] %v5962
      %v6027 = vunpack.c.l.bf16 %v5867
      %v6028 = vunpack.c.h.bf16 %v5867
      %v6029 = vunpack.c.l.bf16 %v5868
      %v6030 = vunpack.c.h.bf16 %v5868
      %v6031 = vunpack.c.l.bf16 %v5869
      %v6032 = vunpack.c.h.bf16 %v5869
      %v6033 = vunpack.c.l.bf16 %v5870
      %v6034 = vunpack.c.h.bf16 %v5870
      %v6035 = vunpack.c.l.bf16 %v5871
      %v6036 = vunpack.c.h.bf16 %v5871
      %v6037 = vunpack.c.l.bf16 %v5872
      %v6038 = vunpack.c.h.bf16 %v5872
      %v6039 = vunpack.c.l.bf16 %v5873
      %v6040 = vunpack.c.h.bf16 %v5873
      %v6041 = vunpack.c.l.bf16 %v5874
      %v6042 = vunpack.c.h.bf16 %v5874
      %v6043 = vunpack.c.l.bf16 %v5875
      %v6044 = vunpack.c.h.bf16 %v5875
      %v6045 = vunpack.c.l.bf16 %v5876
      %v6046 = vunpack.c.h.bf16 %v5876
      %v6047 = vunpack.c.l.bf16 %v5877
      %v6048 = vunpack.c.h.bf16 %v5877
      %v6049 = vunpack.c.l.bf16 %v5878
      %v6050 = vunpack.c.h.bf16 %v5878
      %v6051 = vunpack.c.l.bf16 %v5879
      %v6052 = vunpack.c.h.bf16 %v5879
      %v6053 = vunpack.c.l.bf16 %v5880
      %v6054 = vunpack.c.h.bf16 %v5880
      %v6055 = vunpack.c.l.bf16 %v5881
      %v6056 = vunpack.c.h.bf16 %v5881
      %v6057 = vunpack.c.l.bf16 %v5882
      %v6058 = vunpack.c.h.bf16 %v5882
      %v6059 = vadd.f32 %v6027, %v6028
      %v6060 = vadd.f32 %v6059, %v6029
      %v6061 = vadd.f32 %v6060, %v6030
      %v6062 = vadd.f32 %v6061, %v6031
      %v6063 = vadd.f32 %v6062, %v6032
      %v6064 = vadd.f32 %v6063, %v6033
      %v6065 = vadd.f32 %v6064, %v6034
      %v6066 = vadd.f32 %v6065, %v6035
      %v6067 = vadd.f32 %v6066, %v6036
      %v6068 = vadd.f32 %v6067, %v6037
      %v6069 = vadd.f32 %v6068, %v6038
      %v6070 = vadd.f32 %v6069, %v6039
      %v6071 = vadd.f32 %v6070, %v6040
      %v6072 = vadd.f32 %v6071, %v6041
      %v6073 = vadd.f32 %v6072, %v6042
      %v6074 = vadd.f32 %v6073, %v6043
      %v6075 = vadd.f32 %v6074, %v6044
      %v6076 = vadd.f32 %v6075, %v6045
      %v6077 = vadd.f32 %v6076, %v6046
      %v6078 = vadd.f32 %v6077, %v6047
      %v6079 = vadd.f32 %v6078, %v6048
      %v6080 = vadd.f32 %v6079, %v6049
      %v6081 = vadd.f32 %v6080, %v6050
      %v6082 = vadd.f32 %v6081, %v6051
      %v6083 = vadd.f32 %v6082, %v6052
      %v6084 = vadd.f32 %v6083, %v6053
      %v6085 = vadd.f32 %v6084, %v6054
      %v6086 = vadd.f32 %v6085, %v6055
      %v6087 = vadd.f32 %v6086, %v6056
      %v6088 = vadd.f32 %v6087, %v6057
      %v6089 = vadd.f32 %v6088, %v6058
      %v6090 = vrot.slane %v6089, 4
      %v6091 = vadd.f32 %v6089, %v6090
      %v6092 = vrot.slane %v6091, 2
      %v6093 = vadd.f32 %v6091, %v6092
      %v6094 = vrot.slane %v6093, 1
      %v6095 = vadd.f32 %v6093, %v6094
      %v6096 = vmul.f32 %v6027, %v6027
      %v6097 = vmul.f32 %v6028, %v6028
      %v6098 = vmul.f32 %v6029, %v6029
      %v6099 = vmul.f32 %v6030, %v6030
      %v6100 = vmul.f32 %v6031, %v6031
      %v6101 = vmul.f32 %v6032, %v6032
      %v6102 = vmul.f32 %v6033, %v6033
      %v6103 = vmul.f32 %v6034, %v6034
      %v6104 = vmul.f32 %v6035, %v6035
      %v6105 = vmul.f32 %v6036, %v6036
      %v6106 = vmul.f32 %v6037, %v6037
      %v6107 = vmul.f32 %v6038, %v6038
      %v6108 = vmul.f32 %v6039, %v6039
      %v6109 = vmul.f32 %v6040, %v6040
      %v6110 = vmul.f32 %v6041, %v6041
      %v6111 = vmul.f32 %v6042, %v6042
      %v6112 = vmul.f32 %v6043, %v6043
      %v6113 = vmul.f32 %v6044, %v6044
      %v6114 = vmul.f32 %v6045, %v6045
      %v6115 = vmul.f32 %v6046, %v6046
      %v6116 = vmul.f32 %v6047, %v6047
      %v6117 = vmul.f32 %v6048, %v6048
      %v6118 = vmul.f32 %v6049, %v6049
      %v6119 = vmul.f32 %v6050, %v6050
      %v6120 = vmul.f32 %v6051, %v6051
      %v6121 = vmul.f32 %v6052, %v6052
      %v6122 = vmul.f32 %v6053, %v6053
      %v6123 = vmul.f32 %v6054, %v6054
      %v6124 = vmul.f32 %v6055, %v6055
      %v6125 = vmul.f32 %v6056, %v6056
      %v6126 = vmul.f32 %v6057, %v6057
      %v6127 = vmul.f32 %v6058, %v6058
      %v6128 = vadd.f32 %v6096, %v6097
      %v6129 = vadd.f32 %v6128, %v6098
      %v6130 = vadd.f32 %v6129, %v6099
      %v6131 = vadd.f32 %v6130, %v6100
      %v6132 = vadd.f32 %v6131, %v6101
      %v6133 = vadd.f32 %v6132, %v6102
      %v6134 = vadd.f32 %v6133, %v6103
      %v6135 = vadd.f32 %v6134, %v6104
      %v6136 = vadd.f32 %v6135, %v6105
      %v6137 = vadd.f32 %v6136, %v6106
      %v6138 = vadd.f32 %v6137, %v6107
      %v6139 = vadd.f32 %v6138, %v6108
      %v6140 = vadd.f32 %v6139, %v6109
      %v6141 = vadd.f32 %v6140, %v6110
      %v6142 = vadd.f32 %v6141, %v6111
      %v6143 = vadd.f32 %v6142, %v6112
      %v6144 = vadd.f32 %v6143, %v6113
      %v6145 = vadd.f32 %v6144, %v6114
      %v6146 = vadd.f32 %v6145, %v6115
      %v6147 = vadd.f32 %v6146, %v6116
      %v6148 = vadd.f32 %v6147, %v6117
      %v6149 = vadd.f32 %v6148, %v6118
      %v6150 = vadd.f32 %v6149, %v6119
      %v6151 = vadd.f32 %v6150, %v6120
      %v6152 = vadd.f32 %v6151, %v6121
      %v6153 = vadd.f32 %v6152, %v6122
      %v6154 = vadd.f32 %v6153, %v6123
      %v6155 = vadd.f32 %v6154, %v6124
      %v6156 = vadd.f32 %v6155, %v6125
      %v6157 = vadd.f32 %v6156, %v6126
      %v6158 = vadd.f32 %v6157, %v6127
      %v6159 = vrot.slane %v6158, 4
      %v6160 = vadd.f32 %v6158, %v6159
      %v6161 = vrot.slane %v6160, 2
      %v6162 = vadd.f32 %v6160, %v6161
      %v6163 = vrot.slane %v6162, 1
      %v6164 = vadd.f32 %v6162, %v6163
      %vm6165 = vcmask 1040384
      %v6166 = vsel %vm6165, %v6095, %v6164
      %6167 = vst [vmem:[%s262] sm:$0x3] %v6166
      %p6168 = scmp.lt.s32.totalorder %s18, 1
      %s6169 = scalar_select %p6168, %s18, 1
      %s6170 = smul.addr %s6169, 32
      %s6171 = smul.addr %s6170, 4
      %s6172 = scalar_lea.vmem %s5, %s6171
      %p6173 = scmp.lt.s32.totalorder %s18, 1
      %s6174 = scalar_select %p6173, %s18, 1
      %s6175 = smul.addr %s6174, 2
      %s6176 = scalar_lea.vmem %s6, %s6175
      // Predicated region
      $region41: #{coarse_feature_extractor.5} parent=39 // pred_check
        %p6177 = pneg %p146
      $region42: #{coarse_feature_extractor.5} parent=39 // pred_check_branch
        %6179 = sbr.rel (%p6177) target = $region44
      $region43: #{coarse_feature_extractor.5} parent=39 // pred_region
        _
      $region44: #{coarse_feature_extractor.5} parent=39 // pred_fallthru
        _
      // Predicated region
      $region45: #{coarse_feature_extractor.5} parent=39 // pred_check
        %p6180 = pneg %p172
      $region46: #{coarse_feature_extractor.5} parent=39 // pred_check_branch
        %6182 = sbr.rel (%p6180) target = $region48
      $region47: #{coarse_feature_extractor.5} parent=39 // pred_region
        _
      $region48: #{coarse_feature_extractor.5} parent=39 // pred_fallthru
        _
    $region40: #{coarse_feature_extractor.5} parent=5 // pred_fallthru
      _
    %p6183 = scmp.le.s32.totalorder 2, %s13
    // Predicated region
    $region49: #{coarse_feature_extractor.5} parent=5 // pred_check
      %p6184 = pneg %p6183
    $region50: #{coarse_feature_extractor.5} parent=5 // pred_check_branch
      %6186 = sbr.rel (%p6184) target = $region52
    $region51: #{coarse_feature_extractor.5} parent=5 // pred_region
      %s6187 = ssub.s32 %s13, 2
      // Predicated region
      $region53: #{coarse_feature_extractor.5} parent=51 // pred_check
        %p6188 = pneg %p152
      $region54: #{coarse_feature_extractor.5} parent=51 // pred_check_branch
        %6190 = sbr.rel (%p6188) target = $region56
      $region55: #{coarse_feature_extractor.5} parent=51 // pred_region
        %p6191 = scmp.lt.s32.totalorder %s19, 1
        %s6192 = scalar_select %p6191, %s19, 1
        %s6193 = smul.addr %s6192, 32
        %s6194 = smul.addr %s6193, 4
        %s6195 = scalar_lea.vmem %s5, %s6194
      $region56: #{coarse_feature_extractor.5} parent=51 // pred_fallthru
        _
      // Predicated region
      $region57: #{coarse_feature_extractor.5} parent=51 // pred_check
        %p6196 = pneg %p178
      $region58: #{coarse_feature_extractor.5} parent=51 // pred_check_branch
        %6198 = sbr.rel (%p6196) target = $region60
      $region59: #{coarse_feature_extractor.5} parent=51 // pred_region
        %p6199 = scmp.lt.s32.totalorder %s19, 1
        %s6200 = scalar_select %p6199, %s19, 1
        %s6201 = smul.addr %s6200, 2
        %s6202 = scalar_lea.vmem %s6, %s6201
      $region60: #{coarse_feature_extractor.5} parent=51 // pred_fallthru
        _
    $region52: #{coarse_feature_extractor.5} parent=5 // pred_fallthru
      _
  $region6: #{coarse_feature_extractor.5} parent=0 // loop_footer
    %s17 = sadd.s32 1, %s13
  $region7: #{coarse_feature_extractor.5} parent=0 // loop_footer_branch
    %12 = sbr.rel target = $region3
  $region8: #{coarse_feature_extractor.5} parent=0 // loop_exit
    _

</llo_original>
